<compile_context>
chip_gen: v5e
topology: v5e:2x2
jax: 0.10.0
libtpu: 0.0.40
codegen_flags: <defaults>
</compile_context>

<pallas_src>
import functools
import math

import jax
import jax.numpy as jnp
from jax.experimental import pallas as pl
from jax.experimental.pallas import tpu as pltpu


# ----------------------------------------------------------------------------
# Fused RCAB kernel (one grid step == Nb images)
# ----------------------------------------------------------------------------
def _rcab_kernel(x_ref, w1_ref, b1_ref, w2_ref, b2_ref,
                 wd_ref, bd_ref, wu_ref, bu_ref, o_ref, pad_ref, col_ref):
    Nb, H, W, C = x_ref.shape
    HW = H * W
    M = Nb * HW

    # ---- zero only the 1-pixel border of the f32 halo scratch ----
    zrow = jnp.zeros((Nb, 1, W + 2, C), jnp.float32)
    zcol = jnp.zeros((Nb, H + 2, 1, C), jnp.float32)
    pad_ref[:, 0:1, :, :] = zrow
    pad_ref[:, H + 1:H + 2, :, :] = zrow
    pad_ref[:, :, 0:1, :] = zcol
    pad_ref[:, :, W + 1:W + 2, :] = zcol

    # interior <- x (f32)
    pad_ref[:, 1:H + 1, 1:W + 1, :] = x_ref[...]

    def conv3x3(w_ref, b_ref):
        # im2col in VMEM: tap (kh,kw) goes to lane columns [t*C, (t+1)*C).
        # Ordering (tap-major, then channel) matches the (9*C, C) weights.
        for kh in range(3):
            for kw in range(3):
                t = kh * 3 + kw
                tap = pad_ref[:, kh:kh + H, kw:kw + W, :]
                col_ref[:, t * C:(t + 1) * C] = (
                    tap.reshape(M, C).astype(col_ref.dtype))
        # one (M, 9C) @ (9C, C) MXU matmul, bf16 in / f32 accumulate
        acc = jnp.dot(col_ref[...], w_ref[...],
                      preferred_element_type=jnp.float32)
        return acc + b_ref[...]                     # (M, C) + (1, C), f32

    # body: conv -> ReLU -> conv
    r = jnp.maximum(conv3x3(w1_ref, b1_ref), 0.0)
    pad_ref[:, 1:H + 1, 1:W + 1, :] = r.reshape(Nb, H, W, C)
    r = conv3x3(w2_ref, b2_ref)                     # (M, C) f32

    # CALayer: global avg pool -> 1x1 -> ReLU -> 1x1 -> sigmoid (all f32)
    r3 = r.reshape(Nb, HW, C)
    y = jnp.mean(r3, axis=1)                        # (Nb, C)
    y = jnp.dot(y, wd_ref[...], preferred_element_type=jnp.float32) + bd_ref[...]
    y = jnp.maximum(y, 0.0)
    y = jnp.dot(y, wu_ref[...], preferred_element_type=jnp.float32) + bu_ref[...]
    y = 1.0 / (1.0 + jnp.exp(-y))                   # sigmoid (EUP)

    # channel scaling + residual (re-read the resident x block)
    res = r3 * y[:, None, :]
    o_ref[...] = (res.reshape(Nb, H, W, C) + x_ref[...]).astype(o_ref.dtype)


@functools.lru_cache(maxsize=None)
def _build_rcab_call(N, H, W, C, Cr, Nb):
    steps = N // Nb
    M = Nb * H * W
    return pl.pallas_call(
        _rcab_kernel,
        out_shape=jax.ShapeDtypeStruct((N, H, W, C), jnp.float32),
        grid=(steps,),
        in_specs=[
            pl.BlockSpec((Nb, H, W, C), lambda n: (n, 0, 0, 0)),   # x
            pl.BlockSpec((9 * C, C), lambda n: (0, 0)),            # w1 (bf16)
            pl.BlockSpec((1, C), lambda n: (0, 0)),                # b1
            pl.BlockSpec((9 * C, C), lambda n: (0, 0)),            # w2 (bf16)
            pl.BlockSpec((1, C), lambda n: (0, 0)),                # b2
            pl.BlockSpec((C, Cr), lambda n: (0, 0)),               # wd
            pl.BlockSpec((1, Cr), lambda n: (0, 0)),               # bd
            pl.BlockSpec((Cr, C), lambda n: (0, 0)),               # wu
            pl.BlockSpec((1, C), lambda n: (0, 0)),                # bu
        ],
        out_specs=pl.BlockSpec((Nb, H, W, C), lambda n: (n, 0, 0, 0)),
        scratch_shapes=[
            pltpu.VMEM((Nb, H + 2, W + 2, C), jnp.float32),  # zero-pad halo
            pltpu.VMEM((M, 9 * C), jnp.bfloat16),            # im2col buffer
        ],
        compiler_params=pltpu.CompilerParams(
            dimension_semantics=("parallel",),
            vmem_limit_bytes=32 * 1024 * 1024),
    )


def _pick_images_per_step(N, H, W):
    """Batch images per grid step so each matmul has >= ~1K rows, but keep
    >= 2 (even) grid steps when N allows it (v7x has 2 TensorCores)."""
    nb = 1
    while (N % (nb * 2) == 0 and nb * H * W < 1024 and N // (nb * 2) >= 2):
        nb *= 2
    return nb


def rcab_forward(x, p, *, images_per_step=None):
    """x: (N, H, W, C) NHWC float32; p: dict from init_rcab_params."""
    N, H, W, C = x.shape
    Cr = p["wd"].shape[-1]
    nb = images_per_step or _pick_images_per_step(N, H, W)
    assert N % nb == 0
    call = _build_rcab_call(N, H, W, C, Cr, nb)
    # tap-major (kh*3+kw, cin) rows -> matches the im2col column ordering
    w1 = p["w1"].reshape(9 * C, C)
    w2 = p["w2"].reshape(9 * C, C)
    return call(x, w1, p["b1"], w2, p["b2"],
                p["wd"], p["bd"], p["wu"], p["bu"])


# ----------------------------------------------------------------------------
# Deterministic synthetic parameters (no checkpoint load)
# ----------------------------------------------------------------------------
def init_rcab_params(key, n_feat, reduction):
    cr = n_feat // reduction
    ks = jax.random.split(key, 8)

    def w_init(k, shape, fan_in):
        return jax.random.normal(k, shape, jnp.float32) / math.sqrt(fan_in)

    return {
        # 3x3 body convs, tap-major (kh*3+kw, Cin, Cout); bf16 for the MXU.
        "w1": w_init(ks[0], (9, n_feat, n_feat), 9 * n_feat).astype(jnp.bfloat16),
        "b1": 0.01 * jax.random.normal(ks[1], (1, n_feat), jnp.float32),
        "w2": w_init(ks[2], (9, n_feat, n_feat), 9 * n_feat).astype(jnp.bfloat16),
        "b2": 0.01 * jax.random.normal(ks[3], (1, n_feat), jnp.float32),
        # CALayer 1x1 convs (tiny) stay in f32.
        "wd": w_init(ks[4], (n_feat, cr), n_feat),
        "bd": 0.01 * jax.random.normal(ks[5], (1, cr), jnp.float32),
        "wu": w_init(ks[6], (cr, n_feat), cr),
        "bu": 0.01 * jax.random.normal(ks[7], (1, n_feat), jnp.float32),
    }


# ----------------------------------------------------------------------------
# Pure-JAX reference (mirrors the kernel's bf16-in / f32-acc precision)
# ----------------------------------------------------------------------------
def rcab_reference(x, p):
    def conv3(z, w_bf16, b):
        cin = z.shape[-1]
        wk = w_bf16.reshape(3, 3, cin, -1)
        y = jax.lax.conv_general_dilated(
            z.astype(jnp.bfloat16), wk,
            window_strides=(1, 1), padding="SAME",
            dimension_numbers=("NHWC", "HWIO", "NHWC"),
            preferred_element_type=jnp.float32)
        return y + b.reshape(1, 1, 1, -1)

    r = jax.nn.relu(conv3(x, p["w1"], p["b1"]))
    r = conv3(r, p["w2"], p["b2"])
    y = jnp.mean(r, axis=(1, 2), keepdims=True)                      # (N,1,1,C)
    y = jax.nn.relu(jnp.einsum("nijc,cd->nijd", y, p["wd"])
                    + p["bd"].reshape(1, 1, 1, -1))
    y = jax.nn.sigmoid(jnp.einsum("nijd,dc->nijc", y, p["wu"])
                       + p["bu"].reshape(1, 1, 1, -1))
    return r * y + x


# ----------------------------------------------------------------------------
if __name__ == "__main__":
    N, H, W = 2, 16, 16
    n_feat, reduction = 64, 8

    key = jax.random.PRNGKey(0)
    kx, kp = jax.random.split(key)
    x = jax.random.normal(kx, (N, H, W, n_feat), jnp.float32)
    params = init_rcab_params(kp, n_feat, reduction)

    fwd = jax.jit(rcab_forward)
    out = jax.block_until_ready(fwd(x, params))

    assert out.shape == (N, H, W, n_feat)
    assert bool(jnp.all(jnp.isfinite(out)))

    ref = rcab_reference(x, params)
    err = float(jnp.max(jnp.abs(out - ref)))
    assert err < 2e-3, f"max abs err vs reference: {err}"

    print("KERNEL_OK")
</pallas_src>

<mosaic_0001>
module attributes {stable_mosaic.version = 11 : i64} {
  func.func @_rcab_kernel(%arg0: i32, %arg1: memref<1x16x16x64xf32, #tpu.memory_space<vmem>>, %arg2: memref<576x64xbf16, #tpu.memory_space<vmem>>, %arg3: memref<1x64xf32, #tpu.memory_space<vmem>>, %arg4: memref<576x64xbf16, #tpu.memory_space<vmem>>, %arg5: memref<1x64xf32, #tpu.memory_space<vmem>>, %arg6: memref<64x8xf32, #tpu.memory_space<vmem>>, %arg7: memref<1x8xf32, #tpu.memory_space<vmem>>, %arg8: memref<8x64xf32, #tpu.memory_space<vmem>>, %arg9: memref<1x64xf32, #tpu.memory_space<vmem>>, %arg10: memref<1x16x16x64xf32, #tpu.memory_space<vmem>>, %arg11: memref<1x18x18x64xf32, #tpu.memory_space<vmem>>, %arg12: memref<256x576xbf16, #tpu.memory_space<vmem>>) attributes {dimension_semantics = [#tpu.dimension_semantics<parallel>], iteration_bounds = array<i64: 2>, scalar_prefetch = 0 : i64, scratch_operands = 2 : i64, tpu.core_type = #tpu.core_type<tc>, window_params = [{transform_indices = @transform_0, window_bounds = array<i64: 1, 16, 16, 64>}, {pipeline_mode = #tpu.pipeline_mode<synchronous>, transform_indices = @transform_1, window_bounds = array<i64: 576, 64>}, {pipeline_mode = #tpu.pipeline_mode<synchronous>, transform_indices = @transform_2, window_bounds = array<i64: 1, 64>}, {pipeline_mode = #tpu.pipeline_mode<synchronous>, transform_indices = @transform_3, window_bounds = array<i64: 576, 64>}, {pipeline_mode = #tpu.pipeline_mode<synchronous>, transform_indices = @transform_4, window_bounds = array<i64: 1, 64>}, {pipeline_mode = #tpu.pipeline_mode<synchronous>, transform_indices = @transform_5, window_bounds = array<i64: 64, 8>}, {pipeline_mode = #tpu.pipeline_mode<synchronous>, transform_indices = @transform_6, window_bounds = array<i64: 1, 8>}, {pipeline_mode = #tpu.pipeline_mode<synchronous>, transform_indices = @transform_7, window_bounds = array<i64: 8, 64>}, {pipeline_mode = #tpu.pipeline_mode<synchronous>, transform_indices = @transform_8, window_bounds = array<i64: 1, 64>}, {transform_indices = @transform_9, window_bounds = array<i64: 1, 16, 16, 64>}]} {
    %cst = arith.constant 0.000000e+00 : f32
    %0 = vector.broadcast %cst : f32 to vector<1x1x18x64xf32>
    %cst_0 = arith.constant 0.000000e+00 : f32
    %1 = vector.broadcast %cst_0 : f32 to vector<1x18x1x64xf32>
    %c0 = arith.constant 0 : index
    %c0_1 = arith.constant 0 : index
    %c0_2 = arith.constant 0 : index
    %c0_3 = arith.constant 0 : index
    %2 = vector.load %arg11[%c0, %c0_1, %c0_2, %c0_3] : memref<1x18x18x64xf32, #tpu.memory_space<vmem>>, vector<1x1x18x64xf32>
    tpu.vector_store %arg11[%c0, %c0_1, %c0_2, %c0_3], %0 {strides = array<i32>} : memref<1x18x18x64xf32, #tpu.memory_space<vmem>>, vector<1x1x18x64xf32>,
    %c0_4 = arith.constant 0 : index
    %c17 = arith.constant 17 : index
    %c0_5 = arith.constant 0 : index
    %c0_6 = arith.constant 0 : index
    %3 = vector.load %arg11[%c0_4, %c17, %c0_5, %c0_6] : memref<1x18x18x64xf32, #tpu.memory_space<vmem>>, vector<1x1x18x64xf32>
    tpu.vector_store %arg11[%c0_4, %c17, %c0_5, %c0_6], %0 {strides = array<i32>} : memref<1x18x18x64xf32, #tpu.memory_space<vmem>>, vector<1x1x18x64xf32>,
    %c0_7 = arith.constant 0 : index
    %c0_8 = arith.constant 0 : index
    %c0_9 = arith.constant 0 : index
    %c0_10 = arith.constant 0 : index
    %4 = vector.load %arg11[%c0_7, %c0_8, %c0_9, %c0_10] : memref<1x18x18x64xf32, #tpu.memory_space<vmem>>, vector<1x18x1x64xf32>
    tpu.vector_store %arg11[%c0_7, %c0_8, %c0_9, %c0_10], %1 {strides = array<i32>} : memref<1x18x18x64xf32, #tpu.memory_space<vmem>>, vector<1x18x1x64xf32>,
    %c0_11 = arith.constant 0 : index
    %c0_12 = arith.constant 0 : index
    %c17_13 = arith.constant 17 : index
    %c0_14 = arith.constant 0 : index
    %5 = vector.load %arg11[%c0_11, %c0_12, %c17_13, %c0_14] : memref<1x18x18x64xf32, #tpu.memory_space<vmem>>, vector<1x18x1x64xf32>
    tpu.vector_store %arg11[%c0_11, %c0_12, %c17_13, %c0_14], %1 {strides = array<i32>} : memref<1x18x18x64xf32, #tpu.memory_space<vmem>>, vector<1x18x1x64xf32>,
    %c0_15 = arith.constant 0 : index
    %c0_16 = arith.constant 0 : index
    %c0_17 = arith.constant 0 : index
    %c0_18 = arith.constant 0 : index
    %6 = vector.load %arg1[%c0_15, %c0_16, %c0_17, %c0_18] : memref<1x16x16x64xf32, #tpu.memory_space<vmem>>, vector<1x16x16x64xf32>
    %c0_19 = arith.constant 0 : index
    %c1 = arith.constant 1 : index
    %c1_20 = arith.constant 1 : index
    %c0_21 = arith.constant 0 : index
    %7 = vector.load %arg11[%c0_19, %c1, %c1_20, %c0_21] : memref<1x18x18x64xf32, #tpu.memory_space<vmem>>, vector<1x16x16x64xf32>
    tpu.vector_store %arg11[%c0_19, %c1, %c1_20, %c0_21], %6 {strides = array<i32>} : memref<1x18x18x64xf32, #tpu.memory_space<vmem>>, vector<1x16x16x64xf32>,
    %c0_22 = arith.constant 0 : index
    %c0_23 = arith.constant 0 : index
    %c0_24 = arith.constant 0 : index
    %c0_25 = arith.constant 0 : index
    %8 = vector.load %arg11[%c0_22, %c0_23, %c0_24, %c0_25] : memref<1x18x18x64xf32, #tpu.memory_space<vmem>>, vector<1x16x16x64xf32>
    %9 = vector.shape_cast %8 : vector<1x16x16x64xf32> to vector<256x64xf32>
    %10 = arith.truncf %9 : vector<256x64xf32> to vector<256x64xbf16>
    %c0_26 = arith.constant 0 : index
    %c0_27 = arith.constant 0 : index
    %11 = vector.load %arg12[%c0_26, %c0_27] : memref<256x576xbf16, #tpu.memory_space<vmem>>, vector<256x64xbf16>
    tpu.vector_store %arg12[%c0_26, %c0_27], %10 {strides = array<i32>} : memref<256x576xbf16, #tpu.memory_space<vmem>>, vector<256x64xbf16>,
    %c0_28 = arith.constant 0 : index
    %c0_29 = arith.constant 0 : index
    %c1_30 = arith.constant 1 : index
    %c0_31 = arith.constant 0 : index
    %12 = vector.load %arg11[%c0_28, %c0_29, %c1_30, %c0_31] : memref<1x18x18x64xf32, #tpu.memory_space<vmem>>, vector<1x16x16x64xf32>
    %13 = vector.shape_cast %12 : vector<1x16x16x64xf32> to vector<256x64xf32>
    %14 = arith.truncf %13 : vector<256x64xf32> to vector<256x64xbf16>
    %c0_32 = arith.constant 0 : index
    %c64 = arith.constant 64 : index
    %15 = vector.load %arg12[%c0_32, %c64] : memref<256x576xbf16, #tpu.memory_space<vmem>>, vector<256x64xbf16>
    tpu.vector_store %arg12[%c0_32, %c64], %14 {strides = array<i32>} : memref<256x576xbf16, #tpu.memory_space<vmem>>, vector<256x64xbf16>,
    %c0_33 = arith.constant 0 : index
    %c0_34 = arith.constant 0 : index
    %c2 = arith.constant 2 : index
    %c0_35 = arith.constant 0 : index
    %16 = vector.load %arg11[%c0_33, %c0_34, %c2, %c0_35] : memref<1x18x18x64xf32, #tpu.memory_space<vmem>>, vector<1x16x16x64xf32>
    %17 = vector.shape_cast %16 : vector<1x16x16x64xf32> to vector<256x64xf32>
    %18 = arith.truncf %17 : vector<256x64xf32> to vector<256x64xbf16>
    %c0_36 = arith.constant 0 : index
    %c128 = arith.constant 128 : index
    %19 = vector.load %arg12[%c0_36, %c128] : memref<256x576xbf16, #tpu.memory_space<vmem>>, vector<256x64xbf16>
    tpu.vector_store %arg12[%c0_36, %c128], %18 {strides = array<i32>} : memref<256x576xbf16, #tpu.memory_space<vmem>>, vector<256x64xbf16>,
    %c0_37 = arith.constant 0 : index
    %c1_38 = arith.constant 1 : index
    %c0_39 = arith.constant 0 : index
    %c0_40 = arith.constant 0 : index
    %20 = vector.load %arg11[%c0_37, %c1_38, %c0_39, %c0_40] : memref<1x18x18x64xf32, #tpu.memory_space<vmem>>, vector<1x16x16x64xf32>
    %21 = vector.shape_cast %20 : vector<1x16x16x64xf32> to vector<256x64xf32>
    %22 = arith.truncf %21 : vector<256x64xf32> to vector<256x64xbf16>
    %c0_41 = arith.constant 0 : index
    %c192 = arith.constant 192 : index
    %23 = vector.load %arg12[%c0_41, %c192] : memref<256x576xbf16, #tpu.memory_space<vmem>>, vector<256x64xbf16>
    tpu.vector_store %arg12[%c0_41, %c192], %22 {strides = array<i32>} : memref<256x576xbf16, #tpu.memory_space<vmem>>, vector<256x64xbf16>,
    %c0_42 = arith.constant 0 : index
    %c1_43 = arith.constant 1 : index
    %c1_44 = arith.constant 1 : index
    %c0_45 = arith.constant 0 : index
    %24 = vector.load %arg11[%c0_42, %c1_43, %c1_44, %c0_45] : memref<1x18x18x64xf32, #tpu.memory_space<vmem>>, vector<1x16x16x64xf32>
    %25 = vector.shape_cast %24 : vector<1x16x16x64xf32> to vector<256x64xf32>
    %26 = arith.truncf %25 : vector<256x64xf32> to vector<256x64xbf16>
    %c0_46 = arith.constant 0 : index
    %c256 = arith.constant 256 : index
    %27 = vector.load %arg12[%c0_46, %c256] : memref<256x576xbf16, #tpu.memory_space<vmem>>, vector<256x64xbf16>
    tpu.vector_store %arg12[%c0_46, %c256], %26 {strides = array<i32>} : memref<256x576xbf16, #tpu.memory_space<vmem>>, vector<256x64xbf16>,
    %c0_47 = arith.constant 0 : index
    %c1_48 = arith.constant 1 : index
    %c2_49 = arith.constant 2 : index
    %c0_50 = arith.constant 0 : index
    %28 = vector.load %arg11[%c0_47, %c1_48, %c2_49, %c0_50] : memref<1x18x18x64xf32, #tpu.memory_space<vmem>>, vector<1x16x16x64xf32>
    %29 = vector.shape_cast %28 : vector<1x16x16x64xf32> to vector<256x64xf32>
    %30 = arith.truncf %29 : vector<256x64xf32> to vector<256x64xbf16>
    %c0_51 = arith.constant 0 : index
    %c320 = arith.constant 320 : index
    %31 = vector.load %arg12[%c0_51, %c320] : memref<256x576xbf16, #tpu.memory_space<vmem>>, vector<256x64xbf16>
    tpu.vector_store %arg12[%c0_51, %c320], %30 {strides = array<i32>} : memref<256x576xbf16, #tpu.memory_space<vmem>>, vector<256x64xbf16>,
    %c0_52 = arith.constant 0 : index
    %c2_53 = arith.constant 2 : index
    %c0_54 = arith.constant 0 : index
    %c0_55 = arith.constant 0 : index
    %32 = vector.load %arg11[%c0_52, %c2_53, %c0_54, %c0_55] : memref<1x18x18x64xf32, #tpu.memory_space<vmem>>, vector<1x16x16x64xf32>
    %33 = vector.shape_cast %32 : vector<1x16x16x64xf32> to vector<256x64xf32>
    %34 = arith.truncf %33 : vector<256x64xf32> to vector<256x64xbf16>
    %c0_56 = arith.constant 0 : index
    %c384 = arith.constant 384 : index
    %35 = vector.load %arg12[%c0_56, %c384] : memref<256x576xbf16, #tpu.memory_space<vmem>>, vector<256x64xbf16>
    tpu.vector_store %arg12[%c0_56, %c384], %34 {strides = array<i32>} : memref<256x576xbf16, #tpu.memory_space<vmem>>, vector<256x64xbf16>,
    %c0_57 = arith.constant 0 : index
    %c2_58 = arith.constant 2 : index
    %c1_59 = arith.constant 1 : index
    %c0_60 = arith.constant 0 : index
    %36 = vector.load %arg11[%c0_57, %c2_58, %c1_59, %c0_60] : memref<1x18x18x64xf32, #tpu.memory_space<vmem>>, vector<1x16x16x64xf32>
    %37 = vector.shape_cast %36 : vector<1x16x16x64xf32> to vector<256x64xf32>
    %38 = arith.truncf %37 : vector<256x64xf32> to vector<256x64xbf16>
    %c0_61 = arith.constant 0 : index
    %c448 = arith.constant 448 : index
    %39 = vector.load %arg12[%c0_61, %c448] : memref<256x576xbf16, #tpu.memory_space<vmem>>, vector<256x64xbf16>
    tpu.vector_store %arg12[%c0_61, %c448], %38 {strides = array<i32>} : memref<256x576xbf16, #tpu.memory_space<vmem>>, vector<256x64xbf16>,
    %c0_62 = arith.constant 0 : index
    %c2_63 = arith.constant 2 : index
    %c2_64 = arith.constant 2 : index
    %c0_65 = arith.constant 0 : index
    %40 = vector.load %arg11[%c0_62, %c2_63, %c2_64, %c0_65] : memref<1x18x18x64xf32, #tpu.memory_space<vmem>>, vector<1x16x16x64xf32>
    %41 = vector.shape_cast %40 : vector<1x16x16x64xf32> to vector<256x64xf32>
    %42 = arith.truncf %41 : vector<256x64xf32> to vector<256x64xbf16>
    %c0_66 = arith.constant 0 : index
    %c512 = arith.constant 512 : index
    %43 = vector.load %arg12[%c0_66, %c512] : memref<256x576xbf16, #tpu.memory_space<vmem>>, vector<256x64xbf16>
    tpu.vector_store %arg12[%c0_66, %c512], %42 {strides = array<i32>} : memref<256x576xbf16, #tpu.memory_space<vmem>>, vector<256x64xbf16>,
    %c0_67 = arith.constant 0 : index
    %c0_68 = arith.constant 0 : index
    %44 = vector.load %arg12[%c0_67, %c0_68] : memref<256x576xbf16, #tpu.memory_space<vmem>>, vector<256x576xbf16>
    %c0_69 = arith.constant 0 : index
    %c0_70 = arith.constant 0 : index
    %45 = vector.load %arg2[%c0_69, %c0_70] : memref<576x64xbf16, #tpu.memory_space<vmem>>, vector<576x64xbf16>
    %cst_71 = arith.constant dense<0.000000e+00> : vector<256x64xf32>
    %46 = tpu.matmul %44, %45, %cst_71 {dimension_numbers = #tpu.dot_dimension_numbers<[1], [0], [0], [1], [0, 0, 1, 1], [], []>} : vector<256x576xbf16>, vector<576x64xbf16>, vector<256x64xf32> -> vector<256x64xf32>
    %c0_72 = arith.constant 0 : index
    %c0_73 = arith.constant 0 : index
    %47 = vector.load %arg3[%c0_72, %c0_73] : memref<1x64xf32, #tpu.memory_space<vmem>>, vector<1x64xf32>
    %48 = vector.broadcast %47 : vector<1x64xf32> to vector<256x64xf32>
    %49 = arith.addf %46, %48 : vector<256x64xf32>
    %cst_74 = arith.constant 0.000000e+00 : f32
    %50 = vector.broadcast %cst_74 : f32 to vector<256x64xf32>
    %51 = arith.maximumf %49, %50 : vector<256x64xf32>
    %52 = vector.shape_cast %51 : vector<256x64xf32> to vector<1x16x16x64xf32>
    %c0_75 = arith.constant 0 : index
    %c1_76 = arith.constant 1 : index
    %c1_77 = arith.constant 1 : index
    %c0_78 = arith.constant 0 : index
    %53 = vector.load %arg11[%c0_75, %c1_76, %c1_77, %c0_78] : memref<1x18x18x64xf32, #tpu.memory_space<vmem>>, vector<1x16x16x64xf32>
    tpu.vector_store %arg11[%c0_75, %c1_76, %c1_77, %c0_78], %52 {strides = array<i32>} : memref<1x18x18x64xf32, #tpu.memory_space<vmem>>, vector<1x16x16x64xf32>,
    %c0_79 = arith.constant 0 : index
    %c0_80 = arith.constant 0 : index
    %c0_81 = arith.constant 0 : index
    %c0_82 = arith.constant 0 : index
    %54 = vector.load %arg11[%c0_79, %c0_80, %c0_81, %c0_82] : memref<1x18x18x64xf32, #tpu.memory_space<vmem>>, vector<1x16x16x64xf32>
    %55 = vector.shape_cast %54 : vector<1x16x16x64xf32> to vector<256x64xf32>
    %56 = arith.truncf %55 : vector<256x64xf32> to vector<256x64xbf16>
    %c0_83 = arith.constant 0 : index
    %c0_84 = arith.constant 0 : index
    %57 = vector.load %arg12[%c0_83, %c0_84] : memref<256x576xbf16, #tpu.memory_space<vmem>>, vector<256x64xbf16>
    tpu.vector_store %arg12[%c0_83, %c0_84], %56 {strides = array<i32>} : memref<256x576xbf16, #tpu.memory_space<vmem>>, vector<256x64xbf16>,
    %c0_85 = arith.constant 0 : index
    %c0_86 = arith.constant 0 : index
    %c1_87 = arith.constant 1 : index
    %c0_88 = arith.constant 0 : index
    %58 = vector.load %arg11[%c0_85, %c0_86, %c1_87, %c0_88] : memref<1x18x18x64xf32, #tpu.memory_space<vmem>>, vector<1x16x16x64xf32>
    %59 = vector.shape_cast %58 : vector<1x16x16x64xf32> to vector<256x64xf32>
    %60 = arith.truncf %59 : vector<256x64xf32> to vector<256x64xbf16>
    %c0_89 = arith.constant 0 : index
    %c64_90 = arith.constant 64 : index
    %61 = vector.load %arg12[%c0_89, %c64_90] : memref<256x576xbf16, #tpu.memory_space<vmem>>, vector<256x64xbf16>
    tpu.vector_store %arg12[%c0_89, %c64_90], %60 {strides = array<i32>} : memref<256x576xbf16, #tpu.memory_space<vmem>>, vector<256x64xbf16>,
    %c0_91 = arith.constant 0 : index
    %c0_92 = arith.constant 0 : index
    %c2_93 = arith.constant 2 : index
    %c0_94 = arith.constant 0 : index
    %62 = vector.load %arg11[%c0_91, %c0_92, %c2_93, %c0_94] : memref<1x18x18x64xf32, #tpu.memory_space<vmem>>, vector<1x16x16x64xf32>
    %63 = vector.shape_cast %62 : vector<1x16x16x64xf32> to vector<256x64xf32>
    %64 = arith.truncf %63 : vector<256x64xf32> to vector<256x64xbf16>
    %c0_95 = arith.constant 0 : index
    %c128_96 = arith.constant 128 : index
    %65 = vector.load %arg12[%c0_95, %c128_96] : memref<256x576xbf16, #tpu.memory_space<vmem>>, vector<256x64xbf16>
    tpu.vector_store %arg12[%c0_95, %c128_96], %64 {strides = array<i32>} : memref<256x576xbf16, #tpu.memory_space<vmem>>, vector<256x64xbf16>,
    %c0_97 = arith.constant 0 : index
    %c1_98 = arith.constant 1 : index
    %c0_99 = arith.constant 0 : index
    %c0_100 = arith.constant 0 : index
    %66 = vector.load %arg11[%c0_97, %c1_98, %c0_99, %c0_100] : memref<1x18x18x64xf32, #tpu.memory_space<vmem>>, vector<1x16x16x64xf32>
    %67 = vector.shape_cast %66 : vector<1x16x16x64xf32> to vector<256x64xf32>
    %68 = arith.truncf %67 : vector<256x64xf32> to vector<256x64xbf16>
    %c0_101 = arith.constant 0 : index
    %c192_102 = arith.constant 192 : index
    %69 = vector.load %arg12[%c0_101, %c192_102] : memref<256x576xbf16, #tpu.memory_space<vmem>>, vector<256x64xbf16>
    tpu.vector_store %arg12[%c0_101, %c192_102], %68 {strides = array<i32>} : memref<256x576xbf16, #tpu.memory_space<vmem>>, vector<256x64xbf16>,
    %c0_103 = arith.constant 0 : index
    %c1_104 = arith.constant 1 : index
    %c1_105 = arith.constant 1 : index
    %c0_106 = arith.constant 0 : index
    %70 = vector.load %arg11[%c0_103, %c1_104, %c1_105, %c0_106] : memref<1x18x18x64xf32, #tpu.memory_space<vmem>>, vector<1x16x16x64xf32>
    %71 = vector.shape_cast %70 : vector<1x16x16x64xf32> to vector<256x64xf32>
    %72 = arith.truncf %71 : vector<256x64xf32> to vector<256x64xbf16>
    %c0_107 = arith.constant 0 : index
    %c256_108 = arith.constant 256 : index
    %73 = vector.load %arg12[%c0_107, %c256_108] : memref<256x576xbf16, #tpu.memory_space<vmem>>, vector<256x64xbf16>
    tpu.vector_store %arg12[%c0_107, %c256_108], %72 {strides = array<i32>} : memref<256x576xbf16, #tpu.memory_space<vmem>>, vector<256x64xbf16>,
    %c0_109 = arith.constant 0 : index
    %c1_110 = arith.constant 1 : index
    %c2_111 = arith.constant 2 : index
    %c0_112 = arith.constant 0 : index
    %74 = vector.load %arg11[%c0_109, %c1_110, %c2_111, %c0_112] : memref<1x18x18x64xf32, #tpu.memory_space<vmem>>, vector<1x16x16x64xf32>
    %75 = vector.shape_cast %74 : vector<1x16x16x64xf32> to vector<256x64xf32>
    %76 = arith.truncf %75 : vector<256x64xf32> to vector<256x64xbf16>
    %c0_113 = arith.constant 0 : index
    %c320_114 = arith.constant 320 : index
    %77 = vector.load %arg12[%c0_113, %c320_114] : memref<256x576xbf16, #tpu.memory_space<vmem>>, vector<256x64xbf16>
    tpu.vector_store %arg12[%c0_113, %c320_114], %76 {strides = array<i32>} : memref<256x576xbf16, #tpu.memory_space<vmem>>, vector<256x64xbf16>,
    %c0_115 = arith.constant 0 : index
    %c2_116 = arith.constant 2 : index
    %c0_117 = arith.constant 0 : index
    %c0_118 = arith.constant 0 : index
    %78 = vector.load %arg11[%c0_115, %c2_116, %c0_117, %c0_118] : memref<1x18x18x64xf32, #tpu.memory_space<vmem>>, vector<1x16x16x64xf32>
    %79 = vector.shape_cast %78 : vector<1x16x16x64xf32> to vector<256x64xf32>
    %80 = arith.truncf %79 : vector<256x64xf32> to vector<256x64xbf16>
    %c0_119 = arith.constant 0 : index
    %c384_120 = arith.constant 384 : index
    %81 = vector.load %arg12[%c0_119, %c384_120] : memref<256x576xbf16, #tpu.memory_space<vmem>>, vector<256x64xbf16>
    tpu.vector_store %arg12[%c0_119, %c384_120], %80 {strides = array<i32>} : memref<256x576xbf16, #tpu.memory_space<vmem>>, vector<256x64xbf16>,
    %c0_121 = arith.constant 0 : index
    %c2_122 = arith.constant 2 : index
    %c1_123 = arith.constant 1 : index
    %c0_124 = arith.constant 0 : index
    %82 = vector.load %arg11[%c0_121, %c2_122, %c1_123, %c0_124] : memref<1x18x18x64xf32, #tpu.memory_space<vmem>>, vector<1x16x16x64xf32>
    %83 = vector.shape_cast %82 : vector<1x16x16x64xf32> to vector<256x64xf32>
    %84 = arith.truncf %83 : vector<256x64xf32> to vector<256x64xbf16>
    %c0_125 = arith.constant 0 : index
    %c448_126 = arith.constant 448 : index
    %85 = vector.load %arg12[%c0_125, %c448_126] : memref<256x576xbf16, #tpu.memory_space<vmem>>, vector<256x64xbf16>
    tpu.vector_store %arg12[%c0_125, %c448_126], %84 {strides = array<i32>} : memref<256x576xbf16, #tpu.memory_space<vmem>>, vector<256x64xbf16>,
    %c0_127 = arith.constant 0 : index
    %c2_128 = arith.constant 2 : index
    %c2_129 = arith.constant 2 : index
    %c0_130 = arith.constant 0 : index
    %86 = vector.load %arg11[%c0_127, %c2_128, %c2_129, %c0_130] : memref<1x18x18x64xf32, #tpu.memory_space<vmem>>, vector<1x16x16x64xf32>
    %87 = vector.shape_cast %86 : vector<1x16x16x64xf32> to vector<256x64xf32>
    %88 = arith.truncf %87 : vector<256x64xf32> to vector<256x64xbf16>
    %c0_131 = arith.constant 0 : index
    %c512_132 = arith.constant 512 : index
    %89 = vector.load %arg12[%c0_131, %c512_132] : memref<256x576xbf16, #tpu.memory_space<vmem>>, vector<256x64xbf16>
    tpu.vector_store %arg12[%c0_131, %c512_132], %88 {strides = array<i32>} : memref<256x576xbf16, #tpu.memory_space<vmem>>, vector<256x64xbf16>,
    %c0_133 = arith.constant 0 : index
    %c0_134 = arith.constant 0 : index
    %90 = vector.load %arg12[%c0_133, %c0_134] : memref<256x576xbf16, #tpu.memory_space<vmem>>, vector<256x576xbf16>
    %c0_135 = arith.constant 0 : index
    %c0_136 = arith.constant 0 : index
    %91 = vector.load %arg4[%c0_135, %c0_136] : memref<576x64xbf16, #tpu.memory_space<vmem>>, vector<576x64xbf16>
    %cst_137 = arith.constant dense<0.000000e+00> : vector<256x64xf32>
    %92 = tpu.matmul %90, %91, %cst_137 {dimension_numbers = #tpu.dot_dimension_numbers<[1], [0], [0], [1], [0, 0, 1, 1], [], []>} : vector<256x576xbf16>, vector<576x64xbf16>, vector<256x64xf32> -> vector<256x64xf32>
    %c0_138 = arith.constant 0 : index
    %c0_139 = arith.constant 0 : index
    %93 = vector.load %arg5[%c0_138, %c0_139] : memref<1x64xf32, #tpu.memory_space<vmem>>, vector<1x64xf32>
    %94 = vector.broadcast %93 : vector<1x64xf32> to vector<256x64xf32>
    %95 = arith.addf %92, %94 : vector<256x64xf32>
    %96 = vector.shape_cast %95 : vector<256x64xf32> to vector<1x256x64xf32>
    %cst_140 = arith.constant dense<0.000000e+00> : vector<1x64xf32>
    %97 = vector.multi_reduction <add>, %96, %cst_140 [1] : vector<1x256x64xf32> to vector<1x64xf32>
    %cst_141 = arith.constant 2.560000e+02 : f32
    %98 = vector.broadcast %cst_141 : f32 to vector<1x64xf32>
    %99 = arith.divf %97, %98 : vector<1x64xf32>
    %c0_142 = arith.constant 0 : index
    %c0_143 = arith.constant 0 : index
    %100 = vector.load %arg6[%c0_142, %c0_143] : memref<64x8xf32, #tpu.memory_space<vmem>>, vector<64x8xf32>
    %cst_144 = arith.constant dense<0.000000e+00> : vector<1x8xf32>
    %101 = tpu.matmul %99, %100, %cst_144 {dimension_numbers = #tpu.dot_dimension_numbers<[1], [0], [0], [1], [0, 0, 1, 1], [], []>} : vector<1x64xf32>, vector<64x8xf32>, vector<1x8xf32> -> vector<1x8xf32>
    %c0_145 = arith.constant 0 : index
    %c0_146 = arith.constant 0 : index
    %102 = vector.load %arg7[%c0_145, %c0_146] : memref<1x8xf32, #tpu.memory_space<vmem>>, vector<1x8xf32>
    %103 = arith.addf %101, %102 : vector<1x8xf32>
    %cst_147 = arith.constant 0.000000e+00 : f32
    %104 = vector.broadcast %cst_147 : f32 to vector<1x8xf32>
    %105 = arith.maximumf %103, %104 : vector<1x8xf32>
    %c0_148 = arith.constant 0 : index
    %c0_149 = arith.constant 0 : index
    %106 = vector.load %arg8[%c0_148, %c0_149] : memref<8x64xf32, #tpu.memory_space<vmem>>, vector<8x64xf32>
    %cst_150 = arith.constant dense<0.000000e+00> : vector<1x64xf32>
    %107 = tpu.matmul %105, %106, %cst_150 {dimension_numbers = #tpu.dot_dimension_numbers<[1], [0], [0], [1], [0, 0, 1, 1], [], []>} : vector<1x8xf32>, vector<8x64xf32>, vector<1x64xf32> -> vector<1x64xf32>
    %c0_151 = arith.constant 0 : index
    %c0_152 = arith.constant 0 : index
    %108 = vector.load %arg9[%c0_151, %c0_152] : memref<1x64xf32, #tpu.memory_space<vmem>>, vector<1x64xf32>
    %109 = arith.addf %107, %108 : vector<1x64xf32>
    %cst_153 = arith.constant 0.000000e+00 : f32
    %110 = vector.broadcast %cst_153 : f32 to vector<1x64xf32>
    %111 = arith.subf %110, %109 : vector<1x64xf32>
    %112 = math.exp %111 : vector<1x64xf32>
    %cst_154 = arith.constant 1.000000e+00 : f32
    %113 = vector.broadcast %cst_154 : f32 to vector<1x64xf32>
    %114 = arith.addf %113, %112 : vector<1x64xf32>
    %cst_155 = arith.constant 1.000000e+00 : f32
    %115 = vector.broadcast %cst_155 : f32 to vector<1x64xf32>
    %116 = arith.divf %115, %114 : vector<1x64xf32>
    %117 = vector.shape_cast %116 : vector<1x64xf32> to vector<1x1x64xf32>
    %118 = vector.broadcast %117 : vector<1x1x64xf32> to vector<1x256x64xf32>
    %119 = arith.mulf %96, %118 : vector<1x256x64xf32>
    %120 = vector.shape_cast %119 : vector<1x256x64xf32> to vector<1x16x16x64xf32>
    %c0_156 = arith.constant 0 : index
    %c0_157 = arith.constant 0 : index
    %c0_158 = arith.constant 0 : index
    %c0_159 = arith.constant 0 : index
    %121 = vector.load %arg1[%c0_156, %c0_157, %c0_158, %c0_159] : memref<1x16x16x64xf32, #tpu.memory_space<vmem>>, vector<1x16x16x64xf32>
    %122 = arith.addf %120, %121 : vector<1x16x16x64xf32>
    %c0_160 = arith.constant 0 : index
    %c0_161 = arith.constant 0 : index
    %c0_162 = arith.constant 0 : index
    %c0_163 = arith.constant 0 : index
    %123 = vector.load %arg10[%c0_160, %c0_161, %c0_162, %c0_163] : memref<1x16x16x64xf32, #tpu.memory_space<vmem>>, vector<1x16x16x64xf32>
    tpu.vector_store %arg10[%c0_160, %c0_161, %c0_162, %c0_163], %122 {strides = array<i32>} : memref<1x16x16x64xf32, #tpu.memory_space<vmem>>, vector<1x16x16x64xf32>,
    return
  }
  func.func @transform_0(%arg0: i32) -> (i32, i32, i32, i32) {
    %c0_i32 = arith.constant 0 : i32
    %c0_i32_0 = arith.constant 0 : i32
    %c0_i32_1 = arith.constant 0 : i32
    %c0_i32_2 = arith.constant 0 : i32
    return %arg0, %c0_i32, %c0_i32_0, %c0_i32_1 : i32, i32, i32, i32
  }
  func.func @transform_1(%arg0: i32) -> (i32, i32) {
    %c0_i32 = arith.constant 0 : i32
    %c0_i32_0 = arith.constant 0 : i32
    %c0_i32_1 = arith.constant 0 : i32
    return %c0_i32, %c0_i32_0 : i32, i32
  }
  func.func @transform_2(%arg0: i32) -> (i32, i32) {
    %c0_i32 = arith.constant 0 : i32
    %c0_i32_0 = arith.constant 0 : i32
    %c0_i32_1 = arith.constant 0 : i32
    return %c0_i32, %c0_i32_0 : i32, i32
  }
  func.func @transform_3(%arg0: i32) -> (i32, i32) {
    %c0_i32 = arith.constant 0 : i32
    %c0_i32_0 = arith.constant 0 : i32
    %c0_i32_1 = arith.constant 0 : i32
    return %c0_i32, %c0_i32_0 : i32, i32
  }
  func.func @transform_4(%arg0: i32) -> (i32, i32) {
    %c0_i32 = arith.constant 0 : i32
    %c0_i32_0 = arith.constant 0 : i32
    %c0_i32_1 = arith.constant 0 : i32
    return %c0_i32, %c0_i32_0 : i32, i32
  }
  func.func @transform_5(%arg0: i32) -> (i32, i32) {
    %c0_i32 = arith.constant 0 : i32
    %c0_i32_0 = arith.constant 0 : i32
    %c0_i32_1 = arith.constant 0 : i32
    return %c0_i32, %c0_i32_0 : i32, i32
  }
  func.func @transform_6(%arg0: i32) -> (i32, i32) {
    %c0_i32 = arith.constant 0 : i32
    %c0_i32_0 = arith.constant 0 : i32
    %c0_i32_1 = arith.constant 0 : i32
    return %c0_i32, %c0_i32_0 : i32, i32
  }
  func.func @transform_7(%arg0: i32) -> (i32, i32) {
    %c0_i32 = arith.constant 0 : i32
    %c0_i32_0 = arith.constant 0 : i32
    %c0_i32_1 = arith.constant 0 : i32
    return %c0_i32, %c0_i32_0 : i32, i32
  }
  func.func @transform_8(%arg0: i32) -> (i32, i32) {
    %c0_i32 = arith.constant 0 : i32
    %c0_i32_0 = arith.constant 0 : i32
    %c0_i32_1 = arith.constant 0 : i32
    return %c0_i32, %c0_i32_0 : i32, i32
  }
  func.func @transform_9(%arg0: i32) -> (i32, i32, i32, i32) {
    %c0_i32 = arith.constant 0 : i32
    %c0_i32_0 = arith.constant 0 : i32
    %c0_i32_1 = arith.constant 0 : i32
    %c0_i32_2 = arith.constant 0 : i32
    return %arg0, %c0_i32, %c0_i32_0, %c0_i32_1 : i32, i32, i32, i32
  }
}

</mosaic_0001>

<llo_original>
// kernel: rcab_forward.1
$region0: #{rcab_forward.1}
  #allocation0 [shape = 'u32[]', space=smem, size = 0x4, offset = 0x4, fixed_abs, tag = 'smem constant byte address 0x4 - core index']
  #allocation1 [shape = 'u32[72,128]{1,0:T(1,128)}', space=vmem, size = 0x9000, scoped, tag = 'internal scratch']
  #allocation2 [shape = 'f32[1,18,18,64]{3,2,1,0:T(8,128)}', space=vmem, size = 0x36000, scoped, tag = 'scratch operand']
  #allocation3 [shape = 'bf16[256,576]{1,0:T(8,128)(2,1)}', space=vmem, size = 0x50000, scoped, tag = 'scratch operand']
  %s0 = inlined_call_operand.hbm [shape: f32[2,16,16,64], index: 0, kind: input, shape index: {}]
  %s1 = inlined_call_operand.hbm [shape: bf16[576,64], index: 1, kind: input, shape index: {}]
  %s2 = inlined_call_operand.vmem [shape: f32[1,64], index: 2, kind: input, shape index: {}]
  %s3 = inlined_call_operand.hbm [shape: bf16[576,64], index: 3, kind: input, shape index: {}]
  %s4 = inlined_call_operand.vmem [shape: f32[1,64], index: 4, kind: input, shape index: {}]
  %s5 = inlined_call_operand.vmem [shape: f32[64,8], index: 5, kind: input, shape index: {}]
  %s6 = inlined_call_operand.vmem [shape: f32[1,8], index: 6, kind: input, shape index: {}]
  %s7 = inlined_call_operand.vmem [shape: f32[8,64], index: 7, kind: input, shape index: {}]
  %s8 = inlined_call_operand.vmem [shape: f32[1,64], index: 8, kind: input, shape index: {}]
  %s9 = inlined_call_operand.hbm [shape: f32[2,16,16,64], index: 9, kind: output, shape index: {}]
  %s10 = sld [smem:[#allocation0]]
  $region81: #{rcab_forward.1} parent=0
    _
  %s12 = ssub.s32 1, %s10
  %s13 = scalar_select 0, %s12, %s10
  $region1: #{rcab_forward.1} parent=0
    #allocation4 [shape = 'u8[262144]{0}', space=vmem, size = 0x40000, scoped, tag = 'input window, operand 0']
    #allocation5 [shape = 's32[2]{0}', space=sflag, size = 0x8, scoped, tag = 'scoped memory for rcab_forward.1']
    #allocation6 [shape = 's32[2]{0}', space=sflag, size = 0x8, scoped, tag = 'scoped memory for rcab_forward.1']
    #allocation7 [shape = 'u8[147456]{0}', space=vmem, size = 0x24000, scoped, tag = 'input window, operand 1, single buffered']
    #allocation8 [shape = 's32[1]{0}', space=sflag, size = 0x4, scoped, tag = 'scoped memory for rcab_forward.1']
    #allocation9 [shape = 'u8[147456]{0}', space=vmem, size = 0x24000, scoped, tag = 'input window, operand 3, single buffered']
    #allocation10 [shape = 'u8[262144]{0}', space=vmem, size = 0x40000, scoped, tag = 'output window, operand 0']
    %14 = vsyncpa [#allocation5], 0
    %s15 = scalar_lea.sflag [#allocation5], 1
    %16 = vsyncpa %s15, 0
    %17 = vsyncpa [#allocation8], 0
    %18 = vsyncpa [#allocation6], 0
    %s19 = scalar_lea.sflag [#allocation6], 1
    %20 = vsyncpa %s19, 0
    loop: start=0, step=1, limit=4
    $region2: #{rcab_forward.1} parent=1 // loop_pre_header
      _
    $region3: #{rcab_forward.1} parent=1 // loop_header
      %s22 = sphi 0, %s26
      %p23 = scmp.ge.s32.totalorder %s22, 4
      %s32 = sphi 0, %s34
      %s35 = sphi 0, %s32
      %s36 = sphi 0, %s35
      %s52 = sphi 0, %s36
      %s56 = sphi 0, %s56
      %s58 = sphi 0, %s56
      %s59 = sphi 0, %s58
      %s73 = sphi 0, %s59
      %s77 = sphi 0, %s77
      %s79 = sphi 0, %s77
      %s80 = sphi 0, %s79
      %s94 = sphi 0, %s80
      %s98 = sphi 0, %s98
      %s100 = sphi 0, %s98
      %s101 = sphi 0, %s100
      %s115 = sphi 0, %s101
      %s119 = sphi 0, %s119
      %s121 = sphi 0, %s119
      %s122 = sphi 0, %s121
      %s136 = sphi 0, %s122
      %s140 = sphi 0, %s140
      %s142 = sphi 0, %s140
      %s143 = sphi 0, %s142
      %s157 = sphi 0, %s143
      %s161 = sphi 0, %s161
      %s163 = sphi 0, %s161
      %s164 = sphi 0, %s163
      %s178 = sphi 0, %s164
      %s182 = sphi 0, %s182
      %s184 = sphi 0, %s182
      %s185 = sphi 0, %s184
      %s199 = sphi 0, %s185
      %s203 = sphi 0, %s203
      %s205 = sphi 0, %s203
      %s206 = sphi 0, %s205
      %s220 = sphi 0, %s206
      %s226 = sphi 0, %s228
      %s229 = sphi 0, %s226
      %s230 = sphi 0, %s229
      %s246 = sphi 0, %s230
    $region4: #{rcab_forward.1} parent=1 // loop_header_branch
      %25 = sbr.rel (%p23) target = $region8
    $region5: #{rcab_forward.1} parent=1 // loop_body
      %s27 = ssub.s32 %s22, 1
      %s28 = ssub.s32 %s22, 2
      %s29 = sadd.s32 %s22, 1
      %s30 = ssub.s32 %s22, %s29
      %p31 = scmp.eq.s32.totalorder %s30, 0
      %s33 = sadd.s32 %s32, 1
      %s34 = scalar_select %p31, %s32, %s33
      %p37 = pneg %p31
      %p38 = scmp.eq.s32.totalorder %s22, 1
      %p39 = por %p37, %p38
      %p40 = scmp.ne.s32.totalorder %s32, %s35
      %p41 = scmp.eq.s32.totalorder %s22, 0
      %p42 = por %p40, %p41
      %p43 = scmp.ne.s32.totalorder %s32, %s35
      %p44 = scmp.eq.s32.totalorder %s27, 1
      %p45 = por %p43, %p44
      %p46 = scmp.ne.s32.totalorder %s35, %s36
      %p47 = scmp.eq.s32.totalorder %s27, 0
      %p48 = por %p46, %p47
      %p49 = scmp.ne.s32.totalorder %s35, %s36
      %p50 = scmp.eq.s32.totalorder %s28, 1
      %p51 = por %p49, %p50
      %p53 = scmp.ne.s32.totalorder %s36, %s52
      %p54 = scmp.eq.s32.totalorder %s28, 0
      %p55 = por %p53, %p54
      %s57 = sadd.s32 %s56, 1
      %p60 = scmp.eq.s32.totalorder %s22, 1
      %p61 = scmp.ne.s32.totalorder %s56, %s58
      %p62 = scmp.eq.s32.totalorder %s22, 0
      %p63 = por %p61, %p62
      %p64 = scmp.ne.s32.totalorder %s56, %s58
      %p65 = scmp.eq.s32.totalorder %s27, 1
      %p66 = por %p64, %p65
      %p67 = scmp.ne.s32.totalorder %s58, %s59
      %p68 = scmp.eq.s32.totalorder %s27, 0
      %p69 = por %p67, %p68
      %p70 = scmp.ne.s32.totalorder %s58, %s59
      %p71 = scmp.eq.s32.totalorder %s28, 1
      %p72 = por %p70, %p71
      %p74 = scmp.ne.s32.totalorder %s59, %s73
      %p75 = scmp.eq.s32.totalorder %s28, 0
      %p76 = por %p74, %p75
      %s78 = sadd.s32 %s77, 1
      %p81 = scmp.eq.s32.totalorder %s22, 1
      %p82 = scmp.ne.s32.totalorder %s77, %s79
      %p83 = scmp.eq.s32.totalorder %s22, 0
      %p84 = por %p82, %p83
      %p85 = scmp.ne.s32.totalorder %s77, %s79
      %p86 = scmp.eq.s32.totalorder %s27, 1
      %p87 = por %p85, %p86
      %p88 = scmp.ne.s32.totalorder %s79, %s80
      %p89 = scmp.eq.s32.totalorder %s27, 0
      %p90 = por %p88, %p89
      %p91 = scmp.ne.s32.totalorder %s79, %s80
      %p92 = scmp.eq.s32.totalorder %s28, 1
      %p93 = por %p91, %p92
      %p95 = scmp.ne.s32.totalorder %s80, %s94
      %p96 = scmp.eq.s32.totalorder %s28, 0
      %p97 = por %p95, %p96
      %s99 = sadd.s32 %s98, 1
      %p102 = scmp.eq.s32.totalorder %s22, 1
      %p103 = scmp.ne.s32.totalorder %s98, %s100
      %p104 = scmp.eq.s32.totalorder %s22, 0
      %p105 = por %p103, %p104
      %p106 = scmp.ne.s32.totalorder %s98, %s100
      %p107 = scmp.eq.s32.totalorder %s27, 1
      %p108 = por %p106, %p107
      %p109 = scmp.ne.s32.totalorder %s100, %s101
      %p110 = scmp.eq.s32.totalorder %s27, 0
      %p111 = por %p109, %p110
      %p112 = scmp.ne.s32.totalorder %s100, %s101
      %p113 = scmp.eq.s32.totalorder %s28, 1
      %p114 = por %p112, %p113
      %p116 = scmp.ne.s32.totalorder %s101, %s115
      %p117 = scmp.eq.s32.totalorder %s28, 0
      %p118 = por %p116, %p117
      %s120 = sadd.s32 %s119, 1
      %p123 = scmp.eq.s32.totalorder %s22, 1
      %p124 = scmp.ne.s32.totalorder %s119, %s121
      %p125 = scmp.eq.s32.totalorder %s22, 0
      %p126 = por %p124, %p125
      %p127 = scmp.ne.s32.totalorder %s119, %s121
      %p128 = scmp.eq.s32.totalorder %s27, 1
      %p129 = por %p127, %p128
      %p130 = scmp.ne.s32.totalorder %s121, %s122
      %p131 = scmp.eq.s32.totalorder %s27, 0
      %p132 = por %p130, %p131
      %p133 = scmp.ne.s32.totalorder %s121, %s122
      %p134 = scmp.eq.s32.totalorder %s28, 1
      %p135 = por %p133, %p134
      %p137 = scmp.ne.s32.totalorder %s122, %s136
      %p138 = scmp.eq.s32.totalorder %s28, 0
      %p139 = por %p137, %p138
      %s141 = sadd.s32 %s140, 1
      %p144 = scmp.eq.s32.totalorder %s22, 1
      %p145 = scmp.ne.s32.totalorder %s140, %s142
      %p146 = scmp.eq.s32.totalorder %s22, 0
      %p147 = por %p145, %p146
      %p148 = scmp.ne.s32.totalorder %s140, %s142
      %p149 = scmp.eq.s32.totalorder %s27, 1
      %p150 = por %p148, %p149
      %p151 = scmp.ne.s32.totalorder %s142, %s143
      %p152 = scmp.eq.s32.totalorder %s27, 0
      %p153 = por %p151, %p152
      %p154 = scmp.ne.s32.totalorder %s142, %s143
      %p155 = scmp.eq.s32.totalorder %s28, 1
      %p156 = por %p154, %p155
      %p158 = scmp.ne.s32.totalorder %s143, %s157
      %p159 = scmp.eq.s32.totalorder %s28, 0
      %p160 = por %p158, %p159
      %s162 = sadd.s32 %s161, 1
      %p165 = scmp.eq.s32.totalorder %s22, 1
      %p166 = scmp.ne.s32.totalorder %s161, %s163
      %p167 = scmp.eq.s32.totalorder %s22, 0
      %p168 = por %p166, %p167
      %p169 = scmp.ne.s32.totalorder %s161, %s163
      %p170 = scmp.eq.s32.totalorder %s27, 1
      %p171 = por %p169, %p170
      %p172 = scmp.ne.s32.totalorder %s163, %s164
      %p173 = scmp.eq.s32.totalorder %s27, 0
      %p174 = por %p172, %p173
      %p175 = scmp.ne.s32.totalorder %s163, %s164
      %p176 = scmp.eq.s32.totalorder %s28, 1
      %p177 = por %p175, %p176
      %p179 = scmp.ne.s32.totalorder %s164, %s178
      %p180 = scmp.eq.s32.totalorder %s28, 0
      %p181 = por %p179, %p180
      %s183 = sadd.s32 %s182, 1
      %p186 = scmp.eq.s32.totalorder %s22, 1
      %p187 = scmp.ne.s32.totalorder %s182, %s184
      %p188 = scmp.eq.s32.totalorder %s22, 0
      %p189 = por %p187, %p188
      %p190 = scmp.ne.s32.totalorder %s182, %s184
      %p191 = scmp.eq.s32.totalorder %s27, 1
      %p192 = por %p190, %p191
      %p193 = scmp.ne.s32.totalorder %s184, %s185
      %p194 = scmp.eq.s32.totalorder %s27, 0
      %p195 = por %p193, %p194
      %p196 = scmp.ne.s32.totalorder %s184, %s185
      %p197 = scmp.eq.s32.totalorder %s28, 1
      %p198 = por %p196, %p197
      %p200 = scmp.ne.s32.totalorder %s185, %s199
      %p201 = scmp.eq.s32.totalorder %s28, 0
      %p202 = por %p200, %p201
      %s204 = sadd.s32 %s203, 1
      %p207 = scmp.eq.s32.totalorder %s22, 1
      %p208 = scmp.ne.s32.totalorder %s203, %s205
      %p209 = scmp.eq.s32.totalorder %s22, 0
      %p210 = por %p208, %p209
      %p211 = scmp.ne.s32.totalorder %s203, %s205
      %p212 = scmp.eq.s32.totalorder %s27, 1
      %p213 = por %p211, %p212
      %p214 = scmp.ne.s32.totalorder %s205, %s206
      %p215 = scmp.eq.s32.totalorder %s27, 0
      %p216 = por %p214, %p215
      %p217 = scmp.ne.s32.totalorder %s205, %s206
      %p218 = scmp.eq.s32.totalorder %s28, 1
      %p219 = por %p217, %p218
      %p221 = scmp.ne.s32.totalorder %s206, %s220
      %p222 = scmp.eq.s32.totalorder %s28, 0
      %p223 = por %p221, %p222
      %s224 = ssub.s32 %s22, %s29
      %p225 = scmp.eq.s32.totalorder %s224, 0
      %s227 = sadd.s32 %s226, 1
      %s228 = scalar_select %p225, %s226, %s227
      %p231 = pneg %p225
      %p232 = scmp.eq.s32.totalorder %s22, 1
      %p233 = por %p231, %p232
      %p234 = scmp.ne.s32.totalorder %s226, %s229
      %p235 = scmp.eq.s32.totalorder %s22, 0
      %p236 = por %p234, %p235
      %p237 = scmp.ne.s32.totalorder %s226, %s229
      %p238 = scmp.eq.s32.totalorder %s27, 1
      %p239 = por %p237, %p238
      %p240 = scmp.ne.s32.totalorder %s229, %s230
      %p241 = scmp.eq.s32.totalorder %s27, 0
      %p242 = por %p240, %p241
      %p243 = scmp.ne.s32.totalorder %s229, %s230
      %p244 = scmp.eq.s32.totalorder %s28, 1
      %p245 = por %p243, %p244
      %p247 = scmp.ne.s32.totalorder %s230, %s246
      %p248 = scmp.eq.s32.totalorder %s28, 0
      %p249 = por %p247, %p248
      %p250 = scmp.le.s32.totalorder 1, %s22
      %p251 = scmp.lt.s32.totalorder %s22, 3
      %p252 = pnand %p250, %p251
      %p253 = pneg %p252
      // Predicated region
      $region9: #{rcab_forward.1} parent=5 // pred_check
        _
      $region10: #{rcab_forward.1} parent=5 // pred_check_branch
        %255 = sbr.rel (%p252) target = $region12
      $region11: #{rcab_forward.1} parent=5 // pred_region
        %s256 = ssub.s32 %s22, 1
        // Predicated region
        $region13: #{rcab_forward.1} parent=11 // pred_check
          %p257 = pneg %p69
        $region14: #{rcab_forward.1} parent=11 // pred_check_branch
          %259 = sbr.rel (%p257) target = $region16
        $region15: #{rcab_forward.1} parent=11 // pred_region
          %261 = vsyncadd [#allocation8], 0
          %s262 = sshll.u32 %s1, 4
          %s263 = int_to_ptr.hbm [resolvable:$true] %s262
          %s264 = sshll.u32 [#allocation7], 4
          %s265 = int_to_ptr.vmem [resolvable:$true] %s264
          %270 = dma.hbm_to_vmem [thread:$0]  %s263, 4608, %s265, [#allocation8], 64, 64, 4
        $region16: #{rcab_forward.1} parent=11 // pred_fallthru
          _
        // Predicated region
        $region17: #{rcab_forward.1} parent=11 // pred_check
          %p271 = pneg %p90
        $region18: #{rcab_forward.1} parent=11 // pred_check_branch
          %273 = sbr.rel (%p271) target = $region20
        $region19: #{rcab_forward.1} parent=11 // pred_region
          _
        $region20: #{rcab_forward.1} parent=11 // pred_fallthru
          _
        // Predicated region
        $region21: #{rcab_forward.1} parent=11 // pred_check
          %p274 = pneg %p111
        $region22: #{rcab_forward.1} parent=11 // pred_check_branch
          %276 = sbr.rel (%p274) target = $region24
        $region23: #{rcab_forward.1} parent=11 // pred_region
          %278 = vsyncadd [#allocation8], 0
          %s279 = sshll.u32 %s3, 4
          %s280 = int_to_ptr.hbm [resolvable:$true] %s279
          %s281 = sshll.u32 [#allocation9], 4
          %s282 = int_to_ptr.vmem [resolvable:$true] %s281
          %287 = dma.hbm_to_vmem [thread:$0]  %s280, 4608, %s282, [#allocation8], 64, 64, 4
        $region24: #{rcab_forward.1} parent=11 // pred_fallthru
          _
        // Predicated region
        $region25: #{rcab_forward.1} parent=11 // pred_check
          %p288 = pneg %p132
        $region26: #{rcab_forward.1} parent=11 // pred_check_branch
          %290 = sbr.rel (%p288) target = $region28
        $region27: #{rcab_forward.1} parent=11 // pred_region
          _
        $region28: #{rcab_forward.1} parent=11 // pred_fallthru
          _
        // Predicated region
        $region29: #{rcab_forward.1} parent=11 // pred_check
          %p291 = pneg %p153
        $region30: #{rcab_forward.1} parent=11 // pred_check_branch
          %293 = sbr.rel (%p291) target = $region32
        $region31: #{rcab_forward.1} parent=11 // pred_region
          _
        $region32: #{rcab_forward.1} parent=11 // pred_fallthru
          _
        // Predicated region
        $region33: #{rcab_forward.1} parent=11 // pred_check
          %p294 = pneg %p174
        $region34: #{rcab_forward.1} parent=11 // pred_check_branch
          %296 = sbr.rel (%p294) target = $region36
        $region35: #{rcab_forward.1} parent=11 // pred_region
          _
        $region36: #{rcab_forward.1} parent=11 // pred_fallthru
          _
        // Predicated region
        $region37: #{rcab_forward.1} parent=11 // pred_check
          %p297 = pneg %p195
        $region38: #{rcab_forward.1} parent=11 // pred_check_branch
          %299 = sbr.rel (%p297) target = $region40
        $region39: #{rcab_forward.1} parent=11 // pred_region
          _
        $region40: #{rcab_forward.1} parent=11 // pred_fallthru
          _
        // Predicated region
        $region41: #{rcab_forward.1} parent=11 // pred_check
          %p300 = pneg %p216
        $region42: #{rcab_forward.1} parent=11 // pred_check_branch
          %302 = sbr.rel (%p300) target = $region44
        $region43: #{rcab_forward.1} parent=11 // pred_region
          _
        $region44: #{rcab_forward.1} parent=11 // pred_fallthru
          _
      $region12: #{rcab_forward.1} parent=5 // pred_fallthru
        _
      %p303 = scmp.lt.s32.totalorder %s22, 2
      // Predicated region
      $region45: #{rcab_forward.1} parent=5 // pred_check
        %p304 = pneg %p303
      $region46: #{rcab_forward.1} parent=5 // pred_check_branch
        %306 = sbr.rel (%p304) target = $region48
      $region47: #{rcab_forward.1} parent=5 // pred_region
        // Predicated region
        $region49: #{rcab_forward.1} parent=47 // pred_check
          %p307 = pneg %p42
        $region50: #{rcab_forward.1} parent=47 // pred_check_branch
          %309 = sbr.rel (%p307) target = $region52
        $region51: #{rcab_forward.1} parent=47 // pred_region
          %s310 = sand.u32 %s32, 1
          %s311 = scalar_lea.sflag [#allocation5], %s310
          %s312 = sand.u32 %s32, 1
          %s313 = smul.addr %s312, 256
          %s314 = scalar_lea.vmem [#allocation4], %s313
          %316 = vsyncadd %s311, 0
          %s317 = smul.addr %s22, 32
          %s318 = smul.addr %s317, 8
          %s319 = scalar_lea.hbm %s0, %s318
          %s320 = sshll.u32 %s319, 4
          %s321 = int_to_ptr.hbm [resolvable:$true] %s320
          %s322 = sshll.u32 %s314, 4
          %s323 = int_to_ptr.vmem [resolvable:$true] %s322
          %328 = dma.hbm_to_vmem [thread:$0]  %s321, 4096, %s323, %s311, 128, 128, 8
        $region52: #{rcab_forward.1} parent=47 // pred_fallthru
          _
      $region48: #{rcab_forward.1} parent=5 // pred_fallthru
        _
      %p329 = scmp.le.s32.totalorder 1, %s22
      %p330 = scmp.lt.s32.totalorder %s22, 3
      %p331 = pnand %p329, %p330
      %p332 = pneg %p331
      // Predicated region
      $region53: #{rcab_forward.1} parent=5 // pred_check
        _
      $region54: #{rcab_forward.1} parent=5 // pred_check_branch
        %334 = sbr.rel (%p331) target = $region56
      $region55: #{rcab_forward.1} parent=5 // pred_region
        %s335 = ssub.s32 %s22, 1
        %s336 = sand.u32 %s35, 1
        %s337 = scalar_lea.sflag [#allocation5], %s336
        %s338 = sand.u32 %s35, 1
        %s339 = smul.addr %s338, 256
        %s340 = scalar_lea.vmem [#allocation4], %s339
        // Predicated region
        $region57: #{rcab_forward.1} parent=55 // pred_check
          %p341 = pneg %p48
        $region58: #{rcab_forward.1} parent=55 // pred_check_branch
          %343 = sbr.rel (%p341) target = $region60
        $region59: #{rcab_forward.1} parent=55 // pred_region
          %345 = dma.done %s337, 4096
        $region60: #{rcab_forward.1} parent=55 // pred_fallthru
          _
        // Predicated region
        $region61: #{rcab_forward.1} parent=55 // pred_check
          %p346 = pneg %p69
        $region62: #{rcab_forward.1} parent=55 // pred_check_branch
          %348 = sbr.rel (%p346) target = $region64
        $region63: #{rcab_forward.1} parent=55 // pred_region
          %350 = dma.done [#allocation8], 4608
        $region64: #{rcab_forward.1} parent=55 // pred_fallthru
          _
        // Predicated region
        $region65: #{rcab_forward.1} parent=55 // pred_check
          %p351 = pneg %p111
        $region66: #{rcab_forward.1} parent=55 // pred_check_branch
          %353 = sbr.rel (%p351) target = $region68
        $region67: #{rcab_forward.1} parent=55 // pred_region
          %355 = dma.done [#allocation8], 4608
        $region68: #{rcab_forward.1} parent=55 // pred_fallthru
          _
        %s356 = sand.u32 %s35, 1
        %s357 = scalar_lea.sflag [#allocation5], %s356
        %s358 = sand.u32 %s35, 1
        %s359 = smul.addr %s358, 256
        %s360 = scalar_lea.vmem [#allocation4], %s359
        %p361 = pneg %p48
        %p362 = pneg %p45
        %p363 = pneg %p69
        %p364 = pneg %p66
        %p365 = pneg %p90
        %p366 = pneg %p87
        %p367 = pneg %p111
        %p368 = pneg %p108
        %p369 = pneg %p132
        %p370 = pneg %p129
        %p371 = pneg %p153
        %p372 = pneg %p150
        %p373 = pneg %p174
        %p374 = pneg %p171
        %p375 = pneg %p195
        %p376 = pneg %p192
        %p377 = pneg %p216
        %p378 = pneg %p213
        %p379 = pneg %p242
        %p380 = pneg %p239
        %s381 = sand.u32 %s229, 1
        %s382 = scalar_lea.sflag [#allocation6], %s381
        %s383 = sand.u32 %s229, 1
        %s384 = smul.addr %s383, 256
        %s385 = scalar_lea.vmem [#allocation10], %s384
        %vm387 = vcmask 523264
        %388 = vst.msk [vmem:[#allocation2] sm:$0xff] %vm387, 0.0
        %389 = vst.msk [vmem:[#allocation2 + $0x8] sm:$0xff] %vm387, 0.0
        %vm390 = vcmask 517120
        %391 = vst.msk [vmem:[#allocation2 + $0x10] sm:$0x3] %vm390, 0.0
        %s392 = scalar_lea.vmem [#allocation2], 408
        %393 = vst.msk [vmem:[%s392] sm:$0xff] %vm387, 0.0
        %394 = vst.msk [vmem:[%s392 + $0x8] sm:$0xff] %vm387, 0.0
        %395 = vst.msk [vmem:[%s392 + $0x10] sm:$0x3] %vm390, 0.0
        %vm396 = vcmask 516096
        %397 = vst.msk [vmem:[#allocation2] sm:$0x1] %vm396, 0.0
        %398 = vst.msk [vmem:[#allocation2 + $0x18] sm:$0x1] %vm396, 0.0
        %399 = vst.msk [vmem:[#allocation2 + $0x30] sm:$0x1] %vm396, 0.0
        %400 = vst.msk [vmem:[#allocation2 + $0x48] sm:$0x1] %vm396, 0.0
        %401 = vst.msk [vmem:[#allocation2 + $0x60] sm:$0x1] %vm396, 0.0
        %402 = vst.msk [vmem:[#allocation2 + $0x78] sm:$0x1] %vm396, 0.0
        %403 = vst.msk [vmem:[#allocation2 + $0x90] sm:$0x1] %vm396, 0.0
        %404 = vst.msk [vmem:[#allocation2 + $0xa8] sm:$0x1] %vm396, 0.0
        %405 = vst.msk [vmem:[#allocation2 + $0xc0] sm:$0x1] %vm396, 0.0
        %406 = vst.msk [vmem:[#allocation2 + $0xd8] sm:$0x1] %vm396, 0.0
        %407 = vst.msk [vmem:[#allocation2 + $0xf0] sm:$0x1] %vm396, 0.0
        %408 = vst.msk [vmem:[#allocation2 + $0x108] sm:$0x1] %vm396, 0.0
        %409 = vst.msk [vmem:[#allocation2 + $0x120] sm:$0x1] %vm396, 0.0
        %410 = vst.msk [vmem:[#allocation2 + $0x138] sm:$0x1] %vm396, 0.0
        %411 = vst.msk [vmem:[#allocation2 + $0x150] sm:$0x1] %vm396, 0.0
        %412 = vst.msk [vmem:[#allocation2 + $0x168] sm:$0x1] %vm396, 0.0
        %413 = vst.msk [vmem:[#allocation2 + $0x180] sm:$0x1] %vm396, 0.0
        %414 = vst.msk [vmem:[#allocation2 + $0x198] sm:$0x1] %vm396, 0.0
        %415 = vst.msk [vmem:[#allocation2 + $0x11] sm:$0x1] %vm396, 0.0
        %416 = vst.msk [vmem:[#allocation2 + $0x29] sm:$0x1] %vm396, 0.0
        %417 = vst.msk [vmem:[#allocation2 + $0x41] sm:$0x1] %vm396, 0.0
        %418 = vst.msk [vmem:[#allocation2 + $0x59] sm:$0x1] %vm396, 0.0
        %419 = vst.msk [vmem:[#allocation2 + $0x71] sm:$0x1] %vm396, 0.0
        %420 = vst.msk [vmem:[#allocation2 + $0x89] sm:$0x1] %vm396, 0.0
        %421 = vst.msk [vmem:[#allocation2 + $0xa1] sm:$0x1] %vm396, 0.0
        %422 = vst.msk [vmem:[#allocation2 + $0xb9] sm:$0x1] %vm396, 0.0
        %423 = vst.msk [vmem:[#allocation2 + $0xd1] sm:$0x1] %vm396, 0.0
        %424 = vst.msk [vmem:[#allocation2 + $0xe9] sm:$0x1] %vm396, 0.0
        %425 = vst.msk [vmem:[#allocation2 + $0x101] sm:$0x1] %vm396, 0.0
        %426 = vst.msk [vmem:[#allocation2 + $0x119] sm:$0x1] %vm396, 0.0
        %427 = vst.msk [vmem:[#allocation2 + $0x131] sm:$0x1] %vm396, 0.0
        %428 = vst.msk [vmem:[#allocation2 + $0x149] sm:$0x1] %vm396, 0.0
        %429 = vst.msk [vmem:[#allocation2 + $0x161] sm:$0x1] %vm396, 0.0
        %430 = vst.msk [vmem:[#allocation2 + $0x179] sm:$0x1] %vm396, 0.0
        %431 = vst.msk [vmem:[#allocation2 + $0x191] sm:$0x1] %vm396, 0.0
        %432 = vst.msk [vmem:[#allocation2 + $0x1a9] sm:$0x1] %vm396, 0.0
        %v433 = vld [vmem:[%s340] sm:$0xff]
        %v434 = vld [vmem:[%s340 + $0x8] sm:$0xff]
        %v435 = vld [vmem:[%s340 + $0x10] sm:$0xff]
        %v436 = vld [vmem:[%s340 + $0x18] sm:$0xff]
        %v437 = vld [vmem:[%s340 + $0x20] sm:$0xff]
        %v438 = vld [vmem:[%s340 + $0x28] sm:$0xff]
        %v439 = vld [vmem:[%s340 + $0x30] sm:$0xff]
        %v440 = vld [vmem:[%s340 + $0x38] sm:$0xff]
        %v441 = vld [vmem:[%s340 + $0x40] sm:$0xff]
        %v442 = vld [vmem:[%s340 + $0x48] sm:$0xff]
        %v443 = vld [vmem:[%s340 + $0x50] sm:$0xff]
        %v444 = vld [vmem:[%s340 + $0x58] sm:$0xff]
        %v445 = vld [vmem:[%s340 + $0x60] sm:$0xff]
        %v446 = vld [vmem:[%s340 + $0x68] sm:$0xff]
        %v447 = vld [vmem:[%s340 + $0x70] sm:$0xff]
        %v448 = vld [vmem:[%s340 + $0x78] sm:$0xff]
        %v449 = vld [vmem:[%s340 + $0x80] sm:$0xff]
        %v450 = vld [vmem:[%s340 + $0x88] sm:$0xff]
        %v451 = vld [vmem:[%s340 + $0x90] sm:$0xff]
        %v452 = vld [vmem:[%s340 + $0x98] sm:$0xff]
        %v453 = vld [vmem:[%s340 + $0xa0] sm:$0xff]
        %v454 = vld [vmem:[%s340 + $0xa8] sm:$0xff]
        %v455 = vld [vmem:[%s340 + $0xb0] sm:$0xff]
        %v456 = vld [vmem:[%s340 + $0xb8] sm:$0xff]
        %v457 = vld [vmem:[%s340 + $0xc0] sm:$0xff]
        %v458 = vld [vmem:[%s340 + $0xc8] sm:$0xff]
        %v459 = vld [vmem:[%s340 + $0xd0] sm:$0xff]
        %v460 = vld [vmem:[%s340 + $0xd8] sm:$0xff]
        %v461 = vld [vmem:[%s340 + $0xe0] sm:$0xff]
        %v462 = vld [vmem:[%s340 + $0xe8] sm:$0xff]
        %v463 = vld [vmem:[%s340 + $0xf0] sm:$0xff]
        %v464 = vld [vmem:[%s340 + $0xf8] sm:$0xff]
        %s465 = scalar_lea.vmem [#allocation2], 24
        %466 = vst.msk [vmem:[%s465 + $0x1] sm:$0xff] %vm387, %v433
        %467 = vst.msk [vmem:[%s465 + $0x9] sm:$0xff] %vm387, %v434
        %468 = vst.msk [vmem:[%s465 + $0x19] sm:$0xff] %vm387, %v435
        %469 = vst.msk [vmem:[%s465 + $0x21] sm:$0xff] %vm387, %v436
        %470 = vst.msk [vmem:[%s465 + $0x31] sm:$0xff] %vm387, %v437
        %471 = vst.msk [vmem:[%s465 + $0x39] sm:$0xff] %vm387, %v438
        %472 = vst.msk [vmem:[%s465 + $0x49] sm:$0xff] %vm387, %v439
        %473 = vst.msk [vmem:[%s465 + $0x51] sm:$0xff] %vm387, %v440
        %474 = vst.msk [vmem:[%s465 + $0x61] sm:$0xff] %vm387, %v441
        %475 = vst.msk [vmem:[%s465 + $0x69] sm:$0xff] %vm387, %v442
        %476 = vst.msk [vmem:[%s465 + $0x79] sm:$0xff] %vm387, %v443
        %477 = vst.msk [vmem:[%s465 + $0x81] sm:$0xff] %vm387, %v444
        %478 = vst.msk [vmem:[%s465 + $0x91] sm:$0xff] %vm387, %v445
        %479 = vst.msk [vmem:[%s465 + $0x99] sm:$0xff] %vm387, %v446
        %480 = vst.msk [vmem:[%s465 + $0xa9] sm:$0xff] %vm387, %v447
        %481 = vst.msk [vmem:[%s465 + $0xb1] sm:$0xff] %vm387, %v448
        %482 = vst.msk [vmem:[%s465 + $0xc1] sm:$0xff] %vm387, %v449
        %483 = vst.msk [vmem:[%s465 + $0xc9] sm:$0xff] %vm387, %v450
        %484 = vst.msk [vmem:[%s465 + $0xd9] sm:$0xff] %vm387, %v451
        %485 = vst.msk [vmem:[%s465 + $0xe1] sm:$0xff] %vm387, %v452
        %486 = vst.msk [vmem:[%s465 + $0xf1] sm:$0xff] %vm387, %v453
        %487 = vst.msk [vmem:[%s465 + $0xf9] sm:$0xff] %vm387, %v454
        %488 = vst.msk [vmem:[%s465 + $0x109] sm:$0xff] %vm387, %v455
        %489 = vst.msk [vmem:[%s465 + $0x111] sm:$0xff] %vm387, %v456
        %490 = vst.msk [vmem:[%s465 + $0x121] sm:$0xff] %vm387, %v457
        %491 = vst.msk [vmem:[%s465 + $0x129] sm:$0xff] %vm387, %v458
        %492 = vst.msk [vmem:[%s465 + $0x139] sm:$0xff] %vm387, %v459
        %493 = vst.msk [vmem:[%s465 + $0x141] sm:$0xff] %vm387, %v460
        %494 = vst.msk [vmem:[%s465 + $0x151] sm:$0xff] %vm387, %v461
        %495 = vst.msk [vmem:[%s465 + $0x159] sm:$0xff] %vm387, %v462
        %496 = vst.msk [vmem:[%s465 + $0x169] sm:$0xff] %vm387, %v463
        %497 = vst.msk [vmem:[%s465 + $0x171] sm:$0xff] %vm387, %v464
        %v498 = vld [vmem:[#allocation2] sm:$0xff]
        %v499 = vld [vmem:[#allocation2 + $0x8] sm:$0xff]
        %v500 = vld [vmem:[#allocation2 + $0x18] sm:$0xff]
        %v501 = vld [vmem:[#allocation2 + $0x20] sm:$0xff]
        %v502 = vld [vmem:[#allocation2 + $0x30] sm:$0xff]
        %v503 = vld [vmem:[#allocation2 + $0x38] sm:$0xff]
        %v504 = vld [vmem:[#allocation2 + $0x48] sm:$0xff]
        %v505 = vld [vmem:[#allocation2 + $0x50] sm:$0xff]
        %v506 = vld [vmem:[#allocation2 + $0x60] sm:$0xff]
        %v507 = vld [vmem:[#allocation2 + $0x68] sm:$0xff]
        %v508 = vld [vmem:[#allocation2 + $0x78] sm:$0xff]
        %v509 = vld [vmem:[#allocation2 + $0x80] sm:$0xff]
        %v510 = vld [vmem:[#allocation2 + $0x90] sm:$0xff]
        %v511 = vld [vmem:[#allocation2 + $0x98] sm:$0xff]
        %v512 = vld [vmem:[#allocation2 + $0xa8] sm:$0xff]
        %v513 = vld [vmem:[#allocation2 + $0xb0] sm:$0xff]
        %v514 = vld [vmem:[#allocation2 + $0xc0] sm:$0xff]
        %v515 = vld [vmem:[#allocation2 + $0xc8] sm:$0xff]
        %v516 = vld [vmem:[#allocation2 + $0xd8] sm:$0xff]
        %v517 = vld [vmem:[#allocation2 + $0xe0] sm:$0xff]
        %v518 = vld [vmem:[#allocation2 + $0xf0] sm:$0xff]
        %v519 = vld [vmem:[#allocation2 + $0xf8] sm:$0xff]
        %v520 = vld [vmem:[#allocation2 + $0x108] sm:$0xff]
        %v521 = vld [vmem:[#allocation2 + $0x110] sm:$0xff]
        %v522 = vld [vmem:[#allocation2 + $0x120] sm:$0xff]
        %v523 = vld [vmem:[#allocation2 + $0x128] sm:$0xff]
        %v524 = vld [vmem:[#allocation2 + $0x138] sm:$0xff]
        %v525 = vld [vmem:[#allocation2 + $0x140] sm:$0xff]
        %v526 = vld [vmem:[#allocation2 + $0x150] sm:$0xff]
        %v527 = vld [vmem:[#allocation2 + $0x158] sm:$0xff]
        %v528 = vld [vmem:[#allocation2 + $0x168] sm:$0xff]
        %v529 = vld [vmem:[#allocation2 + $0x170] sm:$0xff]
        %v530 = vpack.c.bf16 %v498, %v498
        %v531 = vpack.c.bf16 %v499, %v499
        %v532 = vpack.c.bf16 %v500, %v500
        %v533 = vpack.c.bf16 %v501, %v501
        %v534 = vpack.c.bf16 %v502, %v502
        %v535 = vpack.c.bf16 %v503, %v503
        %v536 = vpack.c.bf16 %v504, %v504
        %v537 = vpack.c.bf16 %v505, %v505
        %v538 = vpack.c.bf16 %v506, %v506
        %v539 = vpack.c.bf16 %v507, %v507
        %v540 = vpack.c.bf16 %v508, %v508
        %v541 = vpack.c.bf16 %v509, %v509
        %v542 = vpack.c.bf16 %v510, %v510
        %v543 = vpack.c.bf16 %v511, %v511
        %v544 = vpack.c.bf16 %v512, %v512
        %v545 = vpack.c.bf16 %v513, %v513
        %v546 = vpack.c.bf16 %v514, %v514
        %v547 = vpack.c.bf16 %v515, %v515
        %v548 = vpack.c.bf16 %v516, %v516
        %v549 = vpack.c.bf16 %v517, %v517
        %v550 = vpack.c.bf16 %v518, %v518
        %v551 = vpack.c.bf16 %v519, %v519
        %v552 = vpack.c.bf16 %v520, %v520
        %v553 = vpack.c.bf16 %v521, %v521
        %v554 = vpack.c.bf16 %v522, %v522
        %v555 = vpack.c.bf16 %v523, %v523
        %v556 = vpack.c.bf16 %v524, %v524
        %v557 = vpack.c.bf16 %v525, %v525
        %v558 = vpack.c.bf16 %v526, %v526
        %v559 = vpack.c.bf16 %v527, %v527
        %v560 = vpack.c.bf16 %v528, %v528
        %v561 = vpack.c.bf16 %v529, %v529
        %vm562 = vcmask 519168
        %563 = vst.msk [vmem:[#allocation3] sm:$0xf] %vm562, %v530
        %564 = vst.msk [vmem:[#allocation3 + $0x14] sm:$0xf] %vm562, %v531
        %565 = vst.msk [vmem:[#allocation3 + $0x28] sm:$0xf] %vm562, %v532
        %566 = vst.msk [vmem:[#allocation3 + $0x3c] sm:$0xf] %vm562, %v533
        %567 = vst.msk [vmem:[#allocation3 + $0x50] sm:$0xf] %vm562, %v534
        %568 = vst.msk [vmem:[#allocation3 + $0x64] sm:$0xf] %vm562, %v535
        %569 = vst.msk [vmem:[#allocation3 + $0x78] sm:$0xf] %vm562, %v536
        %570 = vst.msk [vmem:[#allocation3 + $0x8c] sm:$0xf] %vm562, %v537
        %571 = vst.msk [vmem:[#allocation3 + $0xa0] sm:$0xf] %vm562, %v538
        %572 = vst.msk [vmem:[#allocation3 + $0xb4] sm:$0xf] %vm562, %v539
        %573 = vst.msk [vmem:[#allocation3 + $0xc8] sm:$0xf] %vm562, %v540
        %574 = vst.msk [vmem:[#allocation3 + $0xdc] sm:$0xf] %vm562, %v541
        %575 = vst.msk [vmem:[#allocation3 + $0xf0] sm:$0xf] %vm562, %v542
        %576 = vst.msk [vmem:[#allocation3 + $0x104] sm:$0xf] %vm562, %v543
        %577 = vst.msk [vmem:[#allocation3 + $0x118] sm:$0xf] %vm562, %v544
        %578 = vst.msk [vmem:[#allocation3 + $0x12c] sm:$0xf] %vm562, %v545
        %579 = vst.msk [vmem:[#allocation3 + $0x140] sm:$0xf] %vm562, %v546
        %580 = vst.msk [vmem:[#allocation3 + $0x154] sm:$0xf] %vm562, %v547
        %581 = vst.msk [vmem:[#allocation3 + $0x168] sm:$0xf] %vm562, %v548
        %582 = vst.msk [vmem:[#allocation3 + $0x17c] sm:$0xf] %vm562, %v549
        %583 = vst.msk [vmem:[#allocation3 + $0x190] sm:$0xf] %vm562, %v550
        %584 = vst.msk [vmem:[#allocation3 + $0x1a4] sm:$0xf] %vm562, %v551
        %585 = vst.msk [vmem:[#allocation3 + $0x1b8] sm:$0xf] %vm562, %v552
        %586 = vst.msk [vmem:[#allocation3 + $0x1cc] sm:$0xf] %vm562, %v553
        %587 = vst.msk [vmem:[#allocation3 + $0x1e0] sm:$0xf] %vm562, %v554
        %588 = vst.msk [vmem:[#allocation3 + $0x1f4] sm:$0xf] %vm562, %v555
        %589 = vst.msk [vmem:[#allocation3 + $0x208] sm:$0xf] %vm562, %v556
        %590 = vst.msk [vmem:[#allocation3 + $0x21c] sm:$0xf] %vm562, %v557
        %591 = vst.msk [vmem:[#allocation3 + $0x230] sm:$0xf] %vm562, %v558
        %592 = vst.msk [vmem:[#allocation3 + $0x244] sm:$0xf] %vm562, %v559
        %593 = vst.msk [vmem:[#allocation3 + $0x258] sm:$0xf] %vm562, %v560
        %594 = vst.msk [vmem:[#allocation3 + $0x26c] sm:$0xf] %vm562, %v561
        %v595 = vld [vmem:[#allocation2 + $0x1] sm:$0xff]
        %v596 = vld [vmem:[#allocation2 + $0x9] sm:$0xff]
        %v597 = vld [vmem:[#allocation2 + $0x19] sm:$0xff]
        %v598 = vld [vmem:[#allocation2 + $0x21] sm:$0xff]
        %v599 = vld [vmem:[#allocation2 + $0x31] sm:$0xff]
        %v600 = vld [vmem:[#allocation2 + $0x39] sm:$0xff]
        %v601 = vld [vmem:[#allocation2 + $0x49] sm:$0xff]
        %v602 = vld [vmem:[#allocation2 + $0x51] sm:$0xff]
        %v603 = vld [vmem:[#allocation2 + $0x61] sm:$0xff]
        %v604 = vld [vmem:[#allocation2 + $0x69] sm:$0xff]
        %v605 = vld [vmem:[#allocation2 + $0x79] sm:$0xff]
        %v606 = vld [vmem:[#allocation2 + $0x81] sm:$0xff]
        %v607 = vld [vmem:[#allocation2 + $0x91] sm:$0xff]
        %v608 = vld [vmem:[#allocation2 + $0x99] sm:$0xff]
        %v609 = vld [vmem:[#allocation2 + $0xa9] sm:$0xff]
        %v610 = vld [vmem:[#allocation2 + $0xb1] sm:$0xff]
        %v611 = vld [vmem:[#allocation2 + $0xc1] sm:$0xff]
        %v612 = vld [vmem:[#allocation2 + $0xc9] sm:$0xff]
        %v613 = vld [vmem:[#allocation2 + $0xd9] sm:$0xff]
        %v614 = vld [vmem:[#allocation2 + $0xe1] sm:$0xff]
        %v615 = vld [vmem:[#allocation2 + $0xf1] sm:$0xff]
        %v616 = vld [vmem:[#allocation2 + $0xf9] sm:$0xff]
        %v617 = vld [vmem:[#allocation2 + $0x109] sm:$0xff]
        %v618 = vld [vmem:[#allocation2 + $0x111] sm:$0xff]
        %v619 = vld [vmem:[#allocation2 + $0x121] sm:$0xff]
        %v620 = vld [vmem:[#allocation2 + $0x129] sm:$0xff]
        %v621 = vld [vmem:[#allocation2 + $0x139] sm:$0xff]
        %v622 = vld [vmem:[#allocation2 + $0x141] sm:$0xff]
        %v623 = vld [vmem:[#allocation2 + $0x151] sm:$0xff]
        %v624 = vld [vmem:[#allocation2 + $0x159] sm:$0xff]
        %v625 = vld [vmem:[#allocation2 + $0x169] sm:$0xff]
        %v626 = vld [vmem:[#allocation2 + $0x171] sm:$0xff]
        %v627 = vpack.c.bf16 %v595, %v595
        %v628 = vpack.c.bf16 %v596, %v596
        %v629 = vpack.c.bf16 %v597, %v597
        %v630 = vpack.c.bf16 %v598, %v598
        %v631 = vpack.c.bf16 %v599, %v599
        %v632 = vpack.c.bf16 %v600, %v600
        %v633 = vpack.c.bf16 %v601, %v601
        %v634 = vpack.c.bf16 %v602, %v602
        %v635 = vpack.c.bf16 %v603, %v603
        %v636 = vpack.c.bf16 %v604, %v604
        %v637 = vpack.c.bf16 %v605, %v605
        %v638 = vpack.c.bf16 %v606, %v606
        %v639 = vpack.c.bf16 %v607, %v607
        %v640 = vpack.c.bf16 %v608, %v608
        %v641 = vpack.c.bf16 %v609, %v609
        %v642 = vpack.c.bf16 %v610, %v610
        %v643 = vpack.c.bf16 %v611, %v611
        %v644 = vpack.c.bf16 %v612, %v612
        %v645 = vpack.c.bf16 %v613, %v613
        %v646 = vpack.c.bf16 %v614, %v614
        %v647 = vpack.c.bf16 %v615, %v615
        %v648 = vpack.c.bf16 %v616, %v616
        %v649 = vpack.c.bf16 %v617, %v617
        %v650 = vpack.c.bf16 %v618, %v618
        %v651 = vpack.c.bf16 %v619, %v619
        %v652 = vpack.c.bf16 %v620, %v620
        %v653 = vpack.c.bf16 %v621, %v621
        %v654 = vpack.c.bf16 %v622, %v622
        %v655 = vpack.c.bf16 %v623, %v623
        %v656 = vpack.c.bf16 %v624, %v624
        %v657 = vpack.c.bf16 %v625, %v625
        %v658 = vpack.c.bf16 %v626, %v626
        %691 = vrot.lane.b32.xlu0 %v627, 64
        %v692 = vpop.permute.xlu0 %691
        %693 = vrot.lane.b32.xlu0 %v628, 64
        %v694 = vpop.permute.xlu0 %693
        %695 = vrot.lane.b32.xlu0 %v629, 64
        %v696 = vpop.permute.xlu0 %695
        %697 = vrot.lane.b32.xlu0 %v630, 64
        %v698 = vpop.permute.xlu0 %697
        %699 = vrot.lane.b32.xlu0 %v631, 64
        %v700 = vpop.permute.xlu0 %699
        %701 = vrot.lane.b32.xlu0 %v632, 64
        %v702 = vpop.permute.xlu0 %701
        %703 = vrot.lane.b32.xlu0 %v633, 64
        %v704 = vpop.permute.xlu0 %703
        %705 = vrot.lane.b32.xlu0 %v634, 64
        %v706 = vpop.permute.xlu0 %705
        %707 = vrot.lane.b32.xlu0 %v635, 64
        %v708 = vpop.permute.xlu0 %707
        %709 = vrot.lane.b32.xlu0 %v636, 64
        %v710 = vpop.permute.xlu0 %709
        %711 = vrot.lane.b32.xlu0 %v637, 64
        %v712 = vpop.permute.xlu0 %711
        %713 = vrot.lane.b32.xlu0 %v638, 64
        %v714 = vpop.permute.xlu0 %713
        %715 = vrot.lane.b32.xlu0 %v639, 64
        %v716 = vpop.permute.xlu0 %715
        %717 = vrot.lane.b32.xlu0 %v640, 64
        %v718 = vpop.permute.xlu0 %717
        %719 = vrot.lane.b32.xlu0 %v641, 64
        %v720 = vpop.permute.xlu0 %719
        %721 = vrot.lane.b32.xlu0 %v642, 64
        %v722 = vpop.permute.xlu0 %721
        %723 = vrot.lane.b32.xlu0 %v643, 64
        %v724 = vpop.permute.xlu0 %723
        %725 = vrot.lane.b32.xlu0 %v644, 64
        %v726 = vpop.permute.xlu0 %725
        %727 = vrot.lane.b32.xlu0 %v645, 64
        %v728 = vpop.permute.xlu0 %727
        %729 = vrot.lane.b32.xlu0 %v646, 64
        %v730 = vpop.permute.xlu0 %729
        %731 = vrot.lane.b32.xlu0 %v647, 64
        %v732 = vpop.permute.xlu0 %731
        %733 = vrot.lane.b32.xlu0 %v648, 64
        %v734 = vpop.permute.xlu0 %733
        %735 = vrot.lane.b32.xlu0 %v649, 64
        %v736 = vpop.permute.xlu0 %735
        %737 = vrot.lane.b32.xlu0 %v650, 64
        %v738 = vpop.permute.xlu0 %737
        %739 = vrot.lane.b32.xlu0 %v651, 64
        %v740 = vpop.permute.xlu0 %739
        %741 = vrot.lane.b32.xlu0 %v652, 64
        %v742 = vpop.permute.xlu0 %741
        %743 = vrot.lane.b32.xlu0 %v653, 64
        %v744 = vpop.permute.xlu0 %743
        %745 = vrot.lane.b32.xlu0 %v654, 64
        %v746 = vpop.permute.xlu0 %745
        %747 = vrot.lane.b32.xlu0 %v655, 64
        %v748 = vpop.permute.xlu0 %747
        %749 = vrot.lane.b32.xlu0 %v656, 64
        %v750 = vpop.permute.xlu0 %749
        %751 = vrot.lane.b32.xlu0 %v657, 64
        %v752 = vpop.permute.xlu0 %751
        %753 = vrot.lane.b32.xlu0 %v658, 64
        %v754 = vpop.permute.xlu0 %753
        %vm787 = vcmask 1043968
        %788 = vst.msk [vmem:[#allocation3] sm:$0xf] %vm787, %v692
        %789 = vst.msk [vmem:[#allocation3 + $0x14] sm:$0xf] %vm787, %v694
        %790 = vst.msk [vmem:[#allocation3 + $0x28] sm:$0xf] %vm787, %v696
        %791 = vst.msk [vmem:[#allocation3 + $0x3c] sm:$0xf] %vm787, %v698
        %792 = vst.msk [vmem:[#allocation3 + $0x50] sm:$0xf] %vm787, %v700
        %793 = vst.msk [vmem:[#allocation3 + $0x64] sm:$0xf] %vm787, %v702
        %794 = vst.msk [vmem:[#allocation3 + $0x78] sm:$0xf] %vm787, %v704
        %795 = vst.msk [vmem:[#allocation3 + $0x8c] sm:$0xf] %vm787, %v706
        %796 = vst.msk [vmem:[#allocation3 + $0xa0] sm:$0xf] %vm787, %v708
        %797 = vst.msk [vmem:[#allocation3 + $0xb4] sm:$0xf] %vm787, %v710
        %798 = vst.msk [vmem:[#allocation3 + $0xc8] sm:$0xf] %vm787, %v712
        %799 = vst.msk [vmem:[#allocation3 + $0xdc] sm:$0xf] %vm787, %v714
        %800 = vst.msk [vmem:[#allocation3 + $0xf0] sm:$0xf] %vm787, %v716
        %801 = vst.msk [vmem:[#allocation3 + $0x104] sm:$0xf] %vm787, %v718
        %802 = vst.msk [vmem:[#allocation3 + $0x118] sm:$0xf] %vm787, %v720
        %803 = vst.msk [vmem:[#allocation3 + $0x12c] sm:$0xf] %vm787, %v722
        %804 = vst.msk [vmem:[#allocation3 + $0x140] sm:$0xf] %vm787, %v724
        %805 = vst.msk [vmem:[#allocation3 + $0x154] sm:$0xf] %vm787, %v726
        %806 = vst.msk [vmem:[#allocation3 + $0x168] sm:$0xf] %vm787, %v728
        %807 = vst.msk [vmem:[#allocation3 + $0x17c] sm:$0xf] %vm787, %v730
        %808 = vst.msk [vmem:[#allocation3 + $0x190] sm:$0xf] %vm787, %v732
        %809 = vst.msk [vmem:[#allocation3 + $0x1a4] sm:$0xf] %vm787, %v734
        %810 = vst.msk [vmem:[#allocation3 + $0x1b8] sm:$0xf] %vm787, %v736
        %811 = vst.msk [vmem:[#allocation3 + $0x1cc] sm:$0xf] %vm787, %v738
        %812 = vst.msk [vmem:[#allocation3 + $0x1e0] sm:$0xf] %vm787, %v740
        %813 = vst.msk [vmem:[#allocation3 + $0x1f4] sm:$0xf] %vm787, %v742
        %814 = vst.msk [vmem:[#allocation3 + $0x208] sm:$0xf] %vm787, %v744
        %815 = vst.msk [vmem:[#allocation3 + $0x21c] sm:$0xf] %vm787, %v746
        %816 = vst.msk [vmem:[#allocation3 + $0x230] sm:$0xf] %vm787, %v748
        %817 = vst.msk [vmem:[#allocation3 + $0x244] sm:$0xf] %vm787, %v750
        %818 = vst.msk [vmem:[#allocation3 + $0x258] sm:$0xf] %vm787, %v752
        %819 = vst.msk [vmem:[#allocation3 + $0x26c] sm:$0xf] %vm787, %v754
        %v820 = vld [vmem:[#allocation2 + $0x2] sm:$0xff]
        %v821 = vld [vmem:[#allocation2 + $0xa] sm:$0xff]
        %v822 = vld [vmem:[#allocation2 + $0x1a] sm:$0xff]
        %v823 = vld [vmem:[#allocation2 + $0x22] sm:$0xff]
        %v824 = vld [vmem:[#allocation2 + $0x32] sm:$0xff]
        %v825 = vld [vmem:[#allocation2 + $0x3a] sm:$0xff]
        %v826 = vld [vmem:[#allocation2 + $0x4a] sm:$0xff]
        %v827 = vld [vmem:[#allocation2 + $0x52] sm:$0xff]
        %v828 = vld [vmem:[#allocation2 + $0x62] sm:$0xff]
        %v829 = vld [vmem:[#allocation2 + $0x6a] sm:$0xff]
        %v830 = vld [vmem:[#allocation2 + $0x7a] sm:$0xff]
        %v831 = vld [vmem:[#allocation2 + $0x82] sm:$0xff]
        %v832 = vld [vmem:[#allocation2 + $0x92] sm:$0xff]
        %v833 = vld [vmem:[#allocation2 + $0x9a] sm:$0xff]
        %v834 = vld [vmem:[#allocation2 + $0xaa] sm:$0xff]
        %v835 = vld [vmem:[#allocation2 + $0xb2] sm:$0xff]
        %v836 = vld [vmem:[#allocation2 + $0xc2] sm:$0xff]
        %v837 = vld [vmem:[#allocation2 + $0xca] sm:$0xff]
        %v838 = vld [vmem:[#allocation2 + $0xda] sm:$0xff]
        %v839 = vld [vmem:[#allocation2 + $0xe2] sm:$0xff]
        %v840 = vld [vmem:[#allocation2 + $0xf2] sm:$0xff]
        %v841 = vld [vmem:[#allocation2 + $0xfa] sm:$0xff]
        %v842 = vld [vmem:[#allocation2 + $0x10a] sm:$0xff]
        %v843 = vld [vmem:[#allocation2 + $0x112] sm:$0xff]
        %v844 = vld [vmem:[#allocation2 + $0x122] sm:$0xff]
        %v845 = vld [vmem:[#allocation2 + $0x12a] sm:$0xff]
        %v846 = vld [vmem:[#allocation2 + $0x13a] sm:$0xff]
        %v847 = vld [vmem:[#allocation2 + $0x142] sm:$0xff]
        %v848 = vld [vmem:[#allocation2 + $0x152] sm:$0xff]
        %v849 = vld [vmem:[#allocation2 + $0x15a] sm:$0xff]
        %v850 = vld [vmem:[#allocation2 + $0x16a] sm:$0xff]
        %v851 = vld [vmem:[#allocation2 + $0x172] sm:$0xff]
        %v852 = vpack.c.bf16 %v820, %v820
        %v853 = vpack.c.bf16 %v821, %v821
        %v854 = vpack.c.bf16 %v822, %v822
        %v855 = vpack.c.bf16 %v823, %v823
        %v856 = vpack.c.bf16 %v824, %v824
        %v857 = vpack.c.bf16 %v825, %v825
        %v858 = vpack.c.bf16 %v826, %v826
        %v859 = vpack.c.bf16 %v827, %v827
        %v860 = vpack.c.bf16 %v828, %v828
        %v861 = vpack.c.bf16 %v829, %v829
        %v862 = vpack.c.bf16 %v830, %v830
        %v863 = vpack.c.bf16 %v831, %v831
        %v864 = vpack.c.bf16 %v832, %v832
        %v865 = vpack.c.bf16 %v833, %v833
        %v866 = vpack.c.bf16 %v834, %v834
        %v867 = vpack.c.bf16 %v835, %v835
        %v868 = vpack.c.bf16 %v836, %v836
        %v869 = vpack.c.bf16 %v837, %v837
        %v870 = vpack.c.bf16 %v838, %v838
        %v871 = vpack.c.bf16 %v839, %v839
        %v872 = vpack.c.bf16 %v840, %v840
        %v873 = vpack.c.bf16 %v841, %v841
        %v874 = vpack.c.bf16 %v842, %v842
        %v875 = vpack.c.bf16 %v843, %v843
        %v876 = vpack.c.bf16 %v844, %v844
        %v877 = vpack.c.bf16 %v845, %v845
        %v878 = vpack.c.bf16 %v846, %v846
        %v879 = vpack.c.bf16 %v847, %v847
        %v880 = vpack.c.bf16 %v848, %v848
        %v881 = vpack.c.bf16 %v849, %v849
        %v882 = vpack.c.bf16 %v850, %v850
        %v883 = vpack.c.bf16 %v851, %v851
        %884 = vst.msk [vmem:[#allocation3 + $0x4] sm:$0xf] %vm562, %v852
        %885 = vst.msk [vmem:[#allocation3 + $0x18] sm:$0xf] %vm562, %v853
        %886 = vst.msk [vmem:[#allocation3 + $0x2c] sm:$0xf] %vm562, %v854
        %887 = vst.msk [vmem:[#allocation3 + $0x40] sm:$0xf] %vm562, %v855
        %888 = vst.msk [vmem:[#allocation3 + $0x54] sm:$0xf] %vm562, %v856
        %889 = vst.msk [vmem:[#allocation3 + $0x68] sm:$0xf] %vm562, %v857
        %890 = vst.msk [vmem:[#allocation3 + $0x7c] sm:$0xf] %vm562, %v858
        %891 = vst.msk [vmem:[#allocation3 + $0x90] sm:$0xf] %vm562, %v859
        %892 = vst.msk [vmem:[#allocation3 + $0xa4] sm:$0xf] %vm562, %v860
        %893 = vst.msk [vmem:[#allocation3 + $0xb8] sm:$0xf] %vm562, %v861
        %894 = vst.msk [vmem:[#allocation3 + $0xcc] sm:$0xf] %vm562, %v862
        %895 = vst.msk [vmem:[#allocation3 + $0xe0] sm:$0xf] %vm562, %v863
        %896 = vst.msk [vmem:[#allocation3 + $0xf4] sm:$0xf] %vm562, %v864
        %897 = vst.msk [vmem:[#allocation3 + $0x108] sm:$0xf] %vm562, %v865
        %898 = vst.msk [vmem:[#allocation3 + $0x11c] sm:$0xf] %vm562, %v866
        %899 = vst.msk [vmem:[#allocation3 + $0x130] sm:$0xf] %vm562, %v867
        %900 = vst.msk [vmem:[#allocation3 + $0x144] sm:$0xf] %vm562, %v868
        %901 = vst.msk [vmem:[#allocation3 + $0x158] sm:$0xf] %vm562, %v869
        %902 = vst.msk [vmem:[#allocation3 + $0x16c] sm:$0xf] %vm562, %v870
        %903 = vst.msk [vmem:[#allocation3 + $0x180] sm:$0xf] %vm562, %v871
        %904 = vst.msk [vmem:[#allocation3 + $0x194] sm:$0xf] %vm562, %v872
        %905 = vst.msk [vmem:[#allocation3 + $0x1a8] sm:$0xf] %vm562, %v873
        %906 = vst.msk [vmem:[#allocation3 + $0x1bc] sm:$0xf] %vm562, %v874
        %907 = vst.msk [vmem:[#allocation3 + $0x1d0] sm:$0xf] %vm562, %v875
        %908 = vst.msk [vmem:[#allocation3 + $0x1e4] sm:$0xf] %vm562, %v876
        %909 = vst.msk [vmem:[#allocation3 + $0x1f8] sm:$0xf] %vm562, %v877
        %910 = vst.msk [vmem:[#allocation3 + $0x20c] sm:$0xf] %vm562, %v878
        %911 = vst.msk [vmem:[#allocation3 + $0x220] sm:$0xf] %vm562, %v879
        %912 = vst.msk [vmem:[#allocation3 + $0x234] sm:$0xf] %vm562, %v880
        %913 = vst.msk [vmem:[#allocation3 + $0x248] sm:$0xf] %vm562, %v881
        %914 = vst.msk [vmem:[#allocation3 + $0x25c] sm:$0xf] %vm562, %v882
        %915 = vst.msk [vmem:[#allocation3 + $0x270] sm:$0xf] %vm562, %v883
        %v916 = vld [vmem:[%s465] sm:$0xff]
        %v917 = vld [vmem:[%s465 + $0x8] sm:$0xff]
        %v918 = vld [vmem:[%s465 + $0x18] sm:$0xff]
        %v919 = vld [vmem:[%s465 + $0x20] sm:$0xff]
        %v920 = vld [vmem:[%s465 + $0x30] sm:$0xff]
        %v921 = vld [vmem:[%s465 + $0x38] sm:$0xff]
        %v922 = vld [vmem:[%s465 + $0x48] sm:$0xff]
        %v923 = vld [vmem:[%s465 + $0x50] sm:$0xff]
        %v924 = vld [vmem:[%s465 + $0x60] sm:$0xff]
        %v925 = vld [vmem:[%s465 + $0x68] sm:$0xff]
        %v926 = vld [vmem:[%s465 + $0x78] sm:$0xff]
        %v927 = vld [vmem:[%s465 + $0x80] sm:$0xff]
        %v928 = vld [vmem:[%s465 + $0x90] sm:$0xff]
        %v929 = vld [vmem:[%s465 + $0x98] sm:$0xff]
        %v930 = vld [vmem:[%s465 + $0xa8] sm:$0xff]
        %v931 = vld [vmem:[%s465 + $0xb0] sm:$0xff]
        %v932 = vld [vmem:[%s465 + $0xc0] sm:$0xff]
        %v933 = vld [vmem:[%s465 + $0xc8] sm:$0xff]
        %v934 = vld [vmem:[%s465 + $0xd8] sm:$0xff]
        %v935 = vld [vmem:[%s465 + $0xe0] sm:$0xff]
        %v936 = vld [vmem:[%s465 + $0xf0] sm:$0xff]
        %v937 = vld [vmem:[%s465 + $0xf8] sm:$0xff]
        %v938 = vld [vmem:[%s465 + $0x108] sm:$0xff]
        %v939 = vld [vmem:[%s465 + $0x110] sm:$0xff]
        %v940 = vld [vmem:[%s465 + $0x120] sm:$0xff]
        %v941 = vld [vmem:[%s465 + $0x128] sm:$0xff]
        %v942 = vld [vmem:[%s465 + $0x138] sm:$0xff]
        %v943 = vld [vmem:[%s465 + $0x140] sm:$0xff]
        %v944 = vld [vmem:[%s465 + $0x150] sm:$0xff]
        %v945 = vld [vmem:[%s465 + $0x158] sm:$0xff]
        %v946 = vld [vmem:[%s465 + $0x168] sm:$0xff]
        %v947 = vld [vmem:[%s465 + $0x170] sm:$0xff]
        %v948 = vpack.c.bf16 %v916, %v916
        %v949 = vpack.c.bf16 %v917, %v917
        %v950 = vpack.c.bf16 %v918, %v918
        %v951 = vpack.c.bf16 %v919, %v919
        %v952 = vpack.c.bf16 %v920, %v920
        %v953 = vpack.c.bf16 %v921, %v921
        %v954 = vpack.c.bf16 %v922, %v922
        %v955 = vpack.c.bf16 %v923, %v923
        %v956 = vpack.c.bf16 %v924, %v924
        %v957 = vpack.c.bf16 %v925, %v925
        %v958 = vpack.c.bf16 %v926, %v926
        %v959 = vpack.c.bf16 %v927, %v927
        %v960 = vpack.c.bf16 %v928, %v928
        %v961 = vpack.c.bf16 %v929, %v929
        %v962 = vpack.c.bf16 %v930, %v930
        %v963 = vpack.c.bf16 %v931, %v931
        %v964 = vpack.c.bf16 %v932, %v932
        %v965 = vpack.c.bf16 %v933, %v933
        %v966 = vpack.c.bf16 %v934, %v934
        %v967 = vpack.c.bf16 %v935, %v935
        %v968 = vpack.c.bf16 %v936, %v936
        %v969 = vpack.c.bf16 %v937, %v937
        %v970 = vpack.c.bf16 %v938, %v938
        %v971 = vpack.c.bf16 %v939, %v939
        %v972 = vpack.c.bf16 %v940, %v940
        %v973 = vpack.c.bf16 %v941, %v941
        %v974 = vpack.c.bf16 %v942, %v942
        %v975 = vpack.c.bf16 %v943, %v943
        %v976 = vpack.c.bf16 %v944, %v944
        %v977 = vpack.c.bf16 %v945, %v945
        %v978 = vpack.c.bf16 %v946, %v946
        %v979 = vpack.c.bf16 %v947, %v947
        %1012 = vrot.lane.b32.xlu0 %v948, 64
        %v1013 = vpop.permute.xlu0 %1012
        %1014 = vrot.lane.b32.xlu0 %v949, 64
        %v1015 = vpop.permute.xlu0 %1014
        %1016 = vrot.lane.b32.xlu0 %v950, 64
        %v1017 = vpop.permute.xlu0 %1016
        %1018 = vrot.lane.b32.xlu0 %v951, 64
        %v1019 = vpop.permute.xlu0 %1018
        %1020 = vrot.lane.b32.xlu0 %v952, 64
        %v1021 = vpop.permute.xlu0 %1020
        %1022 = vrot.lane.b32.xlu0 %v953, 64
        %v1023 = vpop.permute.xlu0 %1022
        %1024 = vrot.lane.b32.xlu0 %v954, 64
        %v1025 = vpop.permute.xlu0 %1024
        %1026 = vrot.lane.b32.xlu0 %v955, 64
        %v1027 = vpop.permute.xlu0 %1026
        %1028 = vrot.lane.b32.xlu0 %v956, 64
        %v1029 = vpop.permute.xlu0 %1028
        %1030 = vrot.lane.b32.xlu0 %v957, 64
        %v1031 = vpop.permute.xlu0 %1030
        %1032 = vrot.lane.b32.xlu0 %v958, 64
        %v1033 = vpop.permute.xlu0 %1032
        %1034 = vrot.lane.b32.xlu0 %v959, 64
        %v1035 = vpop.permute.xlu0 %1034
        %1036 = vrot.lane.b32.xlu0 %v960, 64
        %v1037 = vpop.permute.xlu0 %1036
        %1038 = vrot.lane.b32.xlu0 %v961, 64
        %v1039 = vpop.permute.xlu0 %1038
        %1040 = vrot.lane.b32.xlu0 %v962, 64
        %v1041 = vpop.permute.xlu0 %1040
        %1042 = vrot.lane.b32.xlu0 %v963, 64
        %v1043 = vpop.permute.xlu0 %1042
        %1044 = vrot.lane.b32.xlu0 %v964, 64
        %v1045 = vpop.permute.xlu0 %1044
        %1046 = vrot.lane.b32.xlu0 %v965, 64
        %v1047 = vpop.permute.xlu0 %1046
        %1048 = vrot.lane.b32.xlu0 %v966, 64
        %v1049 = vpop.permute.xlu0 %1048
        %1050 = vrot.lane.b32.xlu0 %v967, 64
        %v1051 = vpop.permute.xlu0 %1050
        %1052 = vrot.lane.b32.xlu0 %v968, 64
        %v1053 = vpop.permute.xlu0 %1052
        %1054 = vrot.lane.b32.xlu0 %v969, 64
        %v1055 = vpop.permute.xlu0 %1054
        %1056 = vrot.lane.b32.xlu0 %v970, 64
        %v1057 = vpop.permute.xlu0 %1056
        %1058 = vrot.lane.b32.xlu0 %v971, 64
        %v1059 = vpop.permute.xlu0 %1058
        %1060 = vrot.lane.b32.xlu0 %v972, 64
        %v1061 = vpop.permute.xlu0 %1060
        %1062 = vrot.lane.b32.xlu0 %v973, 64
        %v1063 = vpop.permute.xlu0 %1062
        %1064 = vrot.lane.b32.xlu0 %v974, 64
        %v1065 = vpop.permute.xlu0 %1064
        %1066 = vrot.lane.b32.xlu0 %v975, 64
        %v1067 = vpop.permute.xlu0 %1066
        %1068 = vrot.lane.b32.xlu0 %v976, 64
        %v1069 = vpop.permute.xlu0 %1068
        %1070 = vrot.lane.b32.xlu0 %v977, 64
        %v1071 = vpop.permute.xlu0 %1070
        %1072 = vrot.lane.b32.xlu0 %v978, 64
        %v1073 = vpop.permute.xlu0 %1072
        %1074 = vrot.lane.b32.xlu0 %v979, 64
        %v1075 = vpop.permute.xlu0 %1074
        %1108 = vst.msk [vmem:[#allocation3 + $0x4] sm:$0xf] %vm787, %v1013
        %1109 = vst.msk [vmem:[#allocation3 + $0x18] sm:$0xf] %vm787, %v1015
        %1110 = vst.msk [vmem:[#allocation3 + $0x2c] sm:$0xf] %vm787, %v1017
        %1111 = vst.msk [vmem:[#allocation3 + $0x40] sm:$0xf] %vm787, %v1019
        %1112 = vst.msk [vmem:[#allocation3 + $0x54] sm:$0xf] %vm787, %v1021
        %1113 = vst.msk [vmem:[#allocation3 + $0x68] sm:$0xf] %vm787, %v1023
        %1114 = vst.msk [vmem:[#allocation3 + $0x7c] sm:$0xf] %vm787, %v1025
        %1115 = vst.msk [vmem:[#allocation3 + $0x90] sm:$0xf] %vm787, %v1027
        %1116 = vst.msk [vmem:[#allocation3 + $0xa4] sm:$0xf] %vm787, %v1029
        %1117 = vst.msk [vmem:[#allocation3 + $0xb8] sm:$0xf] %vm787, %v1031
        %1118 = vst.msk [vmem:[#allocation3 + $0xcc] sm:$0xf] %vm787, %v1033
        %1119 = vst.msk [vmem:[#allocation3 + $0xe0] sm:$0xf] %vm787, %v1035
        %1120 = vst.msk [vmem:[#allocation3 + $0xf4] sm:$0xf] %vm787, %v1037
        %1121 = vst.msk [vmem:[#allocation3 + $0x108] sm:$0xf] %vm787, %v1039
        %1122 = vst.msk [vmem:[#allocation3 + $0x11c] sm:$0xf] %vm787, %v1041
        %1123 = vst.msk [vmem:[#allocation3 + $0x130] sm:$0xf] %vm787, %v1043
        %1124 = vst.msk [vmem:[#allocation3 + $0x144] sm:$0xf] %vm787, %v1045
        %1125 = vst.msk [vmem:[#allocation3 + $0x158] sm:$0xf] %vm787, %v1047
        %1126 = vst.msk [vmem:[#allocation3 + $0x16c] sm:$0xf] %vm787, %v1049
        %1127 = vst.msk [vmem:[#allocation3 + $0x180] sm:$0xf] %vm787, %v1051
        %1128 = vst.msk [vmem:[#allocation3 + $0x194] sm:$0xf] %vm787, %v1053
        %1129 = vst.msk [vmem:[#allocation3 + $0x1a8] sm:$0xf] %vm787, %v1055
        %1130 = vst.msk [vmem:[#allocation3 + $0x1bc] sm:$0xf] %vm787, %v1057
        %1131 = vst.msk [vmem:[#allocation3 + $0x1d0] sm:$0xf] %vm787, %v1059
        %1132 = vst.msk [vmem:[#allocation3 + $0x1e4] sm:$0xf] %vm787, %v1061
        %1133 = vst.msk [vmem:[#allocation3 + $0x1f8] sm:$0xf] %vm787, %v1063
        %1134 = vst.msk [vmem:[#allocation3 + $0x20c] sm:$0xf] %vm787, %v1065
        %1135 = vst.msk [vmem:[#allocation3 + $0x220] sm:$0xf] %vm787, %v1067
        %1136 = vst.msk [vmem:[#allocation3 + $0x234] sm:$0xf] %vm787, %v1069
        %1137 = vst.msk [vmem:[#allocation3 + $0x248] sm:$0xf] %vm787, %v1071
        %1138 = vst.msk [vmem:[#allocation3 + $0x25c] sm:$0xf] %vm787, %v1073
        %1139 = vst.msk [vmem:[#allocation3 + $0x270] sm:$0xf] %vm787, %v1075
        %v1140 = vld [vmem:[%s465 + $0x1] sm:$0xff]
        %v1141 = vld [vmem:[%s465 + $0x9] sm:$0xff]
        %v1142 = vld [vmem:[%s465 + $0x19] sm:$0xff]
        %v1143 = vld [vmem:[%s465 + $0x21] sm:$0xff]
        %v1144 = vld [vmem:[%s465 + $0x31] sm:$0xff]
        %v1145 = vld [vmem:[%s465 + $0x39] sm:$0xff]
        %v1146 = vld [vmem:[%s465 + $0x49] sm:$0xff]
        %v1147 = vld [vmem:[%s465 + $0x51] sm:$0xff]
        %v1148 = vld [vmem:[%s465 + $0x61] sm:$0xff]
        %v1149 = vld [vmem:[%s465 + $0x69] sm:$0xff]
        %v1150 = vld [vmem:[%s465 + $0x79] sm:$0xff]
        %v1151 = vld [vmem:[%s465 + $0x81] sm:$0xff]
        %v1152 = vld [vmem:[%s465 + $0x91] sm:$0xff]
        %v1153 = vld [vmem:[%s465 + $0x99] sm:$0xff]
        %v1154 = vld [vmem:[%s465 + $0xa9] sm:$0xff]
        %v1155 = vld [vmem:[%s465 + $0xb1] sm:$0xff]
        %v1156 = vld [vmem:[%s465 + $0xc1] sm:$0xff]
        %v1157 = vld [vmem:[%s465 + $0xc9] sm:$0xff]
        %v1158 = vld [vmem:[%s465 + $0xd9] sm:$0xff]
        %v1159 = vld [vmem:[%s465 + $0xe1] sm:$0xff]
        %v1160 = vld [vmem:[%s465 + $0xf1] sm:$0xff]
        %v1161 = vld [vmem:[%s465 + $0xf9] sm:$0xff]
        %v1162 = vld [vmem:[%s465 + $0x109] sm:$0xff]
        %v1163 = vld [vmem:[%s465 + $0x111] sm:$0xff]
        %v1164 = vld [vmem:[%s465 + $0x121] sm:$0xff]
        %v1165 = vld [vmem:[%s465 + $0x129] sm:$0xff]
        %v1166 = vld [vmem:[%s465 + $0x139] sm:$0xff]
        %v1167 = vld [vmem:[%s465 + $0x141] sm:$0xff]
        %v1168 = vld [vmem:[%s465 + $0x151] sm:$0xff]
        %v1169 = vld [vmem:[%s465 + $0x159] sm:$0xff]
        %v1170 = vld [vmem:[%s465 + $0x169] sm:$0xff]
        %v1171 = vld [vmem:[%s465 + $0x171] sm:$0xff]
        %v1172 = vpack.c.bf16 %v1140, %v1140
        %v1173 = vpack.c.bf16 %v1141, %v1141
        %v1174 = vpack.c.bf16 %v1142, %v1142
        %v1175 = vpack.c.bf16 %v1143, %v1143
        %v1176 = vpack.c.bf16 %v1144, %v1144
        %v1177 = vpack.c.bf16 %v1145, %v1145
        %v1178 = vpack.c.bf16 %v1146, %v1146
        %v1179 = vpack.c.bf16 %v1147, %v1147
        %v1180 = vpack.c.bf16 %v1148, %v1148
        %v1181 = vpack.c.bf16 %v1149, %v1149
        %v1182 = vpack.c.bf16 %v1150, %v1150
        %v1183 = vpack.c.bf16 %v1151, %v1151
        %v1184 = vpack.c.bf16 %v1152, %v1152
        %v1185 = vpack.c.bf16 %v1153, %v1153
        %v1186 = vpack.c.bf16 %v1154, %v1154
        %v1187 = vpack.c.bf16 %v1155, %v1155
        %v1188 = vpack.c.bf16 %v1156, %v1156
        %v1189 = vpack.c.bf16 %v1157, %v1157
        %v1190 = vpack.c.bf16 %v1158, %v1158
        %v1191 = vpack.c.bf16 %v1159, %v1159
        %v1192 = vpack.c.bf16 %v1160, %v1160
        %v1193 = vpack.c.bf16 %v1161, %v1161
        %v1194 = vpack.c.bf16 %v1162, %v1162
        %v1195 = vpack.c.bf16 %v1163, %v1163
        %v1196 = vpack.c.bf16 %v1164, %v1164
        %v1197 = vpack.c.bf16 %v1165, %v1165
        %v1198 = vpack.c.bf16 %v1166, %v1166
        %v1199 = vpack.c.bf16 %v1167, %v1167
        %v1200 = vpack.c.bf16 %v1168, %v1168
        %v1201 = vpack.c.bf16 %v1169, %v1169
        %v1202 = vpack.c.bf16 %v1170, %v1170
        %v1203 = vpack.c.bf16 %v1171, %v1171
        %1204 = vst.msk [vmem:[#allocation3 + $0x8] sm:$0xf] %vm562, %v1172
        %1205 = vst.msk [vmem:[#allocation3 + $0x1c] sm:$0xf] %vm562, %v1173
        %1206 = vst.msk [vmem:[#allocation3 + $0x30] sm:$0xf] %vm562, %v1174
        %1207 = vst.msk [vmem:[#allocation3 + $0x44] sm:$0xf] %vm562, %v1175
        %1208 = vst.msk [vmem:[#allocation3 + $0x58] sm:$0xf] %vm562, %v1176
        %1209 = vst.msk [vmem:[#allocation3 + $0x6c] sm:$0xf] %vm562, %v1177
        %1210 = vst.msk [vmem:[#allocation3 + $0x80] sm:$0xf] %vm562, %v1178
        %1211 = vst.msk [vmem:[#allocation3 + $0x94] sm:$0xf] %vm562, %v1179
        %1212 = vst.msk [vmem:[#allocation3 + $0xa8] sm:$0xf] %vm562, %v1180
        %1213 = vst.msk [vmem:[#allocation3 + $0xbc] sm:$0xf] %vm562, %v1181
        %1214 = vst.msk [vmem:[#allocation3 + $0xd0] sm:$0xf] %vm562, %v1182
        %1215 = vst.msk [vmem:[#allocation3 + $0xe4] sm:$0xf] %vm562, %v1183
        %1216 = vst.msk [vmem:[#allocation3 + $0xf8] sm:$0xf] %vm562, %v1184
        %1217 = vst.msk [vmem:[#allocation3 + $0x10c] sm:$0xf] %vm562, %v1185
        %1218 = vst.msk [vmem:[#allocation3 + $0x120] sm:$0xf] %vm562, %v1186
        %1219 = vst.msk [vmem:[#allocation3 + $0x134] sm:$0xf] %vm562, %v1187
        %1220 = vst.msk [vmem:[#allocation3 + $0x148] sm:$0xf] %vm562, %v1188
        %1221 = vst.msk [vmem:[#allocation3 + $0x15c] sm:$0xf] %vm562, %v1189
        %1222 = vst.msk [vmem:[#allocation3 + $0x170] sm:$0xf] %vm562, %v1190
        %1223 = vst.msk [vmem:[#allocation3 + $0x184] sm:$0xf] %vm562, %v1191
        %1224 = vst.msk [vmem:[#allocation3 + $0x198] sm:$0xf] %vm562, %v1192
        %1225 = vst.msk [vmem:[#allocation3 + $0x1ac] sm:$0xf] %vm562, %v1193
        %1226 = vst.msk [vmem:[#allocation3 + $0x1c0] sm:$0xf] %vm562, %v1194
        %1227 = vst.msk [vmem:[#allocation3 + $0x1d4] sm:$0xf] %vm562, %v1195
        %1228 = vst.msk [vmem:[#allocation3 + $0x1e8] sm:$0xf] %vm562, %v1196
        %1229 = vst.msk [vmem:[#allocation3 + $0x1fc] sm:$0xf] %vm562, %v1197
        %1230 = vst.msk [vmem:[#allocation3 + $0x210] sm:$0xf] %vm562, %v1198
        %1231 = vst.msk [vmem:[#allocation3 + $0x224] sm:$0xf] %vm562, %v1199
        %1232 = vst.msk [vmem:[#allocation3 + $0x238] sm:$0xf] %vm562, %v1200
        %1233 = vst.msk [vmem:[#allocation3 + $0x24c] sm:$0xf] %vm562, %v1201
        %1234 = vst.msk [vmem:[#allocation3 + $0x260] sm:$0xf] %vm562, %v1202
        %1235 = vst.msk [vmem:[#allocation3 + $0x274] sm:$0xf] %vm562, %v1203
        %v1236 = vld [vmem:[%s465 + $0x2] sm:$0xff]
        %v1237 = vld [vmem:[%s465 + $0xa] sm:$0xff]
        %v1238 = vld [vmem:[%s465 + $0x1a] sm:$0xff]
        %v1239 = vld [vmem:[%s465 + $0x22] sm:$0xff]
        %v1240 = vld [vmem:[%s465 + $0x32] sm:$0xff]
        %v1241 = vld [vmem:[%s465 + $0x3a] sm:$0xff]
        %v1242 = vld [vmem:[%s465 + $0x4a] sm:$0xff]
        %v1243 = vld [vmem:[%s465 + $0x52] sm:$0xff]
        %v1244 = vld [vmem:[%s465 + $0x62] sm:$0xff]
        %v1245 = vld [vmem:[%s465 + $0x6a] sm:$0xff]
        %v1246 = vld [vmem:[%s465 + $0x7a] sm:$0xff]
        %v1247 = vld [vmem:[%s465 + $0x82] sm:$0xff]
        %v1248 = vld [vmem:[%s465 + $0x92] sm:$0xff]
        %v1249 = vld [vmem:[%s465 + $0x9a] sm:$0xff]
        %v1250 = vld [vmem:[%s465 + $0xaa] sm:$0xff]
        %v1251 = vld [vmem:[%s465 + $0xb2] sm:$0xff]
        %v1252 = vld [vmem:[%s465 + $0xc2] sm:$0xff]
        %v1253 = vld [vmem:[%s465 + $0xca] sm:$0xff]
        %v1254 = vld [vmem:[%s465 + $0xda] sm:$0xff]
        %v1255 = vld [vmem:[%s465 + $0xe2] sm:$0xff]
        %v1256 = vld [vmem:[%s465 + $0xf2] sm:$0xff]
        %v1257 = vld [vmem:[%s465 + $0xfa] sm:$0xff]
        %v1258 = vld [vmem:[%s465 + $0x10a] sm:$0xff]
        %v1259 = vld [vmem:[%s465 + $0x112] sm:$0xff]
        %v1260 = vld [vmem:[%s465 + $0x122] sm:$0xff]
        %v1261 = vld [vmem:[%s465 + $0x12a] sm:$0xff]
        %v1262 = vld [vmem:[%s465 + $0x13a] sm:$0xff]
        %v1263 = vld [vmem:[%s465 + $0x142] sm:$0xff]
        %v1264 = vld [vmem:[%s465 + $0x152] sm:$0xff]
        %v1265 = vld [vmem:[%s465 + $0x15a] sm:$0xff]
        %v1266 = vld [vmem:[%s465 + $0x16a] sm:$0xff]
        %v1267 = vld [vmem:[%s465 + $0x172] sm:$0xff]
        %v1268 = vpack.c.bf16 %v1236, %v1236
        %v1269 = vpack.c.bf16 %v1237, %v1237
        %v1270 = vpack.c.bf16 %v1238, %v1238
        %v1271 = vpack.c.bf16 %v1239, %v1239
        %v1272 = vpack.c.bf16 %v1240, %v1240
        %v1273 = vpack.c.bf16 %v1241, %v1241
        %v1274 = vpack.c.bf16 %v1242, %v1242
        %v1275 = vpack.c.bf16 %v1243, %v1243
        %v1276 = vpack.c.bf16 %v1244, %v1244
        %v1277 = vpack.c.bf16 %v1245, %v1245
        %v1278 = vpack.c.bf16 %v1246, %v1246
        %v1279 = vpack.c.bf16 %v1247, %v1247
        %v1280 = vpack.c.bf16 %v1248, %v1248
        %v1281 = vpack.c.bf16 %v1249, %v1249
        %v1282 = vpack.c.bf16 %v1250, %v1250
        %v1283 = vpack.c.bf16 %v1251, %v1251
        %v1284 = vpack.c.bf16 %v1252, %v1252
        %v1285 = vpack.c.bf16 %v1253, %v1253
        %v1286 = vpack.c.bf16 %v1254, %v1254
        %v1287 = vpack.c.bf16 %v1255, %v1255
        %v1288 = vpack.c.bf16 %v1256, %v1256
        %v1289 = vpack.c.bf16 %v1257, %v1257
        %v1290 = vpack.c.bf16 %v1258, %v1258
        %v1291 = vpack.c.bf16 %v1259, %v1259
        %v1292 = vpack.c.bf16 %v1260, %v1260
        %v1293 = vpack.c.bf16 %v1261, %v1261
        %v1294 = vpack.c.bf16 %v1262, %v1262
        %v1295 = vpack.c.bf16 %v1263, %v1263
        %v1296 = vpack.c.bf16 %v1264, %v1264
        %v1297 = vpack.c.bf16 %v1265, %v1265
        %v1298 = vpack.c.bf16 %v1266, %v1266
        %v1299 = vpack.c.bf16 %v1267, %v1267
        %1332 = vrot.lane.b32.xlu0 %v1268, 64
        %v1333 = vpop.permute.xlu0 %1332
        %1334 = vrot.lane.b32.xlu0 %v1269, 64
        %v1335 = vpop.permute.xlu0 %1334
        %1336 = vrot.lane.b32.xlu0 %v1270, 64
        %v1337 = vpop.permute.xlu0 %1336
        %1338 = vrot.lane.b32.xlu0 %v1271, 64
        %v1339 = vpop.permute.xlu0 %1338
        %1340 = vrot.lane.b32.xlu0 %v1272, 64
        %v1341 = vpop.permute.xlu0 %1340
        %1342 = vrot.lane.b32.xlu0 %v1273, 64
        %v1343 = vpop.permute.xlu0 %1342
        %1344 = vrot.lane.b32.xlu0 %v1274, 64
        %v1345 = vpop.permute.xlu0 %1344
        %1346 = vrot.lane.b32.xlu0 %v1275, 64
        %v1347 = vpop.permute.xlu0 %1346
        %1348 = vrot.lane.b32.xlu0 %v1276, 64
        %v1349 = vpop.permute.xlu0 %1348
        %1350 = vrot.lane.b32.xlu0 %v1277, 64
        %v1351 = vpop.permute.xlu0 %1350
        %1352 = vrot.lane.b32.xlu0 %v1278, 64
        %v1353 = vpop.permute.xlu0 %1352
        %1354 = vrot.lane.b32.xlu0 %v1279, 64
        %v1355 = vpop.permute.xlu0 %1354
        %1356 = vrot.lane.b32.xlu0 %v1280, 64
        %v1357 = vpop.permute.xlu0 %1356
        %1358 = vrot.lane.b32.xlu0 %v1281, 64
        %v1359 = vpop.permute.xlu0 %1358
        %1360 = vrot.lane.b32.xlu0 %v1282, 64
        %v1361 = vpop.permute.xlu0 %1360
        %1362 = vrot.lane.b32.xlu0 %v1283, 64
        %v1363 = vpop.permute.xlu0 %1362
        %1364 = vrot.lane.b32.xlu0 %v1284, 64
        %v1365 = vpop.permute.xlu0 %1364
        %1366 = vrot.lane.b32.xlu0 %v1285, 64
        %v1367 = vpop.permute.xlu0 %1366
        %1368 = vrot.lane.b32.xlu0 %v1286, 64
        %v1369 = vpop.permute.xlu0 %1368
        %1370 = vrot.lane.b32.xlu0 %v1287, 64
        %v1371 = vpop.permute.xlu0 %1370
        %1372 = vrot.lane.b32.xlu0 %v1288, 64
        %v1373 = vpop.permute.xlu0 %1372
        %1374 = vrot.lane.b32.xlu0 %v1289, 64
        %v1375 = vpop.permute.xlu0 %1374
        %1376 = vrot.lane.b32.xlu0 %v1290, 64
        %v1377 = vpop.permute.xlu0 %1376
        %1378 = vrot.lane.b32.xlu0 %v1291, 64
        %v1379 = vpop.permute.xlu0 %1378
        %1380 = vrot.lane.b32.xlu0 %v1292, 64
        %v1381 = vpop.permute.xlu0 %1380
        %1382 = vrot.lane.b32.xlu0 %v1293, 64
        %v1383 = vpop.permute.xlu0 %1382
        %1384 = vrot.lane.b32.xlu0 %v1294, 64
        %v1385 = vpop.permute.xlu0 %1384
        %1386 = vrot.lane.b32.xlu0 %v1295, 64
        %v1387 = vpop.permute.xlu0 %1386
        %1388 = vrot.lane.b32.xlu0 %v1296, 64
        %v1389 = vpop.permute.xlu0 %1388
        %1390 = vrot.lane.b32.xlu0 %v1297, 64
        %v1391 = vpop.permute.xlu0 %1390
        %1392 = vrot.lane.b32.xlu0 %v1298, 64
        %v1393 = vpop.permute.xlu0 %1392
        %1394 = vrot.lane.b32.xlu0 %v1299, 64
        %v1395 = vpop.permute.xlu0 %1394
        %1428 = vst.msk [vmem:[#allocation3 + $0x8] sm:$0xf] %vm787, %v1333
        %1429 = vst.msk [vmem:[#allocation3 + $0x1c] sm:$0xf] %vm787, %v1335
        %1430 = vst.msk [vmem:[#allocation3 + $0x30] sm:$0xf] %vm787, %v1337
        %1431 = vst.msk [vmem:[#allocation3 + $0x44] sm:$0xf] %vm787, %v1339
        %1432 = vst.msk [vmem:[#allocation3 + $0x58] sm:$0xf] %vm787, %v1341
        %1433 = vst.msk [vmem:[#allocation3 + $0x6c] sm:$0xf] %vm787, %v1343
        %1434 = vst.msk [vmem:[#allocation3 + $0x80] sm:$0xf] %vm787, %v1345
        %1435 = vst.msk [vmem:[#allocation3 + $0x94] sm:$0xf] %vm787, %v1347
        %1436 = vst.msk [vmem:[#allocation3 + $0xa8] sm:$0xf] %vm787, %v1349
        %1437 = vst.msk [vmem:[#allocation3 + $0xbc] sm:$0xf] %vm787, %v1351
        %1438 = vst.msk [vmem:[#allocation3 + $0xd0] sm:$0xf] %vm787, %v1353
        %1439 = vst.msk [vmem:[#allocation3 + $0xe4] sm:$0xf] %vm787, %v1355
        %1440 = vst.msk [vmem:[#allocation3 + $0xf8] sm:$0xf] %vm787, %v1357
        %1441 = vst.msk [vmem:[#allocation3 + $0x10c] sm:$0xf] %vm787, %v1359
        %1442 = vst.msk [vmem:[#allocation3 + $0x120] sm:$0xf] %vm787, %v1361
        %1443 = vst.msk [vmem:[#allocation3 + $0x134] sm:$0xf] %vm787, %v1363
        %1444 = vst.msk [vmem:[#allocation3 + $0x148] sm:$0xf] %vm787, %v1365
        %1445 = vst.msk [vmem:[#allocation3 + $0x15c] sm:$0xf] %vm787, %v1367
        %1446 = vst.msk [vmem:[#allocation3 + $0x170] sm:$0xf] %vm787, %v1369
        %1447 = vst.msk [vmem:[#allocation3 + $0x184] sm:$0xf] %vm787, %v1371
        %1448 = vst.msk [vmem:[#allocation3 + $0x198] sm:$0xf] %vm787, %v1373
        %1449 = vst.msk [vmem:[#allocation3 + $0x1ac] sm:$0xf] %vm787, %v1375
        %1450 = vst.msk [vmem:[#allocation3 + $0x1c0] sm:$0xf] %vm787, %v1377
        %1451 = vst.msk [vmem:[#allocation3 + $0x1d4] sm:$0xf] %vm787, %v1379
        %1452 = vst.msk [vmem:[#allocation3 + $0x1e8] sm:$0xf] %vm787, %v1381
        %1453 = vst.msk [vmem:[#allocation3 + $0x1fc] sm:$0xf] %vm787, %v1383
        %1454 = vst.msk [vmem:[#allocation3 + $0x210] sm:$0xf] %vm787, %v1385
        %1455 = vst.msk [vmem:[#allocation3 + $0x224] sm:$0xf] %vm787, %v1387
        %1456 = vst.msk [vmem:[#allocation3 + $0x238] sm:$0xf] %vm787, %v1389
        %1457 = vst.msk [vmem:[#allocation3 + $0x24c] sm:$0xf] %vm787, %v1391
        %1458 = vst.msk [vmem:[#allocation3 + $0x260] sm:$0xf] %vm787, %v1393
        %1459 = vst.msk [vmem:[#allocation3 + $0x274] sm:$0xf] %vm787, %v1395
        %s1460 = scalar_lea.vmem [#allocation2], 48
        %v1461 = vld [vmem:[%s1460] sm:$0xff]
        %v1462 = vld [vmem:[%s1460 + $0x8] sm:$0xff]
        %v1463 = vld [vmem:[%s1460 + $0x18] sm:$0xff]
        %v1464 = vld [vmem:[%s1460 + $0x20] sm:$0xff]
        %v1465 = vld [vmem:[%s1460 + $0x30] sm:$0xff]
        %v1466 = vld [vmem:[%s1460 + $0x38] sm:$0xff]
        %v1467 = vld [vmem:[%s1460 + $0x48] sm:$0xff]
        %v1468 = vld [vmem:[%s1460 + $0x50] sm:$0xff]
        %v1469 = vld [vmem:[%s1460 + $0x60] sm:$0xff]
        %v1470 = vld [vmem:[%s1460 + $0x68] sm:$0xff]
        %v1471 = vld [vmem:[%s1460 + $0x78] sm:$0xff]
        %v1472 = vld [vmem:[%s1460 + $0x80] sm:$0xff]
        %v1473 = vld [vmem:[%s1460 + $0x90] sm:$0xff]
        %v1474 = vld [vmem:[%s1460 + $0x98] sm:$0xff]
        %v1475 = vld [vmem:[%s1460 + $0xa8] sm:$0xff]
        %v1476 = vld [vmem:[%s1460 + $0xb0] sm:$0xff]
        %v1477 = vld [vmem:[%s1460 + $0xc0] sm:$0xff]
        %v1478 = vld [vmem:[%s1460 + $0xc8] sm:$0xff]
        %v1479 = vld [vmem:[%s1460 + $0xd8] sm:$0xff]
        %v1480 = vld [vmem:[%s1460 + $0xe0] sm:$0xff]
        %v1481 = vld [vmem:[%s1460 + $0xf0] sm:$0xff]
        %v1482 = vld [vmem:[%s1460 + $0xf8] sm:$0xff]
        %v1483 = vld [vmem:[%s1460 + $0x108] sm:$0xff]
        %v1484 = vld [vmem:[%s1460 + $0x110] sm:$0xff]
        %v1485 = vld [vmem:[%s1460 + $0x120] sm:$0xff]
        %v1486 = vld [vmem:[%s1460 + $0x128] sm:$0xff]
        %v1487 = vld [vmem:[%s1460 + $0x138] sm:$0xff]
        %v1488 = vld [vmem:[%s1460 + $0x140] sm:$0xff]
        %v1489 = vld [vmem:[%s1460 + $0x150] sm:$0xff]
        %v1490 = vld [vmem:[%s1460 + $0x158] sm:$0xff]
        %v1491 = vld [vmem:[%s1460 + $0x168] sm:$0xff]
        %v1492 = vld [vmem:[%s1460 + $0x170] sm:$0xff]
        %v1493 = vpack.c.bf16 %v1461, %v1461
        %v1494 = vpack.c.bf16 %v1462, %v1462
        %v1495 = vpack.c.bf16 %v1463, %v1463
        %v1496 = vpack.c.bf16 %v1464, %v1464
        %v1497 = vpack.c.bf16 %v1465, %v1465
        %v1498 = vpack.c.bf16 %v1466, %v1466
        %v1499 = vpack.c.bf16 %v1467, %v1467
        %v1500 = vpack.c.bf16 %v1468, %v1468
        %v1501 = vpack.c.bf16 %v1469, %v1469
        %v1502 = vpack.c.bf16 %v1470, %v1470
        %v1503 = vpack.c.bf16 %v1471, %v1471
        %v1504 = vpack.c.bf16 %v1472, %v1472
        %v1505 = vpack.c.bf16 %v1473, %v1473
        %v1506 = vpack.c.bf16 %v1474, %v1474
        %v1507 = vpack.c.bf16 %v1475, %v1475
        %v1508 = vpack.c.bf16 %v1476, %v1476
        %v1509 = vpack.c.bf16 %v1477, %v1477
        %v1510 = vpack.c.bf16 %v1478, %v1478
        %v1511 = vpack.c.bf16 %v1479, %v1479
        %v1512 = vpack.c.bf16 %v1480, %v1480
        %v1513 = vpack.c.bf16 %v1481, %v1481
        %v1514 = vpack.c.bf16 %v1482, %v1482
        %v1515 = vpack.c.bf16 %v1483, %v1483
        %v1516 = vpack.c.bf16 %v1484, %v1484
        %v1517 = vpack.c.bf16 %v1485, %v1485
        %v1518 = vpack.c.bf16 %v1486, %v1486
        %v1519 = vpack.c.bf16 %v1487, %v1487
        %v1520 = vpack.c.bf16 %v1488, %v1488
        %v1521 = vpack.c.bf16 %v1489, %v1489
        %v1522 = vpack.c.bf16 %v1490, %v1490
        %v1523 = vpack.c.bf16 %v1491, %v1491
        %v1524 = vpack.c.bf16 %v1492, %v1492
        %1525 = vst.msk [vmem:[#allocation3 + $0xc] sm:$0xf] %vm562, %v1493
        %1526 = vst.msk [vmem:[#allocation3 + $0x20] sm:$0xf] %vm562, %v1494
        %1527 = vst.msk [vmem:[#allocation3 + $0x34] sm:$0xf] %vm562, %v1495
        %1528 = vst.msk [vmem:[#allocation3 + $0x48] sm:$0xf] %vm562, %v1496
        %1529 = vst.msk [vmem:[#allocation3 + $0x5c] sm:$0xf] %vm562, %v1497
        %1530 = vst.msk [vmem:[#allocation3 + $0x70] sm:$0xf] %vm562, %v1498
        %1531 = vst.msk [vmem:[#allocation3 + $0x84] sm:$0xf] %vm562, %v1499
        %1532 = vst.msk [vmem:[#allocation3 + $0x98] sm:$0xf] %vm562, %v1500
        %1533 = vst.msk [vmem:[#allocation3 + $0xac] sm:$0xf] %vm562, %v1501
        %1534 = vst.msk [vmem:[#allocation3 + $0xc0] sm:$0xf] %vm562, %v1502
        %1535 = vst.msk [vmem:[#allocation3 + $0xd4] sm:$0xf] %vm562, %v1503
        %1536 = vst.msk [vmem:[#allocation3 + $0xe8] sm:$0xf] %vm562, %v1504
        %1537 = vst.msk [vmem:[#allocation3 + $0xfc] sm:$0xf] %vm562, %v1505
        %1538 = vst.msk [vmem:[#allocation3 + $0x110] sm:$0xf] %vm562, %v1506
        %1539 = vst.msk [vmem:[#allocation3 + $0x124] sm:$0xf] %vm562, %v1507
        %1540 = vst.msk [vmem:[#allocation3 + $0x138] sm:$0xf] %vm562, %v1508
        %1541 = vst.msk [vmem:[#allocation3 + $0x14c] sm:$0xf] %vm562, %v1509
        %1542 = vst.msk [vmem:[#allocation3 + $0x160] sm:$0xf] %vm562, %v1510
        %1543 = vst.msk [vmem:[#allocation3 + $0x174] sm:$0xf] %vm562, %v1511
        %1544 = vst.msk [vmem:[#allocation3 + $0x188] sm:$0xf] %vm562, %v1512
        %1545 = vst.msk [vmem:[#allocation3 + $0x19c] sm:$0xf] %vm562, %v1513
        %1546 = vst.msk [vmem:[#allocation3 + $0x1b0] sm:$0xf] %vm562, %v1514
        %1547 = vst.msk [vmem:[#allocation3 + $0x1c4] sm:$0xf] %vm562, %v1515
        %1548 = vst.msk [vmem:[#allocation3 + $0x1d8] sm:$0xf] %vm562, %v1516
        %1549 = vst.msk [vmem:[#allocation3 + $0x1ec] sm:$0xf] %vm562, %v1517
        %1550 = vst.msk [vmem:[#allocation3 + $0x200] sm:$0xf] %vm562, %v1518
        %1551 = vst.msk [vmem:[#allocation3 + $0x214] sm:$0xf] %vm562, %v1519
        %1552 = vst.msk [vmem:[#allocation3 + $0x228] sm:$0xf] %vm562, %v1520
        %1553 = vst.msk [vmem:[#allocation3 + $0x23c] sm:$0xf] %vm562, %v1521
        %1554 = vst.msk [vmem:[#allocation3 + $0x250] sm:$0xf] %vm562, %v1522
        %1555 = vst.msk [vmem:[#allocation3 + $0x264] sm:$0xf] %vm562, %v1523
        %1556 = vst.msk [vmem:[#allocation3 + $0x278] sm:$0xf] %vm562, %v1524
        %v1557 = vld [vmem:[%s1460 + $0x1] sm:$0xff]
        %v1558 = vld [vmem:[%s1460 + $0x9] sm:$0xff]
        %v1559 = vld [vmem:[%s1460 + $0x19] sm:$0xff]
        %v1560 = vld [vmem:[%s1460 + $0x21] sm:$0xff]
        %v1561 = vld [vmem:[%s1460 + $0x31] sm:$0xff]
        %v1562 = vld [vmem:[%s1460 + $0x39] sm:$0xff]
        %v1563 = vld [vmem:[%s1460 + $0x49] sm:$0xff]
        %v1564 = vld [vmem:[%s1460 + $0x51] sm:$0xff]
        %v1565 = vld [vmem:[%s1460 + $0x61] sm:$0xff]
        %v1566 = vld [vmem:[%s1460 + $0x69] sm:$0xff]
        %v1567 = vld [vmem:[%s1460 + $0x79] sm:$0xff]
        %v1568 = vld [vmem:[%s1460 + $0x81] sm:$0xff]
        %v1569 = vld [vmem:[%s1460 + $0x91] sm:$0xff]
        %v1570 = vld [vmem:[%s1460 + $0x99] sm:$0xff]
        %v1571 = vld [vmem:[%s1460 + $0xa9] sm:$0xff]
        %v1572 = vld [vmem:[%s1460 + $0xb1] sm:$0xff]
        %v1573 = vld [vmem:[%s1460 + $0xc1] sm:$0xff]
        %v1574 = vld [vmem:[%s1460 + $0xc9] sm:$0xff]
        %v1575 = vld [vmem:[%s1460 + $0xd9] sm:$0xff]
        %v1576 = vld [vmem:[%s1460 + $0xe1] sm:$0xff]
        %v1577 = vld [vmem:[%s1460 + $0xf1] sm:$0xff]
        %v1578 = vld [vmem:[%s1460 + $0xf9] sm:$0xff]
        %v1579 = vld [vmem:[%s1460 + $0x109] sm:$0xff]
        %v1580 = vld [vmem:[%s1460 + $0x111] sm:$0xff]
        %v1581 = vld [vmem:[%s1460 + $0x121] sm:$0xff]
        %v1582 = vld [vmem:[%s1460 + $0x129] sm:$0xff]
        %v1583 = vld [vmem:[%s1460 + $0x139] sm:$0xff]
        %v1584 = vld [vmem:[%s1460 + $0x141] sm:$0xff]
        %v1585 = vld [vmem:[%s1460 + $0x151] sm:$0xff]
        %v1586 = vld [vmem:[%s1460 + $0x159] sm:$0xff]
        %v1587 = vld [vmem:[%s1460 + $0x169] sm:$0xff]
        %v1588 = vld [vmem:[%s1460 + $0x171] sm:$0xff]
        %v1589 = vpack.c.bf16 %v1557, %v1557
        %v1590 = vpack.c.bf16 %v1558, %v1558
        %v1591 = vpack.c.bf16 %v1559, %v1559
        %v1592 = vpack.c.bf16 %v1560, %v1560
        %v1593 = vpack.c.bf16 %v1561, %v1561
        %v1594 = vpack.c.bf16 %v1562, %v1562
        %v1595 = vpack.c.bf16 %v1563, %v1563
        %v1596 = vpack.c.bf16 %v1564, %v1564
        %v1597 = vpack.c.bf16 %v1565, %v1565
        %v1598 = vpack.c.bf16 %v1566, %v1566
        %v1599 = vpack.c.bf16 %v1567, %v1567
        %v1600 = vpack.c.bf16 %v1568, %v1568
        %v1601 = vpack.c.bf16 %v1569, %v1569
        %v1602 = vpack.c.bf16 %v1570, %v1570
        %v1603 = vpack.c.bf16 %v1571, %v1571
        %v1604 = vpack.c.bf16 %v1572, %v1572
        %v1605 = vpack.c.bf16 %v1573, %v1573
        %v1606 = vpack.c.bf16 %v1574, %v1574
        %v1607 = vpack.c.bf16 %v1575, %v1575
        %v1608 = vpack.c.bf16 %v1576, %v1576
        %v1609 = vpack.c.bf16 %v1577, %v1577
        %v1610 = vpack.c.bf16 %v1578, %v1578
        %v1611 = vpack.c.bf16 %v1579, %v1579
        %v1612 = vpack.c.bf16 %v1580, %v1580
        %v1613 = vpack.c.bf16 %v1581, %v1581
        %v1614 = vpack.c.bf16 %v1582, %v1582
        %v1615 = vpack.c.bf16 %v1583, %v1583
        %v1616 = vpack.c.bf16 %v1584, %v1584
        %v1617 = vpack.c.bf16 %v1585, %v1585
        %v1618 = vpack.c.bf16 %v1586, %v1586
        %v1619 = vpack.c.bf16 %v1587, %v1587
        %v1620 = vpack.c.bf16 %v1588, %v1588
        %1653 = vrot.lane.b32.xlu0 %v1589, 64
        %v1654 = vpop.permute.xlu0 %1653
        %1655 = vrot.lane.b32.xlu0 %v1590, 64
        %v1656 = vpop.permute.xlu0 %1655
        %1657 = vrot.lane.b32.xlu0 %v1591, 64
        %v1658 = vpop.permute.xlu0 %1657
        %1659 = vrot.lane.b32.xlu0 %v1592, 64
        %v1660 = vpop.permute.xlu0 %1659
        %1661 = vrot.lane.b32.xlu0 %v1593, 64
        %v1662 = vpop.permute.xlu0 %1661
        %1663 = vrot.lane.b32.xlu0 %v1594, 64
        %v1664 = vpop.permute.xlu0 %1663
        %1665 = vrot.lane.b32.xlu0 %v1595, 64
        %v1666 = vpop.permute.xlu0 %1665
        %1667 = vrot.lane.b32.xlu0 %v1596, 64
        %v1668 = vpop.permute.xlu0 %1667
        %1669 = vrot.lane.b32.xlu0 %v1597, 64
        %v1670 = vpop.permute.xlu0 %1669
        %1671 = vrot.lane.b32.xlu0 %v1598, 64
        %v1672 = vpop.permute.xlu0 %1671
        %1673 = vrot.lane.b32.xlu0 %v1599, 64
        %v1674 = vpop.permute.xlu0 %1673
        %1675 = vrot.lane.b32.xlu0 %v1600, 64
        %v1676 = vpop.permute.xlu0 %1675
        %1677 = vrot.lane.b32.xlu0 %v1601, 64
        %v1678 = vpop.permute.xlu0 %1677
        %1679 = vrot.lane.b32.xlu0 %v1602, 64
        %v1680 = vpop.permute.xlu0 %1679
        %1681 = vrot.lane.b32.xlu0 %v1603, 64
        %v1682 = vpop.permute.xlu0 %1681
        %1683 = vrot.lane.b32.xlu0 %v1604, 64
        %v1684 = vpop.permute.xlu0 %1683
        %1685 = vrot.lane.b32.xlu0 %v1605, 64
        %v1686 = vpop.permute.xlu0 %1685
        %1687 = vrot.lane.b32.xlu0 %v1606, 64
        %v1688 = vpop.permute.xlu0 %1687
        %1689 = vrot.lane.b32.xlu0 %v1607, 64
        %v1690 = vpop.permute.xlu0 %1689
        %1691 = vrot.lane.b32.xlu0 %v1608, 64
        %v1692 = vpop.permute.xlu0 %1691
        %1693 = vrot.lane.b32.xlu0 %v1609, 64
        %v1694 = vpop.permute.xlu0 %1693
        %1695 = vrot.lane.b32.xlu0 %v1610, 64
        %v1696 = vpop.permute.xlu0 %1695
        %1697 = vrot.lane.b32.xlu0 %v1611, 64
        %v1698 = vpop.permute.xlu0 %1697
        %1699 = vrot.lane.b32.xlu0 %v1612, 64
        %v1700 = vpop.permute.xlu0 %1699
        %1701 = vrot.lane.b32.xlu0 %v1613, 64
        %v1702 = vpop.permute.xlu0 %1701
        %1703 = vrot.lane.b32.xlu0 %v1614, 64
        %v1704 = vpop.permute.xlu0 %1703
        %1705 = vrot.lane.b32.xlu0 %v1615, 64
        %v1706 = vpop.permute.xlu0 %1705
        %1707 = vrot.lane.b32.xlu0 %v1616, 64
        %v1708 = vpop.permute.xlu0 %1707
        %1709 = vrot.lane.b32.xlu0 %v1617, 64
        %v1710 = vpop.permute.xlu0 %1709
        %1711 = vrot.lane.b32.xlu0 %v1618, 64
        %v1712 = vpop.permute.xlu0 %1711
        %1713 = vrot.lane.b32.xlu0 %v1619, 64
        %v1714 = vpop.permute.xlu0 %1713
        %1715 = vrot.lane.b32.xlu0 %v1620, 64
        %v1716 = vpop.permute.xlu0 %1715
        %1749 = vst.msk [vmem:[#allocation3 + $0xc] sm:$0xf] %vm787, %v1654
        %1750 = vst.msk [vmem:[#allocation3 + $0x20] sm:$0xf] %vm787, %v1656
        %1751 = vst.msk [vmem:[#allocation3 + $0x34] sm:$0xf] %vm787, %v1658
        %1752 = vst.msk [vmem:[#allocation3 + $0x48] sm:$0xf] %vm787, %v1660
        %1753 = vst.msk [vmem:[#allocation3 + $0x5c] sm:$0xf] %vm787, %v1662
        %1754 = vst.msk [vmem:[#allocation3 + $0x70] sm:$0xf] %vm787, %v1664
        %1755 = vst.msk [vmem:[#allocation3 + $0x84] sm:$0xf] %vm787, %v1666
        %1756 = vst.msk [vmem:[#allocation3 + $0x98] sm:$0xf] %vm787, %v1668
        %1757 = vst.msk [vmem:[#allocation3 + $0xac] sm:$0xf] %vm787, %v1670
        %1758 = vst.msk [vmem:[#allocation3 + $0xc0] sm:$0xf] %vm787, %v1672
        %1759 = vst.msk [vmem:[#allocation3 + $0xd4] sm:$0xf] %vm787, %v1674
        %1760 = vst.msk [vmem:[#allocation3 + $0xe8] sm:$0xf] %vm787, %v1676
        %1761 = vst.msk [vmem:[#allocation3 + $0xfc] sm:$0xf] %vm787, %v1678
        %1762 = vst.msk [vmem:[#allocation3 + $0x110] sm:$0xf] %vm787, %v1680
        %1763 = vst.msk [vmem:[#allocation3 + $0x124] sm:$0xf] %vm787, %v1682
        %1764 = vst.msk [vmem:[#allocation3 + $0x138] sm:$0xf] %vm787, %v1684
        %1765 = vst.msk [vmem:[#allocation3 + $0x14c] sm:$0xf] %vm787, %v1686
        %1766 = vst.msk [vmem:[#allocation3 + $0x160] sm:$0xf] %vm787, %v1688
        %1767 = vst.msk [vmem:[#allocation3 + $0x174] sm:$0xf] %vm787, %v1690
        %1768 = vst.msk [vmem:[#allocation3 + $0x188] sm:$0xf] %vm787, %v1692
        %1769 = vst.msk [vmem:[#allocation3 + $0x19c] sm:$0xf] %vm787, %v1694
        %1770 = vst.msk [vmem:[#allocation3 + $0x1b0] sm:$0xf] %vm787, %v1696
        %1771 = vst.msk [vmem:[#allocation3 + $0x1c4] sm:$0xf] %vm787, %v1698
        %1772 = vst.msk [vmem:[#allocation3 + $0x1d8] sm:$0xf] %vm787, %v1700
        %1773 = vst.msk [vmem:[#allocation3 + $0x1ec] sm:$0xf] %vm787, %v1702
        %1774 = vst.msk [vmem:[#allocation3 + $0x200] sm:$0xf] %vm787, %v1704
        %1775 = vst.msk [vmem:[#allocation3 + $0x214] sm:$0xf] %vm787, %v1706
        %1776 = vst.msk [vmem:[#allocation3 + $0x228] sm:$0xf] %vm787, %v1708
        %1777 = vst.msk [vmem:[#allocation3 + $0x23c] sm:$0xf] %vm787, %v1710
        %1778 = vst.msk [vmem:[#allocation3 + $0x250] sm:$0xf] %vm787, %v1712
        %1779 = vst.msk [vmem:[#allocation3 + $0x264] sm:$0xf] %vm787, %v1714
        %1780 = vst.msk [vmem:[#allocation3 + $0x278] sm:$0xf] %vm787, %v1716
        %v1781 = vld [vmem:[%s1460 + $0x2] sm:$0xff]
        %v1782 = vld [vmem:[%s1460 + $0xa] sm:$0xff]
        %v1783 = vld [vmem:[%s1460 + $0x1a] sm:$0xff]
        %v1784 = vld [vmem:[%s1460 + $0x22] sm:$0xff]
        %v1785 = vld [vmem:[%s1460 + $0x32] sm:$0xff]
        %v1786 = vld [vmem:[%s1460 + $0x3a] sm:$0xff]
        %v1787 = vld [vmem:[%s1460 + $0x4a] sm:$0xff]
        %v1788 = vld [vmem:[%s1460 + $0x52] sm:$0xff]
        %v1789 = vld [vmem:[%s1460 + $0x62] sm:$0xff]
        %v1790 = vld [vmem:[%s1460 + $0x6a] sm:$0xff]
        %v1791 = vld [vmem:[%s1460 + $0x7a] sm:$0xff]
        %v1792 = vld [vmem:[%s1460 + $0x82] sm:$0xff]
        %v1793 = vld [vmem:[%s1460 + $0x92] sm:$0xff]
        %v1794 = vld [vmem:[%s1460 + $0x9a] sm:$0xff]
        %v1795 = vld [vmem:[%s1460 + $0xaa] sm:$0xff]
        %v1796 = vld [vmem:[%s1460 + $0xb2] sm:$0xff]
        %v1797 = vld [vmem:[%s1460 + $0xc2] sm:$0xff]
        %v1798 = vld [vmem:[%s1460 + $0xca] sm:$0xff]
        %v1799 = vld [vmem:[%s1460 + $0xda] sm:$0xff]
        %v1800 = vld [vmem:[%s1460 + $0xe2] sm:$0xff]
        %v1801 = vld [vmem:[%s1460 + $0xf2] sm:$0xff]
        %v1802 = vld [vmem:[%s1460 + $0xfa] sm:$0xff]
        %v1803 = vld [vmem:[%s1460 + $0x10a] sm:$0xff]
        %v1804 = vld [vmem:[%s1460 + $0x112] sm:$0xff]
        %v1805 = vld [vmem:[%s1460 + $0x122] sm:$0xff]
        %v1806 = vld [vmem:[%s1460 + $0x12a] sm:$0xff]
        %v1807 = vld [vmem:[%s1460 + $0x13a] sm:$0xff]
        %v1808 = vld [vmem:[%s1460 + $0x142] sm:$0xff]
        %v1809 = vld [vmem:[%s1460 + $0x152] sm:$0xff]
        %v1810 = vld [vmem:[%s1460 + $0x15a] sm:$0xff]
        %v1811 = vld [vmem:[%s1460 + $0x16a] sm:$0xff]
        %v1812 = vld [vmem:[%s1460 + $0x172] sm:$0xff]
        %v1813 = vpack.c.bf16 %v1781, %v1781
        %v1814 = vpack.c.bf16 %v1782, %v1782
        %v1815 = vpack.c.bf16 %v1783, %v1783
        %v1816 = vpack.c.bf16 %v1784, %v1784
        %v1817 = vpack.c.bf16 %v1785, %v1785
        %v1818 = vpack.c.bf16 %v1786, %v1786
        %v1819 = vpack.c.bf16 %v1787, %v1787
        %v1820 = vpack.c.bf16 %v1788, %v1788
        %v1821 = vpack.c.bf16 %v1789, %v1789
        %v1822 = vpack.c.bf16 %v1790, %v1790
        %v1823 = vpack.c.bf16 %v1791, %v1791
        %v1824 = vpack.c.bf16 %v1792, %v1792
        %v1825 = vpack.c.bf16 %v1793, %v1793
        %v1826 = vpack.c.bf16 %v1794, %v1794
        %v1827 = vpack.c.bf16 %v1795, %v1795
        %v1828 = vpack.c.bf16 %v1796, %v1796
        %v1829 = vpack.c.bf16 %v1797, %v1797
        %v1830 = vpack.c.bf16 %v1798, %v1798
        %v1831 = vpack.c.bf16 %v1799, %v1799
        %v1832 = vpack.c.bf16 %v1800, %v1800
        %v1833 = vpack.c.bf16 %v1801, %v1801
        %v1834 = vpack.c.bf16 %v1802, %v1802
        %v1835 = vpack.c.bf16 %v1803, %v1803
        %v1836 = vpack.c.bf16 %v1804, %v1804
        %v1837 = vpack.c.bf16 %v1805, %v1805
        %v1838 = vpack.c.bf16 %v1806, %v1806
        %v1839 = vpack.c.bf16 %v1807, %v1807
        %v1840 = vpack.c.bf16 %v1808, %v1808
        %v1841 = vpack.c.bf16 %v1809, %v1809
        %v1842 = vpack.c.bf16 %v1810, %v1810
        %v1843 = vpack.c.bf16 %v1811, %v1811
        %v1844 = vpack.c.bf16 %v1812, %v1812
        %1845 = vst.msk [vmem:[#allocation3 + $0x10] sm:$0xf] %vm562, %v1813
        %1846 = vst.msk [vmem:[#allocation3 + $0x24] sm:$0xf] %vm562, %v1814
        %1847 = vst.msk [vmem:[#allocation3 + $0x38] sm:$0xf] %vm562, %v1815
        %1848 = vst.msk [vmem:[#allocation3 + $0x4c] sm:$0xf] %vm562, %v1816
        %1849 = vst.msk [vmem:[#allocation3 + $0x60] sm:$0xf] %vm562, %v1817
        %1850 = vst.msk [vmem:[#allocation3 + $0x74] sm:$0xf] %vm562, %v1818
        %1851 = vst.msk [vmem:[#allocation3 + $0x88] sm:$0xf] %vm562, %v1819
        %1852 = vst.msk [vmem:[#allocation3 + $0x9c] sm:$0xf] %vm562, %v1820
        %1853 = vst.msk [vmem:[#allocation3 + $0xb0] sm:$0xf] %vm562, %v1821
        %1854 = vst.msk [vmem:[#allocation3 + $0xc4] sm:$0xf] %vm562, %v1822
        %1855 = vst.msk [vmem:[#allocation3 + $0xd8] sm:$0xf] %vm562, %v1823
        %1856 = vst.msk [vmem:[#allocation3 + $0xec] sm:$0xf] %vm562, %v1824
        %1857 = vst.msk [vmem:[#allocation3 + $0x100] sm:$0xf] %vm562, %v1825
        %1858 = vst.msk [vmem:[#allocation3 + $0x114] sm:$0xf] %vm562, %v1826
        %1859 = vst.msk [vmem:[#allocation3 + $0x128] sm:$0xf] %vm562, %v1827
        %1860 = vst.msk [vmem:[#allocation3 + $0x13c] sm:$0xf] %vm562, %v1828
        %1861 = vst.msk [vmem:[#allocation3 + $0x150] sm:$0xf] %vm562, %v1829
        %1862 = vst.msk [vmem:[#allocation3 + $0x164] sm:$0xf] %vm562, %v1830
        %1863 = vst.msk [vmem:[#allocation3 + $0x178] sm:$0xf] %vm562, %v1831
        %1864 = vst.msk [vmem:[#allocation3 + $0x18c] sm:$0xf] %vm562, %v1832
        %1865 = vst.msk [vmem:[#allocation3 + $0x1a0] sm:$0xf] %vm562, %v1833
        %1866 = vst.msk [vmem:[#allocation3 + $0x1b4] sm:$0xf] %vm562, %v1834
        %1867 = vst.msk [vmem:[#allocation3 + $0x1c8] sm:$0xf] %vm562, %v1835
        %1868 = vst.msk [vmem:[#allocation3 + $0x1dc] sm:$0xf] %vm562, %v1836
        %1869 = vst.msk [vmem:[#allocation3 + $0x1f0] sm:$0xf] %vm562, %v1837
        %1870 = vst.msk [vmem:[#allocation3 + $0x204] sm:$0xf] %vm562, %v1838
        %1871 = vst.msk [vmem:[#allocation3 + $0x218] sm:$0xf] %vm562, %v1839
        %1872 = vst.msk [vmem:[#allocation3 + $0x22c] sm:$0xf] %vm562, %v1840
        %1873 = vst.msk [vmem:[#allocation3 + $0x240] sm:$0xf] %vm562, %v1841
        %1874 = vst.msk [vmem:[#allocation3 + $0x254] sm:$0xf] %vm562, %v1842
        %1875 = vst.msk [vmem:[#allocation3 + $0x268] sm:$0xf] %vm562, %v1843
        %1876 = vst.msk [vmem:[#allocation3 + $0x27c] sm:$0xf] %vm562, %v1844
        %v1877 = vld [vmem:[#allocation3] sm:$0xff]
        %v1878 = vld [vmem:[#allocation3 + $0x8] sm:$0xff]
        %v1879 = vld [vmem:[#allocation3 + $0x10] sm:$0xf]
        %v1880 = vld [vmem:[#allocation3 + $0x14] sm:$0xff]
        %v1881 = vld [vmem:[#allocation3 + $0x1c] sm:$0xff]
        %v1882 = vld [vmem:[#allocation3 + $0x24] sm:$0xf]
        %v1883 = vld [vmem:[#allocation3 + $0x28] sm:$0xff]
        %v1884 = vld [vmem:[#allocation3 + $0x30] sm:$0xff]
        %v1885 = vld [vmem:[#allocation3 + $0x38] sm:$0xf]
        %v1886 = vld [vmem:[#allocation3 + $0x3c] sm:$0xff]
        %v1887 = vld [vmem:[#allocation3 + $0x44] sm:$0xff]
        %v1888 = vld [vmem:[#allocation3 + $0x4c] sm:$0xf]
        %v1889 = vld [vmem:[#allocation3 + $0x50] sm:$0xff]
        %v1890 = vld [vmem:[#allocation3 + $0x58] sm:$0xff]
        %v1891 = vld [vmem:[#allocation3 + $0x60] sm:$0xf]
        %v1892 = vld [vmem:[#allocation3 + $0x64] sm:$0xff]
        %v1893 = vld [vmem:[#allocation3 + $0x6c] sm:$0xff]
        %v1894 = vld [vmem:[#allocation3 + $0x74] sm:$0xf]
        %v1895 = vld [vmem:[#allocation3 + $0x78] sm:$0xff]
        %v1896 = vld [vmem:[#allocation3 + $0x80] sm:$0xff]
        %v1897 = vld [vmem:[#allocation3 + $0x88] sm:$0xf]
        %v1898 = vld [vmem:[#allocation3 + $0x8c] sm:$0xff]
        %v1899 = vld [vmem:[#allocation3 + $0x94] sm:$0xff]
        %v1900 = vld [vmem:[#allocation3 + $0x9c] sm:$0xf]
        %v1901 = vld [vmem:[#allocation3 + $0xa0] sm:$0xff]
        %v1902 = vld [vmem:[#allocation3 + $0xa8] sm:$0xff]
        %v1903 = vld [vmem:[#allocation3 + $0xb0] sm:$0xf]
        %v1904 = vld [vmem:[#allocation3 + $0xb4] sm:$0xff]
        %v1905 = vld [vmem:[#allocation3 + $0xbc] sm:$0xff]
        %v1906 = vld [vmem:[#allocation3 + $0xc4] sm:$0xf]
        %v1907 = vld [vmem:[#allocation3 + $0xc8] sm:$0xff]
        %v1908 = vld [vmem:[#allocation3 + $0xd0] sm:$0xff]
        %v1909 = vld [vmem:[#allocation3 + $0xd8] sm:$0xf]
        %v1910 = vld [vmem:[#allocation3 + $0xdc] sm:$0xff]
        %v1911 = vld [vmem:[#allocation3 + $0xe4] sm:$0xff]
        %v1912 = vld [vmem:[#allocation3 + $0xec] sm:$0xf]
        %v1913 = vld [vmem:[#allocation3 + $0xf0] sm:$0xff]
        %v1914 = vld [vmem:[#allocation3 + $0xf8] sm:$0xff]
        %v1915 = vld [vmem:[#allocation3 + $0x100] sm:$0xf]
        %v1916 = vld [vmem:[#allocation3 + $0x104] sm:$0xff]
        %v1917 = vld [vmem:[#allocation3 + $0x10c] sm:$0xff]
        %v1918 = vld [vmem:[#allocation3 + $0x114] sm:$0xf]
        %v1919 = vld [vmem:[#allocation3 + $0x118] sm:$0xff]
        %v1920 = vld [vmem:[#allocation3 + $0x120] sm:$0xff]
        %v1921 = vld [vmem:[#allocation3 + $0x128] sm:$0xf]
        %v1922 = vld [vmem:[#allocation3 + $0x12c] sm:$0xff]
        %v1923 = vld [vmem:[#allocation3 + $0x134] sm:$0xff]
        %v1924 = vld [vmem:[#allocation3 + $0x13c] sm:$0xf]
        %v1925 = vld [vmem:[#allocation3 + $0x140] sm:$0xff]
        %v1926 = vld [vmem:[#allocation3 + $0x148] sm:$0xff]
        %v1927 = vld [vmem:[#allocation3 + $0x150] sm:$0xf]
        %v1928 = vld [vmem:[#allocation3 + $0x154] sm:$0xff]
        %v1929 = vld [vmem:[#allocation3 + $0x15c] sm:$0xff]
        %v1930 = vld [vmem:[#allocation3 + $0x164] sm:$0xf]
        %v1931 = vld [vmem:[#allocation3 + $0x168] sm:$0xff]
        %v1932 = vld [vmem:[#allocation3 + $0x170] sm:$0xff]
        %v1933 = vld [vmem:[#allocation3 + $0x178] sm:$0xf]
        %v1934 = vld [vmem:[#allocation3 + $0x17c] sm:$0xff]
        %v1935 = vld [vmem:[#allocation3 + $0x184] sm:$0xff]
        %v1936 = vld [vmem:[#allocation3 + $0x18c] sm:$0xf]
        %v1937 = vld [vmem:[#allocation3 + $0x190] sm:$0xff]
        %v1938 = vld [vmem:[#allocation3 + $0x198] sm:$0xff]
        %v1939 = vld [vmem:[#allocation3 + $0x1a0] sm:$0xf]
        %v1940 = vld [vmem:[#allocation3 + $0x1a4] sm:$0xff]
        %v1941 = vld [vmem:[#allocation3 + $0x1ac] sm:$0xff]
        %v1942 = vld [vmem:[#allocation3 + $0x1b4] sm:$0xf]
        %v1943 = vld [vmem:[#allocation3 + $0x1b8] sm:$0xff]
        %v1944 = vld [vmem:[#allocation3 + $0x1c0] sm:$0xff]
        %v1945 = vld [vmem:[#allocation3 + $0x1c8] sm:$0xf]
        %v1946 = vld [vmem:[#allocation3 + $0x1cc] sm:$0xff]
        %v1947 = vld [vmem:[#allocation3 + $0x1d4] sm:$0xff]
        %v1948 = vld [vmem:[#allocation3 + $0x1dc] sm:$0xf]
        %v1949 = vld [vmem:[#allocation3 + $0x1e0] sm:$0xff]
        %v1950 = vld [vmem:[#allocation3 + $0x1e8] sm:$0xff]
        %v1951 = vld [vmem:[#allocation3 + $0x1f0] sm:$0xf]
        %v1952 = vld [vmem:[#allocation3 + $0x1f4] sm:$0xff]
        %v1953 = vld [vmem:[#allocation3 + $0x1fc] sm:$0xff]
        %v1954 = vld [vmem:[#allocation3 + $0x204] sm:$0xf]
        %v1955 = vld [vmem:[#allocation3 + $0x208] sm:$0xff]
        %v1956 = vld [vmem:[#allocation3 + $0x210] sm:$0xff]
        %v1957 = vld [vmem:[#allocation3 + $0x218] sm:$0xf]
        %v1958 = vld [vmem:[#allocation3 + $0x21c] sm:$0xff]
        %v1959 = vld [vmem:[#allocation3 + $0x224] sm:$0xff]
        %v1960 = vld [vmem:[#allocation3 + $0x22c] sm:$0xf]
        %v1961 = vld [vmem:[#allocation3 + $0x230] sm:$0xff]
        %v1962 = vld [vmem:[#allocation3 + $0x238] sm:$0xff]
        %v1963 = vld [vmem:[#allocation3 + $0x240] sm:$0xf]
        %v1964 = vld [vmem:[#allocation3 + $0x244] sm:$0xff]
        %v1965 = vld [vmem:[#allocation3 + $0x24c] sm:$0xff]
        %v1966 = vld [vmem:[#allocation3 + $0x254] sm:$0xf]
        %v1967 = vld [vmem:[#allocation3 + $0x258] sm:$0xff]
        %v1968 = vld [vmem:[#allocation3 + $0x260] sm:$0xff]
        %v1969 = vld [vmem:[#allocation3 + $0x268] sm:$0xf]
        %v1970 = vld [vmem:[#allocation3 + $0x26c] sm:$0xff]
        %v1971 = vld [vmem:[#allocation3 + $0x274] sm:$0xff]
        %v1972 = vld [vmem:[#allocation3 + $0x27c] sm:$0xf]
        %v1973 = vld [vmem:[#allocation7] sm:$0xf]
        %v1974 = vld [vmem:[#allocation7 + $0x4] sm:$0xf]
        %v1975 = vld [vmem:[#allocation7 + $0x8] sm:$0xf]
        %v1976 = vld [vmem:[#allocation7 + $0xc] sm:$0xf]
        %v1977 = vld [vmem:[#allocation7 + $0x10] sm:$0xf]
        %v1978 = vld [vmem:[#allocation7 + $0x14] sm:$0xf]
        %v1979 = vld [vmem:[#allocation7 + $0x18] sm:$0xf]
        %v1980 = vld [vmem:[#allocation7 + $0x1c] sm:$0xf]
        %v1981 = vld [vmem:[#allocation7 + $0x20] sm:$0xf]
        %v1982 = vld [vmem:[#allocation7 + $0x24] sm:$0xf]
        %v1983 = vld [vmem:[#allocation7 + $0x28] sm:$0xf]
        %v1984 = vld [vmem:[#allocation7 + $0x2c] sm:$0xf]
        %v1985 = vld [vmem:[#allocation7 + $0x30] sm:$0xf]
        %v1986 = vld [vmem:[#allocation7 + $0x34] sm:$0xf]
        %v1987 = vld [vmem:[#allocation7 + $0x38] sm:$0xf]
        %v1988 = vld [vmem:[#allocation7 + $0x3c] sm:$0xf]
        %v1989 = vld [vmem:[#allocation7 + $0x40] sm:$0xf]
        %v1990 = vld [vmem:[#allocation7 + $0x44] sm:$0xf]
        %v1991 = vld [vmem:[#allocation7 + $0x48] sm:$0xf]
        %v1992 = vld [vmem:[#allocation7 + $0x4c] sm:$0xf]
        %v1993 = vld [vmem:[#allocation7 + $0x50] sm:$0xf]
        %v1994 = vld [vmem:[#allocation7 + $0x54] sm:$0xf]
        %v1995 = vld [vmem:[#allocation7 + $0x58] sm:$0xf]
        %v1996 = vld [vmem:[#allocation7 + $0x5c] sm:$0xf]
        %v1997 = vld [vmem:[#allocation7 + $0x60] sm:$0xf]
        %v1998 = vld [vmem:[#allocation7 + $0x64] sm:$0xf]
        %v1999 = vld [vmem:[#allocation7 + $0x68] sm:$0xf]
        %v2000 = vld [vmem:[#allocation7 + $0x6c] sm:$0xf]
        %v2001 = vld [vmem:[#allocation7 + $0x70] sm:$0xf]
        %v2002 = vld [vmem:[#allocation7 + $0x74] sm:$0xf]
        %v2003 = vld [vmem:[#allocation7 + $0x78] sm:$0xf]
        %v2004 = vld [vmem:[#allocation7 + $0x7c] sm:$0xf]
        %v2005 = vld [vmem:[#allocation7 + $0x80] sm:$0xf]
        %v2006 = vld [vmem:[#allocation7 + $0x84] sm:$0xf]
        %v2007 = vld [vmem:[#allocation7 + $0x88] sm:$0xf]
        %v2008 = vld [vmem:[#allocation7 + $0x8c] sm:$0xf]
        %v2009 = vld [vmem:[#allocation7 + $0x90] sm:$0xf]
        %v2010 = vld [vmem:[#allocation7 + $0x94] sm:$0xf]
        %v2011 = vld [vmem:[#allocation7 + $0x98] sm:$0xf]
        %v2012 = vld [vmem:[#allocation7 + $0x9c] sm:$0xf]
        %v2013 = vld [vmem:[#allocation7 + $0xa0] sm:$0xf]
        %v2014 = vld [vmem:[#allocation7 + $0xa4] sm:$0xf]
        %v2015 = vld [vmem:[#allocation7 + $0xa8] sm:$0xf]
        %v2016 = vld [vmem:[#allocation7 + $0xac] sm:$0xf]
        %v2017 = vld [vmem:[#allocation7 + $0xb0] sm:$0xf]
        %v2018 = vld [vmem:[#allocation7 + $0xb4] sm:$0xf]
        %v2019 = vld [vmem:[#allocation7 + $0xb8] sm:$0xf]
        %v2020 = vld [vmem:[#allocation7 + $0xbc] sm:$0xf]
        %v2021 = vld [vmem:[#allocation7 + $0xc0] sm:$0xf]
        %v2022 = vld [vmem:[#allocation7 + $0xc4] sm:$0xf]
        %v2023 = vld [vmem:[#allocation7 + $0xc8] sm:$0xf]
        %v2024 = vld [vmem:[#allocation7 + $0xcc] sm:$0xf]
        %v2025 = vld [vmem:[#allocation7 + $0xd0] sm:$0xf]
        %v2026 = vld [vmem:[#allocation7 + $0xd4] sm:$0xf]
        %v2027 = vld [vmem:[#allocation7 + $0xd8] sm:$0xf]
        %v2028 = vld [vmem:[#allocation7 + $0xdc] sm:$0xf]
        %v2029 = vld [vmem:[#allocation7 + $0xe0] sm:$0xf]
        %v2030 = vld [vmem:[#allocation7 + $0xe4] sm:$0xf]
        %v2031 = vld [vmem:[#allocation7 + $0xe8] sm:$0xf]
        %v2032 = vld [vmem:[#allocation7 + $0xec] sm:$0xf]
        %v2033 = vld [vmem:[#allocation7 + $0xf0] sm:$0xf]
        %v2034 = vld [vmem:[#allocation7 + $0xf4] sm:$0xf]
        %v2035 = vld [vmem:[#allocation7 + $0xf8] sm:$0xf]
        %v2036 = vld [vmem:[#allocation7 + $0xfc] sm:$0xf]
        %v2037 = vld [vmem:[#allocation7 + $0x100] sm:$0xf]
        %v2038 = vld [vmem:[#allocation7 + $0x104] sm:$0xf]
        %v2039 = vld [vmem:[#allocation7 + $0x108] sm:$0xf]
        %v2040 = vld [vmem:[#allocation7 + $0x10c] sm:$0xf]
        %v2041 = vld [vmem:[#allocation7 + $0x110] sm:$0xf]
        %v2042 = vld [vmem:[#allocation7 + $0x114] sm:$0xf]
        %v2043 = vld [vmem:[#allocation7 + $0x118] sm:$0xf]
        %v2044 = vld [vmem:[#allocation7 + $0x11c] sm:$0xf]
        %v2045 = vld [vmem:[%s2] sm:$0x1]
        %v2047 = vperm.slane %v2045, 0
        %v2145 = vunpack.c.l.b16 %v1877
        %v2146 = vunpack.c.h.b16 %v1877
        %v2147 = vunpack.c.l.b16 %v1878
        %v2148 = vunpack.c.h.b16 %v1878
        %v2149 = vunpack.c.l.b16 %v1879
        %v2150 = vunpack.c.l.b16 %v1880
        %v2151 = vunpack.c.h.b16 %v1880
        %v2152 = vunpack.c.l.b16 %v1881
        %v2153 = vunpack.c.h.b16 %v1881
        %v2154 = vunpack.c.l.b16 %v1882
        %v2155 = vunpack.c.l.b16 %v1883
        %v2156 = vunpack.c.h.b16 %v1883
        %v2157 = vunpack.c.l.b16 %v1884
        %v2158 = vunpack.c.h.b16 %v1884
        %v2159 = vunpack.c.l.b16 %v1885
        %v2160 = vunpack.c.l.b16 %v1886
        %v2161 = vunpack.c.h.b16 %v1886
        %v2162 = vunpack.c.l.b16 %v1887
        %v2163 = vunpack.c.h.b16 %v1887
        %v2164 = vunpack.c.l.b16 %v1888
        %v2165 = vunpack.c.l.b16 %v1889
        %v2166 = vunpack.c.h.b16 %v1889
        %v2167 = vunpack.c.l.b16 %v1890
        %v2168 = vunpack.c.h.b16 %v1890
        %v2169 = vunpack.c.l.b16 %v1891
        %v2170 = vunpack.c.l.b16 %v1892
        %v2171 = vunpack.c.h.b16 %v1892
        %v2172 = vunpack.c.l.b16 %v1893
        %v2173 = vunpack.c.h.b16 %v1893
        %v2174 = vunpack.c.l.b16 %v1894
        %v2175 = vunpack.c.l.b16 %v1895
        %v2176 = vunpack.c.h.b16 %v1895
        %v2177 = vunpack.c.l.b16 %v1896
        %v2178 = vunpack.c.h.b16 %v1896
        %v2179 = vunpack.c.l.b16 %v1897
        %v2180 = vunpack.c.l.b16 %v1898
        %v2181 = vunpack.c.h.b16 %v1898
        %v2182 = vunpack.c.l.b16 %v1899
        %v2183 = vunpack.c.h.b16 %v1899
        %v2184 = vunpack.c.l.b16 %v1900
        %v2185 = vunpack.c.l.b16 %v1901
        %v2186 = vunpack.c.h.b16 %v1901
        %v2187 = vunpack.c.l.b16 %v1902
        %v2188 = vunpack.c.h.b16 %v1902
        %v2189 = vunpack.c.l.b16 %v1903
        %v2190 = vunpack.c.l.b16 %v1904
        %v2191 = vunpack.c.h.b16 %v1904
        %v2192 = vunpack.c.l.b16 %v1905
        %v2193 = vunpack.c.h.b16 %v1905
        %v2194 = vunpack.c.l.b16 %v1906
        %v2195 = vunpack.c.l.b16 %v1907
        %v2196 = vunpack.c.h.b16 %v1907
        %v2197 = vunpack.c.l.b16 %v1908
        %v2198 = vunpack.c.h.b16 %v1908
        %v2199 = vunpack.c.l.b16 %v1909
        %v2200 = vunpack.c.l.b16 %v1910
        %v2201 = vunpack.c.h.b16 %v1910
        %v2202 = vunpack.c.l.b16 %v1911
        %v2203 = vunpack.c.h.b16 %v1911
        %v2204 = vunpack.c.l.b16 %v1912
        %v2205 = vunpack.c.l.b16 %v1913
        %v2206 = vunpack.c.h.b16 %v1913
        %v2207 = vunpack.c.l.b16 %v1914
        %v2208 = vunpack.c.h.b16 %v1914
        %v2209 = vunpack.c.l.b16 %v1915
        %v2210 = vunpack.c.l.b16 %v1916
        %v2211 = vunpack.c.h.b16 %v1916
        %v2212 = vunpack.c.l.b16 %v1917
        %v2213 = vunpack.c.h.b16 %v1917
        %v2214 = vunpack.c.l.b16 %v1918
        %v2215 = vunpack.c.l.b16 %v1919
        %v2216 = vunpack.c.h.b16 %v1919
        %v2217 = vunpack.c.l.b16 %v1920
        %v2218 = vunpack.c.h.b16 %v1920
        %v2219 = vunpack.c.l.b16 %v1921
        %v2220 = vunpack.c.l.b16 %v1922
        %v2221 = vunpack.c.h.b16 %v1922
        %v2222 = vunpack.c.l.b16 %v1923
        %v2223 = vunpack.c.h.b16 %v1923
        %v2224 = vunpack.c.l.b16 %v1924
        %v2225 = vunpack.c.l.b16 %v1925
        %v2226 = vunpack.c.h.b16 %v1925
        %v2227 = vunpack.c.l.b16 %v1926
        %v2228 = vunpack.c.h.b16 %v1926
        %v2229 = vunpack.c.l.b16 %v1927
        %v2230 = vunpack.c.l.b16 %v1928
        %v2231 = vunpack.c.h.b16 %v1928
        %v2232 = vunpack.c.l.b16 %v1929
        %v2233 = vunpack.c.h.b16 %v1929
        %v2234 = vunpack.c.l.b16 %v1930
        %v2235 = vunpack.c.l.b16 %v1931
        %v2236 = vunpack.c.h.b16 %v1931
        %v2237 = vunpack.c.l.b16 %v1932
        %v2238 = vunpack.c.h.b16 %v1932
        %v2239 = vunpack.c.l.b16 %v1933
        %v2240 = vunpack.c.l.b16 %v1934
        %v2241 = vunpack.c.h.b16 %v1934
        %v2242 = vunpack.c.l.b16 %v1935
        %v2243 = vunpack.c.h.b16 %v1935
        %v2244 = vunpack.c.l.b16 %v1936
        %v2245 = vunpack.c.l.b16 %v1937
        %v2246 = vunpack.c.h.b16 %v1937
        %v2247 = vunpack.c.l.b16 %v1938
        %v2248 = vunpack.c.h.b16 %v1938
        %v2249 = vunpack.c.l.b16 %v1939
        %v2250 = vunpack.c.l.b16 %v1940
        %v2251 = vunpack.c.h.b16 %v1940
        %v2252 = vunpack.c.l.b16 %v1941
        %v2253 = vunpack.c.h.b16 %v1941
        %v2254 = vunpack.c.l.b16 %v1942
        %v2255 = vunpack.c.l.b16 %v1943
        %v2256 = vunpack.c.h.b16 %v1943
        %v2257 = vunpack.c.l.b16 %v1944
        %v2258 = vunpack.c.h.b16 %v1944
        %v2259 = vunpack.c.l.b16 %v1945
        %v2260 = vunpack.c.l.b16 %v1946
        %v2261 = vunpack.c.h.b16 %v1946
        %v2262 = vunpack.c.l.b16 %v1947
        %v2263 = vunpack.c.h.b16 %v1947
        %v2264 = vunpack.c.l.b16 %v1948
        %v2265 = vunpack.c.l.b16 %v1949
        %v2266 = vunpack.c.h.b16 %v1949
        %v2267 = vunpack.c.l.b16 %v1950
        %v2268 = vunpack.c.h.b16 %v1950
        %v2269 = vunpack.c.l.b16 %v1951
        %v2270 = vunpack.c.l.b16 %v1952
        %v2271 = vunpack.c.h.b16 %v1952
        %v2272 = vunpack.c.l.b16 %v1953
        %v2273 = vunpack.c.h.b16 %v1953
        %v2274 = vunpack.c.l.b16 %v1954
        %v2275 = vunpack.c.l.b16 %v1955
        %v2276 = vunpack.c.h.b16 %v1955
        %v2277 = vunpack.c.l.b16 %v1956
        %v2278 = vunpack.c.h.b16 %v1956
        %v2279 = vunpack.c.l.b16 %v1957
        %v2280 = vunpack.c.l.b16 %v1958
        %v2281 = vunpack.c.h.b16 %v1958
        %v2282 = vunpack.c.l.b16 %v1959
        %v2283 = vunpack.c.h.b16 %v1959
        %v2284 = vunpack.c.l.b16 %v1960
        %v2285 = vunpack.c.l.b16 %v1961
        %v2286 = vunpack.c.h.b16 %v1961
        %v2287 = vunpack.c.l.b16 %v1962
        %v2288 = vunpack.c.h.b16 %v1962
        %v2289 = vunpack.c.l.b16 %v1963
        %v2290 = vunpack.c.l.b16 %v1964
        %v2291 = vunpack.c.h.b16 %v1964
        %v2292 = vunpack.c.l.b16 %v1965
        %v2293 = vunpack.c.h.b16 %v1965
        %v2294 = vunpack.c.l.b16 %v1966
        %v2295 = vunpack.c.l.b16 %v1967
        %v2296 = vunpack.c.h.b16 %v1967
        %v2297 = vunpack.c.l.b16 %v1968
        %v2298 = vunpack.c.h.b16 %v1968
        %v2299 = vunpack.c.l.b16 %v1969
        %v2300 = vunpack.c.l.b16 %v1970
        %v2301 = vunpack.c.h.b16 %v1970
        %v2302 = vunpack.c.l.b16 %v1971
        %v2303 = vunpack.c.h.b16 %v1971
        %v2304 = vunpack.c.l.b16 %v1972
        %v2305 = vpack.c.b16 %v2150, %v2145
        %v2306 = vpack.c.b16 %v2151, %v2146
        %v2307 = vpack.c.b16 %v2152, %v2147
        %v2308 = vpack.c.b16 %v2153, %v2148
        %v2309 = vpack.c.b16 %v2154, %v2149
        %v2310 = vpack.c.b16 %v2160, %v2155
        %v2311 = vpack.c.b16 %v2161, %v2156
        %v2312 = vpack.c.b16 %v2162, %v2157
        %v2313 = vpack.c.b16 %v2163, %v2158
        %v2314 = vpack.c.b16 %v2164, %v2159
        %v2315 = vpack.c.b16 %v2170, %v2165
        %v2316 = vpack.c.b16 %v2171, %v2166
        %v2317 = vpack.c.b16 %v2172, %v2167
        %v2318 = vpack.c.b16 %v2173, %v2168
        %v2319 = vpack.c.b16 %v2174, %v2169
        %v2320 = vpack.c.b16 %v2180, %v2175
        %v2321 = vpack.c.b16 %v2181, %v2176
        %v2322 = vpack.c.b16 %v2182, %v2177
        %v2323 = vpack.c.b16 %v2183, %v2178
        %v2324 = vpack.c.b16 %v2184, %v2179
        %v2325 = vpack.c.b16 %v2190, %v2185
        %v2326 = vpack.c.b16 %v2191, %v2186
        %v2327 = vpack.c.b16 %v2192, %v2187
        %v2328 = vpack.c.b16 %v2193, %v2188
        %v2329 = vpack.c.b16 %v2194, %v2189
        %v2330 = vpack.c.b16 %v2200, %v2195
        %v2331 = vpack.c.b16 %v2201, %v2196
        %v2332 = vpack.c.b16 %v2202, %v2197
        %v2333 = vpack.c.b16 %v2203, %v2198
        %v2334 = vpack.c.b16 %v2204, %v2199
        %v2335 = vpack.c.b16 %v2210, %v2205
        %v2336 = vpack.c.b16 %v2211, %v2206
        %v2337 = vpack.c.b16 %v2212, %v2207
        %v2338 = vpack.c.b16 %v2213, %v2208
        %v2339 = vpack.c.b16 %v2214, %v2209
        %v2340 = vpack.c.b16 %v2220, %v2215
        %v2341 = vpack.c.b16 %v2221, %v2216
        %v2342 = vpack.c.b16 %v2222, %v2217
        %v2343 = vpack.c.b16 %v2223, %v2218
        %v2344 = vpack.c.b16 %v2224, %v2219
        %v2345 = vpack.c.b16 %v2230, %v2225
        %v2346 = vpack.c.b16 %v2231, %v2226
        %v2347 = vpack.c.b16 %v2232, %v2227
        %v2348 = vpack.c.b16 %v2233, %v2228
        %v2349 = vpack.c.b16 %v2234, %v2229
        %v2350 = vpack.c.b16 %v2240, %v2235
        %v2351 = vpack.c.b16 %v2241, %v2236
        %v2352 = vpack.c.b16 %v2242, %v2237
        %v2353 = vpack.c.b16 %v2243, %v2238
        %v2354 = vpack.c.b16 %v2244, %v2239
        %v2355 = vpack.c.b16 %v2250, %v2245
        %v2356 = vpack.c.b16 %v2251, %v2246
        %v2357 = vpack.c.b16 %v2252, %v2247
        %v2358 = vpack.c.b16 %v2253, %v2248
        %v2359 = vpack.c.b16 %v2254, %v2249
        %v2360 = vpack.c.b16 %v2260, %v2255
        %v2361 = vpack.c.b16 %v2261, %v2256
        %v2362 = vpack.c.b16 %v2262, %v2257
        %v2363 = vpack.c.b16 %v2263, %v2258
        %v2364 = vpack.c.b16 %v2264, %v2259
        %v2365 = vpack.c.b16 %v2270, %v2265
        %v2366 = vpack.c.b16 %v2271, %v2266
        %v2367 = vpack.c.b16 %v2272, %v2267
        %v2368 = vpack.c.b16 %v2273, %v2268
        %v2369 = vpack.c.b16 %v2274, %v2269
        %v2370 = vpack.c.b16 %v2280, %v2275
        %v2371 = vpack.c.b16 %v2281, %v2276
        %v2372 = vpack.c.b16 %v2282, %v2277
        %v2373 = vpack.c.b16 %v2283, %v2278
        %v2374 = vpack.c.b16 %v2284, %v2279
        %v2375 = vpack.c.b16 %v2290, %v2285
        %v2376 = vpack.c.b16 %v2291, %v2286
        %v2377 = vpack.c.b16 %v2292, %v2287
        %v2378 = vpack.c.b16 %v2293, %v2288
        %v2379 = vpack.c.b16 %v2294, %v2289
        %v2380 = vpack.c.b16 %v2300, %v2295
        %v2381 = vpack.c.b16 %v2301, %v2296
        %v2382 = vpack.c.b16 %v2302, %v2297
        %v2383 = vpack.c.b16 %v2303, %v2298
        %v2384 = vpack.c.b16 %v2304, %v2299
        %v2521 = vunpack.c.l.b16 %v1973
        %v2522 = vunpack.c.l.b16 %v1974
        %v2523 = vunpack.c.l.b16 %v1975
        %v2524 = vunpack.c.l.b16 %v1976
        %v2525 = vunpack.c.l.b16 %v1977
        %v2526 = vunpack.c.l.b16 %v1978
        %v2527 = vunpack.c.l.b16 %v1979
        %v2528 = vunpack.c.l.b16 %v1980
        %v2529 = vunpack.c.l.b16 %v1981
        %v2530 = vunpack.c.l.b16 %v1982
        %v2531 = vunpack.c.l.b16 %v1983
        %v2532 = vunpack.c.l.b16 %v1984
        %v2533 = vunpack.c.l.b16 %v1985
        %v2534 = vunpack.c.l.b16 %v1986
        %v2535 = vunpack.c.l.b16 %v1987
        %v2536 = vunpack.c.l.b16 %v1988
        %v2537 = vunpack.c.l.b16 %v1989
        %v2538 = vunpack.c.l.b16 %v1990
        %v2539 = vunpack.c.l.b16 %v1991
        %v2540 = vunpack.c.l.b16 %v1992
        %v2541 = vunpack.c.l.b16 %v1993
        %v2542 = vunpack.c.l.b16 %v1994
        %v2543 = vunpack.c.l.b16 %v1995
        %v2544 = vunpack.c.l.b16 %v1996
        %v2545 = vunpack.c.l.b16 %v1997
        %v2546 = vunpack.c.l.b16 %v1998
        %v2547 = vunpack.c.l.b16 %v1999
        %v2548 = vunpack.c.l.b16 %v2000
        %v2549 = vunpack.c.l.b16 %v2001
        %v2550 = vunpack.c.l.b16 %v2002
        %v2551 = vunpack.c.l.b16 %v2003
        %v2552 = vunpack.c.l.b16 %v2004
        %v2553 = vunpack.c.l.b16 %v2005
        %v2554 = vunpack.c.l.b16 %v2006
        %v2555 = vunpack.c.l.b16 %v2007
        %v2556 = vunpack.c.l.b16 %v2008
        %v2557 = vunpack.c.l.b16 %v2009
        %v2558 = vunpack.c.l.b16 %v2010
        %v2559 = vunpack.c.l.b16 %v2011
        %v2560 = vunpack.c.l.b16 %v2012
        %v2561 = vunpack.c.l.b16 %v2013
        %v2562 = vunpack.c.l.b16 %v2014
        %v2563 = vunpack.c.l.b16 %v2015
        %v2564 = vunpack.c.l.b16 %v2016
        %v2565 = vunpack.c.l.b16 %v2017
        %v2566 = vunpack.c.l.b16 %v2018
        %v2567 = vunpack.c.l.b16 %v2019
        %v2568 = vunpack.c.l.b16 %v2020
        %v2569 = vunpack.c.l.b16 %v2021
        %v2570 = vunpack.c.l.b16 %v2022
        %v2571 = vunpack.c.l.b16 %v2023
        %v2572 = vunpack.c.l.b16 %v2024
        %v2573 = vunpack.c.l.b16 %v2025
        %v2574 = vunpack.c.l.b16 %v2026
        %v2575 = vunpack.c.l.b16 %v2027
        %v2576 = vunpack.c.l.b16 %v2028
        %v2577 = vunpack.c.l.b16 %v2029
        %v2578 = vunpack.c.l.b16 %v2030
        %v2579 = vunpack.c.l.b16 %v2031
        %v2580 = vunpack.c.l.b16 %v2032
        %v2581 = vunpack.c.l.b16 %v2033
        %v2582 = vunpack.c.l.b16 %v2034
        %v2583 = vunpack.c.l.b16 %v2035
        %v2584 = vunpack.c.l.b16 %v2036
        %v2585 = vunpack.c.l.b16 %v2037
        %v2586 = vunpack.c.l.b16 %v2038
        %v2587 = vunpack.c.l.b16 %v2039
        %v2588 = vunpack.c.l.b16 %v2040
        %v2589 = vunpack.c.l.b16 %v2041
        %v2590 = vunpack.c.l.b16 %v2042
        %v2591 = vunpack.c.l.b16 %v2043
        %v2592 = vunpack.c.l.b16 %v2044
        %v2593 = vpack.c.b16 %v2522, %v2521
        %v2594 = vpack.c.b16 %v2524, %v2523
        %v2595 = vpack.c.b16 %v2526, %v2525
        %v2596 = vpack.c.b16 %v2528, %v2527
        %v2597 = vpack.c.b16 %v2530, %v2529
        %v2598 = vpack.c.b16 %v2532, %v2531
        %v2599 = vpack.c.b16 %v2534, %v2533
        %v2600 = vpack.c.b16 %v2536, %v2535
        %v2601 = vpack.c.b16 %v2538, %v2537
        %v2602 = vpack.c.b16 %v2540, %v2539
        %v2603 = vpack.c.b16 %v2542, %v2541
        %v2604 = vpack.c.b16 %v2544, %v2543
        %v2605 = vpack.c.b16 %v2546, %v2545
        %v2606 = vpack.c.b16 %v2548, %v2547
        %v2607 = vpack.c.b16 %v2550, %v2549
        %v2608 = vpack.c.b16 %v2552, %v2551
        %v2609 = vpack.c.b16 %v2554, %v2553
        %v2610 = vpack.c.b16 %v2556, %v2555
        %v2611 = vpack.c.b16 %v2558, %v2557
        %v2612 = vpack.c.b16 %v2560, %v2559
        %v2613 = vpack.c.b16 %v2562, %v2561
        %v2614 = vpack.c.b16 %v2564, %v2563
        %v2615 = vpack.c.b16 %v2566, %v2565
        %v2616 = vpack.c.b16 %v2568, %v2567
        %v2617 = vpack.c.b16 %v2570, %v2569
        %v2618 = vpack.c.b16 %v2572, %v2571
        %v2619 = vpack.c.b16 %v2574, %v2573
        %v2620 = vpack.c.b16 %v2576, %v2575
        %v2621 = vpack.c.b16 %v2578, %v2577
        %v2622 = vpack.c.b16 %v2580, %v2579
        %v2623 = vpack.c.b16 %v2582, %v2581
        %v2624 = vpack.c.b16 %v2584, %v2583
        %v2625 = vpack.c.b16 %v2586, %v2585
        %v2626 = vpack.c.b16 %v2588, %v2587
        %v2627 = vpack.c.b16 %v2590, %v2589
        %v2628 = vpack.c.b16 %v2592, %v2591
        %v2666 = vsel %vm387, %v2309, 0
        %v2669 = vsel %vm387, %v2314, 0
        %v2672 = vsel %vm387, %v2319, 0
        %v2675 = vsel %vm387, %v2324, 0
        %v2678 = vsel %vm387, %v2329, 0
        %v2681 = vsel %vm387, %v2334, 0
        %v2684 = vsel %vm387, %v2339, 0
        %v2687 = vsel %vm387, %v2344, 0
        %v2690 = vsel %vm387, %v2349, 0
        %v2693 = vsel %vm387, %v2354, 0
        %v2696 = vsel %vm387, %v2359, 0
        %v2699 = vsel %vm387, %v2364, 0
        %v2702 = vsel %vm387, %v2369, 0
        %v2705 = vsel %vm387, %v2374, 0
        %v2708 = vsel %vm387, %v2379, 0
        %v2711 = vsel %vm387, %v2384, 0
        %2713 = vmatpush.bf16.msra.mxu0 %v2600
        %2714 = vmatpush.bf16.msra.mxu0 %v2599
        %2715 = vmatpush.bf16.msra.mxu0 %v2598
        %2716 = vmatpush.bf16.msra.mxu0 %v2597
        %2717 = vmatpush.bf16.msra.mxu0 %v2596
        %2718 = vmatpush.bf16.msra.mxu0 %v2595
        %2719 = vmatpush.bf16.msra.mxu0 %v2594
        %2720 = vmatpush.bf16.msra.mxu0 %v2593
        %2721 = vmatmul.bf16.gmra.mxu0 %v2305
        %v2722 = vpop.f32.mrf.mxu0
        %v2723 = vadd.f32 %v2047, %v2722
        %v2724 = vpop.f32.mrf.mxu0
        %v2725 = vadd.f32 %v2047, %v2724
        %2726 = vmatmul.bf16.gmra.mxu0 %v2310
        %v2727 = vpop.f32.mrf.mxu0
        %v2728 = vadd.f32 %v2047, %v2727
        %v2729 = vpop.f32.mrf.mxu0
        %v2730 = vadd.f32 %v2047, %v2729
        %2731 = vmatmul.bf16.gmra.mxu0 %v2315
        %v2732 = vpop.f32.mrf.mxu0
        %v2733 = vadd.f32 %v2047, %v2732
        %v2734 = vpop.f32.mrf.mxu0
        %v2735 = vadd.f32 %v2047, %v2734
        %2736 = vmatmul.bf16.gmra.mxu0 %v2320
        %v2737 = vpop.f32.mrf.mxu0
        %v2738 = vadd.f32 %v2047, %v2737
        %v2739 = vpop.f32.mrf.mxu0
        %v2740 = vadd.f32 %v2047, %v2739
        %2741 = vmatmul.bf16.gmra.mxu0 %v2325
        %v2742 = vpop.f32.mrf.mxu0
        %v2743 = vadd.f32 %v2047, %v2742
        %v2744 = vpop.f32.mrf.mxu0
        %v2745 = vadd.f32 %v2047, %v2744
        %2746 = vmatmul.bf16.gmra.mxu0 %v2330
        %v2747 = vpop.f32.mrf.mxu0
        %v2748 = vadd.f32 %v2047, %v2747
        %v2749 = vpop.f32.mrf.mxu0
        %v2750 = vadd.f32 %v2047, %v2749
        %2751 = vmatmul.bf16.gmra.mxu0 %v2335
        %v2752 = vpop.f32.mrf.mxu0
        %v2753 = vadd.f32 %v2047, %v2752
        %v2754 = vpop.f32.mrf.mxu0
        %v2755 = vadd.f32 %v2047, %v2754
        %2756 = vmatmul.bf16.gmra.mxu0 %v2340
        %v2757 = vpop.f32.mrf.mxu0
        %v2758 = vadd.f32 %v2047, %v2757
        %v2759 = vpop.f32.mrf.mxu0
        %v2760 = vadd.f32 %v2047, %v2759
        %2761 = vmatmul.bf16.gmra.mxu0 %v2345
        %v2762 = vpop.f32.mrf.mxu0
        %v2763 = vadd.f32 %v2047, %v2762
        %v2764 = vpop.f32.mrf.mxu0
        %v2765 = vadd.f32 %v2047, %v2764
        %2766 = vmatmul.bf16.gmra.mxu0 %v2350
        %v2767 = vpop.f32.mrf.mxu0
        %v2768 = vadd.f32 %v2047, %v2767
        %v2769 = vpop.f32.mrf.mxu0
        %v2770 = vadd.f32 %v2047, %v2769
        %2771 = vmatmul.bf16.gmra.mxu0 %v2355
        %v2772 = vpop.f32.mrf.mxu0
        %v2773 = vadd.f32 %v2047, %v2772
        %v2774 = vpop.f32.mrf.mxu0
        %v2775 = vadd.f32 %v2047, %v2774
        %2776 = vmatmul.bf16.gmra.mxu0 %v2360
        %v2777 = vpop.f32.mrf.mxu0
        %v2778 = vadd.f32 %v2047, %v2777
        %v2779 = vpop.f32.mrf.mxu0
        %v2780 = vadd.f32 %v2047, %v2779
        %2781 = vmatmul.bf16.gmra.mxu0 %v2365
        %v2782 = vpop.f32.mrf.mxu0
        %v2783 = vadd.f32 %v2047, %v2782
        %v2784 = vpop.f32.mrf.mxu0
        %v2785 = vadd.f32 %v2047, %v2784
        %2786 = vmatmul.bf16.gmra.mxu0 %v2370
        %v2787 = vpop.f32.mrf.mxu0
        %v2788 = vadd.f32 %v2047, %v2787
        %v2789 = vpop.f32.mrf.mxu0
        %v2790 = vadd.f32 %v2047, %v2789
        %2791 = vmatmul.bf16.gmra.mxu0 %v2375
        %v2792 = vpop.f32.mrf.mxu0
        %v2793 = vadd.f32 %v2047, %v2792
        %v2794 = vpop.f32.mrf.mxu0
        %v2795 = vadd.f32 %v2047, %v2794
        %2796 = vmatmul.bf16.gmra.mxu0 %v2380
        %v2797 = vpop.f32.mrf.mxu0
        %v2798 = vadd.f32 %v2047, %v2797
        %v2799 = vpop.f32.mrf.mxu0
        %v2800 = vadd.f32 %v2047, %v2799
        %2801 = vdwg.mxu0
        %2802 = vmatpush.bf16.msra.mxu0 %v2608
        %2803 = vmatpush.bf16.msra.mxu0 %v2607
        %2804 = vmatpush.bf16.msra.mxu0 %v2606
        %2805 = vmatpush.bf16.msra.mxu0 %v2605
        %2806 = vmatpush.bf16.msra.mxu0 %v2604
        %2807 = vmatpush.bf16.msra.mxu0 %v2603
        %2808 = vmatpush.bf16.msra.mxu0 %v2602
        %2809 = vmatpush.bf16.msra.mxu0 %v2601
        %2810 = vmatmul.bf16.gmra.mxu0 %v2306
        %v2811 = vpop.f32.mrf.mxu0
        %v2812 = vadd.f32 %v2723, %v2811
        %v2813 = vpop.f32.mrf.mxu0
        %v2814 = vadd.f32 %v2725, %v2813
        %2815 = vmatmul.bf16.gmra.mxu0 %v2311
        %v2816 = vpop.f32.mrf.mxu0
        %v2817 = vadd.f32 %v2728, %v2816
        %v2818 = vpop.f32.mrf.mxu0
        %v2819 = vadd.f32 %v2730, %v2818
        %2820 = vmatmul.bf16.gmra.mxu0 %v2316
        %v2821 = vpop.f32.mrf.mxu0
        %v2822 = vadd.f32 %v2733, %v2821
        %v2823 = vpop.f32.mrf.mxu0
        %v2824 = vadd.f32 %v2735, %v2823
        %2825 = vmatmul.bf16.gmra.mxu0 %v2321
        %v2826 = vpop.f32.mrf.mxu0
        %v2827 = vadd.f32 %v2738, %v2826
        %v2828 = vpop.f32.mrf.mxu0
        %v2829 = vadd.f32 %v2740, %v2828
        %2830 = vmatmul.bf16.gmra.mxu0 %v2326
        %v2831 = vpop.f32.mrf.mxu0
        %v2832 = vadd.f32 %v2743, %v2831
        %v2833 = vpop.f32.mrf.mxu0
        %v2834 = vadd.f32 %v2745, %v2833
        %2835 = vmatmul.bf16.gmra.mxu0 %v2331
        %v2836 = vpop.f32.mrf.mxu0
        %v2837 = vadd.f32 %v2748, %v2836
        %v2838 = vpop.f32.mrf.mxu0
        %v2839 = vadd.f32 %v2750, %v2838
        %2840 = vmatmul.bf16.gmra.mxu0 %v2336
        %v2841 = vpop.f32.mrf.mxu0
        %v2842 = vadd.f32 %v2753, %v2841
        %v2843 = vpop.f32.mrf.mxu0
        %v2844 = vadd.f32 %v2755, %v2843
        %2845 = vmatmul.bf16.gmra.mxu0 %v2341
        %v2846 = vpop.f32.mrf.mxu0
        %v2847 = vadd.f32 %v2758, %v2846
        %v2848 = vpop.f32.mrf.mxu0
        %v2849 = vadd.f32 %v2760, %v2848
        %2850 = vmatmul.bf16.gmra.mxu0 %v2346
        %v2851 = vpop.f32.mrf.mxu0
        %v2852 = vadd.f32 %v2763, %v2851
        %v2853 = vpop.f32.mrf.mxu0
        %v2854 = vadd.f32 %v2765, %v2853
        %2855 = vmatmul.bf16.gmra.mxu0 %v2351
        %v2856 = vpop.f32.mrf.mxu0
        %v2857 = vadd.f32 %v2768, %v2856
        %v2858 = vpop.f32.mrf.mxu0
        %v2859 = vadd.f32 %v2770, %v2858
        %2860 = vmatmul.bf16.gmra.mxu0 %v2356
        %v2861 = vpop.f32.mrf.mxu0
        %v2862 = vadd.f32 %v2773, %v2861
        %v2863 = vpop.f32.mrf.mxu0
        %v2864 = vadd.f32 %v2775, %v2863
        %2865 = vmatmul.bf16.gmra.mxu0 %v2361
        %v2866 = vpop.f32.mrf.mxu0
        %v2867 = vadd.f32 %v2778, %v2866
        %v2868 = vpop.f32.mrf.mxu0
        %v2869 = vadd.f32 %v2780, %v2868
        %2870 = vmatmul.bf16.gmra.mxu0 %v2366
        %v2871 = vpop.f32.mrf.mxu0
        %v2872 = vadd.f32 %v2783, %v2871
        %v2873 = vpop.f32.mrf.mxu0
        %v2874 = vadd.f32 %v2785, %v2873
        %2875 = vmatmul.bf16.gmra.mxu0 %v2371
        %v2876 = vpop.f32.mrf.mxu0
        %v2877 = vadd.f32 %v2788, %v2876
        %v2878 = vpop.f32.mrf.mxu0
        %v2879 = vadd.f32 %v2790, %v2878
        %2880 = vmatmul.bf16.gmra.mxu0 %v2376
        %v2881 = vpop.f32.mrf.mxu0
        %v2882 = vadd.f32 %v2793, %v2881
        %v2883 = vpop.f32.mrf.mxu0
        %v2884 = vadd.f32 %v2795, %v2883
        %2885 = vmatmul.bf16.gmra.mxu0 %v2381
        %v2886 = vpop.f32.mrf.mxu0
        %v2887 = vadd.f32 %v2798, %v2886
        %v2888 = vpop.f32.mrf.mxu0
        %v2889 = vadd.f32 %v2800, %v2888
        %2890 = vdwg.mxu0
        %2891 = vmatpush.bf16.msra.mxu0 %v2616
        %2892 = vmatpush.bf16.msra.mxu0 %v2615
        %2893 = vmatpush.bf16.msra.mxu0 %v2614
        %2894 = vmatpush.bf16.msra.mxu0 %v2613
        %2895 = vmatpush.bf16.msra.mxu0 %v2612
        %2896 = vmatpush.bf16.msra.mxu0 %v2611
        %2897 = vmatpush.bf16.msra.mxu0 %v2610
        %2898 = vmatpush.bf16.msra.mxu0 %v2609
        %2899 = vmatmul.bf16.gmra.mxu0 %v2307
        %v2900 = vpop.f32.mrf.mxu0
        %v2901 = vadd.f32 %v2812, %v2900
        %v2902 = vpop.f32.mrf.mxu0
        %v2903 = vadd.f32 %v2814, %v2902
        %2904 = vmatmul.bf16.gmra.mxu0 %v2312
        %v2905 = vpop.f32.mrf.mxu0
        %v2906 = vadd.f32 %v2817, %v2905
        %v2907 = vpop.f32.mrf.mxu0
        %v2908 = vadd.f32 %v2819, %v2907
        %2909 = vmatmul.bf16.gmra.mxu0 %v2317
        %v2910 = vpop.f32.mrf.mxu0
        %v2911 = vadd.f32 %v2822, %v2910
        %v2912 = vpop.f32.mrf.mxu0
        %v2913 = vadd.f32 %v2824, %v2912
        %2914 = vmatmul.bf16.gmra.mxu0 %v2322
        %v2915 = vpop.f32.mrf.mxu0
        %v2916 = vadd.f32 %v2827, %v2915
        %v2917 = vpop.f32.mrf.mxu0
        %v2918 = vadd.f32 %v2829, %v2917
        %2919 = vmatmul.bf16.gmra.mxu0 %v2327
        %v2920 = vpop.f32.mrf.mxu0
        %v2921 = vadd.f32 %v2832, %v2920
        %v2922 = vpop.f32.mrf.mxu0
        %v2923 = vadd.f32 %v2834, %v2922
        %2924 = vmatmul.bf16.gmra.mxu0 %v2332
        %v2925 = vpop.f32.mrf.mxu0
        %v2926 = vadd.f32 %v2837, %v2925
        %v2927 = vpop.f32.mrf.mxu0
        %v2928 = vadd.f32 %v2839, %v2927
        %2929 = vmatmul.bf16.gmra.mxu0 %v2337
        %v2930 = vpop.f32.mrf.mxu0
        %v2931 = vadd.f32 %v2842, %v2930
        %v2932 = vpop.f32.mrf.mxu0
        %v2933 = vadd.f32 %v2844, %v2932
        %2934 = vmatmul.bf16.gmra.mxu0 %v2342
        %v2935 = vpop.f32.mrf.mxu0
        %v2936 = vadd.f32 %v2847, %v2935
        %v2937 = vpop.f32.mrf.mxu0
        %v2938 = vadd.f32 %v2849, %v2937
        %2939 = vmatmul.bf16.gmra.mxu0 %v2347
        %v2940 = vpop.f32.mrf.mxu0
        %v2941 = vadd.f32 %v2852, %v2940
        %v2942 = vpop.f32.mrf.mxu0
        %v2943 = vadd.f32 %v2854, %v2942
        %2944 = vmatmul.bf16.gmra.mxu0 %v2352
        %v2945 = vpop.f32.mrf.mxu0
        %v2946 = vadd.f32 %v2857, %v2945
        %v2947 = vpop.f32.mrf.mxu0
        %v2948 = vadd.f32 %v2859, %v2947
        %2949 = vmatmul.bf16.gmra.mxu0 %v2357
        %v2950 = vpop.f32.mrf.mxu0
        %v2951 = vadd.f32 %v2862, %v2950
        %v2952 = vpop.f32.mrf.mxu0
        %v2953 = vadd.f32 %v2864, %v2952
        %2954 = vmatmul.bf16.gmra.mxu0 %v2362
        %v2955 = vpop.f32.mrf.mxu0
        %v2956 = vadd.f32 %v2867, %v2955
        %v2957 = vpop.f32.mrf.mxu0
        %v2958 = vadd.f32 %v2869, %v2957
        %2959 = vmatmul.bf16.gmra.mxu0 %v2367
        %v2960 = vpop.f32.mrf.mxu0
        %v2961 = vadd.f32 %v2872, %v2960
        %v2962 = vpop.f32.mrf.mxu0
        %v2963 = vadd.f32 %v2874, %v2962
        %2964 = vmatmul.bf16.gmra.mxu0 %v2372
        %v2965 = vpop.f32.mrf.mxu0
        %v2966 = vadd.f32 %v2877, %v2965
        %v2967 = vpop.f32.mrf.mxu0
        %v2968 = vadd.f32 %v2879, %v2967
        %2969 = vmatmul.bf16.gmra.mxu0 %v2377
        %v2970 = vpop.f32.mrf.mxu0
        %v2971 = vadd.f32 %v2882, %v2970
        %v2972 = vpop.f32.mrf.mxu0
        %v2973 = vadd.f32 %v2884, %v2972
        %2974 = vmatmul.bf16.gmra.mxu0 %v2382
        %v2975 = vpop.f32.mrf.mxu0
        %v2976 = vadd.f32 %v2887, %v2975
        %v2977 = vpop.f32.mrf.mxu0
        %v2978 = vadd.f32 %v2889, %v2977
        %2979 = vdwg.mxu0
        %2980 = vmatpush.bf16.msra.mxu0 %v2624
        %2981 = vmatpush.bf16.msra.mxu0 %v2623
        %2982 = vmatpush.bf16.msra.mxu0 %v2622
        %2983 = vmatpush.bf16.msra.mxu0 %v2621
        %2984 = vmatpush.bf16.msra.mxu0 %v2620
        %2985 = vmatpush.bf16.msra.mxu0 %v2619
        %2986 = vmatpush.bf16.msra.mxu0 %v2618
        %2987 = vmatpush.bf16.msra.mxu0 %v2617
        %2988 = vmatmul.bf16.gmra.mxu0 %v2308
        %v2989 = vpop.f32.mrf.mxu0
        %v2990 = vadd.f32 %v2901, %v2989
        %v2991 = vpop.f32.mrf.mxu0
        %v2992 = vadd.f32 %v2903, %v2991
        %2993 = vmatmul.bf16.gmra.mxu0 %v2313
        %v2994 = vpop.f32.mrf.mxu0
        %v2995 = vadd.f32 %v2906, %v2994
        %v2996 = vpop.f32.mrf.mxu0
        %v2997 = vadd.f32 %v2908, %v2996
        %2998 = vmatmul.bf16.gmra.mxu0 %v2318
        %v2999 = vpop.f32.mrf.mxu0
        %v3000 = vadd.f32 %v2911, %v2999
        %v3001 = vpop.f32.mrf.mxu0
        %v3002 = vadd.f32 %v2913, %v3001
        %3003 = vmatmul.bf16.gmra.mxu0 %v2323
        %v3004 = vpop.f32.mrf.mxu0
        %v3005 = vadd.f32 %v2916, %v3004
        %v3006 = vpop.f32.mrf.mxu0
        %v3007 = vadd.f32 %v2918, %v3006
        %3008 = vmatmul.bf16.gmra.mxu0 %v2328
        %v3009 = vpop.f32.mrf.mxu0
        %v3010 = vadd.f32 %v2921, %v3009
        %v3011 = vpop.f32.mrf.mxu0
        %v3012 = vadd.f32 %v2923, %v3011
        %3013 = vmatmul.bf16.gmra.mxu0 %v2333
        %v3014 = vpop.f32.mrf.mxu0
        %v3015 = vadd.f32 %v2926, %v3014
        %v3016 = vpop.f32.mrf.mxu0
        %v3017 = vadd.f32 %v2928, %v3016
        %3018 = vmatmul.bf16.gmra.mxu0 %v2338
        %v3019 = vpop.f32.mrf.mxu0
        %v3020 = vadd.f32 %v2931, %v3019
        %v3021 = vpop.f32.mrf.mxu0
        %v3022 = vadd.f32 %v2933, %v3021
        %3023 = vmatmul.bf16.gmra.mxu0 %v2343
        %v3024 = vpop.f32.mrf.mxu0
        %v3025 = vadd.f32 %v2936, %v3024
        %v3026 = vpop.f32.mrf.mxu0
        %v3027 = vadd.f32 %v2938, %v3026
        %3028 = vmatmul.bf16.gmra.mxu0 %v2348
        %v3029 = vpop.f32.mrf.mxu0
        %v3030 = vadd.f32 %v2941, %v3029
        %v3031 = vpop.f32.mrf.mxu0
        %v3032 = vadd.f32 %v2943, %v3031
        %3033 = vmatmul.bf16.gmra.mxu0 %v2353
        %v3034 = vpop.f32.mrf.mxu0
        %v3035 = vadd.f32 %v2946, %v3034
        %v3036 = vpop.f32.mrf.mxu0
        %v3037 = vadd.f32 %v2948, %v3036
        %3038 = vmatmul.bf16.gmra.mxu0 %v2358
        %v3039 = vpop.f32.mrf.mxu0
        %v3040 = vadd.f32 %v2951, %v3039
        %v3041 = vpop.f32.mrf.mxu0
        %v3042 = vadd.f32 %v2953, %v3041
        %3043 = vmatmul.bf16.gmra.mxu0 %v2363
        %v3044 = vpop.f32.mrf.mxu0
        %v3045 = vadd.f32 %v2956, %v3044
        %v3046 = vpop.f32.mrf.mxu0
        %v3047 = vadd.f32 %v2958, %v3046
        %3048 = vmatmul.bf16.gmra.mxu0 %v2368
        %v3049 = vpop.f32.mrf.mxu0
        %v3050 = vadd.f32 %v2961, %v3049
        %v3051 = vpop.f32.mrf.mxu0
        %v3052 = vadd.f32 %v2963, %v3051
        %3053 = vmatmul.bf16.gmra.mxu0 %v2373
        %v3054 = vpop.f32.mrf.mxu0
        %v3055 = vadd.f32 %v2966, %v3054
        %v3056 = vpop.f32.mrf.mxu0
        %v3057 = vadd.f32 %v2968, %v3056
        %3058 = vmatmul.bf16.gmra.mxu0 %v2378
        %v3059 = vpop.f32.mrf.mxu0
        %v3060 = vadd.f32 %v2971, %v3059
        %v3061 = vpop.f32.mrf.mxu0
        %v3062 = vadd.f32 %v2973, %v3061
        %3063 = vmatmul.bf16.gmra.mxu0 %v2383
        %v3064 = vpop.f32.mrf.mxu0
        %v3065 = vadd.f32 %v2976, %v3064
        %v3066 = vpop.f32.mrf.mxu0
        %v3067 = vadd.f32 %v2978, %v3066
        %3068 = vdwg.mxu0
        %3069 = vmatpush.bf16.msra.mxu0 0
        %3070 = vmatpush.bf16.msra.mxu0 0
        %3071 = vmatpush.bf16.msra.mxu0 0
        %3072 = vmatpush.bf16.msra.mxu0 0
        %3073 = vmatpush.bf16.msra.mxu0 %v2628
        %3074 = vmatpush.bf16.msra.mxu0 %v2627
        %3075 = vmatpush.bf16.msra.mxu0 %v2626
        %3076 = vmatpush.bf16.msra.mxu0 %v2625
        %3077 = vmatmul.bf16.gmra.mxu0 %v2666
        %v3078 = vpop.f32.mrf.mxu0
        %v3079 = vadd.f32 %v2990, %v3078
        %v3080 = vpop.f32.mrf.mxu0
        %v3081 = vadd.f32 %v2992, %v3080
        %3082 = vmatmul.bf16.gmra.mxu0 %v2669
        %v3083 = vpop.f32.mrf.mxu0
        %v3084 = vadd.f32 %v2995, %v3083
        %v3085 = vpop.f32.mrf.mxu0
        %v3086 = vadd.f32 %v2997, %v3085
        %3087 = vmatmul.bf16.gmra.mxu0 %v2672
        %v3088 = vpop.f32.mrf.mxu0
        %v3089 = vadd.f32 %v3000, %v3088
        %v3090 = vpop.f32.mrf.mxu0
        %v3091 = vadd.f32 %v3002, %v3090
        %3092 = vmatmul.bf16.gmra.mxu0 %v2675
        %v3093 = vpop.f32.mrf.mxu0
        %v3094 = vadd.f32 %v3005, %v3093
        %v3095 = vpop.f32.mrf.mxu0
        %v3096 = vadd.f32 %v3007, %v3095
        %3097 = vmatmul.bf16.gmra.mxu0 %v2678
        %v3098 = vpop.f32.mrf.mxu0
        %v3099 = vadd.f32 %v3010, %v3098
        %v3100 = vpop.f32.mrf.mxu0
        %v3101 = vadd.f32 %v3012, %v3100
        %3102 = vmatmul.bf16.gmra.mxu0 %v2681
        %v3103 = vpop.f32.mrf.mxu0
        %v3104 = vadd.f32 %v3015, %v3103
        %v3105 = vpop.f32.mrf.mxu0
        %v3106 = vadd.f32 %v3017, %v3105
        %3107 = vmatmul.bf16.gmra.mxu0 %v2684
        %v3108 = vpop.f32.mrf.mxu0
        %v3109 = vadd.f32 %v3020, %v3108
        %v3110 = vpop.f32.mrf.mxu0
        %v3111 = vadd.f32 %v3022, %v3110
        %3112 = vmatmul.bf16.gmra.mxu0 %v2687
        %v3113 = vpop.f32.mrf.mxu0
        %v3114 = vadd.f32 %v3025, %v3113
        %v3115 = vpop.f32.mrf.mxu0
        %v3116 = vadd.f32 %v3027, %v3115
        %3117 = vmatmul.bf16.gmra.mxu0 %v2690
        %v3118 = vpop.f32.mrf.mxu0
        %v3119 = vadd.f32 %v3030, %v3118
        %v3120 = vpop.f32.mrf.mxu0
        %v3121 = vadd.f32 %v3032, %v3120
        %3122 = vmatmul.bf16.gmra.mxu0 %v2693
        %v3123 = vpop.f32.mrf.mxu0
        %v3124 = vadd.f32 %v3035, %v3123
        %v3125 = vpop.f32.mrf.mxu0
        %v3126 = vadd.f32 %v3037, %v3125
        %3127 = vmatmul.bf16.gmra.mxu0 %v2696
        %v3128 = vpop.f32.mrf.mxu0
        %v3129 = vadd.f32 %v3040, %v3128
        %v3130 = vpop.f32.mrf.mxu0
        %v3131 = vadd.f32 %v3042, %v3130
        %3132 = vmatmul.bf16.gmra.mxu0 %v2699
        %v3133 = vpop.f32.mrf.mxu0
        %v3134 = vadd.f32 %v3045, %v3133
        %v3135 = vpop.f32.mrf.mxu0
        %v3136 = vadd.f32 %v3047, %v3135
        %3137 = vmatmul.bf16.gmra.mxu0 %v2702
        %v3138 = vpop.f32.mrf.mxu0
        %v3139 = vadd.f32 %v3050, %v3138
        %v3140 = vpop.f32.mrf.mxu0
        %v3141 = vadd.f32 %v3052, %v3140
        %3142 = vmatmul.bf16.gmra.mxu0 %v2705
        %v3143 = vpop.f32.mrf.mxu0
        %v3144 = vadd.f32 %v3055, %v3143
        %v3145 = vpop.f32.mrf.mxu0
        %v3146 = vadd.f32 %v3057, %v3145
        %3147 = vmatmul.bf16.gmra.mxu0 %v2708
        %v3148 = vpop.f32.mrf.mxu0
        %v3149 = vadd.f32 %v3060, %v3148
        %v3150 = vpop.f32.mrf.mxu0
        %v3151 = vadd.f32 %v3062, %v3150
        %3152 = vmatmul.bf16.gmra.mxu0 %v2711
        %v3153 = vpop.f32.mrf.mxu0
        %v3154 = vadd.f32 %v3065, %v3153
        %v3155 = vpop.f32.mrf.mxu0
        %v3156 = vadd.f32 %v3067, %v3155
        %3157 = vdwg.mxu0
        %v3158 = vmax.f32 %v3079, 0.0
        %v3159 = vmax.f32 %v3081, 0.0
        %v3160 = vmax.f32 %v3084, 0.0
        %v3161 = vmax.f32 %v3086, 0.0
        %v3162 = vmax.f32 %v3089, 0.0
        %v3163 = vmax.f32 %v3091, 0.0
        %v3164 = vmax.f32 %v3094, 0.0
        %v3165 = vmax.f32 %v3096, 0.0
        %v3166 = vmax.f32 %v3099, 0.0
        %v3167 = vmax.f32 %v3101, 0.0
        %v3168 = vmax.f32 %v3104, 0.0
        %v3169 = vmax.f32 %v3106, 0.0
        %v3170 = vmax.f32 %v3109, 0.0
        %v3171 = vmax.f32 %v3111, 0.0
        %v3172 = vmax.f32 %v3114, 0.0
        %v3173 = vmax.f32 %v3116, 0.0
        %v3174 = vmax.f32 %v3119, 0.0
        %v3175 = vmax.f32 %v3121, 0.0
        %v3176 = vmax.f32 %v3124, 0.0
        %v3177 = vmax.f32 %v3126, 0.0
        %v3178 = vmax.f32 %v3129, 0.0
        %v3179 = vmax.f32 %v3131, 0.0
        %v3180 = vmax.f32 %v3134, 0.0
        %v3181 = vmax.f32 %v3136, 0.0
        %v3182 = vmax.f32 %v3139, 0.0
        %v3183 = vmax.f32 %v3141, 0.0
        %v3184 = vmax.f32 %v3144, 0.0
        %v3185 = vmax.f32 %v3146, 0.0
        %v3186 = vmax.f32 %v3149, 0.0
        %v3187 = vmax.f32 %v3151, 0.0
        %v3188 = vmax.f32 %v3154, 0.0
        %v3189 = vmax.f32 %v3156, 0.0
        %3190 = vst.msk [vmem:[%s465 + $0x1] sm:$0xff] %vm387, %v3158
        %3191 = vst.msk [vmem:[%s465 + $0x9] sm:$0xff] %vm387, %v3159
        %3192 = vst.msk [vmem:[%s465 + $0x19] sm:$0xff] %vm387, %v3160
        %3193 = vst.msk [vmem:[%s465 + $0x21] sm:$0xff] %vm387, %v3161
        %3194 = vst.msk [vmem:[%s465 + $0x31] sm:$0xff] %vm387, %v3162
        %3195 = vst.msk [vmem:[%s465 + $0x39] sm:$0xff] %vm387, %v3163
        %3196 = vst.msk [vmem:[%s465 + $0x49] sm:$0xff] %vm387, %v3164
        %3197 = vst.msk [vmem:[%s465 + $0x51] sm:$0xff] %vm387, %v3165
        %3198 = vst.msk [vmem:[%s465 + $0x61] sm:$0xff] %vm387, %v3166
        %3199 = vst.msk [vmem:[%s465 + $0x69] sm:$0xff] %vm387, %v3167
        %3200 = vst.msk [vmem:[%s465 + $0x79] sm:$0xff] %vm387, %v3168
        %3201 = vst.msk [vmem:[%s465 + $0x81] sm:$0xff] %vm387, %v3169
        %3202 = vst.msk [vmem:[%s465 + $0x91] sm:$0xff] %vm387, %v3170
        %3203 = vst.msk [vmem:[%s465 + $0x99] sm:$0xff] %vm387, %v3171
        %3204 = vst.msk [vmem:[%s465 + $0xa9] sm:$0xff] %vm387, %v3172
        %3205 = vst.msk [vmem:[%s465 + $0xb1] sm:$0xff] %vm387, %v3173
        %3206 = vst.msk [vmem:[%s465 + $0xc1] sm:$0xff] %vm387, %v3174
        %3207 = vst.msk [vmem:[%s465 + $0xc9] sm:$0xff] %vm387, %v3175
        %3208 = vst.msk [vmem:[%s465 + $0xd9] sm:$0xff] %vm387, %v3176
        %3209 = vst.msk [vmem:[%s465 + $0xe1] sm:$0xff] %vm387, %v3177
        %3210 = vst.msk [vmem:[%s465 + $0xf1] sm:$0xff] %vm387, %v3178
        %3211 = vst.msk [vmem:[%s465 + $0xf9] sm:$0xff] %vm387, %v3179
        %3212 = vst.msk [vmem:[%s465 + $0x109] sm:$0xff] %vm387, %v3180
        %3213 = vst.msk [vmem:[%s465 + $0x111] sm:$0xff] %vm387, %v3181
        %3214 = vst.msk [vmem:[%s465 + $0x121] sm:$0xff] %vm387, %v3182
        %3215 = vst.msk [vmem:[%s465 + $0x129] sm:$0xff] %vm387, %v3183
        %3216 = vst.msk [vmem:[%s465 + $0x139] sm:$0xff] %vm387, %v3184
        %3217 = vst.msk [vmem:[%s465 + $0x141] sm:$0xff] %vm387, %v3185
        %3218 = vst.msk [vmem:[%s465 + $0x151] sm:$0xff] %vm387, %v3186
        %3219 = vst.msk [vmem:[%s465 + $0x159] sm:$0xff] %vm387, %v3187
        %3220 = vst.msk [vmem:[%s465 + $0x169] sm:$0xff] %vm387, %v3188
        %3221 = vst.msk [vmem:[%s465 + $0x171] sm:$0xff] %vm387, %v3189
        %v3222 = vld [vmem:[#allocation2] sm:$0xff]
        %v3223 = vld [vmem:[#allocation2 + $0x8] sm:$0xff]
        %v3224 = vld [vmem:[#allocation2 + $0x18] sm:$0xff]
        %v3225 = vld [vmem:[#allocation2 + $0x20] sm:$0xff]
        %v3226 = vld [vmem:[#allocation2 + $0x30] sm:$0xff]
        %v3227 = vld [vmem:[#allocation2 + $0x38] sm:$0xff]
        %v3228 = vld [vmem:[#allocation2 + $0x48] sm:$0xff]
        %v3229 = vld [vmem:[#allocation2 + $0x50] sm:$0xff]
        %v3230 = vld [vmem:[#allocation2 + $0x60] sm:$0xff]
        %v3231 = vld [vmem:[#allocation2 + $0x68] sm:$0xff]
        %v3232 = vld [vmem:[#allocation2 + $0x78] sm:$0xff]
        %v3233 = vld [vmem:[#allocation2 + $0x80] sm:$0xff]
        %v3234 = vld [vmem:[#allocation2 + $0x90] sm:$0xff]
        %v3235 = vld [vmem:[#allocation2 + $0x98] sm:$0xff]
        %v3236 = vld [vmem:[#allocation2 + $0xa8] sm:$0xff]
        %v3237 = vld [vmem:[#allocation2 + $0xb0] sm:$0xff]
        %v3238 = vld [vmem:[#allocation2 + $0xc0] sm:$0xff]
        %v3239 = vld [vmem:[#allocation2 + $0xc8] sm:$0xff]
        %v3240 = vld [vmem:[#allocation2 + $0xd8] sm:$0xff]
        %v3241 = vld [vmem:[#allocation2 + $0xe0] sm:$0xff]
        %v3242 = vld [vmem:[#allocation2 + $0xf0] sm:$0xff]
        %v3243 = vld [vmem:[#allocation2 + $0xf8] sm:$0xff]
        %v3244 = vld [vmem:[#allocation2 + $0x108] sm:$0xff]
        %v3245 = vld [vmem:[#allocation2 + $0x110] sm:$0xff]
        %v3246 = vld [vmem:[#allocation2 + $0x120] sm:$0xff]
        %v3247 = vld [vmem:[#allocation2 + $0x128] sm:$0xff]
        %v3248 = vld [vmem:[#allocation2 + $0x138] sm:$0xff]
        %v3249 = vld [vmem:[#allocation2 + $0x140] sm:$0xff]
        %v3250 = vld [vmem:[#allocation2 + $0x150] sm:$0xff]
        %v3251 = vld [vmem:[#allocation2 + $0x158] sm:$0xff]
        %v3252 = vld [vmem:[#allocation2 + $0x168] sm:$0xff]
        %v3253 = vld [vmem:[#allocation2 + $0x170] sm:$0xff]
        %v3254 = vpack.c.bf16 %v3222, %v3222
        %v3255 = vpack.c.bf16 %v3223, %v3223
        %v3256 = vpack.c.bf16 %v3224, %v3224
        %v3257 = vpack.c.bf16 %v3225, %v3225
        %v3258 = vpack.c.bf16 %v3226, %v3226
        %v3259 = vpack.c.bf16 %v3227, %v3227
        %v3260 = vpack.c.bf16 %v3228, %v3228
        %v3261 = vpack.c.bf16 %v3229, %v3229
        %v3262 = vpack.c.bf16 %v3230, %v3230
        %v3263 = vpack.c.bf16 %v3231, %v3231
        %v3264 = vpack.c.bf16 %v3232, %v3232
        %v3265 = vpack.c.bf16 %v3233, %v3233
        %v3266 = vpack.c.bf16 %v3234, %v3234
        %v3267 = vpack.c.bf16 %v3235, %v3235
        %v3268 = vpack.c.bf16 %v3236, %v3236
        %v3269 = vpack.c.bf16 %v3237, %v3237
        %v3270 = vpack.c.bf16 %v3238, %v3238
        %v3271 = vpack.c.bf16 %v3239, %v3239
        %v3272 = vpack.c.bf16 %v3240, %v3240
        %v3273 = vpack.c.bf16 %v3241, %v3241
        %v3274 = vpack.c.bf16 %v3242, %v3242
        %v3275 = vpack.c.bf16 %v3243, %v3243
        %v3276 = vpack.c.bf16 %v3244, %v3244
        %v3277 = vpack.c.bf16 %v3245, %v3245
        %v3278 = vpack.c.bf16 %v3246, %v3246
        %v3279 = vpack.c.bf16 %v3247, %v3247
        %v3280 = vpack.c.bf16 %v3248, %v3248
        %v3281 = vpack.c.bf16 %v3249, %v3249
        %v3282 = vpack.c.bf16 %v3250, %v3250
        %v3283 = vpack.c.bf16 %v3251, %v3251
        %v3284 = vpack.c.bf16 %v3252, %v3252
        %v3285 = vpack.c.bf16 %v3253, %v3253
        %3286 = vst.msk [vmem:[#allocation3] sm:$0xf] %vm562, %v3254
        %3287 = vst.msk [vmem:[#allocation3 + $0x14] sm:$0xf] %vm562, %v3255
        %3288 = vst.msk [vmem:[#allocation3 + $0x28] sm:$0xf] %vm562, %v3256
        %3289 = vst.msk [vmem:[#allocation3 + $0x3c] sm:$0xf] %vm562, %v3257
        %3290 = vst.msk [vmem:[#allocation3 + $0x50] sm:$0xf] %vm562, %v3258
        %3291 = vst.msk [vmem:[#allocation3 + $0x64] sm:$0xf] %vm562, %v3259
        %3292 = vst.msk [vmem:[#allocation3 + $0x78] sm:$0xf] %vm562, %v3260
        %3293 = vst.msk [vmem:[#allocation3 + $0x8c] sm:$0xf] %vm562, %v3261
        %3294 = vst.msk [vmem:[#allocation3 + $0xa0] sm:$0xf] %vm562, %v3262
        %3295 = vst.msk [vmem:[#allocation3 + $0xb4] sm:$0xf] %vm562, %v3263
        %3296 = vst.msk [vmem:[#allocation3 + $0xc8] sm:$0xf] %vm562, %v3264
        %3297 = vst.msk [vmem:[#allocation3 + $0xdc] sm:$0xf] %vm562, %v3265
        %3298 = vst.msk [vmem:[#allocation3 + $0xf0] sm:$0xf] %vm562, %v3266
        %3299 = vst.msk [vmem:[#allocation3 + $0x104] sm:$0xf] %vm562, %v3267
        %3300 = vst.msk [vmem:[#allocation3 + $0x118] sm:$0xf] %vm562, %v3268
        %3301 = vst.msk [vmem:[#allocation3 + $0x12c] sm:$0xf] %vm562, %v3269
        %3302 = vst.msk [vmem:[#allocation3 + $0x140] sm:$0xf] %vm562, %v3270
        %3303 = vst.msk [vmem:[#allocation3 + $0x154] sm:$0xf] %vm562, %v3271
        %3304 = vst.msk [vmem:[#allocation3 + $0x168] sm:$0xf] %vm562, %v3272
        %3305 = vst.msk [vmem:[#allocation3 + $0x17c] sm:$0xf] %vm562, %v3273
        %3306 = vst.msk [vmem:[#allocation3 + $0x190] sm:$0xf] %vm562, %v3274
        %3307 = vst.msk [vmem:[#allocation3 + $0x1a4] sm:$0xf] %vm562, %v3275
        %3308 = vst.msk [vmem:[#allocation3 + $0x1b8] sm:$0xf] %vm562, %v3276
        %3309 = vst.msk [vmem:[#allocation3 + $0x1cc] sm:$0xf] %vm562, %v3277
        %3310 = vst.msk [vmem:[#allocation3 + $0x1e0] sm:$0xf] %vm562, %v3278
        %3311 = vst.msk [vmem:[#allocation3 + $0x1f4] sm:$0xf] %vm562, %v3279
        %3312 = vst.msk [vmem:[#allocation3 + $0x208] sm:$0xf] %vm562, %v3280
        %3313 = vst.msk [vmem:[#allocation3 + $0x21c] sm:$0xf] %vm562, %v3281
        %3314 = vst.msk [vmem:[#allocation3 + $0x230] sm:$0xf] %vm562, %v3282
        %3315 = vst.msk [vmem:[#allocation3 + $0x244] sm:$0xf] %vm562, %v3283
        %3316 = vst.msk [vmem:[#allocation3 + $0x258] sm:$0xf] %vm562, %v3284
        %3317 = vst.msk [vmem:[#allocation3 + $0x26c] sm:$0xf] %vm562, %v3285
        %v3318 = vld [vmem:[#allocation2 + $0x1] sm:$0xff]
        %v3319 = vld [vmem:[#allocation2 + $0x9] sm:$0xff]
        %v3320 = vld [vmem:[#allocation2 + $0x19] sm:$0xff]
        %v3321 = vld [vmem:[#allocation2 + $0x21] sm:$0xff]
        %v3322 = vld [vmem:[#allocation2 + $0x31] sm:$0xff]
        %v3323 = vld [vmem:[#allocation2 + $0x39] sm:$0xff]
        %v3324 = vld [vmem:[#allocation2 + $0x49] sm:$0xff]
        %v3325 = vld [vmem:[#allocation2 + $0x51] sm:$0xff]
        %v3326 = vld [vmem:[#allocation2 + $0x61] sm:$0xff]
        %v3327 = vld [vmem:[#allocation2 + $0x69] sm:$0xff]
        %v3328 = vld [vmem:[#allocation2 + $0x79] sm:$0xff]
        %v3329 = vld [vmem:[#allocation2 + $0x81] sm:$0xff]
        %v3330 = vld [vmem:[#allocation2 + $0x91] sm:$0xff]
        %v3331 = vld [vmem:[#allocation2 + $0x99] sm:$0xff]
        %v3332 = vld [vmem:[#allocation2 + $0xa9] sm:$0xff]
        %v3333 = vld [vmem:[#allocation2 + $0xb1] sm:$0xff]
        %v3334 = vld [vmem:[#allocation2 + $0xc1] sm:$0xff]
        %v3335 = vld [vmem:[#allocation2 + $0xc9] sm:$0xff]
        %v3336 = vld [vmem:[#allocation2 + $0xd9] sm:$0xff]
        %v3337 = vld [vmem:[#allocation2 + $0xe1] sm:$0xff]
        %v3338 = vld [vmem:[#allocation2 + $0xf1] sm:$0xff]
        %v3339 = vld [vmem:[#allocation2 + $0xf9] sm:$0xff]
        %v3340 = vld [vmem:[#allocation2 + $0x109] sm:$0xff]
        %v3341 = vld [vmem:[#allocation2 + $0x111] sm:$0xff]
        %v3342 = vld [vmem:[#allocation2 + $0x121] sm:$0xff]
        %v3343 = vld [vmem:[#allocation2 + $0x129] sm:$0xff]
        %v3344 = vld [vmem:[#allocation2 + $0x139] sm:$0xff]
        %v3345 = vld [vmem:[#allocation2 + $0x141] sm:$0xff]
        %v3346 = vld [vmem:[#allocation2 + $0x151] sm:$0xff]
        %v3347 = vld [vmem:[#allocation2 + $0x159] sm:$0xff]
        %v3348 = vld [vmem:[#allocation2 + $0x169] sm:$0xff]
        %v3349 = vld [vmem:[#allocation2 + $0x171] sm:$0xff]
        %v3350 = vpack.c.bf16 %v3318, %v3318
        %v3351 = vpack.c.bf16 %v3319, %v3319
        %v3352 = vpack.c.bf16 %v3320, %v3320
        %v3353 = vpack.c.bf16 %v3321, %v3321
        %v3354 = vpack.c.bf16 %v3322, %v3322
        %v3355 = vpack.c.bf16 %v3323, %v3323
        %v3356 = vpack.c.bf16 %v3324, %v3324
        %v3357 = vpack.c.bf16 %v3325, %v3325
        %v3358 = vpack.c.bf16 %v3326, %v3326
        %v3359 = vpack.c.bf16 %v3327, %v3327
        %v3360 = vpack.c.bf16 %v3328, %v3328
        %v3361 = vpack.c.bf16 %v3329, %v3329
        %v3362 = vpack.c.bf16 %v3330, %v3330
        %v3363 = vpack.c.bf16 %v3331, %v3331
        %v3364 = vpack.c.bf16 %v3332, %v3332
        %v3365 = vpack.c.bf16 %v3333, %v3333
        %v3366 = vpack.c.bf16 %v3334, %v3334
        %v3367 = vpack.c.bf16 %v3335, %v3335
        %v3368 = vpack.c.bf16 %v3336, %v3336
        %v3369 = vpack.c.bf16 %v3337, %v3337
        %v3370 = vpack.c.bf16 %v3338, %v3338
        %v3371 = vpack.c.bf16 %v3339, %v3339
        %v3372 = vpack.c.bf16 %v3340, %v3340
        %v3373 = vpack.c.bf16 %v3341, %v3341
        %v3374 = vpack.c.bf16 %v3342, %v3342
        %v3375 = vpack.c.bf16 %v3343, %v3343
        %v3376 = vpack.c.bf16 %v3344, %v3344
        %v3377 = vpack.c.bf16 %v3345, %v3345
        %v3378 = vpack.c.bf16 %v3346, %v3346
        %v3379 = vpack.c.bf16 %v3347, %v3347
        %v3380 = vpack.c.bf16 %v3348, %v3348
        %v3381 = vpack.c.bf16 %v3349, %v3349
        %3414 = vrot.lane.b32.xlu0 %v3350, 64
        %v3415 = vpop.permute.xlu0 %3414
        %3416 = vrot.lane.b32.xlu0 %v3351, 64
        %v3417 = vpop.permute.xlu0 %3416
        %3418 = vrot.lane.b32.xlu0 %v3352, 64
        %v3419 = vpop.permute.xlu0 %3418
        %3420 = vrot.lane.b32.xlu0 %v3353, 64
        %v3421 = vpop.permute.xlu0 %3420
        %3422 = vrot.lane.b32.xlu0 %v3354, 64
        %v3423 = vpop.permute.xlu0 %3422
        %3424 = vrot.lane.b32.xlu0 %v3355, 64
        %v3425 = vpop.permute.xlu0 %3424
        %3426 = vrot.lane.b32.xlu0 %v3356, 64
        %v3427 = vpop.permute.xlu0 %3426
        %3428 = vrot.lane.b32.xlu0 %v3357, 64
        %v3429 = vpop.permute.xlu0 %3428
        %3430 = vrot.lane.b32.xlu0 %v3358, 64
        %v3431 = vpop.permute.xlu0 %3430
        %3432 = vrot.lane.b32.xlu0 %v3359, 64
        %v3433 = vpop.permute.xlu0 %3432
        %3434 = vrot.lane.b32.xlu0 %v3360, 64
        %v3435 = vpop.permute.xlu0 %3434
        %3436 = vrot.lane.b32.xlu0 %v3361, 64
        %v3437 = vpop.permute.xlu0 %3436
        %3438 = vrot.lane.b32.xlu0 %v3362, 64
        %v3439 = vpop.permute.xlu0 %3438
        %3440 = vrot.lane.b32.xlu0 %v3363, 64
        %v3441 = vpop.permute.xlu0 %3440
        %3442 = vrot.lane.b32.xlu0 %v3364, 64
        %v3443 = vpop.permute.xlu0 %3442
        %3444 = vrot.lane.b32.xlu0 %v3365, 64
        %v3445 = vpop.permute.xlu0 %3444
        %3446 = vrot.lane.b32.xlu0 %v3366, 64
        %v3447 = vpop.permute.xlu0 %3446
        %3448 = vrot.lane.b32.xlu0 %v3367, 64
        %v3449 = vpop.permute.xlu0 %3448
        %3450 = vrot.lane.b32.xlu0 %v3368, 64
        %v3451 = vpop.permute.xlu0 %3450
        %3452 = vrot.lane.b32.xlu0 %v3369, 64
        %v3453 = vpop.permute.xlu0 %3452
        %3454 = vrot.lane.b32.xlu0 %v3370, 64
        %v3455 = vpop.permute.xlu0 %3454
        %3456 = vrot.lane.b32.xlu0 %v3371, 64
        %v3457 = vpop.permute.xlu0 %3456
        %3458 = vrot.lane.b32.xlu0 %v3372, 64
        %v3459 = vpop.permute.xlu0 %3458
        %3460 = vrot.lane.b32.xlu0 %v3373, 64
        %v3461 = vpop.permute.xlu0 %3460
        %3462 = vrot.lane.b32.xlu0 %v3374, 64
        %v3463 = vpop.permute.xlu0 %3462
        %3464 = vrot.lane.b32.xlu0 %v3375, 64
        %v3465 = vpop.permute.xlu0 %3464
        %3466 = vrot.lane.b32.xlu0 %v3376, 64
        %v3467 = vpop.permute.xlu0 %3466
        %3468 = vrot.lane.b32.xlu0 %v3377, 64
        %v3469 = vpop.permute.xlu0 %3468
        %3470 = vrot.lane.b32.xlu0 %v3378, 64
        %v3471 = vpop.permute.xlu0 %3470
        %3472 = vrot.lane.b32.xlu0 %v3379, 64
        %v3473 = vpop.permute.xlu0 %3472
        %3474 = vrot.lane.b32.xlu0 %v3380, 64
        %v3475 = vpop.permute.xlu0 %3474
        %3476 = vrot.lane.b32.xlu0 %v3381, 64
        %v3477 = vpop.permute.xlu0 %3476
        %3510 = vst.msk [vmem:[#allocation3] sm:$0xf] %vm787, %v3415
        %3511 = vst.msk [vmem:[#allocation3 + $0x14] sm:$0xf] %vm787, %v3417
        %3512 = vst.msk [vmem:[#allocation3 + $0x28] sm:$0xf] %vm787, %v3419
        %3513 = vst.msk [vmem:[#allocation3 + $0x3c] sm:$0xf] %vm787, %v3421
        %3514 = vst.msk [vmem:[#allocation3 + $0x50] sm:$0xf] %vm787, %v3423
        %3515 = vst.msk [vmem:[#allocation3 + $0x64] sm:$0xf] %vm787, %v3425
        %3516 = vst.msk [vmem:[#allocation3 + $0x78] sm:$0xf] %vm787, %v3427
        %3517 = vst.msk [vmem:[#allocation3 + $0x8c] sm:$0xf] %vm787, %v3429
        %3518 = vst.msk [vmem:[#allocation3 + $0xa0] sm:$0xf] %vm787, %v3431
        %3519 = vst.msk [vmem:[#allocation3 + $0xb4] sm:$0xf] %vm787, %v3433
        %3520 = vst.msk [vmem:[#allocation3 + $0xc8] sm:$0xf] %vm787, %v3435
        %3521 = vst.msk [vmem:[#allocation3 + $0xdc] sm:$0xf] %vm787, %v3437
        %3522 = vst.msk [vmem:[#allocation3 + $0xf0] sm:$0xf] %vm787, %v3439
        %3523 = vst.msk [vmem:[#allocation3 + $0x104] sm:$0xf] %vm787, %v3441
        %3524 = vst.msk [vmem:[#allocation3 + $0x118] sm:$0xf] %vm787, %v3443
        %3525 = vst.msk [vmem:[#allocation3 + $0x12c] sm:$0xf] %vm787, %v3445
        %3526 = vst.msk [vmem:[#allocation3 + $0x140] sm:$0xf] %vm787, %v3447
        %3527 = vst.msk [vmem:[#allocation3 + $0x154] sm:$0xf] %vm787, %v3449
        %3528 = vst.msk [vmem:[#allocation3 + $0x168] sm:$0xf] %vm787, %v3451
        %3529 = vst.msk [vmem:[#allocation3 + $0x17c] sm:$0xf] %vm787, %v3453
        %3530 = vst.msk [vmem:[#allocation3 + $0x190] sm:$0xf] %vm787, %v3455
        %3531 = vst.msk [vmem:[#allocation3 + $0x1a4] sm:$0xf] %vm787, %v3457
        %3532 = vst.msk [vmem:[#allocation3 + $0x1b8] sm:$0xf] %vm787, %v3459
        %3533 = vst.msk [vmem:[#allocation3 + $0x1cc] sm:$0xf] %vm787, %v3461
        %3534 = vst.msk [vmem:[#allocation3 + $0x1e0] sm:$0xf] %vm787, %v3463
        %3535 = vst.msk [vmem:[#allocation3 + $0x1f4] sm:$0xf] %vm787, %v3465
        %3536 = vst.msk [vmem:[#allocation3 + $0x208] sm:$0xf] %vm787, %v3467
        %3537 = vst.msk [vmem:[#allocation3 + $0x21c] sm:$0xf] %vm787, %v3469
        %3538 = vst.msk [vmem:[#allocation3 + $0x230] sm:$0xf] %vm787, %v3471
        %3539 = vst.msk [vmem:[#allocation3 + $0x244] sm:$0xf] %vm787, %v3473
        %3540 = vst.msk [vmem:[#allocation3 + $0x258] sm:$0xf] %vm787, %v3475
        %3541 = vst.msk [vmem:[#allocation3 + $0x26c] sm:$0xf] %vm787, %v3477
        %v3542 = vld [vmem:[#allocation2 + $0x2] sm:$0xff]
        %v3543 = vld [vmem:[#allocation2 + $0xa] sm:$0xff]
        %v3544 = vld [vmem:[#allocation2 + $0x1a] sm:$0xff]
        %v3545 = vld [vmem:[#allocation2 + $0x22] sm:$0xff]
        %v3546 = vld [vmem:[#allocation2 + $0x32] sm:$0xff]
        %v3547 = vld [vmem:[#allocation2 + $0x3a] sm:$0xff]
        %v3548 = vld [vmem:[#allocation2 + $0x4a] sm:$0xff]
        %v3549 = vld [vmem:[#allocation2 + $0x52] sm:$0xff]
        %v3550 = vld [vmem:[#allocation2 + $0x62] sm:$0xff]
        %v3551 = vld [vmem:[#allocation2 + $0x6a] sm:$0xff]
        %v3552 = vld [vmem:[#allocation2 + $0x7a] sm:$0xff]
        %v3553 = vld [vmem:[#allocation2 + $0x82] sm:$0xff]
        %v3554 = vld [vmem:[#allocation2 + $0x92] sm:$0xff]
        %v3555 = vld [vmem:[#allocation2 + $0x9a] sm:$0xff]
        %v3556 = vld [vmem:[#allocation2 + $0xaa] sm:$0xff]
        %v3557 = vld [vmem:[#allocation2 + $0xb2] sm:$0xff]
        %v3558 = vld [vmem:[#allocation2 + $0xc2] sm:$0xff]
        %v3559 = vld [vmem:[#allocation2 + $0xca] sm:$0xff]
        %v3560 = vld [vmem:[#allocation2 + $0xda] sm:$0xff]
        %v3561 = vld [vmem:[#allocation2 + $0xe2] sm:$0xff]
        %v3562 = vld [vmem:[#allocation2 + $0xf2] sm:$0xff]
        %v3563 = vld [vmem:[#allocation2 + $0xfa] sm:$0xff]
        %v3564 = vld [vmem:[#allocation2 + $0x10a] sm:$0xff]
        %v3565 = vld [vmem:[#allocation2 + $0x112] sm:$0xff]
        %v3566 = vld [vmem:[#allocation2 + $0x122] sm:$0xff]
        %v3567 = vld [vmem:[#allocation2 + $0x12a] sm:$0xff]
        %v3568 = vld [vmem:[#allocation2 + $0x13a] sm:$0xff]
        %v3569 = vld [vmem:[#allocation2 + $0x142] sm:$0xff]
        %v3570 = vld [vmem:[#allocation2 + $0x152] sm:$0xff]
        %v3571 = vld [vmem:[#allocation2 + $0x15a] sm:$0xff]
        %v3572 = vld [vmem:[#allocation2 + $0x16a] sm:$0xff]
        %v3573 = vld [vmem:[#allocation2 + $0x172] sm:$0xff]
        %v3574 = vpack.c.bf16 %v3542, %v3542
        %v3575 = vpack.c.bf16 %v3543, %v3543
        %v3576 = vpack.c.bf16 %v3544, %v3544
        %v3577 = vpack.c.bf16 %v3545, %v3545
        %v3578 = vpack.c.bf16 %v3546, %v3546
        %v3579 = vpack.c.bf16 %v3547, %v3547
        %v3580 = vpack.c.bf16 %v3548, %v3548
        %v3581 = vpack.c.bf16 %v3549, %v3549
        %v3582 = vpack.c.bf16 %v3550, %v3550
        %v3583 = vpack.c.bf16 %v3551, %v3551
        %v3584 = vpack.c.bf16 %v3552, %v3552
        %v3585 = vpack.c.bf16 %v3553, %v3553
        %v3586 = vpack.c.bf16 %v3554, %v3554
        %v3587 = vpack.c.bf16 %v3555, %v3555
        %v3588 = vpack.c.bf16 %v3556, %v3556
        %v3589 = vpack.c.bf16 %v3557, %v3557
        %v3590 = vpack.c.bf16 %v3558, %v3558
        %v3591 = vpack.c.bf16 %v3559, %v3559
        %v3592 = vpack.c.bf16 %v3560, %v3560
        %v3593 = vpack.c.bf16 %v3561, %v3561
        %v3594 = vpack.c.bf16 %v3562, %v3562
        %v3595 = vpack.c.bf16 %v3563, %v3563
        %v3596 = vpack.c.bf16 %v3564, %v3564
        %v3597 = vpack.c.bf16 %v3565, %v3565
        %v3598 = vpack.c.bf16 %v3566, %v3566
        %v3599 = vpack.c.bf16 %v3567, %v3567
        %v3600 = vpack.c.bf16 %v3568, %v3568
        %v3601 = vpack.c.bf16 %v3569, %v3569
        %v3602 = vpack.c.bf16 %v3570, %v3570
        %v3603 = vpack.c.bf16 %v3571, %v3571
        %v3604 = vpack.c.bf16 %v3572, %v3572
        %v3605 = vpack.c.bf16 %v3573, %v3573
        %3606 = vst.msk [vmem:[#allocation3 + $0x4] sm:$0xf] %vm562, %v3574
        %3607 = vst.msk [vmem:[#allocation3 + $0x18] sm:$0xf] %vm562, %v3575
        %3608 = vst.msk [vmem:[#allocation3 + $0x2c] sm:$0xf] %vm562, %v3576
        %3609 = vst.msk [vmem:[#allocation3 + $0x40] sm:$0xf] %vm562, %v3577
        %3610 = vst.msk [vmem:[#allocation3 + $0x54] sm:$0xf] %vm562, %v3578
        %3611 = vst.msk [vmem:[#allocation3 + $0x68] sm:$0xf] %vm562, %v3579
        %3612 = vst.msk [vmem:[#allocation3 + $0x7c] sm:$0xf] %vm562, %v3580
        %3613 = vst.msk [vmem:[#allocation3 + $0x90] sm:$0xf] %vm562, %v3581
        %3614 = vst.msk [vmem:[#allocation3 + $0xa4] sm:$0xf] %vm562, %v3582
        %3615 = vst.msk [vmem:[#allocation3 + $0xb8] sm:$0xf] %vm562, %v3583
        %3616 = vst.msk [vmem:[#allocation3 + $0xcc] sm:$0xf] %vm562, %v3584
        %3617 = vst.msk [vmem:[#allocation3 + $0xe0] sm:$0xf] %vm562, %v3585
        %3618 = vst.msk [vmem:[#allocation3 + $0xf4] sm:$0xf] %vm562, %v3586
        %3619 = vst.msk [vmem:[#allocation3 + $0x108] sm:$0xf] %vm562, %v3587
        %3620 = vst.msk [vmem:[#allocation3 + $0x11c] sm:$0xf] %vm562, %v3588
        %3621 = vst.msk [vmem:[#allocation3 + $0x130] sm:$0xf] %vm562, %v3589
        %3622 = vst.msk [vmem:[#allocation3 + $0x144] sm:$0xf] %vm562, %v3590
        %3623 = vst.msk [vmem:[#allocation3 + $0x158] sm:$0xf] %vm562, %v3591
        %3624 = vst.msk [vmem:[#allocation3 + $0x16c] sm:$0xf] %vm562, %v3592
        %3625 = vst.msk [vmem:[#allocation3 + $0x180] sm:$0xf] %vm562, %v3593
        %3626 = vst.msk [vmem:[#allocation3 + $0x194] sm:$0xf] %vm562, %v3594
        %3627 = vst.msk [vmem:[#allocation3 + $0x1a8] sm:$0xf] %vm562, %v3595
        %3628 = vst.msk [vmem:[#allocation3 + $0x1bc] sm:$0xf] %vm562, %v3596
        %3629 = vst.msk [vmem:[#allocation3 + $0x1d0] sm:$0xf] %vm562, %v3597
        %3630 = vst.msk [vmem:[#allocation3 + $0x1e4] sm:$0xf] %vm562, %v3598
        %3631 = vst.msk [vmem:[#allocation3 + $0x1f8] sm:$0xf] %vm562, %v3599
        %3632 = vst.msk [vmem:[#allocation3 + $0x20c] sm:$0xf] %vm562, %v3600
        %3633 = vst.msk [vmem:[#allocation3 + $0x220] sm:$0xf] %vm562, %v3601
        %3634 = vst.msk [vmem:[#allocation3 + $0x234] sm:$0xf] %vm562, %v3602
        %3635 = vst.msk [vmem:[#allocation3 + $0x248] sm:$0xf] %vm562, %v3603
        %3636 = vst.msk [vmem:[#allocation3 + $0x25c] sm:$0xf] %vm562, %v3604
        %3637 = vst.msk [vmem:[#allocation3 + $0x270] sm:$0xf] %vm562, %v3605
        %v3638 = vld [vmem:[%s465] sm:$0xff]
        %v3639 = vld [vmem:[%s465 + $0x8] sm:$0xff]
        %v3640 = vld [vmem:[%s465 + $0x18] sm:$0xff]
        %v3641 = vld [vmem:[%s465 + $0x20] sm:$0xff]
        %v3642 = vld [vmem:[%s465 + $0x30] sm:$0xff]
        %v3643 = vld [vmem:[%s465 + $0x38] sm:$0xff]
        %v3644 = vld [vmem:[%s465 + $0x48] sm:$0xff]
        %v3645 = vld [vmem:[%s465 + $0x50] sm:$0xff]
        %v3646 = vld [vmem:[%s465 + $0x60] sm:$0xff]
        %v3647 = vld [vmem:[%s465 + $0x68] sm:$0xff]
        %v3648 = vld [vmem:[%s465 + $0x78] sm:$0xff]
        %v3649 = vld [vmem:[%s465 + $0x80] sm:$0xff]
        %v3650 = vld [vmem:[%s465 + $0x90] sm:$0xff]
        %v3651 = vld [vmem:[%s465 + $0x98] sm:$0xff]
        %v3652 = vld [vmem:[%s465 + $0xa8] sm:$0xff]
        %v3653 = vld [vmem:[%s465 + $0xb0] sm:$0xff]
        %v3654 = vld [vmem:[%s465 + $0xc0] sm:$0xff]
        %v3655 = vld [vmem:[%s465 + $0xc8] sm:$0xff]
        %v3656 = vld [vmem:[%s465 + $0xd8] sm:$0xff]
        %v3657 = vld [vmem:[%s465 + $0xe0] sm:$0xff]
        %v3658 = vld [vmem:[%s465 + $0xf0] sm:$0xff]
        %v3659 = vld [vmem:[%s465 + $0xf8] sm:$0xff]
        %v3660 = vld [vmem:[%s465 + $0x108] sm:$0xff]
        %v3661 = vld [vmem:[%s465 + $0x110] sm:$0xff]
        %v3662 = vld [vmem:[%s465 + $0x120] sm:$0xff]
        %v3663 = vld [vmem:[%s465 + $0x128] sm:$0xff]
        %v3664 = vld [vmem:[%s465 + $0x138] sm:$0xff]
        %v3665 = vld [vmem:[%s465 + $0x140] sm:$0xff]
        %v3666 = vld [vmem:[%s465 + $0x150] sm:$0xff]
        %v3667 = vld [vmem:[%s465 + $0x158] sm:$0xff]
        %v3668 = vld [vmem:[%s465 + $0x168] sm:$0xff]
        %v3669 = vld [vmem:[%s465 + $0x170] sm:$0xff]
        %v3670 = vpack.c.bf16 %v3638, %v3638
        %v3671 = vpack.c.bf16 %v3639, %v3639
        %v3672 = vpack.c.bf16 %v3640, %v3640
        %v3673 = vpack.c.bf16 %v3641, %v3641
        %v3674 = vpack.c.bf16 %v3642, %v3642
        %v3675 = vpack.c.bf16 %v3643, %v3643
        %v3676 = vpack.c.bf16 %v3644, %v3644
        %v3677 = vpack.c.bf16 %v3645, %v3645
        %v3678 = vpack.c.bf16 %v3646, %v3646
        %v3679 = vpack.c.bf16 %v3647, %v3647
        %v3680 = vpack.c.bf16 %v3648, %v3648
        %v3681 = vpack.c.bf16 %v3649, %v3649
        %v3682 = vpack.c.bf16 %v3650, %v3650
        %v3683 = vpack.c.bf16 %v3651, %v3651
        %v3684 = vpack.c.bf16 %v3652, %v3652
        %v3685 = vpack.c.bf16 %v3653, %v3653
        %v3686 = vpack.c.bf16 %v3654, %v3654
        %v3687 = vpack.c.bf16 %v3655, %v3655
        %v3688 = vpack.c.bf16 %v3656, %v3656
        %v3689 = vpack.c.bf16 %v3657, %v3657
        %v3690 = vpack.c.bf16 %v3658, %v3658
        %v3691 = vpack.c.bf16 %v3659, %v3659
        %v3692 = vpack.c.bf16 %v3660, %v3660
        %v3693 = vpack.c.bf16 %v3661, %v3661
        %v3694 = vpack.c.bf16 %v3662, %v3662
        %v3695 = vpack.c.bf16 %v3663, %v3663
        %v3696 = vpack.c.bf16 %v3664, %v3664
        %v3697 = vpack.c.bf16 %v3665, %v3665
        %v3698 = vpack.c.bf16 %v3666, %v3666
        %v3699 = vpack.c.bf16 %v3667, %v3667
        %v3700 = vpack.c.bf16 %v3668, %v3668
        %v3701 = vpack.c.bf16 %v3669, %v3669
        %3734 = vrot.lane.b32.xlu0 %v3670, 64
        %v3735 = vpop.permute.xlu0 %3734
        %3736 = vrot.lane.b32.xlu0 %v3671, 64
        %v3737 = vpop.permute.xlu0 %3736
        %3738 = vrot.lane.b32.xlu0 %v3672, 64
        %v3739 = vpop.permute.xlu0 %3738
        %3740 = vrot.lane.b32.xlu0 %v3673, 64
        %v3741 = vpop.permute.xlu0 %3740
        %3742 = vrot.lane.b32.xlu0 %v3674, 64
        %v3743 = vpop.permute.xlu0 %3742
        %3744 = vrot.lane.b32.xlu0 %v3675, 64
        %v3745 = vpop.permute.xlu0 %3744
        %3746 = vrot.lane.b32.xlu0 %v3676, 64
        %v3747 = vpop.permute.xlu0 %3746
        %3748 = vrot.lane.b32.xlu0 %v3677, 64
        %v3749 = vpop.permute.xlu0 %3748
        %3750 = vrot.lane.b32.xlu0 %v3678, 64
        %v3751 = vpop.permute.xlu0 %3750
        %3752 = vrot.lane.b32.xlu0 %v3679, 64
        %v3753 = vpop.permute.xlu0 %3752
        %3754 = vrot.lane.b32.xlu0 %v3680, 64
        %v3755 = vpop.permute.xlu0 %3754
        %3756 = vrot.lane.b32.xlu0 %v3681, 64
        %v3757 = vpop.permute.xlu0 %3756
        %3758 = vrot.lane.b32.xlu0 %v3682, 64
        %v3759 = vpop.permute.xlu0 %3758
        %3760 = vrot.lane.b32.xlu0 %v3683, 64
        %v3761 = vpop.permute.xlu0 %3760
        %3762 = vrot.lane.b32.xlu0 %v3684, 64
        %v3763 = vpop.permute.xlu0 %3762
        %3764 = vrot.lane.b32.xlu0 %v3685, 64
        %v3765 = vpop.permute.xlu0 %3764
        %3766 = vrot.lane.b32.xlu0 %v3686, 64
        %v3767 = vpop.permute.xlu0 %3766
        %3768 = vrot.lane.b32.xlu0 %v3687, 64
        %v3769 = vpop.permute.xlu0 %3768
        %3770 = vrot.lane.b32.xlu0 %v3688, 64
        %v3771 = vpop.permute.xlu0 %3770
        %3772 = vrot.lane.b32.xlu0 %v3689, 64
        %v3773 = vpop.permute.xlu0 %3772
        %3774 = vrot.lane.b32.xlu0 %v3690, 64
        %v3775 = vpop.permute.xlu0 %3774
        %3776 = vrot.lane.b32.xlu0 %v3691, 64
        %v3777 = vpop.permute.xlu0 %3776
        %3778 = vrot.lane.b32.xlu0 %v3692, 64
        %v3779 = vpop.permute.xlu0 %3778
        %3780 = vrot.lane.b32.xlu0 %v3693, 64
        %v3781 = vpop.permute.xlu0 %3780
        %3782 = vrot.lane.b32.xlu0 %v3694, 64
        %v3783 = vpop.permute.xlu0 %3782
        %3784 = vrot.lane.b32.xlu0 %v3695, 64
        %v3785 = vpop.permute.xlu0 %3784
        %3786 = vrot.lane.b32.xlu0 %v3696, 64
        %v3787 = vpop.permute.xlu0 %3786
        %3788 = vrot.lane.b32.xlu0 %v3697, 64
        %v3789 = vpop.permute.xlu0 %3788
        %3790 = vrot.lane.b32.xlu0 %v3698, 64
        %v3791 = vpop.permute.xlu0 %3790
        %3792 = vrot.lane.b32.xlu0 %v3699, 64
        %v3793 = vpop.permute.xlu0 %3792
        %3794 = vrot.lane.b32.xlu0 %v3700, 64
        %v3795 = vpop.permute.xlu0 %3794
        %3796 = vrot.lane.b32.xlu0 %v3701, 64
        %v3797 = vpop.permute.xlu0 %3796
        %3830 = vst.msk [vmem:[#allocation3 + $0x4] sm:$0xf] %vm787, %v3735
        %3831 = vst.msk [vmem:[#allocation3 + $0x18] sm:$0xf] %vm787, %v3737
        %3832 = vst.msk [vmem:[#allocation3 + $0x2c] sm:$0xf] %vm787, %v3739
        %3833 = vst.msk [vmem:[#allocation3 + $0x40] sm:$0xf] %vm787, %v3741
        %3834 = vst.msk [vmem:[#allocation3 + $0x54] sm:$0xf] %vm787, %v3743
        %3835 = vst.msk [vmem:[#allocation3 + $0x68] sm:$0xf] %vm787, %v3745
        %3836 = vst.msk [vmem:[#allocation3 + $0x7c] sm:$0xf] %vm787, %v3747
        %3837 = vst.msk [vmem:[#allocation3 + $0x90] sm:$0xf] %vm787, %v3749
        %3838 = vst.msk [vmem:[#allocation3 + $0xa4] sm:$0xf] %vm787, %v3751
        %3839 = vst.msk [vmem:[#allocation3 + $0xb8] sm:$0xf] %vm787, %v3753
        %3840 = vst.msk [vmem:[#allocation3 + $0xcc] sm:$0xf] %vm787, %v3755
        %3841 = vst.msk [vmem:[#allocation3 + $0xe0] sm:$0xf] %vm787, %v3757
        %3842 = vst.msk [vmem:[#allocation3 + $0xf4] sm:$0xf] %vm787, %v3759
        %3843 = vst.msk [vmem:[#allocation3 + $0x108] sm:$0xf] %vm787, %v3761
        %3844 = vst.msk [vmem:[#allocation3 + $0x11c] sm:$0xf] %vm787, %v3763
        %3845 = vst.msk [vmem:[#allocation3 + $0x130] sm:$0xf] %vm787, %v3765
        %3846 = vst.msk [vmem:[#allocation3 + $0x144] sm:$0xf] %vm787, %v3767
        %3847 = vst.msk [vmem:[#allocation3 + $0x158] sm:$0xf] %vm787, %v3769
        %3848 = vst.msk [vmem:[#allocation3 + $0x16c] sm:$0xf] %vm787, %v3771
        %3849 = vst.msk [vmem:[#allocation3 + $0x180] sm:$0xf] %vm787, %v3773
        %3850 = vst.msk [vmem:[#allocation3 + $0x194] sm:$0xf] %vm787, %v3775
        %3851 = vst.msk [vmem:[#allocation3 + $0x1a8] sm:$0xf] %vm787, %v3777
        %3852 = vst.msk [vmem:[#allocation3 + $0x1bc] sm:$0xf] %vm787, %v3779
        %3853 = vst.msk [vmem:[#allocation3 + $0x1d0] sm:$0xf] %vm787, %v3781
        %3854 = vst.msk [vmem:[#allocation3 + $0x1e4] sm:$0xf] %vm787, %v3783
        %3855 = vst.msk [vmem:[#allocation3 + $0x1f8] sm:$0xf] %vm787, %v3785
        %3856 = vst.msk [vmem:[#allocation3 + $0x20c] sm:$0xf] %vm787, %v3787
        %3857 = vst.msk [vmem:[#allocation3 + $0x220] sm:$0xf] %vm787, %v3789
        %3858 = vst.msk [vmem:[#allocation3 + $0x234] sm:$0xf] %vm787, %v3791
        %3859 = vst.msk [vmem:[#allocation3 + $0x248] sm:$0xf] %vm787, %v3793
        %3860 = vst.msk [vmem:[#allocation3 + $0x25c] sm:$0xf] %vm787, %v3795
        %3861 = vst.msk [vmem:[#allocation3 + $0x270] sm:$0xf] %vm787, %v3797
        %v3862 = vld [vmem:[%s465 + $0x1] sm:$0xff]
        %v3863 = vld [vmem:[%s465 + $0x9] sm:$0xff]
        %v3864 = vld [vmem:[%s465 + $0x19] sm:$0xff]
        %v3865 = vld [vmem:[%s465 + $0x21] sm:$0xff]
        %v3866 = vld [vmem:[%s465 + $0x31] sm:$0xff]
        %v3867 = vld [vmem:[%s465 + $0x39] sm:$0xff]
        %v3868 = vld [vmem:[%s465 + $0x49] sm:$0xff]
        %v3869 = vld [vmem:[%s465 + $0x51] sm:$0xff]
        %v3870 = vld [vmem:[%s465 + $0x61] sm:$0xff]
        %v3871 = vld [vmem:[%s465 + $0x69] sm:$0xff]
        %v3872 = vld [vmem:[%s465 + $0x79] sm:$0xff]
        %v3873 = vld [vmem:[%s465 + $0x81] sm:$0xff]
        %v3874 = vld [vmem:[%s465 + $0x91] sm:$0xff]
        %v3875 = vld [vmem:[%s465 + $0x99] sm:$0xff]
        %v3876 = vld [vmem:[%s465 + $0xa9] sm:$0xff]
        %v3877 = vld [vmem:[%s465 + $0xb1] sm:$0xff]
        %v3878 = vld [vmem:[%s465 + $0xc1] sm:$0xff]
        %v3879 = vld [vmem:[%s465 + $0xc9] sm:$0xff]
        %v3880 = vld [vmem:[%s465 + $0xd9] sm:$0xff]
        %v3881 = vld [vmem:[%s465 + $0xe1] sm:$0xff]
        %v3882 = vld [vmem:[%s465 + $0xf1] sm:$0xff]
        %v3883 = vld [vmem:[%s465 + $0xf9] sm:$0xff]
        %v3884 = vld [vmem:[%s465 + $0x109] sm:$0xff]
        %v3885 = vld [vmem:[%s465 + $0x111] sm:$0xff]
        %v3886 = vld [vmem:[%s465 + $0x121] sm:$0xff]
        %v3887 = vld [vmem:[%s465 + $0x129] sm:$0xff]
        %v3888 = vld [vmem:[%s465 + $0x139] sm:$0xff]
        %v3889 = vld [vmem:[%s465 + $0x141] sm:$0xff]
        %v3890 = vld [vmem:[%s465 + $0x151] sm:$0xff]
        %v3891 = vld [vmem:[%s465 + $0x159] sm:$0xff]
        %v3892 = vld [vmem:[%s465 + $0x169] sm:$0xff]
        %v3893 = vld [vmem:[%s465 + $0x171] sm:$0xff]
        %v3894 = vpack.c.bf16 %v3862, %v3862
        %v3895 = vpack.c.bf16 %v3863, %v3863
        %v3896 = vpack.c.bf16 %v3864, %v3864
        %v3897 = vpack.c.bf16 %v3865, %v3865
        %v3898 = vpack.c.bf16 %v3866, %v3866
        %v3899 = vpack.c.bf16 %v3867, %v3867
        %v3900 = vpack.c.bf16 %v3868, %v3868
        %v3901 = vpack.c.bf16 %v3869, %v3869
        %v3902 = vpack.c.bf16 %v3870, %v3870
        %v3903 = vpack.c.bf16 %v3871, %v3871
        %v3904 = vpack.c.bf16 %v3872, %v3872
        %v3905 = vpack.c.bf16 %v3873, %v3873
        %v3906 = vpack.c.bf16 %v3874, %v3874
        %v3907 = vpack.c.bf16 %v3875, %v3875
        %v3908 = vpack.c.bf16 %v3876, %v3876
        %v3909 = vpack.c.bf16 %v3877, %v3877
        %v3910 = vpack.c.bf16 %v3878, %v3878
        %v3911 = vpack.c.bf16 %v3879, %v3879
        %v3912 = vpack.c.bf16 %v3880, %v3880
        %v3913 = vpack.c.bf16 %v3881, %v3881
        %v3914 = vpack.c.bf16 %v3882, %v3882
        %v3915 = vpack.c.bf16 %v3883, %v3883
        %v3916 = vpack.c.bf16 %v3884, %v3884
        %v3917 = vpack.c.bf16 %v3885, %v3885
        %v3918 = vpack.c.bf16 %v3886, %v3886
        %v3919 = vpack.c.bf16 %v3887, %v3887
        %v3920 = vpack.c.bf16 %v3888, %v3888
        %v3921 = vpack.c.bf16 %v3889, %v3889
        %v3922 = vpack.c.bf16 %v3890, %v3890
        %v3923 = vpack.c.bf16 %v3891, %v3891
        %v3924 = vpack.c.bf16 %v3892, %v3892
        %v3925 = vpack.c.bf16 %v3893, %v3893
        %3926 = vst.msk [vmem:[#allocation3 + $0x8] sm:$0xf] %vm562, %v3894
        %3927 = vst.msk [vmem:[#allocation3 + $0x1c] sm:$0xf] %vm562, %v3895
        %3928 = vst.msk [vmem:[#allocation3 + $0x30] sm:$0xf] %vm562, %v3896
        %3929 = vst.msk [vmem:[#allocation3 + $0x44] sm:$0xf] %vm562, %v3897
        %3930 = vst.msk [vmem:[#allocation3 + $0x58] sm:$0xf] %vm562, %v3898
        %3931 = vst.msk [vmem:[#allocation3 + $0x6c] sm:$0xf] %vm562, %v3899
        %3932 = vst.msk [vmem:[#allocation3 + $0x80] sm:$0xf] %vm562, %v3900
        %3933 = vst.msk [vmem:[#allocation3 + $0x94] sm:$0xf] %vm562, %v3901
        %3934 = vst.msk [vmem:[#allocation3 + $0xa8] sm:$0xf] %vm562, %v3902
        %3935 = vst.msk [vmem:[#allocation3 + $0xbc] sm:$0xf] %vm562, %v3903
        %3936 = vst.msk [vmem:[#allocation3 + $0xd0] sm:$0xf] %vm562, %v3904
        %3937 = vst.msk [vmem:[#allocation3 + $0xe4] sm:$0xf] %vm562, %v3905
        %3938 = vst.msk [vmem:[#allocation3 + $0xf8] sm:$0xf] %vm562, %v3906
        %3939 = vst.msk [vmem:[#allocation3 + $0x10c] sm:$0xf] %vm562, %v3907
        %3940 = vst.msk [vmem:[#allocation3 + $0x120] sm:$0xf] %vm562, %v3908
        %3941 = vst.msk [vmem:[#allocation3 + $0x134] sm:$0xf] %vm562, %v3909
        %3942 = vst.msk [vmem:[#allocation3 + $0x148] sm:$0xf] %vm562, %v3910
        %3943 = vst.msk [vmem:[#allocation3 + $0x15c] sm:$0xf] %vm562, %v3911
        %3944 = vst.msk [vmem:[#allocation3 + $0x170] sm:$0xf] %vm562, %v3912
        %3945 = vst.msk [vmem:[#allocation3 + $0x184] sm:$0xf] %vm562, %v3913
        %3946 = vst.msk [vmem:[#allocation3 + $0x198] sm:$0xf] %vm562, %v3914
        %3947 = vst.msk [vmem:[#allocation3 + $0x1ac] sm:$0xf] %vm562, %v3915
        %3948 = vst.msk [vmem:[#allocation3 + $0x1c0] sm:$0xf] %vm562, %v3916
        %3949 = vst.msk [vmem:[#allocation3 + $0x1d4] sm:$0xf] %vm562, %v3917
        %3950 = vst.msk [vmem:[#allocation3 + $0x1e8] sm:$0xf] %vm562, %v3918
        %3951 = vst.msk [vmem:[#allocation3 + $0x1fc] sm:$0xf] %vm562, %v3919
        %3952 = vst.msk [vmem:[#allocation3 + $0x210] sm:$0xf] %vm562, %v3920
        %3953 = vst.msk [vmem:[#allocation3 + $0x224] sm:$0xf] %vm562, %v3921
        %3954 = vst.msk [vmem:[#allocation3 + $0x238] sm:$0xf] %vm562, %v3922
        %3955 = vst.msk [vmem:[#allocation3 + $0x24c] sm:$0xf] %vm562, %v3923
        %3956 = vst.msk [vmem:[#allocation3 + $0x260] sm:$0xf] %vm562, %v3924
        %3957 = vst.msk [vmem:[#allocation3 + $0x274] sm:$0xf] %vm562, %v3925
        %v3958 = vld [vmem:[%s465 + $0x2] sm:$0xff]
        %v3959 = vld [vmem:[%s465 + $0xa] sm:$0xff]
        %v3960 = vld [vmem:[%s465 + $0x1a] sm:$0xff]
        %v3961 = vld [vmem:[%s465 + $0x22] sm:$0xff]
        %v3962 = vld [vmem:[%s465 + $0x32] sm:$0xff]
        %v3963 = vld [vmem:[%s465 + $0x3a] sm:$0xff]
        %v3964 = vld [vmem:[%s465 + $0x4a] sm:$0xff]
        %v3965 = vld [vmem:[%s465 + $0x52] sm:$0xff]
        %v3966 = vld [vmem:[%s465 + $0x62] sm:$0xff]
        %v3967 = vld [vmem:[%s465 + $0x6a] sm:$0xff]
        %v3968 = vld [vmem:[%s465 + $0x7a] sm:$0xff]
        %v3969 = vld [vmem:[%s465 + $0x82] sm:$0xff]
        %v3970 = vld [vmem:[%s465 + $0x92] sm:$0xff]
        %v3971 = vld [vmem:[%s465 + $0x9a] sm:$0xff]
        %v3972 = vld [vmem:[%s465 + $0xaa] sm:$0xff]
        %v3973 = vld [vmem:[%s465 + $0xb2] sm:$0xff]
        %v3974 = vld [vmem:[%s465 + $0xc2] sm:$0xff]
        %v3975 = vld [vmem:[%s465 + $0xca] sm:$0xff]
        %v3976 = vld [vmem:[%s465 + $0xda] sm:$0xff]
        %v3977 = vld [vmem:[%s465 + $0xe2] sm:$0xff]
        %v3978 = vld [vmem:[%s465 + $0xf2] sm:$0xff]
        %v3979 = vld [vmem:[%s465 + $0xfa] sm:$0xff]
        %v3980 = vld [vmem:[%s465 + $0x10a] sm:$0xff]
        %v3981 = vld [vmem:[%s465 + $0x112] sm:$0xff]
        %v3982 = vld [vmem:[%s465 + $0x122] sm:$0xff]
        %v3983 = vld [vmem:[%s465 + $0x12a] sm:$0xff]
        %v3984 = vld [vmem:[%s465 + $0x13a] sm:$0xff]
        %v3985 = vld [vmem:[%s465 + $0x142] sm:$0xff]
        %v3986 = vld [vmem:[%s465 + $0x152] sm:$0xff]
        %v3987 = vld [vmem:[%s465 + $0x15a] sm:$0xff]
        %v3988 = vld [vmem:[%s465 + $0x16a] sm:$0xff]
        %v3989 = vld [vmem:[%s465 + $0x172] sm:$0xff]
        %v3990 = vpack.c.bf16 %v3958, %v3958
        %v3991 = vpack.c.bf16 %v3959, %v3959
        %v3992 = vpack.c.bf16 %v3960, %v3960
        %v3993 = vpack.c.bf16 %v3961, %v3961
        %v3994 = vpack.c.bf16 %v3962, %v3962
        %v3995 = vpack.c.bf16 %v3963, %v3963
        %v3996 = vpack.c.bf16 %v3964, %v3964
        %v3997 = vpack.c.bf16 %v3965, %v3965
        %v3998 = vpack.c.bf16 %v3966, %v3966
        %v3999 = vpack.c.bf16 %v3967, %v3967
        %v4000 = vpack.c.bf16 %v3968, %v3968
        %v4001 = vpack.c.bf16 %v3969, %v3969
        %v4002 = vpack.c.bf16 %v3970, %v3970
        %v4003 = vpack.c.bf16 %v3971, %v3971
        %v4004 = vpack.c.bf16 %v3972, %v3972
        %v4005 = vpack.c.bf16 %v3973, %v3973
        %v4006 = vpack.c.bf16 %v3974, %v3974
        %v4007 = vpack.c.bf16 %v3975, %v3975
        %v4008 = vpack.c.bf16 %v3976, %v3976
        %v4009 = vpack.c.bf16 %v3977, %v3977
        %v4010 = vpack.c.bf16 %v3978, %v3978
        %v4011 = vpack.c.bf16 %v3979, %v3979
        %v4012 = vpack.c.bf16 %v3980, %v3980
        %v4013 = vpack.c.bf16 %v3981, %v3981
        %v4014 = vpack.c.bf16 %v3982, %v3982
        %v4015 = vpack.c.bf16 %v3983, %v3983
        %v4016 = vpack.c.bf16 %v3984, %v3984
        %v4017 = vpack.c.bf16 %v3985, %v3985
        %v4018 = vpack.c.bf16 %v3986, %v3986
        %v4019 = vpack.c.bf16 %v3987, %v3987
        %v4020 = vpack.c.bf16 %v3988, %v3988
        %v4021 = vpack.c.bf16 %v3989, %v3989
        %4054 = vrot.lane.b32.xlu0 %v3990, 64
        %v4055 = vpop.permute.xlu0 %4054
        %4056 = vrot.lane.b32.xlu0 %v3991, 64
        %v4057 = vpop.permute.xlu0 %4056
        %4058 = vrot.lane.b32.xlu0 %v3992, 64
        %v4059 = vpop.permute.xlu0 %4058
        %4060 = vrot.lane.b32.xlu0 %v3993, 64
        %v4061 = vpop.permute.xlu0 %4060
        %4062 = vrot.lane.b32.xlu0 %v3994, 64
        %v4063 = vpop.permute.xlu0 %4062
        %4064 = vrot.lane.b32.xlu0 %v3995, 64
        %v4065 = vpop.permute.xlu0 %4064
        %4066 = vrot.lane.b32.xlu0 %v3996, 64
        %v4067 = vpop.permute.xlu0 %4066
        %4068 = vrot.lane.b32.xlu0 %v3997, 64
        %v4069 = vpop.permute.xlu0 %4068
        %4070 = vrot.lane.b32.xlu0 %v3998, 64
        %v4071 = vpop.permute.xlu0 %4070
        %4072 = vrot.lane.b32.xlu0 %v3999, 64
        %v4073 = vpop.permute.xlu0 %4072
        %4074 = vrot.lane.b32.xlu0 %v4000, 64
        %v4075 = vpop.permute.xlu0 %4074
        %4076 = vrot.lane.b32.xlu0 %v4001, 64
        %v4077 = vpop.permute.xlu0 %4076
        %4078 = vrot.lane.b32.xlu0 %v4002, 64
        %v4079 = vpop.permute.xlu0 %4078
        %4080 = vrot.lane.b32.xlu0 %v4003, 64
        %v4081 = vpop.permute.xlu0 %4080
        %4082 = vrot.lane.b32.xlu0 %v4004, 64
        %v4083 = vpop.permute.xlu0 %4082
        %4084 = vrot.lane.b32.xlu0 %v4005, 64
        %v4085 = vpop.permute.xlu0 %4084
        %4086 = vrot.lane.b32.xlu0 %v4006, 64
        %v4087 = vpop.permute.xlu0 %4086
        %4088 = vrot.lane.b32.xlu0 %v4007, 64
        %v4089 = vpop.permute.xlu0 %4088
        %4090 = vrot.lane.b32.xlu0 %v4008, 64
        %v4091 = vpop.permute.xlu0 %4090
        %4092 = vrot.lane.b32.xlu0 %v4009, 64
        %v4093 = vpop.permute.xlu0 %4092
        %4094 = vrot.lane.b32.xlu0 %v4010, 64
        %v4095 = vpop.permute.xlu0 %4094
        %4096 = vrot.lane.b32.xlu0 %v4011, 64
        %v4097 = vpop.permute.xlu0 %4096
        %4098 = vrot.lane.b32.xlu0 %v4012, 64
        %v4099 = vpop.permute.xlu0 %4098
        %4100 = vrot.lane.b32.xlu0 %v4013, 64
        %v4101 = vpop.permute.xlu0 %4100
        %4102 = vrot.lane.b32.xlu0 %v4014, 64
        %v4103 = vpop.permute.xlu0 %4102
        %4104 = vrot.lane.b32.xlu0 %v4015, 64
        %v4105 = vpop.permute.xlu0 %4104
        %4106 = vrot.lane.b32.xlu0 %v4016, 64
        %v4107 = vpop.permute.xlu0 %4106
        %4108 = vrot.lane.b32.xlu0 %v4017, 64
        %v4109 = vpop.permute.xlu0 %4108
        %4110 = vrot.lane.b32.xlu0 %v4018, 64
        %v4111 = vpop.permute.xlu0 %4110
        %4112 = vrot.lane.b32.xlu0 %v4019, 64
        %v4113 = vpop.permute.xlu0 %4112
        %4114 = vrot.lane.b32.xlu0 %v4020, 64
        %v4115 = vpop.permute.xlu0 %4114
        %4116 = vrot.lane.b32.xlu0 %v4021, 64
        %v4117 = vpop.permute.xlu0 %4116
        %4150 = vst.msk [vmem:[#allocation3 + $0x8] sm:$0xf] %vm787, %v4055
        %4151 = vst.msk [vmem:[#allocation3 + $0x1c] sm:$0xf] %vm787, %v4057
        %4152 = vst.msk [vmem:[#allocation3 + $0x30] sm:$0xf] %vm787, %v4059
        %4153 = vst.msk [vmem:[#allocation3 + $0x44] sm:$0xf] %vm787, %v4061
        %4154 = vst.msk [vmem:[#allocation3 + $0x58] sm:$0xf] %vm787, %v4063
        %4155 = vst.msk [vmem:[#allocation3 + $0x6c] sm:$0xf] %vm787, %v4065
        %4156 = vst.msk [vmem:[#allocation3 + $0x80] sm:$0xf] %vm787, %v4067
        %4157 = vst.msk [vmem:[#allocation3 + $0x94] sm:$0xf] %vm787, %v4069
        %4158 = vst.msk [vmem:[#allocation3 + $0xa8] sm:$0xf] %vm787, %v4071
        %4159 = vst.msk [vmem:[#allocation3 + $0xbc] sm:$0xf] %vm787, %v4073
        %4160 = vst.msk [vmem:[#allocation3 + $0xd0] sm:$0xf] %vm787, %v4075
        %4161 = vst.msk [vmem:[#allocation3 + $0xe4] sm:$0xf] %vm787, %v4077
        %4162 = vst.msk [vmem:[#allocation3 + $0xf8] sm:$0xf] %vm787, %v4079
        %4163 = vst.msk [vmem:[#allocation3 + $0x10c] sm:$0xf] %vm787, %v4081
        %4164 = vst.msk [vmem:[#allocation3 + $0x120] sm:$0xf] %vm787, %v4083
        %4165 = vst.msk [vmem:[#allocation3 + $0x134] sm:$0xf] %vm787, %v4085
        %4166 = vst.msk [vmem:[#allocation3 + $0x148] sm:$0xf] %vm787, %v4087
        %4167 = vst.msk [vmem:[#allocation3 + $0x15c] sm:$0xf] %vm787, %v4089
        %4168 = vst.msk [vmem:[#allocation3 + $0x170] sm:$0xf] %vm787, %v4091
        %4169 = vst.msk [vmem:[#allocation3 + $0x184] sm:$0xf] %vm787, %v4093
        %4170 = vst.msk [vmem:[#allocation3 + $0x198] sm:$0xf] %vm787, %v4095
        %4171 = vst.msk [vmem:[#allocation3 + $0x1ac] sm:$0xf] %vm787, %v4097
        %4172 = vst.msk [vmem:[#allocation3 + $0x1c0] sm:$0xf] %vm787, %v4099
        %4173 = vst.msk [vmem:[#allocation3 + $0x1d4] sm:$0xf] %vm787, %v4101
        %4174 = vst.msk [vmem:[#allocation3 + $0x1e8] sm:$0xf] %vm787, %v4103
        %4175 = vst.msk [vmem:[#allocation3 + $0x1fc] sm:$0xf] %vm787, %v4105
        %4176 = vst.msk [vmem:[#allocation3 + $0x210] sm:$0xf] %vm787, %v4107
        %4177 = vst.msk [vmem:[#allocation3 + $0x224] sm:$0xf] %vm787, %v4109
        %4178 = vst.msk [vmem:[#allocation3 + $0x238] sm:$0xf] %vm787, %v4111
        %4179 = vst.msk [vmem:[#allocation3 + $0x24c] sm:$0xf] %vm787, %v4113
        %4180 = vst.msk [vmem:[#allocation3 + $0x260] sm:$0xf] %vm787, %v4115
        %4181 = vst.msk [vmem:[#allocation3 + $0x274] sm:$0xf] %vm787, %v4117
        %v4182 = vld [vmem:[%s1460] sm:$0xff]
        %v4183 = vld [vmem:[%s1460 + $0x8] sm:$0xff]
        %v4184 = vld [vmem:[%s1460 + $0x18] sm:$0xff]
        %v4185 = vld [vmem:[%s1460 + $0x20] sm:$0xff]
        %v4186 = vld [vmem:[%s1460 + $0x30] sm:$0xff]
        %v4187 = vld [vmem:[%s1460 + $0x38] sm:$0xff]
        %v4188 = vld [vmem:[%s1460 + $0x48] sm:$0xff]
        %v4189 = vld [vmem:[%s1460 + $0x50] sm:$0xff]
        %v4190 = vld [vmem:[%s1460 + $0x60] sm:$0xff]
        %v4191 = vld [vmem:[%s1460 + $0x68] sm:$0xff]
        %v4192 = vld [vmem:[%s1460 + $0x78] sm:$0xff]
        %v4193 = vld [vmem:[%s1460 + $0x80] sm:$0xff]
        %v4194 = vld [vmem:[%s1460 + $0x90] sm:$0xff]
        %v4195 = vld [vmem:[%s1460 + $0x98] sm:$0xff]
        %v4196 = vld [vmem:[%s1460 + $0xa8] sm:$0xff]
        %v4197 = vld [vmem:[%s1460 + $0xb0] sm:$0xff]
        %v4198 = vld [vmem:[%s1460 + $0xc0] sm:$0xff]
        %v4199 = vld [vmem:[%s1460 + $0xc8] sm:$0xff]
        %v4200 = vld [vmem:[%s1460 + $0xd8] sm:$0xff]
        %v4201 = vld [vmem:[%s1460 + $0xe0] sm:$0xff]
        %v4202 = vld [vmem:[%s1460 + $0xf0] sm:$0xff]
        %v4203 = vld [vmem:[%s1460 + $0xf8] sm:$0xff]
        %v4204 = vld [vmem:[%s1460 + $0x108] sm:$0xff]
        %v4205 = vld [vmem:[%s1460 + $0x110] sm:$0xff]
        %v4206 = vld [vmem:[%s1460 + $0x120] sm:$0xff]
        %v4207 = vld [vmem:[%s1460 + $0x128] sm:$0xff]
        %v4208 = vld [vmem:[%s1460 + $0x138] sm:$0xff]
        %v4209 = vld [vmem:[%s1460 + $0x140] sm:$0xff]
        %v4210 = vld [vmem:[%s1460 + $0x150] sm:$0xff]
        %v4211 = vld [vmem:[%s1460 + $0x158] sm:$0xff]
        %v4212 = vld [vmem:[%s1460 + $0x168] sm:$0xff]
        %v4213 = vld [vmem:[%s1460 + $0x170] sm:$0xff]
        %v4214 = vpack.c.bf16 %v4182, %v4182
        %v4215 = vpack.c.bf16 %v4183, %v4183
        %v4216 = vpack.c.bf16 %v4184, %v4184
        %v4217 = vpack.c.bf16 %v4185, %v4185
        %v4218 = vpack.c.bf16 %v4186, %v4186
        %v4219 = vpack.c.bf16 %v4187, %v4187
        %v4220 = vpack.c.bf16 %v4188, %v4188
        %v4221 = vpack.c.bf16 %v4189, %v4189
        %v4222 = vpack.c.bf16 %v4190, %v4190
        %v4223 = vpack.c.bf16 %v4191, %v4191
        %v4224 = vpack.c.bf16 %v4192, %v4192
        %v4225 = vpack.c.bf16 %v4193, %v4193
        %v4226 = vpack.c.bf16 %v4194, %v4194
        %v4227 = vpack.c.bf16 %v4195, %v4195
        %v4228 = vpack.c.bf16 %v4196, %v4196
        %v4229 = vpack.c.bf16 %v4197, %v4197
        %v4230 = vpack.c.bf16 %v4198, %v4198
        %v4231 = vpack.c.bf16 %v4199, %v4199
        %v4232 = vpack.c.bf16 %v4200, %v4200
        %v4233 = vpack.c.bf16 %v4201, %v4201
        %v4234 = vpack.c.bf16 %v4202, %v4202
        %v4235 = vpack.c.bf16 %v4203, %v4203
        %v4236 = vpack.c.bf16 %v4204, %v4204
        %v4237 = vpack.c.bf16 %v4205, %v4205
        %v4238 = vpack.c.bf16 %v4206, %v4206
        %v4239 = vpack.c.bf16 %v4207, %v4207
        %v4240 = vpack.c.bf16 %v4208, %v4208
        %v4241 = vpack.c.bf16 %v4209, %v4209
        %v4242 = vpack.c.bf16 %v4210, %v4210
        %v4243 = vpack.c.bf16 %v4211, %v4211
        %v4244 = vpack.c.bf16 %v4212, %v4212
        %v4245 = vpack.c.bf16 %v4213, %v4213
        %4246 = vst.msk [vmem:[#allocation3 + $0xc] sm:$0xf] %vm562, %v4214
        %4247 = vst.msk [vmem:[#allocation3 + $0x20] sm:$0xf] %vm562, %v4215
        %4248 = vst.msk [vmem:[#allocation3 + $0x34] sm:$0xf] %vm562, %v4216
        %4249 = vst.msk [vmem:[#allocation3 + $0x48] sm:$0xf] %vm562, %v4217
        %4250 = vst.msk [vmem:[#allocation3 + $0x5c] sm:$0xf] %vm562, %v4218
        %4251 = vst.msk [vmem:[#allocation3 + $0x70] sm:$0xf] %vm562, %v4219
        %4252 = vst.msk [vmem:[#allocation3 + $0x84] sm:$0xf] %vm562, %v4220
        %4253 = vst.msk [vmem:[#allocation3 + $0x98] sm:$0xf] %vm562, %v4221
        %4254 = vst.msk [vmem:[#allocation3 + $0xac] sm:$0xf] %vm562, %v4222
        %4255 = vst.msk [vmem:[#allocation3 + $0xc0] sm:$0xf] %vm562, %v4223
        %4256 = vst.msk [vmem:[#allocation3 + $0xd4] sm:$0xf] %vm562, %v4224
        %4257 = vst.msk [vmem:[#allocation3 + $0xe8] sm:$0xf] %vm562, %v4225
        %4258 = vst.msk [vmem:[#allocation3 + $0xfc] sm:$0xf] %vm562, %v4226
        %4259 = vst.msk [vmem:[#allocation3 + $0x110] sm:$0xf] %vm562, %v4227
        %4260 = vst.msk [vmem:[#allocation3 + $0x124] sm:$0xf] %vm562, %v4228
        %4261 = vst.msk [vmem:[#allocation3 + $0x138] sm:$0xf] %vm562, %v4229
        %4262 = vst.msk [vmem:[#allocation3 + $0x14c] sm:$0xf] %vm562, %v4230
        %4263 = vst.msk [vmem:[#allocation3 + $0x160] sm:$0xf] %vm562, %v4231
        %4264 = vst.msk [vmem:[#allocation3 + $0x174] sm:$0xf] %vm562, %v4232
        %4265 = vst.msk [vmem:[#allocation3 + $0x188] sm:$0xf] %vm562, %v4233
        %4266 = vst.msk [vmem:[#allocation3 + $0x19c] sm:$0xf] %vm562, %v4234
        %4267 = vst.msk [vmem:[#allocation3 + $0x1b0] sm:$0xf] %vm562, %v4235
        %4268 = vst.msk [vmem:[#allocation3 + $0x1c4] sm:$0xf] %vm562, %v4236
        %4269 = vst.msk [vmem:[#allocation3 + $0x1d8] sm:$0xf] %vm562, %v4237
        %4270 = vst.msk [vmem:[#allocation3 + $0x1ec] sm:$0xf] %vm562, %v4238
        %4271 = vst.msk [vmem:[#allocation3 + $0x200] sm:$0xf] %vm562, %v4239
        %4272 = vst.msk [vmem:[#allocation3 + $0x214] sm:$0xf] %vm562, %v4240
        %4273 = vst.msk [vmem:[#allocation3 + $0x228] sm:$0xf] %vm562, %v4241
        %4274 = vst.msk [vmem:[#allocation3 + $0x23c] sm:$0xf] %vm562, %v4242
        %4275 = vst.msk [vmem:[#allocation3 + $0x250] sm:$0xf] %vm562, %v4243
        %4276 = vst.msk [vmem:[#allocation3 + $0x264] sm:$0xf] %vm562, %v4244
        %4277 = vst.msk [vmem:[#allocation3 + $0x278] sm:$0xf] %vm562, %v4245
        %v4278 = vld [vmem:[%s1460 + $0x1] sm:$0xff]
        %v4279 = vld [vmem:[%s1460 + $0x9] sm:$0xff]
        %v4280 = vld [vmem:[%s1460 + $0x19] sm:$0xff]
        %v4281 = vld [vmem:[%s1460 + $0x21] sm:$0xff]
        %v4282 = vld [vmem:[%s1460 + $0x31] sm:$0xff]
        %v4283 = vld [vmem:[%s1460 + $0x39] sm:$0xff]
        %v4284 = vld [vmem:[%s1460 + $0x49] sm:$0xff]
        %v4285 = vld [vmem:[%s1460 + $0x51] sm:$0xff]
        %v4286 = vld [vmem:[%s1460 + $0x61] sm:$0xff]
        %v4287 = vld [vmem:[%s1460 + $0x69] sm:$0xff]
        %v4288 = vld [vmem:[%s1460 + $0x79] sm:$0xff]
        %v4289 = vld [vmem:[%s1460 + $0x81] sm:$0xff]
        %v4290 = vld [vmem:[%s1460 + $0x91] sm:$0xff]
        %v4291 = vld [vmem:[%s1460 + $0x99] sm:$0xff]
        %v4292 = vld [vmem:[%s1460 + $0xa9] sm:$0xff]
        %v4293 = vld [vmem:[%s1460 + $0xb1] sm:$0xff]
        %v4294 = vld [vmem:[%s1460 + $0xc1] sm:$0xff]
        %v4295 = vld [vmem:[%s1460 + $0xc9] sm:$0xff]
        %v4296 = vld [vmem:[%s1460 + $0xd9] sm:$0xff]
        %v4297 = vld [vmem:[%s1460 + $0xe1] sm:$0xff]
        %v4298 = vld [vmem:[%s1460 + $0xf1] sm:$0xff]
        %v4299 = vld [vmem:[%s1460 + $0xf9] sm:$0xff]
        %v4300 = vld [vmem:[%s1460 + $0x109] sm:$0xff]
        %v4301 = vld [vmem:[%s1460 + $0x111] sm:$0xff]
        %v4302 = vld [vmem:[%s1460 + $0x121] sm:$0xff]
        %v4303 = vld [vmem:[%s1460 + $0x129] sm:$0xff]
        %v4304 = vld [vmem:[%s1460 + $0x139] sm:$0xff]
        %v4305 = vld [vmem:[%s1460 + $0x141] sm:$0xff]
        %v4306 = vld [vmem:[%s1460 + $0x151] sm:$0xff]
        %v4307 = vld [vmem:[%s1460 + $0x159] sm:$0xff]
        %v4308 = vld [vmem:[%s1460 + $0x169] sm:$0xff]
        %v4309 = vld [vmem:[%s1460 + $0x171] sm:$0xff]
        %v4310 = vpack.c.bf16 %v4278, %v4278
        %v4311 = vpack.c.bf16 %v4279, %v4279
        %v4312 = vpack.c.bf16 %v4280, %v4280
        %v4313 = vpack.c.bf16 %v4281, %v4281
        %v4314 = vpack.c.bf16 %v4282, %v4282
        %v4315 = vpack.c.bf16 %v4283, %v4283
        %v4316 = vpack.c.bf16 %v4284, %v4284
        %v4317 = vpack.c.bf16 %v4285, %v4285
        %v4318 = vpack.c.bf16 %v4286, %v4286
        %v4319 = vpack.c.bf16 %v4287, %v4287
        %v4320 = vpack.c.bf16 %v4288, %v4288
        %v4321 = vpack.c.bf16 %v4289, %v4289
        %v4322 = vpack.c.bf16 %v4290, %v4290
        %v4323 = vpack.c.bf16 %v4291, %v4291
        %v4324 = vpack.c.bf16 %v4292, %v4292
        %v4325 = vpack.c.bf16 %v4293, %v4293
        %v4326 = vpack.c.bf16 %v4294, %v4294
        %v4327 = vpack.c.bf16 %v4295, %v4295
        %v4328 = vpack.c.bf16 %v4296, %v4296
        %v4329 = vpack.c.bf16 %v4297, %v4297
        %v4330 = vpack.c.bf16 %v4298, %v4298
        %v4331 = vpack.c.bf16 %v4299, %v4299
        %v4332 = vpack.c.bf16 %v4300, %v4300
        %v4333 = vpack.c.bf16 %v4301, %v4301
        %v4334 = vpack.c.bf16 %v4302, %v4302
        %v4335 = vpack.c.bf16 %v4303, %v4303
        %v4336 = vpack.c.bf16 %v4304, %v4304
        %v4337 = vpack.c.bf16 %v4305, %v4305
        %v4338 = vpack.c.bf16 %v4306, %v4306
        %v4339 = vpack.c.bf16 %v4307, %v4307
        %v4340 = vpack.c.bf16 %v4308, %v4308
        %v4341 = vpack.c.bf16 %v4309, %v4309
        %4374 = vrot.lane.b32.xlu0 %v4310, 64
        %v4375 = vpop.permute.xlu0 %4374
        %4376 = vrot.lane.b32.xlu0 %v4311, 64
        %v4377 = vpop.permute.xlu0 %4376
        %4378 = vrot.lane.b32.xlu0 %v4312, 64
        %v4379 = vpop.permute.xlu0 %4378
        %4380 = vrot.lane.b32.xlu0 %v4313, 64
        %v4381 = vpop.permute.xlu0 %4380
        %4382 = vrot.lane.b32.xlu0 %v4314, 64
        %v4383 = vpop.permute.xlu0 %4382
        %4384 = vrot.lane.b32.xlu0 %v4315, 64
        %v4385 = vpop.permute.xlu0 %4384
        %4386 = vrot.lane.b32.xlu0 %v4316, 64
        %v4387 = vpop.permute.xlu0 %4386
        %4388 = vrot.lane.b32.xlu0 %v4317, 64
        %v4389 = vpop.permute.xlu0 %4388
        %4390 = vrot.lane.b32.xlu0 %v4318, 64
        %v4391 = vpop.permute.xlu0 %4390
        %4392 = vrot.lane.b32.xlu0 %v4319, 64
        %v4393 = vpop.permute.xlu0 %4392
        %4394 = vrot.lane.b32.xlu0 %v4320, 64
        %v4395 = vpop.permute.xlu0 %4394
        %4396 = vrot.lane.b32.xlu0 %v4321, 64
        %v4397 = vpop.permute.xlu0 %4396
        %4398 = vrot.lane.b32.xlu0 %v4322, 64
        %v4399 = vpop.permute.xlu0 %4398
        %4400 = vrot.lane.b32.xlu0 %v4323, 64
        %v4401 = vpop.permute.xlu0 %4400
        %4402 = vrot.lane.b32.xlu0 %v4324, 64
        %v4403 = vpop.permute.xlu0 %4402
        %4404 = vrot.lane.b32.xlu0 %v4325, 64
        %v4405 = vpop.permute.xlu0 %4404
        %4406 = vrot.lane.b32.xlu0 %v4326, 64
        %v4407 = vpop.permute.xlu0 %4406
        %4408 = vrot.lane.b32.xlu0 %v4327, 64
        %v4409 = vpop.permute.xlu0 %4408
        %4410 = vrot.lane.b32.xlu0 %v4328, 64
        %v4411 = vpop.permute.xlu0 %4410
        %4412 = vrot.lane.b32.xlu0 %v4329, 64
        %v4413 = vpop.permute.xlu0 %4412
        %4414 = vrot.lane.b32.xlu0 %v4330, 64
        %v4415 = vpop.permute.xlu0 %4414
        %4416 = vrot.lane.b32.xlu0 %v4331, 64
        %v4417 = vpop.permute.xlu0 %4416
        %4418 = vrot.lane.b32.xlu0 %v4332, 64
        %v4419 = vpop.permute.xlu0 %4418
        %4420 = vrot.lane.b32.xlu0 %v4333, 64
        %v4421 = vpop.permute.xlu0 %4420
        %4422 = vrot.lane.b32.xlu0 %v4334, 64
        %v4423 = vpop.permute.xlu0 %4422
        %4424 = vrot.lane.b32.xlu0 %v4335, 64
        %v4425 = vpop.permute.xlu0 %4424
        %4426 = vrot.lane.b32.xlu0 %v4336, 64
        %v4427 = vpop.permute.xlu0 %4426
        %4428 = vrot.lane.b32.xlu0 %v4337, 64
        %v4429 = vpop.permute.xlu0 %4428
        %4430 = vrot.lane.b32.xlu0 %v4338, 64
        %v4431 = vpop.permute.xlu0 %4430
        %4432 = vrot.lane.b32.xlu0 %v4339, 64
        %v4433 = vpop.permute.xlu0 %4432
        %4434 = vrot.lane.b32.xlu0 %v4340, 64
        %v4435 = vpop.permute.xlu0 %4434
        %4436 = vrot.lane.b32.xlu0 %v4341, 64
        %v4437 = vpop.permute.xlu0 %4436
        %4470 = vst.msk [vmem:[#allocation3 + $0xc] sm:$0xf] %vm787, %v4375
        %4471 = vst.msk [vmem:[#allocation3 + $0x20] sm:$0xf] %vm787, %v4377
        %4472 = vst.msk [vmem:[#allocation3 + $0x34] sm:$0xf] %vm787, %v4379
        %4473 = vst.msk [vmem:[#allocation3 + $0x48] sm:$0xf] %vm787, %v4381
        %4474 = vst.msk [vmem:[#allocation3 + $0x5c] sm:$0xf] %vm787, %v4383
        %4475 = vst.msk [vmem:[#allocation3 + $0x70] sm:$0xf] %vm787, %v4385
        %4476 = vst.msk [vmem:[#allocation3 + $0x84] sm:$0xf] %vm787, %v4387
        %4477 = vst.msk [vmem:[#allocation3 + $0x98] sm:$0xf] %vm787, %v4389
        %4478 = vst.msk [vmem:[#allocation3 + $0xac] sm:$0xf] %vm787, %v4391
        %4479 = vst.msk [vmem:[#allocation3 + $0xc0] sm:$0xf] %vm787, %v4393
        %4480 = vst.msk [vmem:[#allocation3 + $0xd4] sm:$0xf] %vm787, %v4395
        %4481 = vst.msk [vmem:[#allocation3 + $0xe8] sm:$0xf] %vm787, %v4397
        %4482 = vst.msk [vmem:[#allocation3 + $0xfc] sm:$0xf] %vm787, %v4399
        %4483 = vst.msk [vmem:[#allocation3 + $0x110] sm:$0xf] %vm787, %v4401
        %4484 = vst.msk [vmem:[#allocation3 + $0x124] sm:$0xf] %vm787, %v4403
        %4485 = vst.msk [vmem:[#allocation3 + $0x138] sm:$0xf] %vm787, %v4405
        %4486 = vst.msk [vmem:[#allocation3 + $0x14c] sm:$0xf] %vm787, %v4407
        %4487 = vst.msk [vmem:[#allocation3 + $0x160] sm:$0xf] %vm787, %v4409
        %4488 = vst.msk [vmem:[#allocation3 + $0x174] sm:$0xf] %vm787, %v4411
        %4489 = vst.msk [vmem:[#allocation3 + $0x188] sm:$0xf] %vm787, %v4413
        %4490 = vst.msk [vmem:[#allocation3 + $0x19c] sm:$0xf] %vm787, %v4415
        %4491 = vst.msk [vmem:[#allocation3 + $0x1b0] sm:$0xf] %vm787, %v4417
        %4492 = vst.msk [vmem:[#allocation3 + $0x1c4] sm:$0xf] %vm787, %v4419
        %4493 = vst.msk [vmem:[#allocation3 + $0x1d8] sm:$0xf] %vm787, %v4421
        %4494 = vst.msk [vmem:[#allocation3 + $0x1ec] sm:$0xf] %vm787, %v4423
        %4495 = vst.msk [vmem:[#allocation3 + $0x200] sm:$0xf] %vm787, %v4425
        %4496 = vst.msk [vmem:[#allocation3 + $0x214] sm:$0xf] %vm787, %v4427
        %4497 = vst.msk [vmem:[#allocation3 + $0x228] sm:$0xf] %vm787, %v4429
        %4498 = vst.msk [vmem:[#allocation3 + $0x23c] sm:$0xf] %vm787, %v4431
        %4499 = vst.msk [vmem:[#allocation3 + $0x250] sm:$0xf] %vm787, %v4433
        %4500 = vst.msk [vmem:[#allocation3 + $0x264] sm:$0xf] %vm787, %v4435
        %4501 = vst.msk [vmem:[#allocation3 + $0x278] sm:$0xf] %vm787, %v4437
        %v4502 = vld [vmem:[%s1460 + $0x2] sm:$0xff]
        %v4503 = vld [vmem:[%s1460 + $0xa] sm:$0xff]
        %v4504 = vld [vmem:[%s1460 + $0x1a] sm:$0xff]
        %v4505 = vld [vmem:[%s1460 + $0x22] sm:$0xff]
        %v4506 = vld [vmem:[%s1460 + $0x32] sm:$0xff]
        %v4507 = vld [vmem:[%s1460 + $0x3a] sm:$0xff]
        %v4508 = vld [vmem:[%s1460 + $0x4a] sm:$0xff]
        %v4509 = vld [vmem:[%s1460 + $0x52] sm:$0xff]
        %v4510 = vld [vmem:[%s1460 + $0x62] sm:$0xff]
        %v4511 = vld [vmem:[%s1460 + $0x6a] sm:$0xff]
        %v4512 = vld [vmem:[%s1460 + $0x7a] sm:$0xff]
        %v4513 = vld [vmem:[%s1460 + $0x82] sm:$0xff]
        %v4514 = vld [vmem:[%s1460 + $0x92] sm:$0xff]
        %v4515 = vld [vmem:[%s1460 + $0x9a] sm:$0xff]
        %v4516 = vld [vmem:[%s1460 + $0xaa] sm:$0xff]
        %v4517 = vld [vmem:[%s1460 + $0xb2] sm:$0xff]
        %v4518 = vld [vmem:[%s1460 + $0xc2] sm:$0xff]
        %v4519 = vld [vmem:[%s1460 + $0xca] sm:$0xff]
        %v4520 = vld [vmem:[%s1460 + $0xda] sm:$0xff]
        %v4521 = vld [vmem:[%s1460 + $0xe2] sm:$0xff]
        %v4522 = vld [vmem:[%s1460 + $0xf2] sm:$0xff]
        %v4523 = vld [vmem:[%s1460 + $0xfa] sm:$0xff]
        %v4524 = vld [vmem:[%s1460 + $0x10a] sm:$0xff]
        %v4525 = vld [vmem:[%s1460 + $0x112] sm:$0xff]
        %v4526 = vld [vmem:[%s1460 + $0x122] sm:$0xff]
        %v4527 = vld [vmem:[%s1460 + $0x12a] sm:$0xff]
        %v4528 = vld [vmem:[%s1460 + $0x13a] sm:$0xff]
        %v4529 = vld [vmem:[%s1460 + $0x142] sm:$0xff]
        %v4530 = vld [vmem:[%s1460 + $0x152] sm:$0xff]
        %v4531 = vld [vmem:[%s1460 + $0x15a] sm:$0xff]
        %v4532 = vld [vmem:[%s1460 + $0x16a] sm:$0xff]
        %v4533 = vld [vmem:[%s1460 + $0x172] sm:$0xff]
        %v4534 = vpack.c.bf16 %v4502, %v4502
        %v4535 = vpack.c.bf16 %v4503, %v4503
        %v4536 = vpack.c.bf16 %v4504, %v4504
        %v4537 = vpack.c.bf16 %v4505, %v4505
        %v4538 = vpack.c.bf16 %v4506, %v4506
        %v4539 = vpack.c.bf16 %v4507, %v4507
        %v4540 = vpack.c.bf16 %v4508, %v4508
        %v4541 = vpack.c.bf16 %v4509, %v4509
        %v4542 = vpack.c.bf16 %v4510, %v4510
        %v4543 = vpack.c.bf16 %v4511, %v4511
        %v4544 = vpack.c.bf16 %v4512, %v4512
        %v4545 = vpack.c.bf16 %v4513, %v4513
        %v4546 = vpack.c.bf16 %v4514, %v4514
        %v4547 = vpack.c.bf16 %v4515, %v4515
        %v4548 = vpack.c.bf16 %v4516, %v4516
        %v4549 = vpack.c.bf16 %v4517, %v4517
        %v4550 = vpack.c.bf16 %v4518, %v4518
        %v4551 = vpack.c.bf16 %v4519, %v4519
        %v4552 = vpack.c.bf16 %v4520, %v4520
        %v4553 = vpack.c.bf16 %v4521, %v4521
        %v4554 = vpack.c.bf16 %v4522, %v4522
        %v4555 = vpack.c.bf16 %v4523, %v4523
        %v4556 = vpack.c.bf16 %v4524, %v4524
        %v4557 = vpack.c.bf16 %v4525, %v4525
        %v4558 = vpack.c.bf16 %v4526, %v4526
        %v4559 = vpack.c.bf16 %v4527, %v4527
        %v4560 = vpack.c.bf16 %v4528, %v4528
        %v4561 = vpack.c.bf16 %v4529, %v4529
        %v4562 = vpack.c.bf16 %v4530, %v4530
        %v4563 = vpack.c.bf16 %v4531, %v4531
        %v4564 = vpack.c.bf16 %v4532, %v4532
        %v4565 = vpack.c.bf16 %v4533, %v4533
        %4566 = vst.msk [vmem:[#allocation3 + $0x10] sm:$0xf] %vm562, %v4534
        %4567 = vst.msk [vmem:[#allocation3 + $0x24] sm:$0xf] %vm562, %v4535
        %4568 = vst.msk [vmem:[#allocation3 + $0x38] sm:$0xf] %vm562, %v4536
        %4569 = vst.msk [vmem:[#allocation3 + $0x4c] sm:$0xf] %vm562, %v4537
        %4570 = vst.msk [vmem:[#allocation3 + $0x60] sm:$0xf] %vm562, %v4538
        %4571 = vst.msk [vmem:[#allocation3 + $0x74] sm:$0xf] %vm562, %v4539
        %4572 = vst.msk [vmem:[#allocation3 + $0x88] sm:$0xf] %vm562, %v4540
        %4573 = vst.msk [vmem:[#allocation3 + $0x9c] sm:$0xf] %vm562, %v4541
        %4574 = vst.msk [vmem:[#allocation3 + $0xb0] sm:$0xf] %vm562, %v4542
        %4575 = vst.msk [vmem:[#allocation3 + $0xc4] sm:$0xf] %vm562, %v4543
        %4576 = vst.msk [vmem:[#allocation3 + $0xd8] sm:$0xf] %vm562, %v4544
        %4577 = vst.msk [vmem:[#allocation3 + $0xec] sm:$0xf] %vm562, %v4545
        %4578 = vst.msk [vmem:[#allocation3 + $0x100] sm:$0xf] %vm562, %v4546
        %4579 = vst.msk [vmem:[#allocation3 + $0x114] sm:$0xf] %vm562, %v4547
        %4580 = vst.msk [vmem:[#allocation3 + $0x128] sm:$0xf] %vm562, %v4548
        %4581 = vst.msk [vmem:[#allocation3 + $0x13c] sm:$0xf] %vm562, %v4549
        %4582 = vst.msk [vmem:[#allocation3 + $0x150] sm:$0xf] %vm562, %v4550
        %4583 = vst.msk [vmem:[#allocation3 + $0x164] sm:$0xf] %vm562, %v4551
        %4584 = vst.msk [vmem:[#allocation3 + $0x178] sm:$0xf] %vm562, %v4552
        %4585 = vst.msk [vmem:[#allocation3 + $0x18c] sm:$0xf] %vm562, %v4553
        %4586 = vst.msk [vmem:[#allocation3 + $0x1a0] sm:$0xf] %vm562, %v4554
        %4587 = vst.msk [vmem:[#allocation3 + $0x1b4] sm:$0xf] %vm562, %v4555
        %4588 = vst.msk [vmem:[#allocation3 + $0x1c8] sm:$0xf] %vm562, %v4556
        %4589 = vst.msk [vmem:[#allocation3 + $0x1dc] sm:$0xf] %vm562, %v4557
        %4590 = vst.msk [vmem:[#allocation3 + $0x1f0] sm:$0xf] %vm562, %v4558
        %4591 = vst.msk [vmem:[#allocation3 + $0x204] sm:$0xf] %vm562, %v4559
        %4592 = vst.msk [vmem:[#allocation3 + $0x218] sm:$0xf] %vm562, %v4560
        %4593 = vst.msk [vmem:[#allocation3 + $0x22c] sm:$0xf] %vm562, %v4561
        %4594 = vst.msk [vmem:[#allocation3 + $0x240] sm:$0xf] %vm562, %v4562
        %4595 = vst.msk [vmem:[#allocation3 + $0x254] sm:$0xf] %vm562, %v4563
        %4596 = vst.msk [vmem:[#allocation3 + $0x268] sm:$0xf] %vm562, %v4564
        %4597 = vst.msk [vmem:[#allocation3 + $0x27c] sm:$0xf] %vm562, %v4565
        %v4598 = vld [vmem:[#allocation3] sm:$0xff]
        %v4599 = vld [vmem:[#allocation3 + $0x8] sm:$0xff]
        %v4600 = vld [vmem:[#allocation3 + $0x10] sm:$0xf]
        %v4601 = vld [vmem:[#allocation3 + $0x14] sm:$0xff]
        %v4602 = vld [vmem:[#allocation3 + $0x1c] sm:$0xff]
        %v4603 = vld [vmem:[#allocation3 + $0x24] sm:$0xf]
        %v4604 = vld [vmem:[#allocation3 + $0x28] sm:$0xff]
        %v4605 = vld [vmem:[#allocation3 + $0x30] sm:$0xff]
        %v4606 = vld [vmem:[#allocation3 + $0x38] sm:$0xf]
        %v4607 = vld [vmem:[#allocation3 + $0x3c] sm:$0xff]
        %v4608 = vld [vmem:[#allocation3 + $0x44] sm:$0xff]
        %v4609 = vld [vmem:[#allocation3 + $0x4c] sm:$0xf]
        %v4610 = vld [vmem:[#allocation3 + $0x50] sm:$0xff]
        %v4611 = vld [vmem:[#allocation3 + $0x58] sm:$0xff]
        %v4612 = vld [vmem:[#allocation3 + $0x60] sm:$0xf]
        %v4613 = vld [vmem:[#allocation3 + $0x64] sm:$0xff]
        %v4614 = vld [vmem:[#allocation3 + $0x6c] sm:$0xff]
        %v4615 = vld [vmem:[#allocation3 + $0x74] sm:$0xf]
        %v4616 = vld [vmem:[#allocation3 + $0x78] sm:$0xff]
        %v4617 = vld [vmem:[#allocation3 + $0x80] sm:$0xff]
        %v4618 = vld [vmem:[#allocation3 + $0x88] sm:$0xf]
        %v4619 = vld [vmem:[#allocation3 + $0x8c] sm:$0xff]
        %v4620 = vld [vmem:[#allocation3 + $0x94] sm:$0xff]
        %v4621 = vld [vmem:[#allocation3 + $0x9c] sm:$0xf]
        %v4622 = vld [vmem:[#allocation3 + $0xa0] sm:$0xff]
        %v4623 = vld [vmem:[#allocation3 + $0xa8] sm:$0xff]
        %v4624 = vld [vmem:[#allocation3 + $0xb0] sm:$0xf]
        %v4625 = vld [vmem:[#allocation3 + $0xb4] sm:$0xff]
        %v4626 = vld [vmem:[#allocation3 + $0xbc] sm:$0xff]
        %v4627 = vld [vmem:[#allocation3 + $0xc4] sm:$0xf]
        %v4628 = vld [vmem:[#allocation3 + $0xc8] sm:$0xff]
        %v4629 = vld [vmem:[#allocation3 + $0xd0] sm:$0xff]
        %v4630 = vld [vmem:[#allocation3 + $0xd8] sm:$0xf]
        %v4631 = vld [vmem:[#allocation3 + $0xdc] sm:$0xff]
        %v4632 = vld [vmem:[#allocation3 + $0xe4] sm:$0xff]
        %v4633 = vld [vmem:[#allocation3 + $0xec] sm:$0xf]
        %v4634 = vld [vmem:[#allocation3 + $0xf0] sm:$0xff]
        %v4635 = vld [vmem:[#allocation3 + $0xf8] sm:$0xff]
        %v4636 = vld [vmem:[#allocation3 + $0x100] sm:$0xf]
        %v4637 = vld [vmem:[#allocation3 + $0x104] sm:$0xff]
        %v4638 = vld [vmem:[#allocation3 + $0x10c] sm:$0xff]
        %v4639 = vld [vmem:[#allocation3 + $0x114] sm:$0xf]
        %v4640 = vld [vmem:[#allocation3 + $0x118] sm:$0xff]
        %v4641 = vld [vmem:[#allocation3 + $0x120] sm:$0xff]
        %v4642 = vld [vmem:[#allocation3 + $0x128] sm:$0xf]
        %v4643 = vld [vmem:[#allocation3 + $0x12c] sm:$0xff]
        %v4644 = vld [vmem:[#allocation3 + $0x134] sm:$0xff]
        %v4645 = vld [vmem:[#allocation3 + $0x13c] sm:$0xf]
        %v4646 = vld [vmem:[#allocation3 + $0x140] sm:$0xff]
        %v4647 = vld [vmem:[#allocation3 + $0x148] sm:$0xff]
        %v4648 = vld [vmem:[#allocation3 + $0x150] sm:$0xf]
        %v4649 = vld [vmem:[#allocation3 + $0x154] sm:$0xff]
        %v4650 = vld [vmem:[#allocation3 + $0x15c] sm:$0xff]
        %v4651 = vld [vmem:[#allocation3 + $0x164] sm:$0xf]
        %v4652 = vld [vmem:[#allocation3 + $0x168] sm:$0xff]
        %v4653 = vld [vmem:[#allocation3 + $0x170] sm:$0xff]
        %v4654 = vld [vmem:[#allocation3 + $0x178] sm:$0xf]
        %v4655 = vld [vmem:[#allocation3 + $0x17c] sm:$0xff]
        %v4656 = vld [vmem:[#allocation3 + $0x184] sm:$0xff]
        %v4657 = vld [vmem:[#allocation3 + $0x18c] sm:$0xf]
        %v4658 = vld [vmem:[#allocation3 + $0x190] sm:$0xff]
        %v4659 = vld [vmem:[#allocation3 + $0x198] sm:$0xff]
        %v4660 = vld [vmem:[#allocation3 + $0x1a0] sm:$0xf]
        %v4661 = vld [vmem:[#allocation3 + $0x1a4] sm:$0xff]
        %v4662 = vld [vmem:[#allocation3 + $0x1ac] sm:$0xff]
        %v4663 = vld [vmem:[#allocation3 + $0x1b4] sm:$0xf]
        %v4664 = vld [vmem:[#allocation3 + $0x1b8] sm:$0xff]
        %v4665 = vld [vmem:[#allocation3 + $0x1c0] sm:$0xff]
        %v4666 = vld [vmem:[#allocation3 + $0x1c8] sm:$0xf]
        %v4667 = vld [vmem:[#allocation3 + $0x1cc] sm:$0xff]
        %v4668 = vld [vmem:[#allocation3 + $0x1d4] sm:$0xff]
        %v4669 = vld [vmem:[#allocation3 + $0x1dc] sm:$0xf]
        %v4670 = vld [vmem:[#allocation3 + $0x1e0] sm:$0xff]
        %v4671 = vld [vmem:[#allocation3 + $0x1e8] sm:$0xff]
        %v4672 = vld [vmem:[#allocation3 + $0x1f0] sm:$0xf]
        %v4673 = vld [vmem:[#allocation3 + $0x1f4] sm:$0xff]
        %v4674 = vld [vmem:[#allocation3 + $0x1fc] sm:$0xff]
        %v4675 = vld [vmem:[#allocation3 + $0x204] sm:$0xf]
        %v4676 = vld [vmem:[#allocation3 + $0x208] sm:$0xff]
        %v4677 = vld [vmem:[#allocation3 + $0x210] sm:$0xff]
        %v4678 = vld [vmem:[#allocation3 + $0x218] sm:$0xf]
        %v4679 = vld [vmem:[#allocation3 + $0x21c] sm:$0xff]
        %v4680 = vld [vmem:[#allocation3 + $0x224] sm:$0xff]
        %v4681 = vld [vmem:[#allocation3 + $0x22c] sm:$0xf]
        %v4682 = vld [vmem:[#allocation3 + $0x230] sm:$0xff]
        %v4683 = vld [vmem:[#allocation3 + $0x238] sm:$0xff]
        %v4684 = vld [vmem:[#allocation3 + $0x240] sm:$0xf]
        %v4685 = vld [vmem:[#allocation3 + $0x244] sm:$0xff]
        %v4686 = vld [vmem:[#allocation3 + $0x24c] sm:$0xff]
        %v4687 = vld [vmem:[#allocation3 + $0x254] sm:$0xf]
        %v4688 = vld [vmem:[#allocation3 + $0x258] sm:$0xff]
        %v4689 = vld [vmem:[#allocation3 + $0x260] sm:$0xff]
        %v4690 = vld [vmem:[#allocation3 + $0x268] sm:$0xf]
        %v4691 = vld [vmem:[#allocation3 + $0x26c] sm:$0xff]
        %v4692 = vld [vmem:[#allocation3 + $0x274] sm:$0xff]
        %v4693 = vld [vmem:[#allocation3 + $0x27c] sm:$0xf]
        %v4694 = vld [vmem:[#allocation9] sm:$0xf]
        %v4695 = vld [vmem:[#allocation9 + $0x4] sm:$0xf]
        %v4696 = vld [vmem:[#allocation9 + $0x8] sm:$0xf]
        %v4697 = vld [vmem:[#allocation9 + $0xc] sm:$0xf]
        %v4698 = vld [vmem:[#allocation9 + $0x10] sm:$0xf]
        %v4699 = vld [vmem:[#allocation9 + $0x14] sm:$0xf]
        %v4700 = vld [vmem:[#allocation9 + $0x18] sm:$0xf]
        %v4701 = vld [vmem:[#allocation9 + $0x1c] sm:$0xf]
        %v4702 = vld [vmem:[#allocation9 + $0x20] sm:$0xf]
        %v4703 = vld [vmem:[#allocation9 + $0x24] sm:$0xf]
        %v4704 = vld [vmem:[#allocation9 + $0x28] sm:$0xf]
        %v4705 = vld [vmem:[#allocation9 + $0x2c] sm:$0xf]
        %v4706 = vld [vmem:[#allocation9 + $0x30] sm:$0xf]
        %v4707 = vld [vmem:[#allocation9 + $0x34] sm:$0xf]
        %v4708 = vld [vmem:[#allocation9 + $0x38] sm:$0xf]
        %v4709 = vld [vmem:[#allocation9 + $0x3c] sm:$0xf]
        %v4710 = vld [vmem:[#allocation9 + $0x40] sm:$0xf]
        %v4711 = vld [vmem:[#allocation9 + $0x44] sm:$0xf]
        %v4712 = vld [vmem:[#allocation9 + $0x48] sm:$0xf]
        %v4713 = vld [vmem:[#allocation9 + $0x4c] sm:$0xf]
        %v4714 = vld [vmem:[#allocation9 + $0x50] sm:$0xf]
        %v4715 = vld [vmem:[#allocation9 + $0x54] sm:$0xf]
        %v4716 = vld [vmem:[#allocation9 + $0x58] sm:$0xf]
        %v4717 = vld [vmem:[#allocation9 + $0x5c] sm:$0xf]
        %v4718 = vld [vmem:[#allocation9 + $0x60] sm:$0xf]
        %v4719 = vld [vmem:[#allocation9 + $0x64] sm:$0xf]
        %v4720 = vld [vmem:[#allocation9 + $0x68] sm:$0xf]
        %v4721 = vld [vmem:[#allocation9 + $0x6c] sm:$0xf]
        %v4722 = vld [vmem:[#allocation9 + $0x70] sm:$0xf]
        %v4723 = vld [vmem:[#allocation9 + $0x74] sm:$0xf]
        %v4724 = vld [vmem:[#allocation9 + $0x78] sm:$0xf]
        %v4725 = vld [vmem:[#allocation9 + $0x7c] sm:$0xf]
        %v4726 = vld [vmem:[#allocation9 + $0x80] sm:$0xf]
        %v4727 = vld [vmem:[#allocation9 + $0x84] sm:$0xf]
        %v4728 = vld [vmem:[#allocation9 + $0x88] sm:$0xf]
        %v4729 = vld [vmem:[#allocation9 + $0x8c] sm:$0xf]
        %v4730 = vld [vmem:[#allocation9 + $0x90] sm:$0xf]
        %v4731 = vld [vmem:[#allocation9 + $0x94] sm:$0xf]
        %v4732 = vld [vmem:[#allocation9 + $0x98] sm:$0xf]
        %v4733 = vld [vmem:[#allocation9 + $0x9c] sm:$0xf]
        %v4734 = vld [vmem:[#allocation9 + $0xa0] sm:$0xf]
        %v4735 = vld [vmem:[#allocation9 + $0xa4] sm:$0xf]
        %v4736 = vld [vmem:[#allocation9 + $0xa8] sm:$0xf]
        %v4737 = vld [vmem:[#allocation9 + $0xac] sm:$0xf]
        %v4738 = vld [vmem:[#allocation9 + $0xb0] sm:$0xf]
        %v4739 = vld [vmem:[#allocation9 + $0xb4] sm:$0xf]
        %v4740 = vld [vmem:[#allocation9 + $0xb8] sm:$0xf]
        %v4741 = vld [vmem:[#allocation9 + $0xbc] sm:$0xf]
        %v4742 = vld [vmem:[#allocation9 + $0xc0] sm:$0xf]
        %v4743 = vld [vmem:[#allocation9 + $0xc4] sm:$0xf]
        %v4744 = vld [vmem:[#allocation9 + $0xc8] sm:$0xf]
        %v4745 = vld [vmem:[#allocation9 + $0xcc] sm:$0xf]
        %v4746 = vld [vmem:[#allocation9 + $0xd0] sm:$0xf]
        %v4747 = vld [vmem:[#allocation9 + $0xd4] sm:$0xf]
        %v4748 = vld [vmem:[#allocation9 + $0xd8] sm:$0xf]
        %v4749 = vld [vmem:[#allocation9 + $0xdc] sm:$0xf]
        %v4750 = vld [vmem:[#allocation9 + $0xe0] sm:$0xf]
        %v4751 = vld [vmem:[#allocation9 + $0xe4] sm:$0xf]
        %v4752 = vld [vmem:[#allocation9 + $0xe8] sm:$0xf]
        %v4753 = vld [vmem:[#allocation9 + $0xec] sm:$0xf]
        %v4754 = vld [vmem:[#allocation9 + $0xf0] sm:$0xf]
        %v4755 = vld [vmem:[#allocation9 + $0xf4] sm:$0xf]
        %v4756 = vld [vmem:[#allocation9 + $0xf8] sm:$0xf]
        %v4757 = vld [vmem:[#allocation9 + $0xfc] sm:$0xf]
        %v4758 = vld [vmem:[#allocation9 + $0x100] sm:$0xf]
        %v4759 = vld [vmem:[#allocation9 + $0x104] sm:$0xf]
        %v4760 = vld [vmem:[#allocation9 + $0x108] sm:$0xf]
        %v4761 = vld [vmem:[#allocation9 + $0x10c] sm:$0xf]
        %v4762 = vld [vmem:[#allocation9 + $0x110] sm:$0xf]
        %v4763 = vld [vmem:[#allocation9 + $0x114] sm:$0xf]
        %v4764 = vld [vmem:[#allocation9 + $0x118] sm:$0xf]
        %v4765 = vld [vmem:[#allocation9 + $0x11c] sm:$0xf]
        %v4766 = vld [vmem:[%s4] sm:$0x1]
        %v4768 = vperm.slane %v4766, 0
        %v4866 = vunpack.c.l.b16 %v4598
        %v4867 = vunpack.c.h.b16 %v4598
        %v4868 = vunpack.c.l.b16 %v4599
        %v4869 = vunpack.c.h.b16 %v4599
        %v4870 = vunpack.c.l.b16 %v4600
        %v4871 = vunpack.c.l.b16 %v4601
        %v4872 = vunpack.c.h.b16 %v4601
        %v4873 = vunpack.c.l.b16 %v4602
        %v4874 = vunpack.c.h.b16 %v4602
        %v4875 = vunpack.c.l.b16 %v4603
        %v4876 = vunpack.c.l.b16 %v4604
        %v4877 = vunpack.c.h.b16 %v4604
        %v4878 = vunpack.c.l.b16 %v4605
        %v4879 = vunpack.c.h.b16 %v4605
        %v4880 = vunpack.c.l.b16 %v4606
        %v4881 = vunpack.c.l.b16 %v4607
        %v4882 = vunpack.c.h.b16 %v4607
        %v4883 = vunpack.c.l.b16 %v4608
        %v4884 = vunpack.c.h.b16 %v4608
        %v4885 = vunpack.c.l.b16 %v4609
        %v4886 = vunpack.c.l.b16 %v4610
        %v4887 = vunpack.c.h.b16 %v4610
        %v4888 = vunpack.c.l.b16 %v4611
        %v4889 = vunpack.c.h.b16 %v4611
        %v4890 = vunpack.c.l.b16 %v4612
        %v4891 = vunpack.c.l.b16 %v4613
        %v4892 = vunpack.c.h.b16 %v4613
        %v4893 = vunpack.c.l.b16 %v4614
        %v4894 = vunpack.c.h.b16 %v4614
        %v4895 = vunpack.c.l.b16 %v4615
        %v4896 = vunpack.c.l.b16 %v4616
        %v4897 = vunpack.c.h.b16 %v4616
        %v4898 = vunpack.c.l.b16 %v4617
        %v4899 = vunpack.c.h.b16 %v4617
        %v4900 = vunpack.c.l.b16 %v4618
        %v4901 = vunpack.c.l.b16 %v4619
        %v4902 = vunpack.c.h.b16 %v4619
        %v4903 = vunpack.c.l.b16 %v4620
        %v4904 = vunpack.c.h.b16 %v4620
        %v4905 = vunpack.c.l.b16 %v4621
        %v4906 = vunpack.c.l.b16 %v4622
        %v4907 = vunpack.c.h.b16 %v4622
        %v4908 = vunpack.c.l.b16 %v4623
        %v4909 = vunpack.c.h.b16 %v4623
        %v4910 = vunpack.c.l.b16 %v4624
        %v4911 = vunpack.c.l.b16 %v4625
        %v4912 = vunpack.c.h.b16 %v4625
        %v4913 = vunpack.c.l.b16 %v4626
        %v4914 = vunpack.c.h.b16 %v4626
        %v4915 = vunpack.c.l.b16 %v4627
        %v4916 = vunpack.c.l.b16 %v4628
        %v4917 = vunpack.c.h.b16 %v4628
        %v4918 = vunpack.c.l.b16 %v4629
        %v4919 = vunpack.c.h.b16 %v4629
        %v4920 = vunpack.c.l.b16 %v4630
        %v4921 = vunpack.c.l.b16 %v4631
        %v4922 = vunpack.c.h.b16 %v4631
        %v4923 = vunpack.c.l.b16 %v4632
        %v4924 = vunpack.c.h.b16 %v4632
        %v4925 = vunpack.c.l.b16 %v4633
        %v4926 = vunpack.c.l.b16 %v4634
        %v4927 = vunpack.c.h.b16 %v4634
        %v4928 = vunpack.c.l.b16 %v4635
        %v4929 = vunpack.c.h.b16 %v4635
        %v4930 = vunpack.c.l.b16 %v4636
        %v4931 = vunpack.c.l.b16 %v4637
        %v4932 = vunpack.c.h.b16 %v4637
        %v4933 = vunpack.c.l.b16 %v4638
        %v4934 = vunpack.c.h.b16 %v4638
        %v4935 = vunpack.c.l.b16 %v4639
        %v4936 = vunpack.c.l.b16 %v4640
        %v4937 = vunpack.c.h.b16 %v4640
        %v4938 = vunpack.c.l.b16 %v4641
        %v4939 = vunpack.c.h.b16 %v4641
        %v4940 = vunpack.c.l.b16 %v4642
        %v4941 = vunpack.c.l.b16 %v4643
        %v4942 = vunpack.c.h.b16 %v4643
        %v4943 = vunpack.c.l.b16 %v4644
        %v4944 = vunpack.c.h.b16 %v4644
        %v4945 = vunpack.c.l.b16 %v4645
        %v4946 = vunpack.c.l.b16 %v4646
        %v4947 = vunpack.c.h.b16 %v4646
        %v4948 = vunpack.c.l.b16 %v4647
        %v4949 = vunpack.c.h.b16 %v4647
        %v4950 = vunpack.c.l.b16 %v4648
        %v4951 = vunpack.c.l.b16 %v4649
        %v4952 = vunpack.c.h.b16 %v4649
        %v4953 = vunpack.c.l.b16 %v4650
        %v4954 = vunpack.c.h.b16 %v4650
        %v4955 = vunpack.c.l.b16 %v4651
        %v4956 = vunpack.c.l.b16 %v4652
        %v4957 = vunpack.c.h.b16 %v4652
        %v4958 = vunpack.c.l.b16 %v4653
        %v4959 = vunpack.c.h.b16 %v4653
        %v4960 = vunpack.c.l.b16 %v4654
        %v4961 = vunpack.c.l.b16 %v4655
        %v4962 = vunpack.c.h.b16 %v4655
        %v4963 = vunpack.c.l.b16 %v4656
        %v4964 = vunpack.c.h.b16 %v4656
        %v4965 = vunpack.c.l.b16 %v4657
        %v4966 = vunpack.c.l.b16 %v4658
        %v4967 = vunpack.c.h.b16 %v4658
        %v4968 = vunpack.c.l.b16 %v4659
        %v4969 = vunpack.c.h.b16 %v4659
        %v4970 = vunpack.c.l.b16 %v4660
        %v4971 = vunpack.c.l.b16 %v4661
        %v4972 = vunpack.c.h.b16 %v4661
        %v4973 = vunpack.c.l.b16 %v4662
        %v4974 = vunpack.c.h.b16 %v4662
        %v4975 = vunpack.c.l.b16 %v4663
        %v4976 = vunpack.c.l.b16 %v4664
        %v4977 = vunpack.c.h.b16 %v4664
        %v4978 = vunpack.c.l.b16 %v4665
        %v4979 = vunpack.c.h.b16 %v4665
        %v4980 = vunpack.c.l.b16 %v4666
        %v4981 = vunpack.c.l.b16 %v4667
        %v4982 = vunpack.c.h.b16 %v4667
        %v4983 = vunpack.c.l.b16 %v4668
        %v4984 = vunpack.c.h.b16 %v4668
        %v4985 = vunpack.c.l.b16 %v4669
        %v4986 = vunpack.c.l.b16 %v4670
        %v4987 = vunpack.c.h.b16 %v4670
        %v4988 = vunpack.c.l.b16 %v4671
        %v4989 = vunpack.c.h.b16 %v4671
        %v4990 = vunpack.c.l.b16 %v4672
        %v4991 = vunpack.c.l.b16 %v4673
        %v4992 = vunpack.c.h.b16 %v4673
        %v4993 = vunpack.c.l.b16 %v4674
        %v4994 = vunpack.c.h.b16 %v4674
        %v4995 = vunpack.c.l.b16 %v4675
        %v4996 = vunpack.c.l.b16 %v4676
        %v4997 = vunpack.c.h.b16 %v4676
        %v4998 = vunpack.c.l.b16 %v4677
        %v4999 = vunpack.c.h.b16 %v4677
        %v5000 = vunpack.c.l.b16 %v4678
        %v5001 = vunpack.c.l.b16 %v4679
        %v5002 = vunpack.c.h.b16 %v4679
        %v5003 = vunpack.c.l.b16 %v4680
        %v5004 = vunpack.c.h.b16 %v4680
        %v5005 = vunpack.c.l.b16 %v4681
        %v5006 = vunpack.c.l.b16 %v4682
        %v5007 = vunpack.c.h.b16 %v4682
        %v5008 = vunpack.c.l.b16 %v4683
        %v5009 = vunpack.c.h.b16 %v4683
        %v5010 = vunpack.c.l.b16 %v4684
        %v5011 = vunpack.c.l.b16 %v4685
        %v5012 = vunpack.c.h.b16 %v4685
        %v5013 = vunpack.c.l.b16 %v4686
        %v5014 = vunpack.c.h.b16 %v4686
        %v5015 = vunpack.c.l.b16 %v4687
        %v5016 = vunpack.c.l.b16 %v4688
        %v5017 = vunpack.c.h.b16 %v4688
        %v5018 = vunpack.c.l.b16 %v4689
        %v5019 = vunpack.c.h.b16 %v4689
        %v5020 = vunpack.c.l.b16 %v4690
        %v5021 = vunpack.c.l.b16 %v4691
        %v5022 = vunpack.c.h.b16 %v4691
        %v5023 = vunpack.c.l.b16 %v4692
        %v5024 = vunpack.c.h.b16 %v4692
        %v5025 = vunpack.c.l.b16 %v4693
        %v5026 = vpack.c.b16 %v4871, %v4866
        %v5027 = vpack.c.b16 %v4872, %v4867
        %v5028 = vpack.c.b16 %v4873, %v4868
        %v5029 = vpack.c.b16 %v4874, %v4869
        %v5030 = vpack.c.b16 %v4875, %v4870
        %v5031 = vpack.c.b16 %v4881, %v4876
        %v5032 = vpack.c.b16 %v4882, %v4877
        %v5033 = vpack.c.b16 %v4883, %v4878
        %v5034 = vpack.c.b16 %v4884, %v4879
        %v5035 = vpack.c.b16 %v4885, %v4880
        %v5036 = vpack.c.b16 %v4891, %v4886
        %v5037 = vpack.c.b16 %v4892, %v4887
        %v5038 = vpack.c.b16 %v4893, %v4888
        %v5039 = vpack.c.b16 %v4894, %v4889
        %v5040 = vpack.c.b16 %v4895, %v4890
        %v5041 = vpack.c.b16 %v4901, %v4896
        %v5042 = vpack.c.b16 %v4902, %v4897
        %v5043 = vpack.c.b16 %v4903, %v4898
        %v5044 = vpack.c.b16 %v4904, %v4899
        %v5045 = vpack.c.b16 %v4905, %v4900
        %v5046 = vpack.c.b16 %v4911, %v4906
        %v5047 = vpack.c.b16 %v4912, %v4907
        %v5048 = vpack.c.b16 %v4913, %v4908
        %v5049 = vpack.c.b16 %v4914, %v4909
        %v5050 = vpack.c.b16 %v4915, %v4910
        %v5051 = vpack.c.b16 %v4921, %v4916
        %v5052 = vpack.c.b16 %v4922, %v4917
        %v5053 = vpack.c.b16 %v4923, %v4918
        %v5054 = vpack.c.b16 %v4924, %v4919
        %v5055 = vpack.c.b16 %v4925, %v4920
        %v5056 = vpack.c.b16 %v4931, %v4926
        %v5057 = vpack.c.b16 %v4932, %v4927
        %v5058 = vpack.c.b16 %v4933, %v4928
        %v5059 = vpack.c.b16 %v4934, %v4929
        %v5060 = vpack.c.b16 %v4935, %v4930
        %v5061 = vpack.c.b16 %v4941, %v4936
        %v5062 = vpack.c.b16 %v4942, %v4937
        %v5063 = vpack.c.b16 %v4943, %v4938
        %v5064 = vpack.c.b16 %v4944, %v4939
        %v5065 = vpack.c.b16 %v4945, %v4940
        %v5066 = vpack.c.b16 %v4951, %v4946
        %v5067 = vpack.c.b16 %v4952, %v4947
        %v5068 = vpack.c.b16 %v4953, %v4948
        %v5069 = vpack.c.b16 %v4954, %v4949
        %v5070 = vpack.c.b16 %v4955, %v4950
        %v5071 = vpack.c.b16 %v4961, %v4956
        %v5072 = vpack.c.b16 %v4962, %v4957
        %v5073 = vpack.c.b16 %v4963, %v4958
        %v5074 = vpack.c.b16 %v4964, %v4959
        %v5075 = vpack.c.b16 %v4965, %v4960
        %v5076 = vpack.c.b16 %v4971, %v4966
        %v5077 = vpack.c.b16 %v4972, %v4967
        %v5078 = vpack.c.b16 %v4973, %v4968
        %v5079 = vpack.c.b16 %v4974, %v4969
        %v5080 = vpack.c.b16 %v4975, %v4970
        %v5081 = vpack.c.b16 %v4981, %v4976
        %v5082 = vpack.c.b16 %v4982, %v4977
        %v5083 = vpack.c.b16 %v4983, %v4978
        %v5084 = vpack.c.b16 %v4984, %v4979
        %v5085 = vpack.c.b16 %v4985, %v4980
        %v5086 = vpack.c.b16 %v4991, %v4986
        %v5087 = vpack.c.b16 %v4992, %v4987
        %v5088 = vpack.c.b16 %v4993, %v4988
        %v5089 = vpack.c.b16 %v4994, %v4989
        %v5090 = vpack.c.b16 %v4995, %v4990
        %v5091 = vpack.c.b16 %v5001, %v4996
        %v5092 = vpack.c.b16 %v5002, %v4997
        %v5093 = vpack.c.b16 %v5003, %v4998
        %v5094 = vpack.c.b16 %v5004, %v4999
        %v5095 = vpack.c.b16 %v5005, %v5000
        %v5096 = vpack.c.b16 %v5011, %v5006
        %v5097 = vpack.c.b16 %v5012, %v5007
        %v5098 = vpack.c.b16 %v5013, %v5008
        %v5099 = vpack.c.b16 %v5014, %v5009
        %v5100 = vpack.c.b16 %v5015, %v5010
        %v5101 = vpack.c.b16 %v5021, %v5016
        %v5102 = vpack.c.b16 %v5022, %v5017
        %v5103 = vpack.c.b16 %v5023, %v5018
        %v5104 = vpack.c.b16 %v5024, %v5019
        %v5105 = vpack.c.b16 %v5025, %v5020
        %v5242 = vunpack.c.l.b16 %v4694
        %v5243 = vunpack.c.l.b16 %v4695
        %v5244 = vunpack.c.l.b16 %v4696
        %v5245 = vunpack.c.l.b16 %v4697
        %v5246 = vunpack.c.l.b16 %v4698
        %v5247 = vunpack.c.l.b16 %v4699
        %v5248 = vunpack.c.l.b16 %v4700
        %v5249 = vunpack.c.l.b16 %v4701
        %v5250 = vunpack.c.l.b16 %v4702
        %v5251 = vunpack.c.l.b16 %v4703
        %v5252 = vunpack.c.l.b16 %v4704
        %v5253 = vunpack.c.l.b16 %v4705
        %v5254 = vunpack.c.l.b16 %v4706
        %v5255 = vunpack.c.l.b16 %v4707
        %v5256 = vunpack.c.l.b16 %v4708
        %v5257 = vunpack.c.l.b16 %v4709
        %v5258 = vunpack.c.l.b16 %v4710
        %v5259 = vunpack.c.l.b16 %v4711
        %v5260 = vunpack.c.l.b16 %v4712
        %v5261 = vunpack.c.l.b16 %v4713
        %v5262 = vunpack.c.l.b16 %v4714
        %v5263 = vunpack.c.l.b16 %v4715
        %v5264 = vunpack.c.l.b16 %v4716
        %v5265 = vunpack.c.l.b16 %v4717
        %v5266 = vunpack.c.l.b16 %v4718
        %v5267 = vunpack.c.l.b16 %v4719
        %v5268 = vunpack.c.l.b16 %v4720
        %v5269 = vunpack.c.l.b16 %v4721
        %v5270 = vunpack.c.l.b16 %v4722
        %v5271 = vunpack.c.l.b16 %v4723
        %v5272 = vunpack.c.l.b16 %v4724
        %v5273 = vunpack.c.l.b16 %v4725
        %v5274 = vunpack.c.l.b16 %v4726
        %v5275 = vunpack.c.l.b16 %v4727
        %v5276 = vunpack.c.l.b16 %v4728
        %v5277 = vunpack.c.l.b16 %v4729
        %v5278 = vunpack.c.l.b16 %v4730
        %v5279 = vunpack.c.l.b16 %v4731
        %v5280 = vunpack.c.l.b16 %v4732
        %v5281 = vunpack.c.l.b16 %v4733
        %v5282 = vunpack.c.l.b16 %v4734
        %v5283 = vunpack.c.l.b16 %v4735
        %v5284 = vunpack.c.l.b16 %v4736
        %v5285 = vunpack.c.l.b16 %v4737
        %v5286 = vunpack.c.l.b16 %v4738
        %v5287 = vunpack.c.l.b16 %v4739
        %v5288 = vunpack.c.l.b16 %v4740
        %v5289 = vunpack.c.l.b16 %v4741
        %v5290 = vunpack.c.l.b16 %v4742
        %v5291 = vunpack.c.l.b16 %v4743
        %v5292 = vunpack.c.l.b16 %v4744
        %v5293 = vunpack.c.l.b16 %v4745
        %v5294 = vunpack.c.l.b16 %v4746
        %v5295 = vunpack.c.l.b16 %v4747
        %v5296 = vunpack.c.l.b16 %v4748
        %v5297 = vunpack.c.l.b16 %v4749
        %v5298 = vunpack.c.l.b16 %v4750
        %v5299 = vunpack.c.l.b16 %v4751
        %v5300 = vunpack.c.l.b16 %v4752
        %v5301 = vunpack.c.l.b16 %v4753
        %v5302 = vunpack.c.l.b16 %v4754
        %v5303 = vunpack.c.l.b16 %v4755
        %v5304 = vunpack.c.l.b16 %v4756
        %v5305 = vunpack.c.l.b16 %v4757
        %v5306 = vunpack.c.l.b16 %v4758
        %v5307 = vunpack.c.l.b16 %v4759
        %v5308 = vunpack.c.l.b16 %v4760
        %v5309 = vunpack.c.l.b16 %v4761
        %v5310 = vunpack.c.l.b16 %v4762
        %v5311 = vunpack.c.l.b16 %v4763
        %v5312 = vunpack.c.l.b16 %v4764
        %v5313 = vunpack.c.l.b16 %v4765
        %v5314 = vpack.c.b16 %v5243, %v5242
        %v5315 = vpack.c.b16 %v5245, %v5244
        %v5316 = vpack.c.b16 %v5247, %v5246
        %v5317 = vpack.c.b16 %v5249, %v5248
        %v5318 = vpack.c.b16 %v5251, %v5250
        %v5319 = vpack.c.b16 %v5253, %v5252
        %v5320 = vpack.c.b16 %v5255, %v5254
        %v5321 = vpack.c.b16 %v5257, %v5256
        %v5322 = vpack.c.b16 %v5259, %v5258
        %v5323 = vpack.c.b16 %v5261, %v5260
        %v5324 = vpack.c.b16 %v5263, %v5262
        %v5325 = vpack.c.b16 %v5265, %v5264
        %v5326 = vpack.c.b16 %v5267, %v5266
        %v5327 = vpack.c.b16 %v5269, %v5268
        %v5328 = vpack.c.b16 %v5271, %v5270
        %v5329 = vpack.c.b16 %v5273, %v5272
        %v5330 = vpack.c.b16 %v5275, %v5274
        %v5331 = vpack.c.b16 %v5277, %v5276
        %v5332 = vpack.c.b16 %v5279, %v5278
        %v5333 = vpack.c.b16 %v5281, %v5280
        %v5334 = vpack.c.b16 %v5283, %v5282
        %v5335 = vpack.c.b16 %v5285, %v5284
        %v5336 = vpack.c.b16 %v5287, %v5286
        %v5337 = vpack.c.b16 %v5289, %v5288
        %v5338 = vpack.c.b16 %v5291, %v5290
        %v5339 = vpack.c.b16 %v5293, %v5292
        %v5340 = vpack.c.b16 %v5295, %v5294
        %v5341 = vpack.c.b16 %v5297, %v5296
        %v5342 = vpack.c.b16 %v5299, %v5298
        %v5343 = vpack.c.b16 %v5301, %v5300
        %v5344 = vpack.c.b16 %v5303, %v5302
        %v5345 = vpack.c.b16 %v5305, %v5304
        %v5346 = vpack.c.b16 %v5307, %v5306
        %v5347 = vpack.c.b16 %v5309, %v5308
        %v5348 = vpack.c.b16 %v5311, %v5310
        %v5349 = vpack.c.b16 %v5313, %v5312
        %v5387 = vsel %vm387, %v5030, 0
        %v5390 = vsel %vm387, %v5035, 0
        %v5393 = vsel %vm387, %v5040, 0
        %v5396 = vsel %vm387, %v5045, 0
        %v5399 = vsel %vm387, %v5050, 0
        %v5402 = vsel %vm387, %v5055, 0
        %v5405 = vsel %vm387, %v5060, 0
        %v5408 = vsel %vm387, %v5065, 0
        %v5411 = vsel %vm387, %v5070, 0
        %v5414 = vsel %vm387, %v5075, 0
        %v5417 = vsel %vm387, %v5080, 0
        %v5420 = vsel %vm387, %v5085, 0
        %v5423 = vsel %vm387, %v5090, 0
        %v5426 = vsel %vm387, %v5095, 0
        %v5429 = vsel %vm387, %v5100, 0
        %v5432 = vsel %vm387, %v5105, 0
        %5434 = vmatpush.bf16.msra.mxu0 %v5321
        %5435 = vmatpush.bf16.msra.mxu0 %v5320
        %5436 = vmatpush.bf16.msra.mxu0 %v5319
        %5437 = vmatpush.bf16.msra.mxu0 %v5318
        %5438 = vmatpush.bf16.msra.mxu0 %v5317
        %5439 = vmatpush.bf16.msra.mxu0 %v5316
        %5440 = vmatpush.bf16.msra.mxu0 %v5315
        %5441 = vmatpush.bf16.msra.mxu0 %v5314
        %5442 = vmatmul.bf16.gmra.mxu0 %v5026
        %v5443 = vpop.f32.mrf.mxu0
        %v5444 = vadd.f32 %v4768, %v5443
        %v5445 = vpop.f32.mrf.mxu0
        %v5446 = vadd.f32 %v4768, %v5445
        %5447 = vmatmul.bf16.gmra.mxu0 %v5031
        %v5448 = vpop.f32.mrf.mxu0
        %v5449 = vadd.f32 %v4768, %v5448
        %v5450 = vpop.f32.mrf.mxu0
        %v5451 = vadd.f32 %v4768, %v5450
        %5452 = vmatmul.bf16.gmra.mxu0 %v5036
        %v5453 = vpop.f32.mrf.mxu0
        %v5454 = vadd.f32 %v4768, %v5453
        %v5455 = vpop.f32.mrf.mxu0
        %v5456 = vadd.f32 %v4768, %v5455
        %5457 = vmatmul.bf16.gmra.mxu0 %v5041
        %v5458 = vpop.f32.mrf.mxu0
        %v5459 = vadd.f32 %v4768, %v5458
        %v5460 = vpop.f32.mrf.mxu0
        %v5461 = vadd.f32 %v4768, %v5460
        %5462 = vmatmul.bf16.gmra.mxu0 %v5046
        %v5463 = vpop.f32.mrf.mxu0
        %v5464 = vadd.f32 %v4768, %v5463
        %v5465 = vpop.f32.mrf.mxu0
        %v5466 = vadd.f32 %v4768, %v5465
        %5467 = vmatmul.bf16.gmra.mxu0 %v5051
        %v5468 = vpop.f32.mrf.mxu0
        %v5469 = vadd.f32 %v4768, %v5468
        %v5470 = vpop.f32.mrf.mxu0
        %v5471 = vadd.f32 %v4768, %v5470
        %5472 = vmatmul.bf16.gmra.mxu0 %v5056
        %v5473 = vpop.f32.mrf.mxu0
        %v5474 = vadd.f32 %v4768, %v5473
        %v5475 = vpop.f32.mrf.mxu0
        %v5476 = vadd.f32 %v4768, %v5475
        %5477 = vmatmul.bf16.gmra.mxu0 %v5061
        %v5478 = vpop.f32.mrf.mxu0
        %v5479 = vadd.f32 %v4768, %v5478
        %v5480 = vpop.f32.mrf.mxu0
        %v5481 = vadd.f32 %v4768, %v5480
        %5482 = vmatmul.bf16.gmra.mxu0 %v5066
        %v5483 = vpop.f32.mrf.mxu0
        %v5484 = vadd.f32 %v4768, %v5483
        %v5485 = vpop.f32.mrf.mxu0
        %v5486 = vadd.f32 %v4768, %v5485
        %5487 = vmatmul.bf16.gmra.mxu0 %v5071
        %v5488 = vpop.f32.mrf.mxu0
        %v5489 = vadd.f32 %v4768, %v5488
        %v5490 = vpop.f32.mrf.mxu0
        %v5491 = vadd.f32 %v4768, %v5490
        %5492 = vmatmul.bf16.gmra.mxu0 %v5076
        %v5493 = vpop.f32.mrf.mxu0
        %v5494 = vadd.f32 %v4768, %v5493
        %v5495 = vpop.f32.mrf.mxu0
        %v5496 = vadd.f32 %v4768, %v5495
        %5497 = vmatmul.bf16.gmra.mxu0 %v5081
        %v5498 = vpop.f32.mrf.mxu0
        %v5499 = vadd.f32 %v4768, %v5498
        %v5500 = vpop.f32.mrf.mxu0
        %v5501 = vadd.f32 %v4768, %v5500
        %5502 = vmatmul.bf16.gmra.mxu0 %v5086
        %v5503 = vpop.f32.mrf.mxu0
        %v5504 = vadd.f32 %v4768, %v5503
        %v5505 = vpop.f32.mrf.mxu0
        %v5506 = vadd.f32 %v4768, %v5505
        %5507 = vmatmul.bf16.gmra.mxu0 %v5091
        %v5508 = vpop.f32.mrf.mxu0
        %v5509 = vadd.f32 %v4768, %v5508
        %v5510 = vpop.f32.mrf.mxu0
        %v5511 = vadd.f32 %v4768, %v5510
        %5512 = vmatmul.bf16.gmra.mxu0 %v5096
        %v5513 = vpop.f32.mrf.mxu0
        %v5514 = vadd.f32 %v4768, %v5513
        %v5515 = vpop.f32.mrf.mxu0
        %v5516 = vadd.f32 %v4768, %v5515
        %5517 = vmatmul.bf16.gmra.mxu0 %v5101
        %v5518 = vpop.f32.mrf.mxu0
        %v5519 = vadd.f32 %v4768, %v5518
        %v5520 = vpop.f32.mrf.mxu0
        %v5521 = vadd.f32 %v4768, %v5520
        %5522 = vdwg.mxu0
        %5523 = vmatpush.bf16.msra.mxu0 %v5329
        %5524 = vmatpush.bf16.msra.mxu0 %v5328
        %5525 = vmatpush.bf16.msra.mxu0 %v5327
        %5526 = vmatpush.bf16.msra.mxu0 %v5326
        %5527 = vmatpush.bf16.msra.mxu0 %v5325
        %5528 = vmatpush.bf16.msra.mxu0 %v5324
        %5529 = vmatpush.bf16.msra.mxu0 %v5323
        %5530 = vmatpush.bf16.msra.mxu0 %v5322
        %5531 = vmatmul.bf16.gmra.mxu0 %v5027
        %v5532 = vpop.f32.mrf.mxu0
        %v5533 = vadd.f32 %v5444, %v5532
        %v5534 = vpop.f32.mrf.mxu0
        %v5535 = vadd.f32 %v5446, %v5534
        %5536 = vmatmul.bf16.gmra.mxu0 %v5032
        %v5537 = vpop.f32.mrf.mxu0
        %v5538 = vadd.f32 %v5449, %v5537
        %v5539 = vpop.f32.mrf.mxu0
        %v5540 = vadd.f32 %v5451, %v5539
        %5541 = vmatmul.bf16.gmra.mxu0 %v5037
        %v5542 = vpop.f32.mrf.mxu0
        %v5543 = vadd.f32 %v5454, %v5542
        %v5544 = vpop.f32.mrf.mxu0
        %v5545 = vadd.f32 %v5456, %v5544
        %5546 = vmatmul.bf16.gmra.mxu0 %v5042
        %v5547 = vpop.f32.mrf.mxu0
        %v5548 = vadd.f32 %v5459, %v5547
        %v5549 = vpop.f32.mrf.mxu0
        %v5550 = vadd.f32 %v5461, %v5549
        %5551 = vmatmul.bf16.gmra.mxu0 %v5047
        %v5552 = vpop.f32.mrf.mxu0
        %v5553 = vadd.f32 %v5464, %v5552
        %v5554 = vpop.f32.mrf.mxu0
        %v5555 = vadd.f32 %v5466, %v5554
        %5556 = vmatmul.bf16.gmra.mxu0 %v5052
        %v5557 = vpop.f32.mrf.mxu0
        %v5558 = vadd.f32 %v5469, %v5557
        %v5559 = vpop.f32.mrf.mxu0
        %v5560 = vadd.f32 %v5471, %v5559
        %5561 = vmatmul.bf16.gmra.mxu0 %v5057
        %v5562 = vpop.f32.mrf.mxu0
        %v5563 = vadd.f32 %v5474, %v5562
        %v5564 = vpop.f32.mrf.mxu0
        %v5565 = vadd.f32 %v5476, %v5564
        %5566 = vmatmul.bf16.gmra.mxu0 %v5062
        %v5567 = vpop.f32.mrf.mxu0
        %v5568 = vadd.f32 %v5479, %v5567
        %v5569 = vpop.f32.mrf.mxu0
        %v5570 = vadd.f32 %v5481, %v5569
        %5571 = vmatmul.bf16.gmra.mxu0 %v5067
        %v5572 = vpop.f32.mrf.mxu0
        %v5573 = vadd.f32 %v5484, %v5572
        %v5574 = vpop.f32.mrf.mxu0
        %v5575 = vadd.f32 %v5486, %v5574
        %5576 = vmatmul.bf16.gmra.mxu0 %v5072
        %v5577 = vpop.f32.mrf.mxu0
        %v5578 = vadd.f32 %v5489, %v5577
        %v5579 = vpop.f32.mrf.mxu0
        %v5580 = vadd.f32 %v5491, %v5579
        %5581 = vmatmul.bf16.gmra.mxu0 %v5077
        %v5582 = vpop.f32.mrf.mxu0
        %v5583 = vadd.f32 %v5494, %v5582
        %v5584 = vpop.f32.mrf.mxu0
        %v5585 = vadd.f32 %v5496, %v5584
        %5586 = vmatmul.bf16.gmra.mxu0 %v5082
        %v5587 = vpop.f32.mrf.mxu0
        %v5588 = vadd.f32 %v5499, %v5587
        %v5589 = vpop.f32.mrf.mxu0
        %v5590 = vadd.f32 %v5501, %v5589
        %5591 = vmatmul.bf16.gmra.mxu0 %v5087
        %v5592 = vpop.f32.mrf.mxu0
        %v5593 = vadd.f32 %v5504, %v5592
        %v5594 = vpop.f32.mrf.mxu0
        %v5595 = vadd.f32 %v5506, %v5594
        %5596 = vmatmul.bf16.gmra.mxu0 %v5092
        %v5597 = vpop.f32.mrf.mxu0
        %v5598 = vadd.f32 %v5509, %v5597
        %v5599 = vpop.f32.mrf.mxu0
        %v5600 = vadd.f32 %v5511, %v5599
        %5601 = vmatmul.bf16.gmra.mxu0 %v5097
        %v5602 = vpop.f32.mrf.mxu0
        %v5603 = vadd.f32 %v5514, %v5602
        %v5604 = vpop.f32.mrf.mxu0
        %v5605 = vadd.f32 %v5516, %v5604
        %5606 = vmatmul.bf16.gmra.mxu0 %v5102
        %v5607 = vpop.f32.mrf.mxu0
        %v5608 = vadd.f32 %v5519, %v5607
        %v5609 = vpop.f32.mrf.mxu0
        %v5610 = vadd.f32 %v5521, %v5609
        %5611 = vdwg.mxu0
        %5612 = vmatpush.bf16.msra.mxu0 %v5337
        %5613 = vmatpush.bf16.msra.mxu0 %v5336
        %5614 = vmatpush.bf16.msra.mxu0 %v5335
        %5615 = vmatpush.bf16.msra.mxu0 %v5334
        %5616 = vmatpush.bf16.msra.mxu0 %v5333
        %5617 = vmatpush.bf16.msra.mxu0 %v5332
        %5618 = vmatpush.bf16.msra.mxu0 %v5331
        %5619 = vmatpush.bf16.msra.mxu0 %v5330
        %5620 = vmatmul.bf16.gmra.mxu0 %v5028
        %v5621 = vpop.f32.mrf.mxu0
        %v5622 = vadd.f32 %v5533, %v5621
        %v5623 = vpop.f32.mrf.mxu0
        %v5624 = vadd.f32 %v5535, %v5623
        %5625 = vmatmul.bf16.gmra.mxu0 %v5033
        %v5626 = vpop.f32.mrf.mxu0
        %v5627 = vadd.f32 %v5538, %v5626
        %v5628 = vpop.f32.mrf.mxu0
        %v5629 = vadd.f32 %v5540, %v5628
        %5630 = vmatmul.bf16.gmra.mxu0 %v5038
        %v5631 = vpop.f32.mrf.mxu0
        %v5632 = vadd.f32 %v5543, %v5631
        %v5633 = vpop.f32.mrf.mxu0
        %v5634 = vadd.f32 %v5545, %v5633
        %5635 = vmatmul.bf16.gmra.mxu0 %v5043
        %v5636 = vpop.f32.mrf.mxu0
        %v5637 = vadd.f32 %v5548, %v5636
        %v5638 = vpop.f32.mrf.mxu0
        %v5639 = vadd.f32 %v5550, %v5638
        %5640 = vmatmul.bf16.gmra.mxu0 %v5048
        %v5641 = vpop.f32.mrf.mxu0
        %v5642 = vadd.f32 %v5553, %v5641
        %v5643 = vpop.f32.mrf.mxu0
        %v5644 = vadd.f32 %v5555, %v5643
        %5645 = vmatmul.bf16.gmra.mxu0 %v5053
        %v5646 = vpop.f32.mrf.mxu0
        %v5647 = vadd.f32 %v5558, %v5646
        %v5648 = vpop.f32.mrf.mxu0
        %v5649 = vadd.f32 %v5560, %v5648
        %5650 = vmatmul.bf16.gmra.mxu0 %v5058
        %v5651 = vpop.f32.mrf.mxu0
        %v5652 = vadd.f32 %v5563, %v5651
        %v5653 = vpop.f32.mrf.mxu0
        %v5654 = vadd.f32 %v5565, %v5653
        %5655 = vmatmul.bf16.gmra.mxu0 %v5063
        %v5656 = vpop.f32.mrf.mxu0
        %v5657 = vadd.f32 %v5568, %v5656
        %v5658 = vpop.f32.mrf.mxu0
        %v5659 = vadd.f32 %v5570, %v5658
        %5660 = vmatmul.bf16.gmra.mxu0 %v5068
        %v5661 = vpop.f32.mrf.mxu0
        %v5662 = vadd.f32 %v5573, %v5661
        %v5663 = vpop.f32.mrf.mxu0
        %v5664 = vadd.f32 %v5575, %v5663
        %5665 = vmatmul.bf16.gmra.mxu0 %v5073
        %v5666 = vpop.f32.mrf.mxu0
        %v5667 = vadd.f32 %v5578, %v5666
        %v5668 = vpop.f32.mrf.mxu0
        %v5669 = vadd.f32 %v5580, %v5668
        %5670 = vmatmul.bf16.gmra.mxu0 %v5078
        %v5671 = vpop.f32.mrf.mxu0
        %v5672 = vadd.f32 %v5583, %v5671
        %v5673 = vpop.f32.mrf.mxu0
        %v5674 = vadd.f32 %v5585, %v5673
        %5675 = vmatmul.bf16.gmra.mxu0 %v5083
        %v5676 = vpop.f32.mrf.mxu0
        %v5677 = vadd.f32 %v5588, %v5676
        %v5678 = vpop.f32.mrf.mxu0
        %v5679 = vadd.f32 %v5590, %v5678
        %5680 = vmatmul.bf16.gmra.mxu0 %v5088
        %v5681 = vpop.f32.mrf.mxu0
        %v5682 = vadd.f32 %v5593, %v5681
        %v5683 = vpop.f32.mrf.mxu0
        %v5684 = vadd.f32 %v5595, %v5683
        %5685 = vmatmul.bf16.gmra.mxu0 %v5093
        %v5686 = vpop.f32.mrf.mxu0
        %v5687 = vadd.f32 %v5598, %v5686
        %v5688 = vpop.f32.mrf.mxu0
        %v5689 = vadd.f32 %v5600, %v5688
        %5690 = vmatmul.bf16.gmra.mxu0 %v5098
        %v5691 = vpop.f32.mrf.mxu0
        %v5692 = vadd.f32 %v5603, %v5691
        %v5693 = vpop.f32.mrf.mxu0
        %v5694 = vadd.f32 %v5605, %v5693
        %5695 = vmatmul.bf16.gmra.mxu0 %v5103
        %v5696 = vpop.f32.mrf.mxu0
        %v5697 = vadd.f32 %v5608, %v5696
        %v5698 = vpop.f32.mrf.mxu0
        %v5699 = vadd.f32 %v5610, %v5698
        %5700 = vdwg.mxu0
        %5701 = vmatpush.bf16.msra.mxu0 %v5345
        %5702 = vmatpush.bf16.msra.mxu0 %v5344
        %5703 = vmatpush.bf16.msra.mxu0 %v5343
        %5704 = vmatpush.bf16.msra.mxu0 %v5342
        %5705 = vmatpush.bf16.msra.mxu0 %v5341
        %5706 = vmatpush.bf16.msra.mxu0 %v5340
        %5707 = vmatpush.bf16.msra.mxu0 %v5339
        %5708 = vmatpush.bf16.msra.mxu0 %v5338
        %5709 = vmatmul.bf16.gmra.mxu0 %v5029
        %v5710 = vpop.f32.mrf.mxu0
        %v5711 = vadd.f32 %v5622, %v5710
        %v5712 = vpop.f32.mrf.mxu0
        %v5713 = vadd.f32 %v5624, %v5712
        %5714 = vmatmul.bf16.gmra.mxu0 %v5034
        %v5715 = vpop.f32.mrf.mxu0
        %v5716 = vadd.f32 %v5627, %v5715
        %v5717 = vpop.f32.mrf.mxu0
        %v5718 = vadd.f32 %v5629, %v5717
        %5719 = vmatmul.bf16.gmra.mxu0 %v5039
        %v5720 = vpop.f32.mrf.mxu0
        %v5721 = vadd.f32 %v5632, %v5720
        %v5722 = vpop.f32.mrf.mxu0
        %v5723 = vadd.f32 %v5634, %v5722
        %5724 = vmatmul.bf16.gmra.mxu0 %v5044
        %v5725 = vpop.f32.mrf.mxu0
        %v5726 = vadd.f32 %v5637, %v5725
        %v5727 = vpop.f32.mrf.mxu0
        %v5728 = vadd.f32 %v5639, %v5727
        %5729 = vmatmul.bf16.gmra.mxu0 %v5049
        %v5730 = vpop.f32.mrf.mxu0
        %v5731 = vadd.f32 %v5642, %v5730
        %v5732 = vpop.f32.mrf.mxu0
        %v5733 = vadd.f32 %v5644, %v5732
        %5734 = vmatmul.bf16.gmra.mxu0 %v5054
        %v5735 = vpop.f32.mrf.mxu0
        %v5736 = vadd.f32 %v5647, %v5735
        %v5737 = vpop.f32.mrf.mxu0
        %v5738 = vadd.f32 %v5649, %v5737
        %5739 = vmatmul.bf16.gmra.mxu0 %v5059
        %v5740 = vpop.f32.mrf.mxu0
        %v5741 = vadd.f32 %v5652, %v5740
        %v5742 = vpop.f32.mrf.mxu0
        %v5743 = vadd.f32 %v5654, %v5742
        %5744 = vmatmul.bf16.gmra.mxu0 %v5064
        %v5745 = vpop.f32.mrf.mxu0
        %v5746 = vadd.f32 %v5657, %v5745
        %v5747 = vpop.f32.mrf.mxu0
        %v5748 = vadd.f32 %v5659, %v5747
        %5749 = vmatmul.bf16.gmra.mxu0 %v5069
        %v5750 = vpop.f32.mrf.mxu0
        %v5751 = vadd.f32 %v5662, %v5750
        %v5752 = vpop.f32.mrf.mxu0
        %v5753 = vadd.f32 %v5664, %v5752
        %5754 = vmatmul.bf16.gmra.mxu0 %v5074
        %v5755 = vpop.f32.mrf.mxu0
        %v5756 = vadd.f32 %v5667, %v5755
        %v5757 = vpop.f32.mrf.mxu0
        %v5758 = vadd.f32 %v5669, %v5757
        %5759 = vmatmul.bf16.gmra.mxu0 %v5079
        %v5760 = vpop.f32.mrf.mxu0
        %v5761 = vadd.f32 %v5672, %v5760
        %v5762 = vpop.f32.mrf.mxu0
        %v5763 = vadd.f32 %v5674, %v5762
        %5764 = vmatmul.bf16.gmra.mxu0 %v5084
        %v5765 = vpop.f32.mrf.mxu0
        %v5766 = vadd.f32 %v5677, %v5765
        %v5767 = vpop.f32.mrf.mxu0
        %v5768 = vadd.f32 %v5679, %v5767
        %5769 = vmatmul.bf16.gmra.mxu0 %v5089
        %v5770 = vpop.f32.mrf.mxu0
        %v5771 = vadd.f32 %v5682, %v5770
        %v5772 = vpop.f32.mrf.mxu0
        %v5773 = vadd.f32 %v5684, %v5772
        %5774 = vmatmul.bf16.gmra.mxu0 %v5094
        %v5775 = vpop.f32.mrf.mxu0
        %v5776 = vadd.f32 %v5687, %v5775
        %v5777 = vpop.f32.mrf.mxu0
        %v5778 = vadd.f32 %v5689, %v5777
        %5779 = vmatmul.bf16.gmra.mxu0 %v5099
        %v5780 = vpop.f32.mrf.mxu0
        %v5781 = vadd.f32 %v5692, %v5780
        %v5782 = vpop.f32.mrf.mxu0
        %v5783 = vadd.f32 %v5694, %v5782
        %5784 = vmatmul.bf16.gmra.mxu0 %v5104
        %v5785 = vpop.f32.mrf.mxu0
        %v5786 = vadd.f32 %v5697, %v5785
        %v5787 = vpop.f32.mrf.mxu0
        %v5788 = vadd.f32 %v5699, %v5787
        %5789 = vdwg.mxu0
        %5790 = vmatpush.bf16.msra.mxu0 0
        %5791 = vmatpush.bf16.msra.mxu0 0
        %5792 = vmatpush.bf16.msra.mxu0 0
        %5793 = vmatpush.bf16.msra.mxu0 0
        %5794 = vmatpush.bf16.msra.mxu0 %v5349
        %5795 = vmatpush.bf16.msra.mxu0 %v5348
        %5796 = vmatpush.bf16.msra.mxu0 %v5347
        %5797 = vmatpush.bf16.msra.mxu0 %v5346
        %5798 = vmatmul.bf16.gmra.mxu0 %v5387
        %v5799 = vpop.f32.mrf.mxu0
        %v5800 = vadd.f32 %v5711, %v5799
        %v5801 = vpop.f32.mrf.mxu0
        %v5802 = vadd.f32 %v5713, %v5801
        %5803 = vmatmul.bf16.gmra.mxu0 %v5390
        %v5804 = vpop.f32.mrf.mxu0
        %v5805 = vadd.f32 %v5716, %v5804
        %v5806 = vpop.f32.mrf.mxu0
        %v5807 = vadd.f32 %v5718, %v5806
        %5808 = vmatmul.bf16.gmra.mxu0 %v5393
        %v5809 = vpop.f32.mrf.mxu0
        %v5810 = vadd.f32 %v5721, %v5809
        %v5811 = vpop.f32.mrf.mxu0
        %v5812 = vadd.f32 %v5723, %v5811
        %5813 = vmatmul.bf16.gmra.mxu0 %v5396
        %v5814 = vpop.f32.mrf.mxu0
        %v5815 = vadd.f32 %v5726, %v5814
        %v5816 = vpop.f32.mrf.mxu0
        %v5817 = vadd.f32 %v5728, %v5816
        %5818 = vmatmul.bf16.gmra.mxu0 %v5399
        %v5819 = vpop.f32.mrf.mxu0
        %v5820 = vadd.f32 %v5731, %v5819
        %v5821 = vpop.f32.mrf.mxu0
        %v5822 = vadd.f32 %v5733, %v5821
        %5823 = vmatmul.bf16.gmra.mxu0 %v5402
        %v5824 = vpop.f32.mrf.mxu0
        %v5825 = vadd.f32 %v5736, %v5824
        %v5826 = vpop.f32.mrf.mxu0
        %v5827 = vadd.f32 %v5738, %v5826
        %5828 = vmatmul.bf16.gmra.mxu0 %v5405
        %v5829 = vpop.f32.mrf.mxu0
        %v5830 = vadd.f32 %v5741, %v5829
        %v5831 = vpop.f32.mrf.mxu0
        %v5832 = vadd.f32 %v5743, %v5831
        %5833 = vmatmul.bf16.gmra.mxu0 %v5408
        %v5834 = vpop.f32.mrf.mxu0
        %v5835 = vadd.f32 %v5746, %v5834
        %v5836 = vpop.f32.mrf.mxu0
        %v5837 = vadd.f32 %v5748, %v5836
        %5838 = vmatmul.bf16.gmra.mxu0 %v5411
        %v5839 = vpop.f32.mrf.mxu0
        %v5840 = vadd.f32 %v5751, %v5839
        %v5841 = vpop.f32.mrf.mxu0
        %v5842 = vadd.f32 %v5753, %v5841
        %5843 = vmatmul.bf16.gmra.mxu0 %v5414
        %v5844 = vpop.f32.mrf.mxu0
        %v5845 = vadd.f32 %v5756, %v5844
        %v5846 = vpop.f32.mrf.mxu0
        %v5847 = vadd.f32 %v5758, %v5846
        %5848 = vmatmul.bf16.gmra.mxu0 %v5417
        %v5849 = vpop.f32.mrf.mxu0
        %v5850 = vadd.f32 %v5761, %v5849
        %v5851 = vpop.f32.mrf.mxu0
        %v5852 = vadd.f32 %v5763, %v5851
        %5853 = vmatmul.bf16.gmra.mxu0 %v5420
        %v5854 = vpop.f32.mrf.mxu0
        %v5855 = vadd.f32 %v5766, %v5854
        %v5856 = vpop.f32.mrf.mxu0
        %v5857 = vadd.f32 %v5768, %v5856
        %5858 = vmatmul.bf16.gmra.mxu0 %v5423
        %v5859 = vpop.f32.mrf.mxu0
        %v5860 = vadd.f32 %v5771, %v5859
        %v5861 = vpop.f32.mrf.mxu0
        %v5862 = vadd.f32 %v5773, %v5861
        %5863 = vmatmul.bf16.gmra.mxu0 %v5426
        %v5864 = vpop.f32.mrf.mxu0
        %v5865 = vadd.f32 %v5776, %v5864
        %v5866 = vpop.f32.mrf.mxu0
        %v5867 = vadd.f32 %v5778, %v5866
        %5868 = vmatmul.bf16.gmra.mxu0 %v5429
        %v5869 = vpop.f32.mrf.mxu0
        %v5870 = vadd.f32 %v5781, %v5869
        %v5871 = vpop.f32.mrf.mxu0
        %v5872 = vadd.f32 %v5783, %v5871
        %5873 = vmatmul.bf16.gmra.mxu0 %v5432
        %v5874 = vpop.f32.mrf.mxu0
        %v5875 = vadd.f32 %v5786, %v5874
        %v5876 = vpop.f32.mrf.mxu0
        %v5877 = vadd.f32 %v5788, %v5876
        %5878 = vdwg.mxu0
        %v5879 = vsel %vm387, %v5800, 0.0
        %v5880 = vsel %vm387, %v5802, 0.0
        %v5881 = vadd.f32 %v5879, %v5880
        %v5882 = vsel %vm387, %v5805, 0.0
        %v5883 = vadd.f32 %v5881, %v5882
        %v5884 = vsel %vm387, %v5807, 0.0
        %v5885 = vadd.f32 %v5883, %v5884
        %v5886 = vsel %vm387, %v5810, 0.0
        %v5887 = vadd.f32 %v5885, %v5886
        %v5888 = vsel %vm387, %v5812, 0.0
        %v5889 = vadd.f32 %v5887, %v5888
        %v5890 = vsel %vm387, %v5815, 0.0
        %v5891 = vadd.f32 %v5889, %v5890
        %v5892 = vsel %vm387, %v5817, 0.0
        %v5893 = vadd.f32 %v5891, %v5892
        %v5894 = vsel %vm387, %v5820, 0.0
        %v5895 = vadd.f32 %v5893, %v5894
        %v5896 = vsel %vm387, %v5822, 0.0
        %v5897 = vadd.f32 %v5895, %v5896
        %v5898 = vsel %vm387, %v5825, 0.0
        %v5899 = vadd.f32 %v5897, %v5898
        %v5900 = vsel %vm387, %v5827, 0.0
        %v5901 = vadd.f32 %v5899, %v5900
        %v5902 = vsel %vm387, %v5830, 0.0
        %v5903 = vadd.f32 %v5901, %v5902
        %v5904 = vsel %vm387, %v5832, 0.0
        %v5905 = vadd.f32 %v5903, %v5904
        %v5906 = vsel %vm387, %v5835, 0.0
        %v5907 = vadd.f32 %v5905, %v5906
        %v5908 = vsel %vm387, %v5837, 0.0
        %v5909 = vadd.f32 %v5907, %v5908
        %v5910 = vsel %vm387, %v5840, 0.0
        %v5911 = vadd.f32 %v5909, %v5910
        %v5912 = vsel %vm387, %v5842, 0.0
        %v5913 = vadd.f32 %v5911, %v5912
        %v5914 = vsel %vm387, %v5845, 0.0
        %v5915 = vadd.f32 %v5913, %v5914
        %v5916 = vsel %vm387, %v5847, 0.0
        %v5917 = vadd.f32 %v5915, %v5916
        %v5918 = vsel %vm387, %v5850, 0.0
        %v5919 = vadd.f32 %v5917, %v5918
        %v5920 = vsel %vm387, %v5852, 0.0
        %v5921 = vadd.f32 %v5919, %v5920
        %v5922 = vsel %vm387, %v5855, 0.0
        %v5923 = vadd.f32 %v5921, %v5922
        %v5924 = vsel %vm387, %v5857, 0.0
        %v5925 = vadd.f32 %v5923, %v5924
        %v5926 = vsel %vm387, %v5860, 0.0
        %v5927 = vadd.f32 %v5925, %v5926
        %v5928 = vsel %vm387, %v5862, 0.0
        %v5929 = vadd.f32 %v5927, %v5928
        %v5930 = vsel %vm387, %v5865, 0.0
        %v5931 = vadd.f32 %v5929, %v5930
        %v5932 = vsel %vm387, %v5867, 0.0
        %v5933 = vadd.f32 %v5931, %v5932
        %v5934 = vsel %vm387, %v5870, 0.0
        %v5935 = vadd.f32 %v5933, %v5934
        %v5936 = vsel %vm387, %v5872, 0.0
        %v5937 = vadd.f32 %v5935, %v5936
        %v5938 = vsel %vm387, %v5875, 0.0
        %v5939 = vadd.f32 %v5937, %v5938
        %v5940 = vsel %vm387, %v5877, 0.0
        %v5941 = vadd.f32 %v5939, %v5940
        %v5942 = vrot.slane %v5941, 4
        %v5943 = vadd.f32 %v5941, %v5942
        %v5944 = vrot.slane %v5943, 2
        %v5945 = vadd.f32 %v5943, %v5944
        %v5946 = vrot.slane %v5945, 1
        %v5947 = vadd.f32 %v5945, %v5946
        %v5948 = vrcp.pop 256.0
        %v5949 = vmul.f32 256.0, %v5948
        %v5950 = vsub.f32 1.0, %v5949
        %v5951 = vmul.f32 %v5948, %v5950
        %v5952 = vadd.f32 %v5948, %v5951
        %vm5953 = vweird.f32 %v5948
        %v5954 = vsel %vm5953, %v5948, %v5952
        %v5955 = vmul.f32 %v5947, %v5954
        %v5956 = vld [vmem:[%s5] sm:$0xff]
        %v5957 = vld [vmem:[%s5 + $0x8] sm:$0xff]
        %v5958 = vld [vmem:[%s5 + $0x10] sm:$0xff]
        %v5959 = vld [vmem:[%s5 + $0x18] sm:$0xff]
        %v5960 = vld [vmem:[%s5 + $0x20] sm:$0xff]
        %v5961 = vld [vmem:[%s5 + $0x28] sm:$0xff]
        %v5962 = vld [vmem:[%s5 + $0x30] sm:$0xff]
        %v5963 = vld [vmem:[%s5 + $0x38] sm:$0xff]
        %v5964 = vld [vmem:[%s6] sm:$0x1]
        %v5966 = vsel %vm387, %v5955, 0
        %5968 = vmatpush.msra.mxu0 0.0
        %5969 = vmatpush.msra.mxu0 0.0
        %5970 = vmatpush.msra.mxu0 0.0
        %5971 = vmatpush.msra.mxu0 0.0
        %5972 = vmatpush.msra.mxu0 0.0
        %5973 = vmatpush.msra.mxu0 0.0
        %5974 = vmatpush.msra.mxu0 0.0
        %5975 = vmatpush.msra.mxu0 0.0
        %5976 = vmatpush.msra.mxu0 %v5963
        %5977 = vmatpush.msra.mxu0 %v5962
        %5978 = vmatpush.msra.mxu0 %v5961
        %5979 = vmatpush.msra.mxu0 %v5960
        %5980 = vmatpush.msra.mxu0 %v5959
        %5981 = vmatpush.msra.mxu0 %v5958
        %5982 = vmatpush.msra.mxu0 %v5957
        %5983 = vmatpush.msra.mxu0 %v5956
        %5984 = vmatmul.f32.gmra.mxu0 %v5966
        %v5985 = vpop.f32.mrf.mxu0
        %v5986 = vadd.f32 %v5964, %v5985
        %5987 = vdwg.mxu0
        %v5988 = vmax.f32 %v5986, 0.0
        %v5989 = vld [vmem:[%s7] sm:$0xff]
        %v5990 = vld [vmem:[%s8] sm:$0x1]
        %vm5991 = vcmask 64512
        %v5993 = vsel %vm5991, %v5988, 0
        %5995 = vmatpush.msra.mxu0 0.0
        %5996 = vmatpush.msra.mxu0 0.0
        %5997 = vmatpush.msra.mxu0 0.0
        %5998 = vmatpush.msra.mxu0 0.0
        %5999 = vmatpush.msra.mxu0 0.0
        %6000 = vmatpush.msra.mxu0 0.0
        %6001 = vmatpush.msra.mxu0 0.0
        %6002 = vmatpush.msra.mxu0 0.0
        %6003 = vmatpush.msra.mxu0 0.0
        %6004 = vmatpush.msra.mxu0 0.0
        %6005 = vmatpush.msra.mxu0 0.0
        %6006 = vmatpush.msra.mxu0 0.0
        %6007 = vmatpush.msra.mxu0 0.0
        %6008 = vmatpush.msra.mxu0 0.0
        %6009 = vmatpush.msra.mxu0 0.0
        %6010 = vmatpush.msra.mxu0 %v5989
        %6011 = vmatmul.f32.gmra.mxu0 %v5993
        %v6012 = vpop.f32.mrf.mxu0
        %v6013 = vadd.f32 %v5990, %v6012
        %6014 = vdwg.mxu0
        %v6015 = vsub.f32 0.0, %v6013
        %v6016 = vmul.f32 %v6015, 1.442695
        %v6017 = vpow.pop %v6016
        %v6018 = vadd.f32 %v6017, 1.0
        %v6019 = vrcp.pop %v6018
        %v6020 = vmul.f32 %v6018, %v6019
        %v6021 = vsub.f32 1.0, %v6020
        %v6022 = vmul.f32 %v6019, %v6021
        %v6023 = vadd.f32 %v6019, %v6022
        %vm6024 = vweird.f32 %v6018
        %vm6025 = vweird.f32 %v6019
        %vm6026 = vmor %vm6024, %vm6025
        %v6027 = vsel %vm6026, %v6019, %v6023
        %v6028 = vand.u32 2147483647, %v6018
        %vm6029 = vcmp.eq.f32.partialorder %v6028, 8.507059e+37
        %v6030 = vand.u32 %v6018, 2147483648
        %v6031 = vor.u32 1.1754944e-38, %v6030
        %v6032 = vsel %vm6029, %v6031, %v6027
        %v6033 = vmul.f32 1.0, %v6032
        %v6034 = vperm.slane %v6033, 0
        %v6035 = vmul.f32 %v5800, %v6034
        %v6036 = vmul.f32 %v5802, %v6034
        %v6037 = vmul.f32 %v5805, %v6034
        %v6038 = vmul.f32 %v5807, %v6034
        %v6039 = vmul.f32 %v5810, %v6034
        %v6040 = vmul.f32 %v5812, %v6034
        %v6041 = vmul.f32 %v5815, %v6034
        %v6042 = vmul.f32 %v5817, %v6034
        %v6043 = vmul.f32 %v5820, %v6034
        %v6044 = vmul.f32 %v5822, %v6034
        %v6045 = vmul.f32 %v5825, %v6034
        %v6046 = vmul.f32 %v5827, %v6034
        %v6047 = vmul.f32 %v5830, %v6034
        %v6048 = vmul.f32 %v5832, %v6034
        %v6049 = vmul.f32 %v5835, %v6034
        %v6050 = vmul.f32 %v5837, %v6034
        %v6051 = vmul.f32 %v5840, %v6034
        %v6052 = vmul.f32 %v5842, %v6034
        %v6053 = vmul.f32 %v5845, %v6034
        %v6054 = vmul.f32 %v5847, %v6034
        %v6055 = vmul.f32 %v5850, %v6034
        %v6056 = vmul.f32 %v5852, %v6034
        %v6057 = vmul.f32 %v5855, %v6034
        %v6058 = vmul.f32 %v5857, %v6034
        %v6059 = vmul.f32 %v5860, %v6034
        %v6060 = vmul.f32 %v5862, %v6034
        %v6061 = vmul.f32 %v5865, %v6034
        %v6062 = vmul.f32 %v5867, %v6034
        %v6063 = vmul.f32 %v5870, %v6034
        %v6064 = vmul.f32 %v5872, %v6034
        %v6065 = vmul.f32 %v5875, %v6034
        %v6066 = vmul.f32 %v5877, %v6034
        %v6067 = vld [vmem:[%s340] sm:$0xff]
        %v6068 = vld [vmem:[%s340 + $0x8] sm:$0xff]
        %v6069 = vld [vmem:[%s340 + $0x10] sm:$0xff]
        %v6070 = vld [vmem:[%s340 + $0x18] sm:$0xff]
        %v6071 = vld [vmem:[%s340 + $0x20] sm:$0xff]
        %v6072 = vld [vmem:[%s340 + $0x28] sm:$0xff]
        %v6073 = vld [vmem:[%s340 + $0x30] sm:$0xff]
        %v6074 = vld [vmem:[%s340 + $0x38] sm:$0xff]
        %v6075 = vld [vmem:[%s340 + $0x40] sm:$0xff]
        %v6076 = vld [vmem:[%s340 + $0x48] sm:$0xff]
        %v6077 = vld [vmem:[%s340 + $0x50] sm:$0xff]
        %v6078 = vld [vmem:[%s340 + $0x58] sm:$0xff]
        %v6079 = vld [vmem:[%s340 + $0x60] sm:$0xff]
        %v6080 = vld [vmem:[%s340 + $0x68] sm:$0xff]
        %v6081 = vld [vmem:[%s340 + $0x70] sm:$0xff]
        %v6082 = vld [vmem:[%s340 + $0x78] sm:$0xff]
        %v6083 = vld [vmem:[%s340 + $0x80] sm:$0xff]
        %v6084 = vld [vmem:[%s340 + $0x88] sm:$0xff]
        %v6085 = vld [vmem:[%s340 + $0x90] sm:$0xff]
        %v6086 = vld [vmem:[%s340 + $0x98] sm:$0xff]
        %v6087 = vld [vmem:[%s340 + $0xa0] sm:$0xff]
        %v6088 = vld [vmem:[%s340 + $0xa8] sm:$0xff]
        %v6089 = vld [vmem:[%s340 + $0xb0] sm:$0xff]
        %v6090 = vld [vmem:[%s340 + $0xb8] sm:$0xff]
        %v6091 = vld [vmem:[%s340 + $0xc0] sm:$0xff]
        %v6092 = vld [vmem:[%s340 + $0xc8] sm:$0xff]
        %v6093 = vld [vmem:[%s340 + $0xd0] sm:$0xff]
        %v6094 = vld [vmem:[%s340 + $0xd8] sm:$0xff]
        %v6095 = vld [vmem:[%s340 + $0xe0] sm:$0xff]
        %v6096 = vld [vmem:[%s340 + $0xe8] sm:$0xff]
        %v6097 = vld [vmem:[%s340 + $0xf0] sm:$0xff]
        %v6098 = vld [vmem:[%s340 + $0xf8] sm:$0xff]
        %v6099 = vadd.f32 %v6035, %v6067
        %v6100 = vadd.f32 %v6036, %v6068
        %v6101 = vadd.f32 %v6037, %v6069
        %v6102 = vadd.f32 %v6038, %v6070
        %v6103 = vadd.f32 %v6039, %v6071
        %v6104 = vadd.f32 %v6040, %v6072
        %v6105 = vadd.f32 %v6041, %v6073
        %v6106 = vadd.f32 %v6042, %v6074
        %v6107 = vadd.f32 %v6043, %v6075
        %v6108 = vadd.f32 %v6044, %v6076
        %v6109 = vadd.f32 %v6045, %v6077
        %v6110 = vadd.f32 %v6046, %v6078
        %v6111 = vadd.f32 %v6047, %v6079
        %v6112 = vadd.f32 %v6048, %v6080
        %v6113 = vadd.f32 %v6049, %v6081
        %v6114 = vadd.f32 %v6050, %v6082
        %v6115 = vadd.f32 %v6051, %v6083
        %v6116 = vadd.f32 %v6052, %v6084
        %v6117 = vadd.f32 %v6053, %v6085
        %v6118 = vadd.f32 %v6054, %v6086
        %v6119 = vadd.f32 %v6055, %v6087
        %v6120 = vadd.f32 %v6056, %v6088
        %v6121 = vadd.f32 %v6057, %v6089
        %v6122 = vadd.f32 %v6058, %v6090
        %v6123 = vadd.f32 %v6059, %v6091
        %v6124 = vadd.f32 %v6060, %v6092
        %v6125 = vadd.f32 %v6061, %v6093
        %v6126 = vadd.f32 %v6062, %v6094
        %v6127 = vadd.f32 %v6063, %v6095
        %v6128 = vadd.f32 %v6064, %v6096
        %v6129 = vadd.f32 %v6065, %v6097
        %v6130 = vadd.f32 %v6066, %v6098
        %6131 = vst.msk [vmem:[%s385] sm:$0xff] %vm387, %v6099
        %6132 = vst.msk [vmem:[%s385 + $0x8] sm:$0xff] %vm387, %v6100
        %6133 = vst.msk [vmem:[%s385 + $0x10] sm:$0xff] %vm387, %v6101
        %6134 = vst.msk [vmem:[%s385 + $0x18] sm:$0xff] %vm387, %v6102
        %6135 = vst.msk [vmem:[%s385 + $0x20] sm:$0xff] %vm387, %v6103
        %6136 = vst.msk [vmem:[%s385 + $0x28] sm:$0xff] %vm387, %v6104
        %6137 = vst.msk [vmem:[%s385 + $0x30] sm:$0xff] %vm387, %v6105
        %6138 = vst.msk [vmem:[%s385 + $0x38] sm:$0xff] %vm387, %v6106
        %6139 = vst.msk [vmem:[%s385 + $0x40] sm:$0xff] %vm387, %v6107
        %6140 = vst.msk [vmem:[%s385 + $0x48] sm:$0xff] %vm387, %v6108
        %6141 = vst.msk [vmem:[%s385 + $0x50] sm:$0xff] %vm387, %v6109
        %6142 = vst.msk [vmem:[%s385 + $0x58] sm:$0xff] %vm387, %v6110
        %6143 = vst.msk [vmem:[%s385 + $0x60] sm:$0xff] %vm387, %v6111
        %6144 = vst.msk [vmem:[%s385 + $0x68] sm:$0xff] %vm387, %v6112
        %6145 = vst.msk [vmem:[%s385 + $0x70] sm:$0xff] %vm387, %v6113
        %6146 = vst.msk [vmem:[%s385 + $0x78] sm:$0xff] %vm387, %v6114
        %6147 = vst.msk [vmem:[%s385 + $0x80] sm:$0xff] %vm387, %v6115
        %6148 = vst.msk [vmem:[%s385 + $0x88] sm:$0xff] %vm387, %v6116
        %6149 = vst.msk [vmem:[%s385 + $0x90] sm:$0xff] %vm387, %v6117
        %6150 = vst.msk [vmem:[%s385 + $0x98] sm:$0xff] %vm387, %v6118
        %6151 = vst.msk [vmem:[%s385 + $0xa0] sm:$0xff] %vm387, %v6119
        %6152 = vst.msk [vmem:[%s385 + $0xa8] sm:$0xff] %vm387, %v6120
        %6153 = vst.msk [vmem:[%s385 + $0xb0] sm:$0xff] %vm387, %v6121
        %6154 = vst.msk [vmem:[%s385 + $0xb8] sm:$0xff] %vm387, %v6122
        %6155 = vst.msk [vmem:[%s385 + $0xc0] sm:$0xff] %vm387, %v6123
        %6156 = vst.msk [vmem:[%s385 + $0xc8] sm:$0xff] %vm387, %v6124
        %6157 = vst.msk [vmem:[%s385 + $0xd0] sm:$0xff] %vm387, %v6125
        %6158 = vst.msk [vmem:[%s385 + $0xd8] sm:$0xff] %vm387, %v6126
        %6159 = vst.msk [vmem:[%s385 + $0xe0] sm:$0xff] %vm387, %v6127
        %6160 = vst.msk [vmem:[%s385 + $0xe8] sm:$0xff] %vm387, %v6128
        %6161 = vst.msk [vmem:[%s385 + $0xf0] sm:$0xff] %vm387, %v6129
        %6162 = vst.msk [vmem:[%s385 + $0xf8] sm:$0xff] %vm387, %v6130
        %s6163 = sand.u32 %s229, 1
        %s6164 = scalar_lea.sflag [#allocation6], %s6163
        %s6165 = sand.u32 %s229, 1
        %s6166 = smul.addr %s6165, 256
        %s6167 = scalar_lea.vmem [#allocation10], %s6166
        // Predicated region
        $region69: #{rcab_forward.1} parent=55 // pred_check
          %p6168 = pneg %p239
        $region70: #{rcab_forward.1} parent=55 // pred_check_branch
          %6170 = sbr.rel (%p6168) target = $region72
        $region71: #{rcab_forward.1} parent=55 // pred_region
          %6172 = vsyncadd %s6164, 0
          %s6173 = smul.addr %s27, 32
          %s6174 = smul.addr %s6173, 8
          %s6175 = scalar_lea.hbm %s9, %s6174
          %s6176 = sshll.u32 %s6167, 4
          %s6177 = int_to_ptr.vmem [resolvable:$true] %s6176
          %s6178 = sshll.u32 %s6175, 4
          %s6179 = int_to_ptr.hbm [resolvable:$true] %s6178
          %6184 = dma.vmem_to_hbm [thread:$0]  %s6177, 4096, %s6179, %s6164, 128, 128, 8
        $region72: #{rcab_forward.1} parent=55 // pred_fallthru
          _
      $region56: #{rcab_forward.1} parent=5 // pred_fallthru
        _
      %p6185 = scmp.le.s32.totalorder 2, %s22
      // Predicated region
      $region73: #{rcab_forward.1} parent=5 // pred_check
        %p6186 = pneg %p6185
      $region74: #{rcab_forward.1} parent=5 // pred_check_branch
        %6188 = sbr.rel (%p6186) target = $region76
      $region75: #{rcab_forward.1} parent=5 // pred_region
        %s6189 = ssub.s32 %s22, 2
        // Predicated region
        $region77: #{rcab_forward.1} parent=75 // pred_check
          %p6190 = pneg %p245
        $region78: #{rcab_forward.1} parent=75 // pred_check_branch
          %6192 = sbr.rel (%p6190) target = $region80
        $region79: #{rcab_forward.1} parent=75 // pred_region
          %s6193 = sand.u32 %s230, 1
          %s6194 = scalar_lea.sflag [#allocation6], %s6193
          %s6195 = sand.u32 %s230, 1
          %s6196 = smul.addr %s6195, 256
          %s6197 = scalar_lea.vmem [#allocation10], %s6196
          %6199 = dma.done %s6194, 4096
        $region80: #{rcab_forward.1} parent=75 // pred_fallthru
          _
      $region76: #{rcab_forward.1} parent=5 // pred_fallthru
        _
    $region6: #{rcab_forward.1} parent=1 // loop_footer
      %s26 = sadd.s32 1, %s22
    $region7: #{rcab_forward.1} parent=1 // loop_footer_branch
      %21 = sbr.rel target = $region3
    $region8: #{rcab_forward.1} parent=1 // loop_exit
      _
    %6200 = vsyncpa [#allocation5], 1
    %s6201 = scalar_lea.sflag [#allocation5], 1
    %6202 = vsyncpa %s6201, 1
    %6203 = vsyncpa [#allocation8], 1
    %6204 = vsyncpa [#allocation6], 1
    %s6205 = scalar_lea.sflag [#allocation6], 1
    %6206 = vsyncpa %s6205, 1

</llo_original>
